<compile_context>
chip_gen: v7x
topology: tpu7x:2x2x1
jax: 0.10.0
libtpu: 0.0.40
codegen_flags: <defaults>
</compile_context>

<pallas_src>
import functools
import math

import jax
import jax.numpy as jnp
from jax.experimental import pallas as pl
from jax.experimental.pallas import tpu as pltpu


# ---------------------------------------------------------------------------
# Kernels
# ---------------------------------------------------------------------------

def _conv_pool_kernel(x_ref, w_ref, b_ref, o_ref, *, H, W, KC, Cout):
    """Fused 3x3 conv (3 accumulated matmuls) + bias + ReLU + 2x2 max-pool.

    x_ref : (1, H+2, W, 3*Cin) bf16  kw-expanded, zero-padded input for ONE batch
                                     element; W axis ordered [even cols | odd cols].
    w_ref : (3, 3*Cin, Cout)   bf16  one (3Cin, Cout) slab per kernel row kh.
    b_ref : (1, Cout)          f32
    o_ref : (1, H/2, W/2, Cout) bf16 pooled output.
    """
    x = x_ref[0]                                               # (H+2, W, KC) bf16
    # in-kernel im2col: accumulate the three kh-shifted slabs (dim-0 slices are
    # free; merging (H, W) -> H*W is layout-free since W % 8 == 0).
    acc = jnp.dot(x[0:H].reshape(H * W, KC), w_ref[0],
                  preferred_element_type=jnp.float32)
    acc = acc + jnp.dot(x[1:H + 1].reshape(H * W, KC), w_ref[1],
                        preferred_element_type=jnp.float32)
    acc = acc + jnp.dot(x[2:H + 2].reshape(H * W, KC), w_ref[2],
                        preferred_element_type=jnp.float32)
    y = jnp.maximum(acc + b_ref[...], 0.0)                     # (H*W, Cout) f32

    # 2x2 max-pool.  Row r = h*W + j (j = reordered column index).  Viewed as
    # (H/2, 2W, Cout), dim1 = (h%2)*W + j, so the H-direction pool is two
    # 8-aligned sublane slices; the even/odd W partners sit W/2 apart in dim1,
    # paired with one sublane roll (XLU) and an offset-0 slice.
    y3 = y.reshape(H // 2, 2 * W, Cout)
    zh = jnp.maximum(y3[:, :W, :], y3[:, W:, :])               # pool over h
    zw = jnp.maximum(zh, pltpu.roll(zh, shift=W // 2, axis=1)) # pool over w
    o_ref[0] = zw[:, :W // 2, :].astype(o_ref.dtype)


def _mha_block_kernel(x_ref, wqkv_ref, bqkv_ref, wout_ref, bout_ref, g_ref,
                      o_ref, *, num_heads, hd, scale):
    """Whole MultiHeadAttention module for one batch element, fused:
         qkv  = x @ Wqkv + b            (single (S,C)@(C,3*nh*hd) matmul)
         per-head exact-softmax attention (heads in 128-aligned lane slices)
         y    = concat(heads) @ Wout + b
         out  = gamma * y + x           (residual)
    Per-head dims are zero-padded to hd=128 lanes at init (numerically exact).
    """
    x = x_ref[0]                                               # (S, C) bf16
    qkv = jnp.dot(x, wqkv_ref[...], preferred_element_type=jnp.float32)
    qkv = (qkv + bqkv_ref[...]).astype(jnp.bfloat16)           # (S, 3*nh*hd)

    nh = num_heads
    heads = []
    for h in range(nh):                                        # static, nh = 4
        q = qkv[:, h * hd:(h + 1) * hd]                        # (S, hd) bf16
        k = qkv[:, (nh + h) * hd:(nh + h + 1) * hd]
        v = qkv[:, (2 * nh + h) * hd:(2 * nh + h + 1) * hd]
        # scores: contract the hd dim of both (no transposed copy materialized)
        s = jax.lax.dot_general(q, k, (((1,), (1,)), ((), ())),
                                preferred_element_type=jnp.float32) * scale
        s = s - jnp.max(s, axis=-1, keepdims=True)
        e = jnp.exp(s)
        p = e / jnp.sum(e, axis=-1, keepdims=True)             # exact softmax (f32)
        heads.append(jnp.dot(p.astype(jnp.bfloat16), v,
                             preferred_element_type=jnp.float32).astype(jnp.bfloat16))
    attn = jnp.concatenate(heads, axis=-1)                     # (S, nh*hd) bf16

    y = jnp.dot(attn, wout_ref[...], preferred_element_type=jnp.float32)
    y = y + bout_ref[...]
    o_ref[0] = (g_ref[0, 0] * y + x.astype(jnp.float32)).astype(o_ref.dtype)


def _mlp_head_kernel(x_ref, w1_ref, b1_ref, w2_ref, b2_ref, o_ref):
    h = jnp.dot(x_ref[...], w1_ref[...], preferred_element_type=jnp.float32)
    h = jnp.maximum(h + b1_ref[...], 0.0).astype(jnp.bfloat16)
    # TODO(synk): nn.Dropout(0.5) is identity in eval mode; training dropout omitted.
    o_ref[...] = jnp.dot(h, w2_ref[...],
                         preferred_element_type=jnp.float32) + b2_ref[...]


# ---------------------------------------------------------------------------
# Pallas wrappers
# ---------------------------------------------------------------------------

def conv3x3_relu_pool(x_nhwc, w3, b2):
    """conv(3x3, pad=1) -> ReLU -> maxpool(2,2).  x_nhwc bf16 -> bf16."""
    B, H, W, Cin = x_nhwc.shape
    KC, Cout = w3.shape[1], w3.shape[2]

    # kw-window im2col only (3x expansion, bf16); the kh shifts + pooling happen
    # in-kernel.  Output columns are ordered evens-then-odds so the in-kernel
    # pool reduces to aligned slices.
    xp = jnp.pad(x_nhwc, ((0, 0), (1, 1), (1, 1), (0, 0)))     # zero pad

    def win(off):  # off=0 -> even output cols, off=1 -> odd output cols
        return jnp.concatenate(
            [xp[:, :, dw + off:dw + off + W - 1:2, :] for dw in range(3)],
            axis=-1)

    xw = jnp.concatenate([win(0), win(1)], axis=2)             # (B, H+2, W, 3Cin)

    return pl.pallas_call(
        functools.partial(_conv_pool_kernel, H=H, W=W, KC=KC, Cout=Cout),
        grid=(B,),
        in_specs=[
            pl.BlockSpec((1, H + 2, W, KC), lambda i: (i, 0, 0, 0)),
            pl.BlockSpec((3, KC, Cout), lambda i: (0, 0, 0)),
            pl.BlockSpec((1, Cout), lambda i: (0, 0)),
        ],
        out_specs=pl.BlockSpec((1, H // 2, W // 2, Cout), lambda i: (i, 0, 0, 0)),
        out_shape=jax.ShapeDtypeStruct((B, H // 2, W // 2, Cout), jnp.bfloat16),
        compiler_params=pltpu.CompilerParams(dimension_semantics=("parallel",)),
    )(xw, w3, b2)


def mha_block(x_bsc, p, num_heads):
    """Fused MultiHeadAttention module.  x_bsc: (B, S, C) bf16 -> (B, S, C) bf16."""
    B, S, C = x_bsc.shape
    hd = p['w_qkv'].shape[1] // (3 * num_heads)                # padded head width (128)
    scale = 1.0 / math.sqrt(C // num_heads)                    # real head dim
    return pl.pallas_call(
        functools.partial(_mha_block_kernel, num_heads=num_heads, hd=hd, scale=scale),
        grid=(B,),
        in_specs=[
            pl.BlockSpec((1, S, C), lambda i: (i, 0, 0)),
            pl.BlockSpec(p['w_qkv'].shape, lambda i: (0, 0)),
            pl.BlockSpec(p['b_qkv'].shape, lambda i: (0, 0)),
            pl.BlockSpec(p['w_out'].shape, lambda i: (0, 0)),
            pl.BlockSpec(p['b_out'].shape, lambda i: (0, 0)),
            pl.BlockSpec((1, 1), lambda i: (0, 0)),
        ],
        out_specs=pl.BlockSpec((1, S, C), lambda i: (i, 0, 0)),
        out_shape=jax.ShapeDtypeStruct((B, S, C), jnp.bfloat16),
        compiler_params=pltpu.CompilerParams(dimension_semantics=("parallel",)),
    )(x_bsc, p['w_qkv'], p['b_qkv'], p['w_out'], p['b_out'], p['gamma'])


def mlp_head(x, w1, b1, w2, b2):
    M, K = x.shape
    H1, N = w1.shape[1], w2.shape[1]
    return pl.pallas_call(
        _mlp_head_kernel,
        grid=(1,),
        in_specs=[
            pl.BlockSpec((M, K), lambda i: (0, 0)),
            pl.BlockSpec((K, H1), lambda i: (0, 0)),
            pl.BlockSpec((1, H1), lambda i: (0, 0)),
            pl.BlockSpec((H1, N), lambda i: (0, 0)),
            pl.BlockSpec((1, N), lambda i: (0, 0)),
        ],
        out_specs=pl.BlockSpec((M, N), lambda i: (0, 0)),
        out_shape=jax.ShapeDtypeStruct((M, N), jnp.float32),
    )(x, w1, b1, w2, b2)


# ---------------------------------------------------------------------------
# Model forward
# ---------------------------------------------------------------------------

def forward(params, x_nchw):
    # NCHW -> NHWC and cast to bf16 once; all matmul operands are bf16, while
    # accumulation / bias / softmax / residual stay f32 inside the kernels.
    x = jnp.transpose(x_nchw, (0, 2, 3, 1)).astype(jnp.bfloat16)
    x = conv3x3_relu_pool(x, *params['conv1'])                 # (B, 16, 16, 32)
    x = conv3x3_relu_pool(x, *params['conv2'])                 # (B,  8,  8, 64)
    B, H, W, C = x.shape
    x = mha_block(x.reshape(B, H * W, C), params['attn1'], num_heads=4)
    x = conv3x3_relu_pool(x.reshape(B, H, W, C), *params['conv3'])   # (B, 4, 4, 128)
    B, H, W, C = x.shape
    x = mha_block(x.reshape(B, H * W, C), params['attn2'], num_heads=4)
    # fc1's weight rows were permuted at init to accept this (S, C) flatten
    # order directly, so no NHWC->NCHW transpose is needed here.
    flat = x.reshape(B, H * W * C)                             # (B, 2048) bf16
    return mlp_head(flat, *params['fc1'], *params['fc2'])      # (B, 10) f32


# ---------------------------------------------------------------------------
# Deterministic parameter init (shapes follow the PyTorch __init__), with:
#   * the 1x1-conv q/k/v and the in_proj affine maps folded into one (C, 3C) map,
#     then each head's Dh zero-padded to 128 lanes,
#   * the PyTorch NCHW flatten permutation folded into fc1's weight rows,
#   * all matmul weights stored in bf16, biases in f32 (cast once, not per call).
# ---------------------------------------------------------------------------

def init_params(key):
    keys = iter(jax.random.split(key, 64))

    def uni(shape, bound):
        return jax.random.uniform(next(keys), shape, jnp.float32, -bound, bound)

    def conv(cin, cout):
        s = 1.0 / math.sqrt(cin * 9)
        w = uni((3, 3, cin, cout), s)                # (kh, kw, cin, cout)
        b = uni((cout,), s)
        return (w.reshape(3, 3 * cin, cout).astype(jnp.bfloat16),
                b.reshape(1, cout))

    def lin(cin, cout):
        s = 1.0 / math.sqrt(cin)
        return uni((cin, cout), s), uni((cout,), s)

    def mha(c, nh=4):
        dh, hd = c // nh, 128
        wq, bq = lin(c, c); wk, bk = lin(c, c); wv, bv = lin(c, c)        # 1x1 convs
        wiq, biq = lin(c, c); wik, bik = lin(c, c); wiv, biv = lin(c, c)  # in_proj
        w_out, b_out = lin(c, c)                                          # out_proj

        def fold(w1, b1, w2, b2):            # (x@w1+b1)@w2+b2 == x@(w1@w2) + (b1@w2+b2)
            return w1 @ w2, b1 @ w2 + b2

        w_q, b_q = fold(wq, bq, wiq, biq)
        w_k, b_k = fold(wk, bk, wik, bik)
        w_v, b_v = fold(wv, bv, wiv, biv)

        def pad_cols(w, b):                  # zero-pad each head's Dh slice to 128 lanes
            w = jnp.pad(w.reshape(c, nh, dh), ((0, 0), (0, 0), (0, hd - dh)))
            b = jnp.pad(b.reshape(nh, dh), ((0, 0), (0, hd - dh)))
            return w.reshape(c, nh * hd), b.reshape(nh * hd)

        wq_p, bq_p = pad_cols(w_q, b_q)
        wk_p, bk_p = pad_cols(w_k, b_k)
        wv_p, bv_p = pad_cols(w_v, b_v)
        w_out_p = jnp.pad(w_out.reshape(nh, dh, c), ((0, 0), (0, hd - dh), (0, 0)))
        return {
            'w_qkv': jnp.concatenate([wq_p, wk_p, wv_p], 1).astype(jnp.bfloat16),
            'b_qkv': jnp.concatenate([bq_p, bk_p, bv_p], 0).reshape(1, 3 * nh * hd),
            'w_out': w_out_p.reshape(nh * hd, c).astype(jnp.bfloat16),
            'b_out': b_out.reshape(1, c),
            'gamma': jnp.zeros((1, 1), jnp.float32),          # torch.zeros(1)
        }

    def head_fc1(c, hw, cout):
        s = 1.0 / math.sqrt(c * hw)
        w = uni((c * hw, cout), s)                  # rows in PyTorch NCHW-flatten order
        b = uni((cout,), s)
        # fold the NHWC->NCHW flatten permutation into the weight rows
        w = w.reshape(c, hw, cout).transpose(1, 0, 2).reshape(c * hw, cout)
        return w.astype(jnp.bfloat16), b.reshape(1, cout)

    def fc(cin, cout):
        w, b = lin(cin, cout)
        return w.astype(jnp.bfloat16), b.reshape(1, cout)

    return {
        'conv1': conv(3, 32),
        'conv2': conv(32, 64),
        'conv3': conv(64, 128),
        'attn1': mha(64),
        'attn2': mha(128),
        'fc1': head_fc1(128, 16, 128),
        'fc2': fc(128, 10),
    }


# ---------------------------------------------------------------------------

if __name__ == "__main__":
    key = jax.random.PRNGKey(0)
    k_x, k_p = jax.random.split(key)

    # Input must be 3x32x32 so that three 2x2 pools yield the 128*4*4 fc1 input.
    x = jax.random.normal(k_x, (2, 3, 32, 32), dtype=jnp.float32)   # NCHW
    params = init_params(k_p)

    logits = jax.jit(forward)(params, x)
    jax.block_until_ready(logits)
    assert logits.shape == (2, 10)
    print("KERNEL_OK")
</pallas_src>

<mosaic_0001>
module attributes {stable_mosaic.version = 11 : i64} {
  func.func @_conv_pool_kernel(%arg0: i32, %arg1: memref<1x34x32x9xbf16, #tpu.memory_space<vmem>>, %arg2: memref<3x9x32xbf16, #tpu.memory_space<vmem>>, %arg3: memref<1x32xf32, #tpu.memory_space<vmem>>, %arg4: memref<1x16x16x32xbf16, #tpu.memory_space<vmem>>) attributes {dimension_semantics = [#tpu.dimension_semantics<parallel>], iteration_bounds = array<i64: 2>, scalar_prefetch = 0 : i64, scratch_operands = 0 : i64, tpu.core_type = #tpu.core_type<tc>, window_params = [{transform_indices = @transform_0, window_bounds = array<i64: 1, 34, 32, 9>}, {pipeline_mode = #tpu.pipeline_mode<synchronous>, transform_indices = @transform_1, window_bounds = array<i64: 3, 9, 32>}, {pipeline_mode = #tpu.pipeline_mode<synchronous>, transform_indices = @transform_2, window_bounds = array<i64: 1, 32>}, {transform_indices = @transform_3, window_bounds = array<i64: 1, 16, 16, 32>}]} {
    %c0 = arith.constant 0 : index
    %c0_0 = arith.constant 0 : index
    %c0_1 = arith.constant 0 : index
    %c0_2 = arith.constant 0 : index
    %0 = vector.load %arg1[%c0, %c0_0, %c0_1, %c0_2] : memref<1x34x32x9xbf16, #tpu.memory_space<vmem>>, vector<1x34x32x9xbf16>
    %1 = vector.shape_cast %0 : vector<1x34x32x9xbf16> to vector<34x32x9xbf16>
    %2 = vector.extract_strided_slice %1 {offsets = [0, 0, 0], sizes = [32, 32, 9], strides = [1, 1, 1]} : vector<34x32x9xbf16> to vector<32x32x9xbf16>
    %3 = vector.shape_cast %2 : vector<32x32x9xbf16> to vector<1024x9xbf16>
    %c0_3 = arith.constant 0 : index
    %c0_4 = arith.constant 0 : index
    %c0_5 = arith.constant 0 : index
    %4 = vector.load %arg2[%c0_3, %c0_4, %c0_5] : memref<3x9x32xbf16, #tpu.memory_space<vmem>>, vector<1x9x32xbf16>
    %5 = vector.shape_cast %4 : vector<1x9x32xbf16> to vector<9x32xbf16>
    %cst = arith.constant dense<0.000000e+00> : vector<1024x32xf32>
    %6 = tpu.matmul %3, %5, %cst {dimension_numbers = #tpu.dot_dimension_numbers<[1], [0], [0], [1], [0, 0, 1, 1], [], []>} : vector<1024x9xbf16>, vector<9x32xbf16>, vector<1024x32xf32> -> vector<1024x32xf32>
    %7 = vector.extract_strided_slice %1 {offsets = [1, 0, 0], sizes = [32, 32, 9], strides = [1, 1, 1]} : vector<34x32x9xbf16> to vector<32x32x9xbf16>
    %8 = vector.shape_cast %7 : vector<32x32x9xbf16> to vector<1024x9xbf16>
    %c1 = arith.constant 1 : index
    %c0_6 = arith.constant 0 : index
    %c0_7 = arith.constant 0 : index
    %9 = vector.load %arg2[%c1, %c0_6, %c0_7] : memref<3x9x32xbf16, #tpu.memory_space<vmem>>, vector<1x9x32xbf16>
    %10 = vector.shape_cast %9 : vector<1x9x32xbf16> to vector<9x32xbf16>
    %cst_8 = arith.constant dense<0.000000e+00> : vector<1024x32xf32>
    %11 = tpu.matmul %8, %10, %cst_8 {dimension_numbers = #tpu.dot_dimension_numbers<[1], [0], [0], [1], [0, 0, 1, 1], [], []>} : vector<1024x9xbf16>, vector<9x32xbf16>, vector<1024x32xf32> -> vector<1024x32xf32>
    %12 = arith.addf %6, %11 : vector<1024x32xf32>
    %13 = vector.extract_strided_slice %1 {offsets = [2, 0, 0], sizes = [32, 32, 9], strides = [1, 1, 1]} : vector<34x32x9xbf16> to vector<32x32x9xbf16>
    %14 = vector.shape_cast %13 : vector<32x32x9xbf16> to vector<1024x9xbf16>
    %c2 = arith.constant 2 : index
    %c0_9 = arith.constant 0 : index
    %c0_10 = arith.constant 0 : index
    %15 = vector.load %arg2[%c2, %c0_9, %c0_10] : memref<3x9x32xbf16, #tpu.memory_space<vmem>>, vector<1x9x32xbf16>
    %16 = vector.shape_cast %15 : vector<1x9x32xbf16> to vector<9x32xbf16>
    %cst_11 = arith.constant dense<0.000000e+00> : vector<1024x32xf32>
    %17 = tpu.matmul %14, %16, %cst_11 {dimension_numbers = #tpu.dot_dimension_numbers<[1], [0], [0], [1], [0, 0, 1, 1], [], []>} : vector<1024x9xbf16>, vector<9x32xbf16>, vector<1024x32xf32> -> vector<1024x32xf32>
    %18 = arith.addf %12, %17 : vector<1024x32xf32>
    %c0_12 = arith.constant 0 : index
    %c0_13 = arith.constant 0 : index
    %19 = vector.load %arg3[%c0_12, %c0_13] : memref<1x32xf32, #tpu.memory_space<vmem>>, vector<1x32xf32>
    %20 = vector.broadcast %19 : vector<1x32xf32> to vector<1024x32xf32>
    %21 = arith.addf %18, %20 : vector<1024x32xf32>
    %cst_14 = arith.constant 0.000000e+00 : f32
    %22 = vector.broadcast %cst_14 : f32 to vector<1024x32xf32>
    %23 = arith.maximumf %21, %22 : vector<1024x32xf32>
    %24 = vector.shape_cast %23 : vector<1024x32xf32> to vector<16x64x32xf32>
    %25 = vector.extract_strided_slice %24 {offsets = [0, 0, 0], sizes = [16, 32, 32], strides = [1, 1, 1]} : vector<16x64x32xf32> to vector<16x32x32xf32>
    %26 = vector.extract_strided_slice %24 {offsets = [0, 32, 0], sizes = [16, 32, 32], strides = [1, 1, 1]} : vector<16x64x32xf32> to vector<16x32x32xf32>
    %27 = arith.maximumf %25, %26 : vector<16x32x32xf32>
    %c16_i32 = arith.constant 16 : i32
    %28 = tpu.dynamic_rotate %27 by %c16_i32 dim 1 : vector<16x32x32xf32>, i32 -> vector<16x32x32xf32>
    %29 = arith.maximumf %27, %28 : vector<16x32x32xf32>
    %30 = vector.extract_strided_slice %29 {offsets = [0, 0, 0], sizes = [16, 16, 32], strides = [1, 1, 1]} : vector<16x32x32xf32> to vector<16x16x32xf32>
    %31 = arith.truncf %30 : vector<16x16x32xf32> to vector<16x16x32xbf16>
    %c0_15 = arith.constant 0 : index
    %c0_16 = arith.constant 0 : index
    %c0_17 = arith.constant 0 : index
    %c0_18 = arith.constant 0 : index
    %32 = vector.load %arg4[%c0_15, %c0_16, %c0_17, %c0_18] : memref<1x16x16x32xbf16, #tpu.memory_space<vmem>>, vector<1x16x16x32xbf16>
    %33 = vector.shape_cast %32 : vector<1x16x16x32xbf16> to vector<16x16x32xbf16>
    %34 = vector.shape_cast %31 : vector<16x16x32xbf16> to vector<1x16x16x32xbf16>
    tpu.vector_store %arg4[%c0_15, %c0_16, %c0_17, %c0_18], %34 {strides = array<i32>} : memref<1x16x16x32xbf16, #tpu.memory_space<vmem>>, vector<1x16x16x32xbf16>,
    return
  }
  func.func @transform_0(%arg0: i32) -> (i32, i32, i32, i32) {
    %c0_i32 = arith.constant 0 : i32
    %c0_i32_0 = arith.constant 0 : i32
    %c0_i32_1 = arith.constant 0 : i32
    %c0_i32_2 = arith.constant 0 : i32
    return %arg0, %c0_i32, %c0_i32_0, %c0_i32_1 : i32, i32, i32, i32
  }
  func.func @transform_1(%arg0: i32) -> (i32, i32, i32) {
    %c0_i32 = arith.constant 0 : i32
    %c0_i32_0 = arith.constant 0 : i32
    %c0_i32_1 = arith.constant 0 : i32
    %c0_i32_2 = arith.constant 0 : i32
    return %c0_i32, %c0_i32_0, %c0_i32_1 : i32, i32, i32
  }
  func.func @transform_2(%arg0: i32) -> (i32, i32) {
    %c0_i32 = arith.constant 0 : i32
    %c0_i32_0 = arith.constant 0 : i32
    %c0_i32_1 = arith.constant 0 : i32
    return %c0_i32, %c0_i32_0 : i32, i32
  }
  func.func @transform_3(%arg0: i32) -> (i32, i32, i32, i32) {
    %c0_i32 = arith.constant 0 : i32
    %c0_i32_0 = arith.constant 0 : i32
    %c0_i32_1 = arith.constant 0 : i32
    %c0_i32_2 = arith.constant 0 : i32
    return %arg0, %c0_i32, %c0_i32_0, %c0_i32_1 : i32, i32, i32, i32
  }
}

module attributes {stable_mosaic.version = 11 : i64} {
  func.func @_conv_pool_kernel(%arg0: i32, %arg1: memref<1x18x16x96xbf16, #tpu.memory_space<vmem>>, %arg2: memref<3x96x64xbf16, #tpu.memory_space<vmem>>, %arg3: memref<1x64xf32, #tpu.memory_space<vmem>>, %arg4: memref<1x8x8x64xbf16, #tpu.memory_space<vmem>>) attributes {dimension_semantics = [#tpu.dimension_semantics<parallel>], iteration_bounds = array<i64: 2>, scalar_prefetch = 0 : i64, scratch_operands = 0 : i64, tpu.core_type = #tpu.core_type<tc>, window_params = [{transform_indices = @transform_0, window_bounds = array<i64: 1, 18, 16, 96>}, {pipeline_mode = #tpu.pipeline_mode<synchronous>, transform_indices = @transform_1, window_bounds = array<i64: 3, 96, 64>}, {pipeline_mode = #tpu.pipeline_mode<synchronous>, transform_indices = @transform_2, window_bounds = array<i64: 1, 64>}, {transform_indices = @transform_3, window_bounds = array<i64: 1, 8, 8, 64>}]} {
    %c0 = arith.constant 0 : index
    %c0_0 = arith.constant 0 : index
    %c0_1 = arith.constant 0 : index
    %c0_2 = arith.constant 0 : index
    %0 = vector.load %arg1[%c0, %c0_0, %c0_1, %c0_2] : memref<1x18x16x96xbf16, #tpu.memory_space<vmem>>, vector<1x18x16x96xbf16>
    %1 = vector.shape_cast %0 : vector<1x18x16x96xbf16> to vector<18x16x96xbf16>
    %2 = vector.extract_strided_slice %1 {offsets = [0, 0, 0], sizes = [16, 16, 96], strides = [1, 1, 1]} : vector<18x16x96xbf16> to vector<16x16x96xbf16>
    %3 = vector.shape_cast %2 : vector<16x16x96xbf16> to vector<256x96xbf16>
    %c0_3 = arith.constant 0 : index
    %c0_4 = arith.constant 0 : index
    %c0_5 = arith.constant 0 : index
    %4 = vector.load %arg2[%c0_3, %c0_4, %c0_5] : memref<3x96x64xbf16, #tpu.memory_space<vmem>>, vector<1x96x64xbf16>
    %5 = vector.shape_cast %4 : vector<1x96x64xbf16> to vector<96x64xbf16>
    %cst = arith.constant dense<0.000000e+00> : vector<256x64xf32>
    %6 = tpu.matmul %3, %5, %cst {dimension_numbers = #tpu.dot_dimension_numbers<[1], [0], [0], [1], [0, 0, 1, 1], [], []>} : vector<256x96xbf16>, vector<96x64xbf16>, vector<256x64xf32> -> vector<256x64xf32>
    %7 = vector.extract_strided_slice %1 {offsets = [1, 0, 0], sizes = [16, 16, 96], strides = [1, 1, 1]} : vector<18x16x96xbf16> to vector<16x16x96xbf16>
    %8 = vector.shape_cast %7 : vector<16x16x96xbf16> to vector<256x96xbf16>
    %c1 = arith.constant 1 : index
    %c0_6 = arith.constant 0 : index
    %c0_7 = arith.constant 0 : index
    %9 = vector.load %arg2[%c1, %c0_6, %c0_7] : memref<3x96x64xbf16, #tpu.memory_space<vmem>>, vector<1x96x64xbf16>
    %10 = vector.shape_cast %9 : vector<1x96x64xbf16> to vector<96x64xbf16>
    %cst_8 = arith.constant dense<0.000000e+00> : vector<256x64xf32>
    %11 = tpu.matmul %8, %10, %cst_8 {dimension_numbers = #tpu.dot_dimension_numbers<[1], [0], [0], [1], [0, 0, 1, 1], [], []>} : vector<256x96xbf16>, vector<96x64xbf16>, vector<256x64xf32> -> vector<256x64xf32>
    %12 = arith.addf %6, %11 : vector<256x64xf32>
    %13 = vector.extract_strided_slice %1 {offsets = [2, 0, 0], sizes = [16, 16, 96], strides = [1, 1, 1]} : vector<18x16x96xbf16> to vector<16x16x96xbf16>
    %14 = vector.shape_cast %13 : vector<16x16x96xbf16> to vector<256x96xbf16>
    %c2 = arith.constant 2 : index
    %c0_9 = arith.constant 0 : index
    %c0_10 = arith.constant 0 : index
    %15 = vector.load %arg2[%c2, %c0_9, %c0_10] : memref<3x96x64xbf16, #tpu.memory_space<vmem>>, vector<1x96x64xbf16>
    %16 = vector.shape_cast %15 : vector<1x96x64xbf16> to vector<96x64xbf16>
    %cst_11 = arith.constant dense<0.000000e+00> : vector<256x64xf32>
    %17 = tpu.matmul %14, %16, %cst_11 {dimension_numbers = #tpu.dot_dimension_numbers<[1], [0], [0], [1], [0, 0, 1, 1], [], []>} : vector<256x96xbf16>, vector<96x64xbf16>, vector<256x64xf32> -> vector<256x64xf32>
    %18 = arith.addf %12, %17 : vector<256x64xf32>
    %c0_12 = arith.constant 0 : index
    %c0_13 = arith.constant 0 : index
    %19 = vector.load %arg3[%c0_12, %c0_13] : memref<1x64xf32, #tpu.memory_space<vmem>>, vector<1x64xf32>
    %20 = vector.broadcast %19 : vector<1x64xf32> to vector<256x64xf32>
    %21 = arith.addf %18, %20 : vector<256x64xf32>
    %cst_14 = arith.constant 0.000000e+00 : f32
    %22 = vector.broadcast %cst_14 : f32 to vector<256x64xf32>
    %23 = arith.maximumf %21, %22 : vector<256x64xf32>
    %24 = vector.shape_cast %23 : vector<256x64xf32> to vector<8x32x64xf32>
    %25 = vector.extract_strided_slice %24 {offsets = [0, 0, 0], sizes = [8, 16, 64], strides = [1, 1, 1]} : vector<8x32x64xf32> to vector<8x16x64xf32>
    %26 = vector.extract_strided_slice %24 {offsets = [0, 16, 0], sizes = [8, 16, 64], strides = [1, 1, 1]} : vector<8x32x64xf32> to vector<8x16x64xf32>
    %27 = arith.maximumf %25, %26 : vector<8x16x64xf32>
    %c8_i32 = arith.constant 8 : i32
    %28 = tpu.dynamic_rotate %27 by %c8_i32 dim 1 : vector<8x16x64xf32>, i32 -> vector<8x16x64xf32>
    %29 = arith.maximumf %27, %28 : vector<8x16x64xf32>
    %30 = vector.extract_strided_slice %29 {offsets = [0, 0, 0], sizes = [8, 8, 64], strides = [1, 1, 1]} : vector<8x16x64xf32> to vector<8x8x64xf32>
    %31 = arith.truncf %30 : vector<8x8x64xf32> to vector<8x8x64xbf16>
    %c0_15 = arith.constant 0 : index
    %c0_16 = arith.constant 0 : index
    %c0_17 = arith.constant 0 : index
    %c0_18 = arith.constant 0 : index
    %32 = vector.load %arg4[%c0_15, %c0_16, %c0_17, %c0_18] : memref<1x8x8x64xbf16, #tpu.memory_space<vmem>>, vector<1x8x8x64xbf16>
    %33 = vector.shape_cast %32 : vector<1x8x8x64xbf16> to vector<8x8x64xbf16>
    %34 = vector.shape_cast %31 : vector<8x8x64xbf16> to vector<1x8x8x64xbf16>
    tpu.vector_store %arg4[%c0_15, %c0_16, %c0_17, %c0_18], %34 {strides = array<i32>} : memref<1x8x8x64xbf16, #tpu.memory_space<vmem>>, vector<1x8x8x64xbf16>,
    return
  }
  func.func @transform_0(%arg0: i32) -> (i32, i32, i32, i32) {
    %c0_i32 = arith.constant 0 : i32
    %c0_i32_0 = arith.constant 0 : i32
    %c0_i32_1 = arith.constant 0 : i32
    %c0_i32_2 = arith.constant 0 : i32
    return %arg0, %c0_i32, %c0_i32_0, %c0_i32_1 : i32, i32, i32, i32
  }
  func.func @transform_1(%arg0: i32) -> (i32, i32, i32) {
    %c0_i32 = arith.constant 0 : i32
    %c0_i32_0 = arith.constant 0 : i32
    %c0_i32_1 = arith.constant 0 : i32
    %c0_i32_2 = arith.constant 0 : i32
    return %c0_i32, %c0_i32_0, %c0_i32_1 : i32, i32, i32
  }
  func.func @transform_2(%arg0: i32) -> (i32, i32) {
    %c0_i32 = arith.constant 0 : i32
    %c0_i32_0 = arith.constant 0 : i32
    %c0_i32_1 = arith.constant 0 : i32
    return %c0_i32, %c0_i32_0 : i32, i32
  }
  func.func @transform_3(%arg0: i32) -> (i32, i32, i32, i32) {
    %c0_i32 = arith.constant 0 : i32
    %c0_i32_0 = arith.constant 0 : i32
    %c0_i32_1 = arith.constant 0 : i32
    %c0_i32_2 = arith.constant 0 : i32
    return %arg0, %c0_i32, %c0_i32_0, %c0_i32_1 : i32, i32, i32, i32
  }
}

module attributes {stable_mosaic.version = 11 : i64} {
  func.func @_mha_block_kernel(%arg0: i32, %arg1: memref<1x64x64xbf16, #tpu.memory_space<vmem>>, %arg2: memref<64x1536xbf16, #tpu.memory_space<vmem>>, %arg3: memref<1x1536xf32, #tpu.memory_space<vmem>>, %arg4: memref<512x64xbf16, #tpu.memory_space<vmem>>, %arg5: memref<1x64xf32, #tpu.memory_space<vmem>>, %arg6: memref<1x1xf32, #tpu.memory_space<vmem>>, %arg7: memref<1x64x64xbf16, #tpu.memory_space<vmem>>) attributes {dimension_semantics = [#tpu.dimension_semantics<parallel>], iteration_bounds = array<i64: 2>, scalar_prefetch = 0 : i64, scratch_operands = 0 : i64, tpu.core_type = #tpu.core_type<tc>, window_params = [{transform_indices = @transform_0, window_bounds = array<i64: 1, 64, 64>}, {pipeline_mode = #tpu.pipeline_mode<synchronous>, transform_indices = @transform_1, window_bounds = array<i64: 64, 1536>}, {pipeline_mode = #tpu.pipeline_mode<synchronous>, transform_indices = @transform_2, window_bounds = array<i64: 1, 1536>}, {pipeline_mode = #tpu.pipeline_mode<synchronous>, transform_indices = @transform_3, window_bounds = array<i64: 512, 64>}, {pipeline_mode = #tpu.pipeline_mode<synchronous>, transform_indices = @transform_4, window_bounds = array<i64: 1, 64>}, {pipeline_mode = #tpu.pipeline_mode<synchronous>, transform_indices = @transform_5, window_bounds = array<i64: 1, 1>}, {transform_indices = @transform_6, window_bounds = array<i64: 1, 64, 64>}]} {
    %c0 = arith.constant 0 : index
    %c0_0 = arith.constant 0 : index
    %c0_1 = arith.constant 0 : index
    %0 = vector.load %arg1[%c0, %c0_0, %c0_1] : memref<1x64x64xbf16, #tpu.memory_space<vmem>>, vector<1x64x64xbf16>
    %1 = vector.shape_cast %0 : vector<1x64x64xbf16> to vector<64x64xbf16>
    %c0_2 = arith.constant 0 : index
    %c0_3 = arith.constant 0 : index
    %2 = vector.load %arg2[%c0_2, %c0_3] : memref<64x1536xbf16, #tpu.memory_space<vmem>>, vector<64x1536xbf16>
    %cst = arith.constant dense<0.000000e+00> : vector<64x1536xf32>
    %3 = tpu.matmul %1, %2, %cst {dimension_numbers = #tpu.dot_dimension_numbers<[1], [0], [0], [1], [0, 0, 1, 1], [], []>} : vector<64x64xbf16>, vector<64x1536xbf16>, vector<64x1536xf32> -> vector<64x1536xf32>
    %c0_4 = arith.constant 0 : index
    %c0_5 = arith.constant 0 : index
    %4 = vector.load %arg3[%c0_4, %c0_5] : memref<1x1536xf32, #tpu.memory_space<vmem>>, vector<1x1536xf32>
    %5 = vector.broadcast %4 : vector<1x1536xf32> to vector<64x1536xf32>
    %6 = arith.addf %3, %5 : vector<64x1536xf32>
    %7 = arith.truncf %6 : vector<64x1536xf32> to vector<64x1536xbf16>
    %8 = vector.extract_strided_slice %7 {offsets = [0, 0], sizes = [64, 128], strides = [1, 1]} : vector<64x1536xbf16> to vector<64x128xbf16>
    %9 = vector.extract_strided_slice %7 {offsets = [0, 512], sizes = [64, 128], strides = [1, 1]} : vector<64x1536xbf16> to vector<64x128xbf16>
    %10 = vector.extract_strided_slice %7 {offsets = [0, 1024], sizes = [64, 128], strides = [1, 1]} : vector<64x1536xbf16> to vector<64x128xbf16>
    %cst_6 = arith.constant dense<0.000000e+00> : vector<64x64xf32>
    %11 = tpu.matmul %8, %9, %cst_6 {dimension_numbers = #tpu.dot_dimension_numbers<[1], [1], [0], [0], [0, 0, 1, 0], [], []>} : vector<64x128xbf16>, vector<64x128xbf16>, vector<64x64xf32> -> vector<64x64xf32>
    %cst_7 = arith.constant 2.500000e-01 : f32
    %12 = vector.broadcast %cst_7 : f32 to vector<64x64xf32>
    %13 = arith.mulf %11, %12 : vector<64x64xf32>
    %cst_8 = arith.constant dense<0xFF800000> : vector<64xf32>
    %14 = vector.multi_reduction <maximumf>, %13, %cst_8 [1] : vector<64x64xf32> to vector<64xf32>
    %15 = vector.shape_cast %14 : vector<64xf32> to vector<64x1xf32>
    %16 = vector.broadcast %15 : vector<64x1xf32> to vector<64x64xf32>
    %17 = arith.subf %13, %16 : vector<64x64xf32>
    %18 = math.exp %17 : vector<64x64xf32>
    %cst_9 = arith.constant dense<0.000000e+00> : vector<64xf32>
    %19 = vector.multi_reduction <add>, %18, %cst_9 [1] : vector<64x64xf32> to vector<64xf32>
    %20 = vector.shape_cast %19 : vector<64xf32> to vector<64x1xf32>
    %21 = vector.broadcast %20 : vector<64x1xf32> to vector<64x64xf32>
    %22 = arith.divf %18, %21 : vector<64x64xf32>
    %23 = arith.truncf %22 : vector<64x64xf32> to vector<64x64xbf16>
    %cst_10 = arith.constant dense<0.000000e+00> : vector<64x128xf32>
    %24 = tpu.matmul %23, %10, %cst_10 {dimension_numbers = #tpu.dot_dimension_numbers<[1], [0], [0], [1], [0, 0, 1, 1], [], []>} : vector<64x64xbf16>, vector<64x128xbf16>, vector<64x128xf32> -> vector<64x128xf32>
    %25 = arith.truncf %24 : vector<64x128xf32> to vector<64x128xbf16>
    %26 = vector.extract_strided_slice %7 {offsets = [0, 128], sizes = [64, 128], strides = [1, 1]} : vector<64x1536xbf16> to vector<64x128xbf16>
    %27 = vector.extract_strided_slice %7 {offsets = [0, 640], sizes = [64, 128], strides = [1, 1]} : vector<64x1536xbf16> to vector<64x128xbf16>
    %28 = vector.extract_strided_slice %7 {offsets = [0, 1152], sizes = [64, 128], strides = [1, 1]} : vector<64x1536xbf16> to vector<64x128xbf16>
    %cst_11 = arith.constant dense<0.000000e+00> : vector<64x64xf32>
    %29 = tpu.matmul %26, %27, %cst_11 {dimension_numbers = #tpu.dot_dimension_numbers<[1], [1], [0], [0], [0, 0, 1, 0], [], []>} : vector<64x128xbf16>, vector<64x128xbf16>, vector<64x64xf32> -> vector<64x64xf32>
    %cst_12 = arith.constant 2.500000e-01 : f32
    %30 = vector.broadcast %cst_12 : f32 to vector<64x64xf32>
    %31 = arith.mulf %29, %30 : vector<64x64xf32>
    %cst_13 = arith.constant dense<0xFF800000> : vector<64xf32>
    %32 = vector.multi_reduction <maximumf>, %31, %cst_13 [1] : vector<64x64xf32> to vector<64xf32>
    %33 = vector.shape_cast %32 : vector<64xf32> to vector<64x1xf32>
    %34 = vector.broadcast %33 : vector<64x1xf32> to vector<64x64xf32>
    %35 = arith.subf %31, %34 : vector<64x64xf32>
    %36 = math.exp %35 : vector<64x64xf32>
    %cst_14 = arith.constant dense<0.000000e+00> : vector<64xf32>
    %37 = vector.multi_reduction <add>, %36, %cst_14 [1] : vector<64x64xf32> to vector<64xf32>
    %38 = vector.shape_cast %37 : vector<64xf32> to vector<64x1xf32>
    %39 = vector.broadcast %38 : vector<64x1xf32> to vector<64x64xf32>
    %40 = arith.divf %36, %39 : vector<64x64xf32>
    %41 = arith.truncf %40 : vector<64x64xf32> to vector<64x64xbf16>
    %cst_15 = arith.constant dense<0.000000e+00> : vector<64x128xf32>
    %42 = tpu.matmul %41, %28, %cst_15 {dimension_numbers = #tpu.dot_dimension_numbers<[1], [0], [0], [1], [0, 0, 1, 1], [], []>} : vector<64x64xbf16>, vector<64x128xbf16>, vector<64x128xf32> -> vector<64x128xf32>
    %43 = arith.truncf %42 : vector<64x128xf32> to vector<64x128xbf16>
    %44 = vector.extract_strided_slice %7 {offsets = [0, 256], sizes = [64, 128], strides = [1, 1]} : vector<64x1536xbf16> to vector<64x128xbf16>
    %45 = vector.extract_strided_slice %7 {offsets = [0, 768], sizes = [64, 128], strides = [1, 1]} : vector<64x1536xbf16> to vector<64x128xbf16>
    %46 = vector.extract_strided_slice %7 {offsets = [0, 1280], sizes = [64, 128], strides = [1, 1]} : vector<64x1536xbf16> to vector<64x128xbf16>
    %cst_16 = arith.constant dense<0.000000e+00> : vector<64x64xf32>
    %47 = tpu.matmul %44, %45, %cst_16 {dimension_numbers = #tpu.dot_dimension_numbers<[1], [1], [0], [0], [0, 0, 1, 0], [], []>} : vector<64x128xbf16>, vector<64x128xbf16>, vector<64x64xf32> -> vector<64x64xf32>
    %cst_17 = arith.constant 2.500000e-01 : f32
    %48 = vector.broadcast %cst_17 : f32 to vector<64x64xf32>
    %49 = arith.mulf %47, %48 : vector<64x64xf32>
    %cst_18 = arith.constant dense<0xFF800000> : vector<64xf32>
    %50 = vector.multi_reduction <maximumf>, %49, %cst_18 [1] : vector<64x64xf32> to vector<64xf32>
    %51 = vector.shape_cast %50 : vector<64xf32> to vector<64x1xf32>
    %52 = vector.broadcast %51 : vector<64x1xf32> to vector<64x64xf32>
    %53 = arith.subf %49, %52 : vector<64x64xf32>
    %54 = math.exp %53 : vector<64x64xf32>
    %cst_19 = arith.constant dense<0.000000e+00> : vector<64xf32>
    %55 = vector.multi_reduction <add>, %54, %cst_19 [1] : vector<64x64xf32> to vector<64xf32>
    %56 = vector.shape_cast %55 : vector<64xf32> to vector<64x1xf32>
    %57 = vector.broadcast %56 : vector<64x1xf32> to vector<64x64xf32>
    %58 = arith.divf %54, %57 : vector<64x64xf32>
    %59 = arith.truncf %58 : vector<64x64xf32> to vector<64x64xbf16>
    %cst_20 = arith.constant dense<0.000000e+00> : vector<64x128xf32>
    %60 = tpu.matmul %59, %46, %cst_20 {dimension_numbers = #tpu.dot_dimension_numbers<[1], [0], [0], [1], [0, 0, 1, 1], [], []>} : vector<64x64xbf16>, vector<64x128xbf16>, vector<64x128xf32> -> vector<64x128xf32>
    %61 = arith.truncf %60 : vector<64x128xf32> to vector<64x128xbf16>
    %62 = vector.extract_strided_slice %7 {offsets = [0, 384], sizes = [64, 128], strides = [1, 1]} : vector<64x1536xbf16> to vector<64x128xbf16>
    %63 = vector.extract_strided_slice %7 {offsets = [0, 896], sizes = [64, 128], strides = [1, 1]} : vector<64x1536xbf16> to vector<64x128xbf16>
    %64 = vector.extract_strided_slice %7 {offsets = [0, 1408], sizes = [64, 128], strides = [1, 1]} : vector<64x1536xbf16> to vector<64x128xbf16>
    %cst_21 = arith.constant dense<0.000000e+00> : vector<64x64xf32>
    %65 = tpu.matmul %62, %63, %cst_21 {dimension_numbers = #tpu.dot_dimension_numbers<[1], [1], [0], [0], [0, 0, 1, 0], [], []>} : vector<64x128xbf16>, vector<64x128xbf16>, vector<64x64xf32> -> vector<64x64xf32>
    %cst_22 = arith.constant 2.500000e-01 : f32
    %66 = vector.broadcast %cst_22 : f32 to vector<64x64xf32>
    %67 = arith.mulf %65, %66 : vector<64x64xf32>
    %cst_23 = arith.constant dense<0xFF800000> : vector<64xf32>
    %68 = vector.multi_reduction <maximumf>, %67, %cst_23 [1] : vector<64x64xf32> to vector<64xf32>
    %69 = vector.shape_cast %68 : vector<64xf32> to vector<64x1xf32>
    %70 = vector.broadcast %69 : vector<64x1xf32> to vector<64x64xf32>
    %71 = arith.subf %67, %70 : vector<64x64xf32>
    %72 = math.exp %71 : vector<64x64xf32>
    %cst_24 = arith.constant dense<0.000000e+00> : vector<64xf32>
    %73 = vector.multi_reduction <add>, %72, %cst_24 [1] : vector<64x64xf32> to vector<64xf32>
    %74 = vector.shape_cast %73 : vector<64xf32> to vector<64x1xf32>
    %75 = vector.broadcast %74 : vector<64x1xf32> to vector<64x64xf32>
    %76 = arith.divf %72, %75 : vector<64x64xf32>
    %77 = arith.truncf %76 : vector<64x64xf32> to vector<64x64xbf16>
    %cst_25 = arith.constant dense<0.000000e+00> : vector<64x128xf32>
    %78 = tpu.matmul %77, %64, %cst_25 {dimension_numbers = #tpu.dot_dimension_numbers<[1], [0], [0], [1], [0, 0, 1, 1], [], []>} : vector<64x64xbf16>, vector<64x128xbf16>, vector<64x128xf32> -> vector<64x128xf32>
    %79 = arith.truncf %78 : vector<64x128xf32> to vector<64x128xbf16>
    %80 = tpu.concatenate %25, %43, %61, %79 in 1 : vector<64x128xbf16>, vector<64x128xbf16>, vector<64x128xbf16>, vector<64x128xbf16> -> vector<64x512xbf16>
    %c0_26 = arith.constant 0 : index
    %c0_27 = arith.constant 0 : index
    %81 = vector.load %arg4[%c0_26, %c0_27] : memref<512x64xbf16, #tpu.memory_space<vmem>>, vector<512x64xbf16>
    %cst_28 = arith.constant dense<0.000000e+00> : vector<64x64xf32>
    %82 = tpu.matmul %80, %81, %cst_28 {dimension_numbers = #tpu.dot_dimension_numbers<[1], [0], [0], [1], [0, 0, 1, 1], [], []>} : vector<64x512xbf16>, vector<512x64xbf16>, vector<64x64xf32> -> vector<64x64xf32>
    %c0_29 = arith.constant 0 : index
    %c0_30 = arith.constant 0 : index
    %83 = vector.load %arg5[%c0_29, %c0_30] : memref<1x64xf32, #tpu.memory_space<vmem>>, vector<1x64xf32>
    %84 = vector.broadcast %83 : vector<1x64xf32> to vector<64x64xf32>
    %85 = arith.addf %82, %84 : vector<64x64xf32>
    %c0_31 = arith.constant 0 : index
    %c0_32 = arith.constant 0 : index
    %86 = vector.load %arg6[%c0_31, %c0_32] : memref<1x1xf32, #tpu.memory_space<vmem>>, vector<1x1xf32>
    %87 = vector.extract %86[0, 0] : f32 from vector<1x1xf32>
    %88 = vector.broadcast %87 : f32 to vector<64x64xf32>
    %89 = arith.mulf %88, %85 : vector<64x64xf32>
    %90 = arith.extf %1 : vector<64x64xbf16> to vector<64x64xf32>
    %91 = arith.addf %89, %90 : vector<64x64xf32>
    %92 = arith.truncf %91 : vector<64x64xf32> to vector<64x64xbf16>
    %c0_33 = arith.constant 0 : index
    %c0_34 = arith.constant 0 : index
    %c0_35 = arith.constant 0 : index
    %93 = vector.load %arg7[%c0_33, %c0_34, %c0_35] : memref<1x64x64xbf16, #tpu.memory_space<vmem>>, vector<1x64x64xbf16>
    %94 = vector.shape_cast %93 : vector<1x64x64xbf16> to vector<64x64xbf16>
    %95 = vector.shape_cast %92 : vector<64x64xbf16> to vector<1x64x64xbf16>
    tpu.vector_store %arg7[%c0_33, %c0_34, %c0_35], %95 {strides = array<i32>} : memref<1x64x64xbf16, #tpu.memory_space<vmem>>, vector<1x64x64xbf16>,
    return
  }
  func.func @transform_0(%arg0: i32) -> (i32, i32, i32) {
    %c0_i32 = arith.constant 0 : i32
    %c0_i32_0 = arith.constant 0 : i32
    %c0_i32_1 = arith.constant 0 : i32
    return %arg0, %c0_i32, %c0_i32_0 : i32, i32, i32
  }
  func.func @transform_1(%arg0: i32) -> (i32, i32) {
    %c0_i32 = arith.constant 0 : i32
    %c0_i32_0 = arith.constant 0 : i32
    %c0_i32_1 = arith.constant 0 : i32
    return %c0_i32, %c0_i32_0 : i32, i32
  }
  func.func @transform_2(%arg0: i32) -> (i32, i32) {
    %c0_i32 = arith.constant 0 : i32
    %c0_i32_0 = arith.constant 0 : i32
    %c0_i32_1 = arith.constant 0 : i32
    return %c0_i32, %c0_i32_0 : i32, i32
  }
  func.func @transform_3(%arg0: i32) -> (i32, i32) {
    %c0_i32 = arith.constant 0 : i32
    %c0_i32_0 = arith.constant 0 : i32
    %c0_i32_1 = arith.constant 0 : i32
    return %c0_i32, %c0_i32_0 : i32, i32
  }
  func.func @transform_4(%arg0: i32) -> (i32, i32) {
    %c0_i32 = arith.constant 0 : i32
    %c0_i32_0 = arith.constant 0 : i32
    %c0_i32_1 = arith.constant 0 : i32
    return %c0_i32, %c0_i32_0 : i32, i32
  }
  func.func @transform_5(%arg0: i32) -> (i32, i32) {
    %c0_i32 = arith.constant 0 : i32
    %c0_i32_0 = arith.constant 0 : i32
    %c0_i32_1 = arith.constant 0 : i32
    return %c0_i32, %c0_i32_0 : i32, i32
  }
  func.func @transform_6(%arg0: i32) -> (i32, i32, i32) {
    %c0_i32 = arith.constant 0 : i32
    %c0_i32_0 = arith.constant 0 : i32
    %c0_i32_1 = arith.constant 0 : i32
    return %arg0, %c0_i32, %c0_i32_0 : i32, i32, i32
  }
}

module attributes {stable_mosaic.version = 11 : i64} {
  func.func @_conv_pool_kernel(%arg0: i32, %arg1: memref<1x10x8x192xbf16, #tpu.memory_space<vmem>>, %arg2: memref<3x192x128xbf16, #tpu.memory_space<vmem>>, %arg3: memref<1x128xf32, #tpu.memory_space<vmem>>, %arg4: memref<1x4x4x128xbf16, #tpu.memory_space<vmem>>) attributes {dimension_semantics = [#tpu.dimension_semantics<parallel>], iteration_bounds = array<i64: 2>, scalar_prefetch = 0 : i64, scratch_operands = 0 : i64, tpu.core_type = #tpu.core_type<tc>, window_params = [{transform_indices = @transform_0, window_bounds = array<i64: 1, 10, 8, 192>}, {pipeline_mode = #tpu.pipeline_mode<synchronous>, transform_indices = @transform_1, window_bounds = array<i64: 3, 192, 128>}, {pipeline_mode = #tpu.pipeline_mode<synchronous>, transform_indices = @transform_2, window_bounds = array<i64: 1, 128>}, {transform_indices = @transform_3, window_bounds = array<i64: 1, 4, 4, 128>}]} {
    %c0 = arith.constant 0 : index
    %c0_0 = arith.constant 0 : index
    %c0_1 = arith.constant 0 : index
    %c0_2 = arith.constant 0 : index
    %0 = vector.load %arg1[%c0, %c0_0, %c0_1, %c0_2] : memref<1x10x8x192xbf16, #tpu.memory_space<vmem>>, vector<1x10x8x192xbf16>
    %1 = vector.shape_cast %0 : vector<1x10x8x192xbf16> to vector<10x8x192xbf16>
    %2 = vector.extract_strided_slice %1 {offsets = [0, 0, 0], sizes = [8, 8, 192], strides = [1, 1, 1]} : vector<10x8x192xbf16> to vector<8x8x192xbf16>
    %3 = vector.shape_cast %2 : vector<8x8x192xbf16> to vector<64x192xbf16>
    %c0_3 = arith.constant 0 : index
    %c0_4 = arith.constant 0 : index
    %c0_5 = arith.constant 0 : index
    %4 = vector.load %arg2[%c0_3, %c0_4, %c0_5] : memref<3x192x128xbf16, #tpu.memory_space<vmem>>, vector<1x192x128xbf16>
    %5 = vector.shape_cast %4 : vector<1x192x128xbf16> to vector<192x128xbf16>
    %cst = arith.constant dense<0.000000e+00> : vector<64x128xf32>
    %6 = tpu.matmul %3, %5, %cst {dimension_numbers = #tpu.dot_dimension_numbers<[1], [0], [0], [1], [0, 0, 1, 1], [], []>} : vector<64x192xbf16>, vector<192x128xbf16>, vector<64x128xf32> -> vector<64x128xf32>
    %7 = vector.extract_strided_slice %1 {offsets = [1, 0, 0], sizes = [8, 8, 192], strides = [1, 1, 1]} : vector<10x8x192xbf16> to vector<8x8x192xbf16>
    %8 = vector.shape_cast %7 : vector<8x8x192xbf16> to vector<64x192xbf16>
    %c1 = arith.constant 1 : index
    %c0_6 = arith.constant 0 : index
    %c0_7 = arith.constant 0 : index
    %9 = vector.load %arg2[%c1, %c0_6, %c0_7] : memref<3x192x128xbf16, #tpu.memory_space<vmem>>, vector<1x192x128xbf16>
    %10 = vector.shape_cast %9 : vector<1x192x128xbf16> to vector<192x128xbf16>
    %cst_8 = arith.constant dense<0.000000e+00> : vector<64x128xf32>
    %11 = tpu.matmul %8, %10, %cst_8 {dimension_numbers = #tpu.dot_dimension_numbers<[1], [0], [0], [1], [0, 0, 1, 1], [], []>} : vector<64x192xbf16>, vector<192x128xbf16>, vector<64x128xf32> -> vector<64x128xf32>
    %12 = arith.addf %6, %11 : vector<64x128xf32>
    %13 = vector.extract_strided_slice %1 {offsets = [2, 0, 0], sizes = [8, 8, 192], strides = [1, 1, 1]} : vector<10x8x192xbf16> to vector<8x8x192xbf16>
    %14 = vector.shape_cast %13 : vector<8x8x192xbf16> to vector<64x192xbf16>
    %c2 = arith.constant 2 : index
    %c0_9 = arith.constant 0 : index
    %c0_10 = arith.constant 0 : index
    %15 = vector.load %arg2[%c2, %c0_9, %c0_10] : memref<3x192x128xbf16, #tpu.memory_space<vmem>>, vector<1x192x128xbf16>
    %16 = vector.shape_cast %15 : vector<1x192x128xbf16> to vector<192x128xbf16>
    %cst_11 = arith.constant dense<0.000000e+00> : vector<64x128xf32>
    %17 = tpu.matmul %14, %16, %cst_11 {dimension_numbers = #tpu.dot_dimension_numbers<[1], [0], [0], [1], [0, 0, 1, 1], [], []>} : vector<64x192xbf16>, vector<192x128xbf16>, vector<64x128xf32> -> vector<64x128xf32>
    %18 = arith.addf %12, %17 : vector<64x128xf32>
    %c0_12 = arith.constant 0 : index
    %c0_13 = arith.constant 0 : index
    %19 = vector.load %arg3[%c0_12, %c0_13] : memref<1x128xf32, #tpu.memory_space<vmem>>, vector<1x128xf32>
    %20 = vector.broadcast %19 : vector<1x128xf32> to vector<64x128xf32>
    %21 = arith.addf %18, %20 : vector<64x128xf32>
    %cst_14 = arith.constant 0.000000e+00 : f32
    %22 = vector.broadcast %cst_14 : f32 to vector<64x128xf32>
    %23 = arith.maximumf %21, %22 : vector<64x128xf32>
    %24 = vector.shape_cast %23 : vector<64x128xf32> to vector<4x16x128xf32>
    %25 = vector.extract_strided_slice %24 {offsets = [0, 0, 0], sizes = [4, 8, 128], strides = [1, 1, 1]} : vector<4x16x128xf32> to vector<4x8x128xf32>
    %26 = vector.extract_strided_slice %24 {offsets = [0, 8, 0], sizes = [4, 8, 128], strides = [1, 1, 1]} : vector<4x16x128xf32> to vector<4x8x128xf32>
    %27 = arith.maximumf %25, %26 : vector<4x8x128xf32>
    %c4_i32 = arith.constant 4 : i32
    %28 = tpu.dynamic_rotate %27 by %c4_i32 dim 1 : vector<4x8x128xf32>, i32 -> vector<4x8x128xf32>
    %29 = arith.maximumf %27, %28 : vector<4x8x128xf32>
    %30 = vector.extract_strided_slice %29 {offsets = [0, 0, 0], sizes = [4, 4, 128], strides = [1, 1, 1]} : vector<4x8x128xf32> to vector<4x4x128xf32>
    %31 = arith.truncf %30 : vector<4x4x128xf32> to vector<4x4x128xbf16>
    %c0_15 = arith.constant 0 : index
    %c0_16 = arith.constant 0 : index
    %c0_17 = arith.constant 0 : index
    %c0_18 = arith.constant 0 : index
    %32 = vector.load %arg4[%c0_15, %c0_16, %c0_17, %c0_18] : memref<1x4x4x128xbf16, #tpu.memory_space<vmem>>, vector<1x4x4x128xbf16>
    %33 = vector.shape_cast %32 : vector<1x4x4x128xbf16> to vector<4x4x128xbf16>
    %34 = vector.shape_cast %31 : vector<4x4x128xbf16> to vector<1x4x4x128xbf16>
    tpu.vector_store %arg4[%c0_15, %c0_16, %c0_17, %c0_18], %34 {strides = array<i32>} : memref<1x4x4x128xbf16, #tpu.memory_space<vmem>>, vector<1x4x4x128xbf16>,
    return
  }
  func.func @transform_0(%arg0: i32) -> (i32, i32, i32, i32) {
    %c0_i32 = arith.constant 0 : i32
    %c0_i32_0 = arith.constant 0 : i32
    %c0_i32_1 = arith.constant 0 : i32
    %c0_i32_2 = arith.constant 0 : i32
    return %arg0, %c0_i32, %c0_i32_0, %c0_i32_1 : i32, i32, i32, i32
  }
  func.func @transform_1(%arg0: i32) -> (i32, i32, i32) {
    %c0_i32 = arith.constant 0 : i32
    %c0_i32_0 = arith.constant 0 : i32
    %c0_i32_1 = arith.constant 0 : i32
    %c0_i32_2 = arith.constant 0 : i32
    return %c0_i32, %c0_i32_0, %c0_i32_1 : i32, i32, i32
  }
  func.func @transform_2(%arg0: i32) -> (i32, i32) {
    %c0_i32 = arith.constant 0 : i32
    %c0_i32_0 = arith.constant 0 : i32
    %c0_i32_1 = arith.constant 0 : i32
    return %c0_i32, %c0_i32_0 : i32, i32
  }
  func.func @transform_3(%arg0: i32) -> (i32, i32, i32, i32) {
    %c0_i32 = arith.constant 0 : i32
    %c0_i32_0 = arith.constant 0 : i32
    %c0_i32_1 = arith.constant 0 : i32
    %c0_i32_2 = arith.constant 0 : i32
    return %arg0, %c0_i32, %c0_i32_0, %c0_i32_1 : i32, i32, i32, i32
  }
}

module attributes {stable_mosaic.version = 11 : i64} {
  func.func @_mha_block_kernel(%arg0: i32, %arg1: memref<1x16x128xbf16, #tpu.memory_space<vmem>>, %arg2: memref<128x1536xbf16, #tpu.memory_space<vmem>>, %arg3: memref<1x1536xf32, #tpu.memory_space<vmem>>, %arg4: memref<512x128xbf16, #tpu.memory_space<vmem>>, %arg5: memref<1x128xf32, #tpu.memory_space<vmem>>, %arg6: memref<1x1xf32, #tpu.memory_space<vmem>>, %arg7: memref<1x16x128xbf16, #tpu.memory_space<vmem>>) attributes {dimension_semantics = [#tpu.dimension_semantics<parallel>], iteration_bounds = array<i64: 2>, scalar_prefetch = 0 : i64, scratch_operands = 0 : i64, tpu.core_type = #tpu.core_type<tc>, window_params = [{transform_indices = @transform_0, window_bounds = array<i64: 1, 16, 128>}, {pipeline_mode = #tpu.pipeline_mode<synchronous>, transform_indices = @transform_1, window_bounds = array<i64: 128, 1536>}, {pipeline_mode = #tpu.pipeline_mode<synchronous>, transform_indices = @transform_2, window_bounds = array<i64: 1, 1536>}, {pipeline_mode = #tpu.pipeline_mode<synchronous>, transform_indices = @transform_3, window_bounds = array<i64: 512, 128>}, {pipeline_mode = #tpu.pipeline_mode<synchronous>, transform_indices = @transform_4, window_bounds = array<i64: 1, 128>}, {pipeline_mode = #tpu.pipeline_mode<synchronous>, transform_indices = @transform_5, window_bounds = array<i64: 1, 1>}, {transform_indices = @transform_6, window_bounds = array<i64: 1, 16, 128>}]} {
    %c0 = arith.constant 0 : index
    %c0_0 = arith.constant 0 : index
    %c0_1 = arith.constant 0 : index
    %0 = vector.load %arg1[%c0, %c0_0, %c0_1] : memref<1x16x128xbf16, #tpu.memory_space<vmem>>, vector<1x16x128xbf16>
    %1 = vector.shape_cast %0 : vector<1x16x128xbf16> to vector<16x128xbf16>
    %c0_2 = arith.constant 0 : index
    %c0_3 = arith.constant 0 : index
    %2 = vector.load %arg2[%c0_2, %c0_3] : memref<128x1536xbf16, #tpu.memory_space<vmem>>, vector<128x1536xbf16>
    %cst = arith.constant dense<0.000000e+00> : vector<16x1536xf32>
    %3 = tpu.matmul %1, %2, %cst {dimension_numbers = #tpu.dot_dimension_numbers<[1], [0], [0], [1], [0, 0, 1, 1], [], []>} : vector<16x128xbf16>, vector<128x1536xbf16>, vector<16x1536xf32> -> vector<16x1536xf32>
    %c0_4 = arith.constant 0 : index
    %c0_5 = arith.constant 0 : index
    %4 = vector.load %arg3[%c0_4, %c0_5] : memref<1x1536xf32, #tpu.memory_space<vmem>>, vector<1x1536xf32>
    %5 = vector.broadcast %4 : vector<1x1536xf32> to vector<16x1536xf32>
    %6 = arith.addf %3, %5 : vector<16x1536xf32>
    %7 = arith.truncf %6 : vector<16x1536xf32> to vector<16x1536xbf16>
    %8 = vector.extract_strided_slice %7 {offsets = [0, 0], sizes = [16, 128], strides = [1, 1]} : vector<16x1536xbf16> to vector<16x128xbf16>
    %9 = vector.extract_strided_slice %7 {offsets = [0, 512], sizes = [16, 128], strides = [1, 1]} : vector<16x1536xbf16> to vector<16x128xbf16>
    %10 = vector.extract_strided_slice %7 {offsets = [0, 1024], sizes = [16, 128], strides = [1, 1]} : vector<16x1536xbf16> to vector<16x128xbf16>
    %cst_6 = arith.constant dense<0.000000e+00> : vector<16x16xf32>
    %11 = tpu.matmul %8, %9, %cst_6 {dimension_numbers = #tpu.dot_dimension_numbers<[1], [1], [0], [0], [0, 0, 1, 0], [], []>} : vector<16x128xbf16>, vector<16x128xbf16>, vector<16x16xf32> -> vector<16x16xf32>
    %cst_7 = arith.constant 0.176776692 : f32
    %12 = vector.broadcast %cst_7 : f32 to vector<16x16xf32>
    %13 = arith.mulf %11, %12 : vector<16x16xf32>
    %cst_8 = arith.constant dense<0xFF800000> : vector<16xf32>
    %14 = vector.multi_reduction <maximumf>, %13, %cst_8 [1] : vector<16x16xf32> to vector<16xf32>
    %15 = vector.shape_cast %14 : vector<16xf32> to vector<16x1xf32>
    %16 = vector.broadcast %15 : vector<16x1xf32> to vector<16x16xf32>
    %17 = arith.subf %13, %16 : vector<16x16xf32>
    %18 = math.exp %17 : vector<16x16xf32>
    %cst_9 = arith.constant dense<0.000000e+00> : vector<16xf32>
    %19 = vector.multi_reduction <add>, %18, %cst_9 [1] : vector<16x16xf32> to vector<16xf32>
    %20 = vector.shape_cast %19 : vector<16xf32> to vector<16x1xf32>
    %21 = vector.broadcast %20 : vector<16x1xf32> to vector<16x16xf32>
    %22 = arith.divf %18, %21 : vector<16x16xf32>
    %23 = arith.truncf %22 : vector<16x16xf32> to vector<16x16xbf16>
    %cst_10 = arith.constant dense<0.000000e+00> : vector<16x128xf32>
    %24 = tpu.matmul %23, %10, %cst_10 {dimension_numbers = #tpu.dot_dimension_numbers<[1], [0], [0], [1], [0, 0, 1, 1], [], []>} : vector<16x16xbf16>, vector<16x128xbf16>, vector<16x128xf32> -> vector<16x128xf32>
    %25 = arith.truncf %24 : vector<16x128xf32> to vector<16x128xbf16>
    %26 = vector.extract_strided_slice %7 {offsets = [0, 128], sizes = [16, 128], strides = [1, 1]} : vector<16x1536xbf16> to vector<16x128xbf16>
    %27 = vector.extract_strided_slice %7 {offsets = [0, 640], sizes = [16, 128], strides = [1, 1]} : vector<16x1536xbf16> to vector<16x128xbf16>
    %28 = vector.extract_strided_slice %7 {offsets = [0, 1152], sizes = [16, 128], strides = [1, 1]} : vector<16x1536xbf16> to vector<16x128xbf16>
    %cst_11 = arith.constant dense<0.000000e+00> : vector<16x16xf32>
    %29 = tpu.matmul %26, %27, %cst_11 {dimension_numbers = #tpu.dot_dimension_numbers<[1], [1], [0], [0], [0, 0, 1, 0], [], []>} : vector<16x128xbf16>, vector<16x128xbf16>, vector<16x16xf32> -> vector<16x16xf32>
    %cst_12 = arith.constant 0.176776692 : f32
    %30 = vector.broadcast %cst_12 : f32 to vector<16x16xf32>
    %31 = arith.mulf %29, %30 : vector<16x16xf32>
    %cst_13 = arith.constant dense<0xFF800000> : vector<16xf32>
    %32 = vector.multi_reduction <maximumf>, %31, %cst_13 [1] : vector<16x16xf32> to vector<16xf32>
    %33 = vector.shape_cast %32 : vector<16xf32> to vector<16x1xf32>
    %34 = vector.broadcast %33 : vector<16x1xf32> to vector<16x16xf32>
    %35 = arith.subf %31, %34 : vector<16x16xf32>
    %36 = math.exp %35 : vector<16x16xf32>
    %cst_14 = arith.constant dense<0.000000e+00> : vector<16xf32>
    %37 = vector.multi_reduction <add>, %36, %cst_14 [1] : vector<16x16xf32> to vector<16xf32>
    %38 = vector.shape_cast %37 : vector<16xf32> to vector<16x1xf32>
    %39 = vector.broadcast %38 : vector<16x1xf32> to vector<16x16xf32>
    %40 = arith.divf %36, %39 : vector<16x16xf32>
    %41 = arith.truncf %40 : vector<16x16xf32> to vector<16x16xbf16>
    %cst_15 = arith.constant dense<0.000000e+00> : vector<16x128xf32>
    %42 = tpu.matmul %41, %28, %cst_15 {dimension_numbers = #tpu.dot_dimension_numbers<[1], [0], [0], [1], [0, 0, 1, 1], [], []>} : vector<16x16xbf16>, vector<16x128xbf16>, vector<16x128xf32> -> vector<16x128xf32>
    %43 = arith.truncf %42 : vector<16x128xf32> to vector<16x128xbf16>
    %44 = vector.extract_strided_slice %7 {offsets = [0, 256], sizes = [16, 128], strides = [1, 1]} : vector<16x1536xbf16> to vector<16x128xbf16>
    %45 = vector.extract_strided_slice %7 {offsets = [0, 768], sizes = [16, 128], strides = [1, 1]} : vector<16x1536xbf16> to vector<16x128xbf16>
    %46 = vector.extract_strided_slice %7 {offsets = [0, 1280], sizes = [16, 128], strides = [1, 1]} : vector<16x1536xbf16> to vector<16x128xbf16>
    %cst_16 = arith.constant dense<0.000000e+00> : vector<16x16xf32>
    %47 = tpu.matmul %44, %45, %cst_16 {dimension_numbers = #tpu.dot_dimension_numbers<[1], [1], [0], [0], [0, 0, 1, 0], [], []>} : vector<16x128xbf16>, vector<16x128xbf16>, vector<16x16xf32> -> vector<16x16xf32>
    %cst_17 = arith.constant 0.176776692 : f32
    %48 = vector.broadcast %cst_17 : f32 to vector<16x16xf32>
    %49 = arith.mulf %47, %48 : vector<16x16xf32>
    %cst_18 = arith.constant dense<0xFF800000> : vector<16xf32>
    %50 = vector.multi_reduction <maximumf>, %49, %cst_18 [1] : vector<16x16xf32> to vector<16xf32>
    %51 = vector.shape_cast %50 : vector<16xf32> to vector<16x1xf32>
    %52 = vector.broadcast %51 : vector<16x1xf32> to vector<16x16xf32>
    %53 = arith.subf %49, %52 : vector<16x16xf32>
    %54 = math.exp %53 : vector<16x16xf32>
    %cst_19 = arith.constant dense<0.000000e+00> : vector<16xf32>
    %55 = vector.multi_reduction <add>, %54, %cst_19 [1] : vector<16x16xf32> to vector<16xf32>
    %56 = vector.shape_cast %55 : vector<16xf32> to vector<16x1xf32>
    %57 = vector.broadcast %56 : vector<16x1xf32> to vector<16x16xf32>
    %58 = arith.divf %54, %57 : vector<16x16xf32>
    %59 = arith.truncf %58 : vector<16x16xf32> to vector<16x16xbf16>
    %cst_20 = arith.constant dense<0.000000e+00> : vector<16x128xf32>
    %60 = tpu.matmul %59, %46, %cst_20 {dimension_numbers = #tpu.dot_dimension_numbers<[1], [0], [0], [1], [0, 0, 1, 1], [], []>} : vector<16x16xbf16>, vector<16x128xbf16>, vector<16x128xf32> -> vector<16x128xf32>
    %61 = arith.truncf %60 : vector<16x128xf32> to vector<16x128xbf16>
    %62 = vector.extract_strided_slice %7 {offsets = [0, 384], sizes = [16, 128], strides = [1, 1]} : vector<16x1536xbf16> to vector<16x128xbf16>
    %63 = vector.extract_strided_slice %7 {offsets = [0, 896], sizes = [16, 128], strides = [1, 1]} : vector<16x1536xbf16> to vector<16x128xbf16>
    %64 = vector.extract_strided_slice %7 {offsets = [0, 1408], sizes = [16, 128], strides = [1, 1]} : vector<16x1536xbf16> to vector<16x128xbf16>
    %cst_21 = arith.constant dense<0.000000e+00> : vector<16x16xf32>
    %65 = tpu.matmul %62, %63, %cst_21 {dimension_numbers = #tpu.dot_dimension_numbers<[1], [1], [0], [0], [0, 0, 1, 0], [], []>} : vector<16x128xbf16>, vector<16x128xbf16>, vector<16x16xf32> -> vector<16x16xf32>
    %cst_22 = arith.constant 0.176776692 : f32
    %66 = vector.broadcast %cst_22 : f32 to vector<16x16xf32>
    %67 = arith.mulf %65, %66 : vector<16x16xf32>
    %cst_23 = arith.constant dense<0xFF800000> : vector<16xf32>
    %68 = vector.multi_reduction <maximumf>, %67, %cst_23 [1] : vector<16x16xf32> to vector<16xf32>
    %69 = vector.shape_cast %68 : vector<16xf32> to vector<16x1xf32>
    %70 = vector.broadcast %69 : vector<16x1xf32> to vector<16x16xf32>
    %71 = arith.subf %67, %70 : vector<16x16xf32>
    %72 = math.exp %71 : vector<16x16xf32>
    %cst_24 = arith.constant dense<0.000000e+00> : vector<16xf32>
    %73 = vector.multi_reduction <add>, %72, %cst_24 [1] : vector<16x16xf32> to vector<16xf32>
    %74 = vector.shape_cast %73 : vector<16xf32> to vector<16x1xf32>
    %75 = vector.broadcast %74 : vector<16x1xf32> to vector<16x16xf32>
    %76 = arith.divf %72, %75 : vector<16x16xf32>
    %77 = arith.truncf %76 : vector<16x16xf32> to vector<16x16xbf16>
    %cst_25 = arith.constant dense<0.000000e+00> : vector<16x128xf32>
    %78 = tpu.matmul %77, %64, %cst_25 {dimension_numbers = #tpu.dot_dimension_numbers<[1], [0], [0], [1], [0, 0, 1, 1], [], []>} : vector<16x16xbf16>, vector<16x128xbf16>, vector<16x128xf32> -> vector<16x128xf32>
    %79 = arith.truncf %78 : vector<16x128xf32> to vector<16x128xbf16>
    %80 = tpu.concatenate %25, %43, %61, %79 in 1 : vector<16x128xbf16>, vector<16x128xbf16>, vector<16x128xbf16>, vector<16x128xbf16> -> vector<16x512xbf16>
    %c0_26 = arith.constant 0 : index
    %c0_27 = arith.constant 0 : index
    %81 = vector.load %arg4[%c0_26, %c0_27] : memref<512x128xbf16, #tpu.memory_space<vmem>>, vector<512x128xbf16>
    %cst_28 = arith.constant dense<0.000000e+00> : vector<16x128xf32>
    %82 = tpu.matmul %80, %81, %cst_28 {dimension_numbers = #tpu.dot_dimension_numbers<[1], [0], [0], [1], [0, 0, 1, 1], [], []>} : vector<16x512xbf16>, vector<512x128xbf16>, vector<16x128xf32> -> vector<16x128xf32>
    %c0_29 = arith.constant 0 : index
    %c0_30 = arith.constant 0 : index
    %83 = vector.load %arg5[%c0_29, %c0_30] : memref<1x128xf32, #tpu.memory_space<vmem>>, vector<1x128xf32>
    %84 = vector.broadcast %83 : vector<1x128xf32> to vector<16x128xf32>
    %85 = arith.addf %82, %84 : vector<16x128xf32>
    %c0_31 = arith.constant 0 : index
    %c0_32 = arith.constant 0 : index
    %86 = vector.load %arg6[%c0_31, %c0_32] : memref<1x1xf32, #tpu.memory_space<vmem>>, vector<1x1xf32>
    %87 = vector.extract %86[0, 0] : f32 from vector<1x1xf32>
    %88 = vector.broadcast %87 : f32 to vector<16x128xf32>
    %89 = arith.mulf %88, %85 : vector<16x128xf32>
    %90 = arith.extf %1 : vector<16x128xbf16> to vector<16x128xf32>
    %91 = arith.addf %89, %90 : vector<16x128xf32>
    %92 = arith.truncf %91 : vector<16x128xf32> to vector<16x128xbf16>
    %c0_33 = arith.constant 0 : index
    %c0_34 = arith.constant 0 : index
    %c0_35 = arith.constant 0 : index
    %93 = vector.load %arg7[%c0_33, %c0_34, %c0_35] : memref<1x16x128xbf16, #tpu.memory_space<vmem>>, vector<1x16x128xbf16>
    %94 = vector.shape_cast %93 : vector<1x16x128xbf16> to vector<16x128xbf16>
    %95 = vector.shape_cast %92 : vector<16x128xbf16> to vector<1x16x128xbf16>
    tpu.vector_store %arg7[%c0_33, %c0_34, %c0_35], %95 {strides = array<i32>} : memref<1x16x128xbf16, #tpu.memory_space<vmem>>, vector<1x16x128xbf16>,
    return
  }
  func.func @transform_0(%arg0: i32) -> (i32, i32, i32) {
    %c0_i32 = arith.constant 0 : i32
    %c0_i32_0 = arith.constant 0 : i32
    %c0_i32_1 = arith.constant 0 : i32
    return %arg0, %c0_i32, %c0_i32_0 : i32, i32, i32
  }
  func.func @transform_1(%arg0: i32) -> (i32, i32) {
    %c0_i32 = arith.constant 0 : i32
    %c0_i32_0 = arith.constant 0 : i32
    %c0_i32_1 = arith.constant 0 : i32
    return %c0_i32, %c0_i32_0 : i32, i32
  }
  func.func @transform_2(%arg0: i32) -> (i32, i32) {
    %c0_i32 = arith.constant 0 : i32
    %c0_i32_0 = arith.constant 0 : i32
    %c0_i32_1 = arith.constant 0 : i32
    return %c0_i32, %c0_i32_0 : i32, i32
  }
  func.func @transform_3(%arg0: i32) -> (i32, i32) {
    %c0_i32 = arith.constant 0 : i32
    %c0_i32_0 = arith.constant 0 : i32
    %c0_i32_1 = arith.constant 0 : i32
    return %c0_i32, %c0_i32_0 : i32, i32
  }
  func.func @transform_4(%arg0: i32) -> (i32, i32) {
    %c0_i32 = arith.constant 0 : i32
    %c0_i32_0 = arith.constant 0 : i32
    %c0_i32_1 = arith.constant 0 : i32
    return %c0_i32, %c0_i32_0 : i32, i32
  }
  func.func @transform_5(%arg0: i32) -> (i32, i32) {
    %c0_i32 = arith.constant 0 : i32
    %c0_i32_0 = arith.constant 0 : i32
    %c0_i32_1 = arith.constant 0 : i32
    return %c0_i32, %c0_i32_0 : i32, i32
  }
  func.func @transform_6(%arg0: i32) -> (i32, i32, i32) {
    %c0_i32 = arith.constant 0 : i32
    %c0_i32_0 = arith.constant 0 : i32
    %c0_i32_1 = arith.constant 0 : i32
    return %arg0, %c0_i32, %c0_i32_0 : i32, i32, i32
  }
}

module attributes {stable_mosaic.version = 11 : i64} {
  func.func @_mlp_head_kernel(%arg0: i32, %arg1: memref<2x2048xbf16, #tpu.memory_space<vmem>>, %arg2: memref<2048x128xbf16, #tpu.memory_space<vmem>>, %arg3: memref<1x128xf32, #tpu.memory_space<vmem>>, %arg4: memref<128x10xbf16, #tpu.memory_space<vmem>>, %arg5: memref<1x10xf32, #tpu.memory_space<vmem>>, %arg6: memref<2x10xf32, #tpu.memory_space<vmem>>) attributes {dimension_semantics = [#tpu.dimension_semantics<arbitrary>], iteration_bounds = array<i64: 1>, scalar_prefetch = 0 : i64, scratch_operands = 0 : i64, tpu.core_type = #tpu.core_type<tc>, window_params = [{pipeline_mode = #tpu.pipeline_mode<synchronous>, transform_indices = @transform_0, window_bounds = array<i64: 2, 2048>}, {pipeline_mode = #tpu.pipeline_mode<synchronous>, transform_indices = @transform_1, window_bounds = array<i64: 2048, 128>}, {pipeline_mode = #tpu.pipeline_mode<synchronous>, transform_indices = @transform_2, window_bounds = array<i64: 1, 128>}, {pipeline_mode = #tpu.pipeline_mode<synchronous>, transform_indices = @transform_3, window_bounds = array<i64: 128, 10>}, {pipeline_mode = #tpu.pipeline_mode<synchronous>, transform_indices = @transform_4, window_bounds = array<i64: 1, 10>}, {pipeline_mode = #tpu.pipeline_mode<synchronous>, transform_indices = @transform_5, window_bounds = array<i64: 2, 10>}]} {
    %c0 = arith.constant 0 : index
    %c0_0 = arith.constant 0 : index
    %0 = vector.load %arg1[%c0, %c0_0] : memref<2x2048xbf16, #tpu.memory_space<vmem>>, vector<2x2048xbf16>
    %c0_1 = arith.constant 0 : index
    %c0_2 = arith.constant 0 : index
    %1 = vector.load %arg2[%c0_1, %c0_2] : memref<2048x128xbf16, #tpu.memory_space<vmem>>, vector<2048x128xbf16>
    %cst = arith.constant dense<0.000000e+00> : vector<2x128xf32>
    %2 = tpu.matmul %0, %1, %cst {dimension_numbers = #tpu.dot_dimension_numbers<[1], [0], [0], [1], [0, 0, 1, 1], [], []>} : vector<2x2048xbf16>, vector<2048x128xbf16>, vector<2x128xf32> -> vector<2x128xf32>
    %c0_3 = arith.constant 0 : index
    %c0_4 = arith.constant 0 : index
    %3 = vector.load %arg3[%c0_3, %c0_4] : memref<1x128xf32, #tpu.memory_space<vmem>>, vector<1x128xf32>
    %4 = vector.broadcast %3 : vector<1x128xf32> to vector<2x128xf32>
    %5 = arith.addf %2, %4 : vector<2x128xf32>
    %cst_5 = arith.constant 0.000000e+00 : f32
    %6 = vector.broadcast %cst_5 : f32 to vector<2x128xf32>
    %7 = arith.maximumf %5, %6 : vector<2x128xf32>
    %8 = arith.truncf %7 : vector<2x128xf32> to vector<2x128xbf16>
    %c0_6 = arith.constant 0 : index
    %c0_7 = arith.constant 0 : index
    %9 = vector.load %arg4[%c0_6, %c0_7] : memref<128x10xbf16, #tpu.memory_space<vmem>>, vector<128x10xbf16>
    %cst_8 = arith.constant dense<0.000000e+00> : vector<2x10xf32>
    %10 = tpu.matmul %8, %9, %cst_8 {dimension_numbers = #tpu.dot_dimension_numbers<[1], [0], [0], [1], [0, 0, 1, 1], [], []>} : vector<2x128xbf16>, vector<128x10xbf16>, vector<2x10xf32> -> vector<2x10xf32>
    %c0_9 = arith.constant 0 : index
    %c0_10 = arith.constant 0 : index
    %11 = vector.load %arg5[%c0_9, %c0_10] : memref<1x10xf32, #tpu.memory_space<vmem>>, vector<1x10xf32>
    %12 = vector.broadcast %11 : vector<1x10xf32> to vector<2x10xf32>
    %13 = arith.addf %10, %12 : vector<2x10xf32>
    %c0_11 = arith.constant 0 : index
    %c0_12 = arith.constant 0 : index
    %14 = vector.load %arg6[%c0_11, %c0_12] : memref<2x10xf32, #tpu.memory_space<vmem>>, vector<2x10xf32>
    tpu.vector_store %arg6[%c0_11, %c0_12], %13 {strides = array<i32>} : memref<2x10xf32, #tpu.memory_space<vmem>>, vector<2x10xf32>,
    return
  }
  func.func @transform_0(%arg0: i32) -> (i32, i32) {
    %c0_i32 = arith.constant 0 : i32
    %c0_i32_0 = arith.constant 0 : i32
    %c0_i32_1 = arith.constant 0 : i32
    return %c0_i32, %c0_i32_0 : i32, i32
  }
  func.func @transform_1(%arg0: i32) -> (i32, i32) {
    %c0_i32 = arith.constant 0 : i32
    %c0_i32_0 = arith.constant 0 : i32
    %c0_i32_1 = arith.constant 0 : i32
    return %c0_i32, %c0_i32_0 : i32, i32
  }
  func.func @transform_2(%arg0: i32) -> (i32, i32) {
    %c0_i32 = arith.constant 0 : i32
    %c0_i32_0 = arith.constant 0 : i32
    %c0_i32_1 = arith.constant 0 : i32
    return %c0_i32, %c0_i32_0 : i32, i32
  }
  func.func @transform_3(%arg0: i32) -> (i32, i32) {
    %c0_i32 = arith.constant 0 : i32
    %c0_i32_0 = arith.constant 0 : i32
    %c0_i32_1 = arith.constant 0 : i32
    return %c0_i32, %c0_i32_0 : i32, i32
  }
  func.func @transform_4(%arg0: i32) -> (i32, i32) {
    %c0_i32 = arith.constant 0 : i32
    %c0_i32_0 = arith.constant 0 : i32
    %c0_i32_1 = arith.constant 0 : i32
    return %c0_i32, %c0_i32_0 : i32, i32
  }
  func.func @transform_5(%arg0: i32) -> (i32, i32) {
    %c0_i32 = arith.constant 0 : i32
    %c0_i32_0 = arith.constant 0 : i32
    %c0_i32_1 = arith.constant 0 : i32
    return %c0_i32, %c0_i32_0 : i32, i32
  }
}

</mosaic_0001>

<llo_original>
// kernel: forward.7
$region0: #{forward.7}
  #allocation0 [shape = 'u32[]', space=smem, size = 0x4, offset = 0x4, fixed_abs, tag = 'smem constant byte address 0x4 - core index']
  #allocation1 [shape = 'u32[144,128]{1,0:T(1,128)}', space=vmem, size = 0x12000, scoped, tag = 'internal scratch']
  %s0 = inlined_call_operand.vmem [shape: bf16[2,18,16,96], index: 0, kind: input, shape index: {}]
  %s1 = inlined_call_operand.vmem [shape: bf16[3,96,64], index: 1, kind: input, shape index: {}]
  %s2 = inlined_call_operand.vmem [shape: f32[1,64], index: 2, kind: input, shape index: {}]
  %s3 = inlined_call_operand.vmem [shape: bf16[2,8,8,64], index: 3, kind: output, shape index: {}]
  %s4 = sld [smem:[#allocation0]]
  $region45: #{forward.7} parent=0
    _
  %s6 = ssub.s32 1, %s4
  %s7 = scalar_select 0, %s6, %s4
  loop: start=0, step=1, limit=4
  $region2: #{forward.7} parent=0 // loop_pre_header
    _
  $region3: #{forward.7} parent=0 // loop_header
    %s9 = sphi 0, %s13
    %p10 = scmp.ge.s32.totalorder %s9, 4
    %s19 = sphi 0, %s21
    %s22 = sphi 0, %s19
    %s23 = sphi 0, %s22
    %s39 = sphi 0, %s23
    %s43 = sphi 0, %s43
    %s45 = sphi 0, %s43
    %s46 = sphi 0, %s45
    %s60 = sphi 0, %s46
    %s64 = sphi 0, %s64
    %s66 = sphi 0, %s64
    %s67 = sphi 0, %s66
    %s81 = sphi 0, %s67
    %s87 = sphi 0, %s89
    %s90 = sphi 0, %s87
    %s91 = sphi 0, %s90
    %s107 = sphi 0, %s91
  $region4: #{forward.7} parent=0 // loop_header_branch
    %12 = sbr.rel (%p10) target = $region8
  $region5: #{forward.7} parent=0 // loop_body
    %s14 = ssub.s32 %s9, 1
    %s15 = ssub.s32 %s9, 2
    %s16 = sadd.s32 %s9, 1
    %s17 = ssub.s32 %s9, %s16
    %p18 = scmp.eq.s32.totalorder %s17, 0
    %s20 = sadd.s32 %s19, 1
    %s21 = scalar_select %p18, %s19, %s20
    %p24 = pneg %p18
    %p25 = scmp.eq.s32.totalorder %s9, 1
    %p26 = por %p24, %p25
    %p27 = scmp.ne.s32.totalorder %s19, %s22
    %p28 = scmp.eq.s32.totalorder %s9, 0
    %p29 = por %p27, %p28
    %p30 = scmp.ne.s32.totalorder %s19, %s22
    %p31 = scmp.eq.s32.totalorder %s14, 1
    %p32 = por %p30, %p31
    %p33 = scmp.ne.s32.totalorder %s22, %s23
    %p34 = scmp.eq.s32.totalorder %s14, 0
    %p35 = por %p33, %p34
    %p36 = scmp.ne.s32.totalorder %s22, %s23
    %p37 = scmp.eq.s32.totalorder %s15, 1
    %p38 = por %p36, %p37
    %p40 = scmp.ne.s32.totalorder %s23, %s39
    %p41 = scmp.eq.s32.totalorder %s15, 0
    %p42 = por %p40, %p41
    %s44 = sadd.s32 %s43, 1
    %p47 = scmp.eq.s32.totalorder %s9, 1
    %p48 = scmp.ne.s32.totalorder %s43, %s45
    %p49 = scmp.eq.s32.totalorder %s9, 0
    %p50 = por %p48, %p49
    %p51 = scmp.ne.s32.totalorder %s43, %s45
    %p52 = scmp.eq.s32.totalorder %s14, 1
    %p53 = por %p51, %p52
    %p54 = scmp.ne.s32.totalorder %s45, %s46
    %p55 = scmp.eq.s32.totalorder %s14, 0
    %p56 = por %p54, %p55
    %p57 = scmp.ne.s32.totalorder %s45, %s46
    %p58 = scmp.eq.s32.totalorder %s15, 1
    %p59 = por %p57, %p58
    %p61 = scmp.ne.s32.totalorder %s46, %s60
    %p62 = scmp.eq.s32.totalorder %s15, 0
    %p63 = por %p61, %p62
    %s65 = sadd.s32 %s64, 1
    %p68 = scmp.eq.s32.totalorder %s9, 1
    %p69 = scmp.ne.s32.totalorder %s64, %s66
    %p70 = scmp.eq.s32.totalorder %s9, 0
    %p71 = por %p69, %p70
    %p72 = scmp.ne.s32.totalorder %s64, %s66
    %p73 = scmp.eq.s32.totalorder %s14, 1
    %p74 = por %p72, %p73
    %p75 = scmp.ne.s32.totalorder %s66, %s67
    %p76 = scmp.eq.s32.totalorder %s14, 0
    %p77 = por %p75, %p76
    %p78 = scmp.ne.s32.totalorder %s66, %s67
    %p79 = scmp.eq.s32.totalorder %s15, 1
    %p80 = por %p78, %p79
    %p82 = scmp.ne.s32.totalorder %s67, %s81
    %p83 = scmp.eq.s32.totalorder %s15, 0
    %p84 = por %p82, %p83
    %s85 = ssub.s32 %s9, %s16
    %p86 = scmp.eq.s32.totalorder %s85, 0
    %s88 = sadd.s32 %s87, 1
    %s89 = scalar_select %p86, %s87, %s88
    %p92 = pneg %p86
    %p93 = scmp.eq.s32.totalorder %s9, 1
    %p94 = por %p92, %p93
    %p95 = scmp.ne.s32.totalorder %s87, %s90
    %p96 = scmp.eq.s32.totalorder %s9, 0
    %p97 = por %p95, %p96
    %p98 = scmp.ne.s32.totalorder %s87, %s90
    %p99 = scmp.eq.s32.totalorder %s14, 1
    %p100 = por %p98, %p99
    %p101 = scmp.ne.s32.totalorder %s90, %s91
    %p102 = scmp.eq.s32.totalorder %s14, 0
    %p103 = por %p101, %p102
    %p104 = scmp.ne.s32.totalorder %s90, %s91
    %p105 = scmp.eq.s32.totalorder %s15, 1
    %p106 = por %p104, %p105
    %p108 = scmp.ne.s32.totalorder %s91, %s107
    %p109 = scmp.eq.s32.totalorder %s15, 0
    %p110 = por %p108, %p109
    %p111 = scmp.le.s32.totalorder 1, %s9
    %p112 = scmp.lt.s32.totalorder %s9, 3
    %p113 = pnand %p111, %p112
    %p114 = pneg %p113
    // Predicated region
    $region9: #{forward.7} parent=5 // pred_check
      _
    $region10: #{forward.7} parent=5 // pred_check_branch
      %116 = sbr.rel (%p113) target = $region12
    $region11: #{forward.7} parent=5 // pred_region
      %s117 = ssub.s32 %s9, 1
      // Predicated region
      $region13: #{forward.7} parent=11 // pred_check
        %p118 = pneg %p56
      $region14: #{forward.7} parent=11 // pred_check_branch
        %120 = sbr.rel (%p118) target = $region16
      $region15: #{forward.7} parent=11 // pred_region
        _
      $region16: #{forward.7} parent=11 // pred_fallthru
        _
      // Predicated region
      $region17: #{forward.7} parent=11 // pred_check
        %p121 = pneg %p77
      $region18: #{forward.7} parent=11 // pred_check_branch
        %123 = sbr.rel (%p121) target = $region20
      $region19: #{forward.7} parent=11 // pred_region
        _
      $region20: #{forward.7} parent=11 // pred_fallthru
        _
    $region12: #{forward.7} parent=5 // pred_fallthru
      _
    %p124 = scmp.lt.s32.totalorder %s9, 2
    // Predicated region
    $region21: #{forward.7} parent=5 // pred_check
      %p125 = pneg %p124
    $region22: #{forward.7} parent=5 // pred_check_branch
      %127 = sbr.rel (%p125) target = $region24
    $region23: #{forward.7} parent=5 // pred_region
      // Predicated region
      $region25: #{forward.7} parent=23 // pred_check
        %p128 = pneg %p29
      $region26: #{forward.7} parent=23 // pred_check_branch
        %130 = sbr.rel (%p128) target = $region28
      $region27: #{forward.7} parent=23 // pred_region
        %p131 = scmp.lt.s32.totalorder %s9, 1
        %s132 = scalar_select %p131, %s9, 1
        %s133 = smul.addr %s132, 36
        %s134 = smul.addr %s133, 4
        %s135 = scalar_lea.vmem %s0, %s134
      $region28: #{forward.7} parent=23 // pred_fallthru
        _
    $region24: #{forward.7} parent=5 // pred_fallthru
      _
    %p136 = scmp.le.s32.totalorder 1, %s9
    %p137 = scmp.lt.s32.totalorder %s9, 3
    %p138 = pnand %p136, %p137
    %p139 = pneg %p138
    // Predicated region
    $region29: #{forward.7} parent=5 // pred_check
      _
    $region30: #{forward.7} parent=5 // pred_check_branch
      %141 = sbr.rel (%p138) target = $region32
    $region31: #{forward.7} parent=5 // pred_region
      %s142 = ssub.s32 %s9, 1
      %p143 = scmp.lt.s32.totalorder %s14, 1
      %s144 = scalar_select %p143, %s14, 1
      %s145 = smul.addr %s144, 36
      %s146 = smul.addr %s145, 4
      %s147 = scalar_lea.vmem %s0, %s146
      %p148 = pneg %p35
      %p149 = pneg %p32
      %p150 = pneg %p56
      %p151 = pneg %p53
      %p152 = pneg %p77
      %p153 = pneg %p74
      %p154 = pneg %p103
      %p155 = pneg %p100
      %p156 = scmp.lt.s32.totalorder %s14, 1
      %s157 = scalar_select %p156, %s14, 1
      %s158 = smul.addr %s157, 8
      %s159 = smul.addr %s158, 4
      %s160 = scalar_lea.vmem %s3, %s159
      %p161 = scmp.lt.s32.totalorder %s14, 1
      %s162 = scalar_select %p161, %s14, 1
      %s163 = smul.addr %s162, 36
      %s164 = smul.addr %s163, 4
      %s165 = scalar_lea.vmem %s0, %s164
      %p166 = scmp.lt.s32.totalorder %s14, 1
      %s167 = scalar_select %p166, %s14, 1
      %s168 = smul.addr %s167, 8
      %s169 = smul.addr %s168, 4
      %s170 = scalar_lea.vmem %s3, %s169
      %v172 = vld [vmem:[%s165] sm:$0xf]
      %v173 = vld [vmem:[%s165 + $0x4] sm:$0xf]
      %v174 = vld [vmem:[%s165 + $0x8] sm:$0xf]
      %v175 = vld [vmem:[%s165 + $0xc] sm:$0xf]
      %v176 = vld [vmem:[%s165 + $0x10] sm:$0xf]
      %v177 = vld [vmem:[%s165 + $0x14] sm:$0xf]
      %v178 = vld [vmem:[%s165 + $0x18] sm:$0xf]
      %v179 = vld [vmem:[%s165 + $0x1c] sm:$0xf]
      %v180 = vld [vmem:[%s165 + $0x20] sm:$0xf]
      %v181 = vld [vmem:[%s165 + $0x24] sm:$0xf]
      %v182 = vld [vmem:[%s165 + $0x28] sm:$0xf]
      %v183 = vld [vmem:[%s165 + $0x2c] sm:$0xf]
      %v184 = vld [vmem:[%s165 + $0x30] sm:$0xf]
      %v185 = vld [vmem:[%s165 + $0x34] sm:$0xf]
      %v186 = vld [vmem:[%s165 + $0x38] sm:$0xf]
      %v187 = vld [vmem:[%s165 + $0x3c] sm:$0xf]
      %v188 = vld [vmem:[%s165 + $0x40] sm:$0xf]
      %v189 = vld [vmem:[%s165 + $0x44] sm:$0xf]
      %v190 = vld [vmem:[%s165 + $0x48] sm:$0xf]
      %v191 = vld [vmem:[%s165 + $0x4c] sm:$0xf]
      %v192 = vld [vmem:[%s165 + $0x50] sm:$0xf]
      %v193 = vld [vmem:[%s165 + $0x54] sm:$0xf]
      %v194 = vld [vmem:[%s165 + $0x58] sm:$0xf]
      %v195 = vld [vmem:[%s165 + $0x5c] sm:$0xf]
      %v196 = vld [vmem:[%s165 + $0x60] sm:$0xf]
      %v197 = vld [vmem:[%s165 + $0x64] sm:$0xf]
      %v198 = vld [vmem:[%s165 + $0x68] sm:$0xf]
      %v199 = vld [vmem:[%s165 + $0x6c] sm:$0xf]
      %v200 = vld [vmem:[%s165 + $0x70] sm:$0xf]
      %v201 = vld [vmem:[%s165 + $0x74] sm:$0xf]
      %v202 = vld [vmem:[%s165 + $0x78] sm:$0xf]
      %v203 = vld [vmem:[%s165 + $0x7c] sm:$0xf]
      %v204 = vld [vmem:[%s165 + $0x80] sm:$0xf]
      %v205 = vld [vmem:[%s165 + $0x84] sm:$0xf]
      %v206 = vld [vmem:[%s165 + $0x88] sm:$0xf]
      %v207 = vld [vmem:[%s165 + $0x8c] sm:$0xf]
      %v208 = vld [vmem:[%s1] sm:$0xf]
      %v209 = vld [vmem:[%s1 + $0x4] sm:$0xf]
      %v210 = vld [vmem:[%s1 + $0x8] sm:$0xf]
      %v211 = vld [vmem:[%s1 + $0xc] sm:$0xf]
      %v212 = vld [vmem:[%s1 + $0x10] sm:$0xf]
      %v213 = vld [vmem:[%s1 + $0x14] sm:$0xf]
      %v214 = vld [vmem:[%s1 + $0x18] sm:$0xf]
      %v215 = vld [vmem:[%s1 + $0x1c] sm:$0xf]
      %v216 = vld [vmem:[%s1 + $0x20] sm:$0xf]
      %v217 = vld [vmem:[%s1 + $0x24] sm:$0xf]
      %v218 = vld [vmem:[%s1 + $0x28] sm:$0xf]
      %v219 = vld [vmem:[%s1 + $0x2c] sm:$0xf]
      %s220 = scalar_lea.vmem %s1, 48
      %v221 = vld [vmem:[%s220] sm:$0xf]
      %v222 = vld [vmem:[%s220 + $0x4] sm:$0xf]
      %v223 = vld [vmem:[%s220 + $0x8] sm:$0xf]
      %v224 = vld [vmem:[%s220 + $0xc] sm:$0xf]
      %v225 = vld [vmem:[%s220 + $0x10] sm:$0xf]
      %v226 = vld [vmem:[%s220 + $0x14] sm:$0xf]
      %v227 = vld [vmem:[%s220 + $0x18] sm:$0xf]
      %v228 = vld [vmem:[%s220 + $0x1c] sm:$0xf]
      %v229 = vld [vmem:[%s220 + $0x20] sm:$0xf]
      %v230 = vld [vmem:[%s220 + $0x24] sm:$0xf]
      %v231 = vld [vmem:[%s220 + $0x28] sm:$0xf]
      %v232 = vld [vmem:[%s220 + $0x2c] sm:$0xf]
      %v265 = vunpack.c.l.b16 %v174
      %v266 = vunpack.c.l.b16 %v175
      %v267 = vunpack.c.l.b16 %v176
      %v268 = vunpack.c.l.b16 %v177
      %v269 = vunpack.c.l.b16 %v178
      %v270 = vunpack.c.l.b16 %v179
      %v271 = vunpack.c.l.b16 %v180
      %v272 = vunpack.c.l.b16 %v181
      %v273 = vunpack.c.l.b16 %v182
      %v274 = vunpack.c.l.b16 %v183
      %v275 = vunpack.c.l.b16 %v184
      %v276 = vunpack.c.l.b16 %v185
      %v277 = vunpack.c.l.b16 %v186
      %v278 = vunpack.c.l.b16 %v187
      %v279 = vunpack.c.l.b16 %v188
      %v280 = vunpack.c.l.b16 %v189
      %v281 = vunpack.c.l.b16 %v190
      %v282 = vunpack.c.l.b16 %v191
      %v283 = vunpack.c.l.b16 %v192
      %v284 = vunpack.c.l.b16 %v193
      %v285 = vunpack.c.l.b16 %v194
      %v286 = vunpack.c.l.b16 %v195
      %v287 = vunpack.c.l.b16 %v196
      %v288 = vunpack.c.l.b16 %v197
      %v289 = vunpack.c.l.b16 %v198
      %v290 = vunpack.c.l.b16 %v199
      %v291 = vunpack.c.l.b16 %v200
      %v292 = vunpack.c.l.b16 %v201
      %v293 = vunpack.c.l.b16 %v202
      %v294 = vunpack.c.l.b16 %v203
      %v295 = vunpack.c.l.b16 %v204
      %v296 = vunpack.c.l.b16 %v205
      %v297 = vpack.c.b16 %v266, %v265
      %v298 = vpack.c.b16 %v268, %v267
      %v299 = vpack.c.b16 %v270, %v269
      %v300 = vpack.c.b16 %v272, %v271
      %v301 = vpack.c.b16 %v274, %v273
      %v302 = vpack.c.b16 %v276, %v275
      %v303 = vpack.c.b16 %v278, %v277
      %v304 = vpack.c.b16 %v280, %v279
      %v305 = vpack.c.b16 %v282, %v281
      %v306 = vpack.c.b16 %v284, %v283
      %v307 = vpack.c.b16 %v286, %v285
      %v308 = vpack.c.b16 %v288, %v287
      %v309 = vpack.c.b16 %v290, %v289
      %v310 = vpack.c.b16 %v292, %v291
      %v311 = vpack.c.b16 %v294, %v293
      %v312 = vpack.c.b16 %v296, %v295
      %v325 = vunpack.c.l.b16 %v221
      %v326 = vunpack.c.l.b16 %v222
      %v327 = vunpack.c.l.b16 %v223
      %v328 = vunpack.c.l.b16 %v224
      %v329 = vunpack.c.l.b16 %v225
      %v330 = vunpack.c.l.b16 %v226
      %v331 = vunpack.c.l.b16 %v227
      %v332 = vunpack.c.l.b16 %v228
      %v333 = vunpack.c.l.b16 %v229
      %v334 = vunpack.c.l.b16 %v230
      %v335 = vunpack.c.l.b16 %v231
      %v336 = vunpack.c.l.b16 %v232
      %v337 = vpack.c.b16 %v326, %v325
      %v338 = vpack.c.b16 %v328, %v327
      %v339 = vpack.c.b16 %v330, %v329
      %v340 = vpack.c.b16 %v332, %v331
      %v341 = vpack.c.b16 %v334, %v333
      %v342 = vpack.c.b16 %v336, %v335
      %vm349 = vcmask 785408
      %v351 = vsel %vm349, %v297, 0
      %v354 = vsel %vm349, %v298, 0
      %v357 = vsel %vm349, %v299, 0
      %v360 = vsel %vm349, %v300, 0
      %v363 = vsel %vm349, %v301, 0
      %v366 = vsel %vm349, %v302, 0
      %v369 = vsel %vm349, %v303, 0
      %v372 = vsel %vm349, %v304, 0
      %v375 = vsel %vm349, %v305, 0
      %v378 = vsel %vm349, %v306, 0
      %v381 = vsel %vm349, %v307, 0
      %v384 = vsel %vm349, %v308, 0
      %v387 = vsel %vm349, %v309, 0
      %v390 = vsel %vm349, %v310, 0
      %v393 = vsel %vm349, %v311, 0
      %v396 = vsel %vm349, %v312, 0
      %398 = vmatprep.subr.bf16.mxu0 0
      %399 = vmatpush1.bf16.msra.mxu0 %v337
      %400 = vmatprep.subr.bf16.mxu0 0
      %401 = vmatpush1.bf16.msra.mxu0 %v338
      %402 = vmatprep.subr.bf16.mxu0 0
      %403 = vmatpush1.bf16.msra.mxu0 %v339
      %404 = vmatprep.subr.bf16.mxu0 0
      %405 = vmatpush1.bf16.msra.mxu0 %v340
      %406 = vmatprep.subr.bf16.mxu0 0
      %407 = vmatpush1.bf16.msra.mxu0 %v341
      %408 = vmatprep.subr.bf16.mxu0 0
      %409 = vmatpush1.bf16.msra.mxu0 %v342
      %410 = vmatprep.subr.bf16.mxu0 0
      %411 = vmatpush1.bf16.msra.mxu0 0
      %412 = vmatprep.subr.bf16.mxu0 0
      %413 = vmatpush1.bf16.msra.mxu0 0
      %414 = vmatprep.subr.bf16.mxu0 0
      %415 = vmatpush1.bf16.msra.mxu0 0
      %416 = vmatprep.subr.bf16.mxu0 0
      %417 = vmatpush1.bf16.msra.mxu0 0
      %418 = vmatprep.subr.bf16.mxu0 0
      %419 = vmatpush1.bf16.msra.mxu0 0
      %420 = vmatprep.subr.bf16.mxu0 0
      %421 = vmatpush1.bf16.msra.mxu0 0
      %422 = vmatprep.subr.bf16.mxu0 0
      %423 = vmatpush1.bf16.msra.mxu0 0
      %424 = vmatprep.subr.bf16.mxu0 0
      %425 = vmatpush1.bf16.msra.mxu0 0
      %426 = vmatprep.subr.bf16.mxu0 0
      %427 = vmatpush1.bf16.msra.mxu0 0
      %428 = vmatprep.subr.bf16.mxu0 0
      %429 = vmatpush1.bf16.msra.mxu0 0
      %430 = vmatprep.mubr.bf16.mxu0 0
      %431 = vmatmul.mubr.bf16.gmra.mrb[0].mxu0 %v351
      %v432 = vpop.f32.mrb[0].mxu0
      %v433 = vadd.f32 0.0, %v432
      %v434 = vpop.f32.mrb[0].mxu0
      %v435 = vpop.f32.mrb[0].mxu0
      %v436 = vadd.f32 0.0, %v435
      %v437 = vpop.f32.mrb[0].mxu0
      %438 = vmatprep.mubr.bf16.mxu0 0
      %439 = vmatmul.mubr.bf16.gmra.mrb[0].mxu0 %v354
      %v440 = vpop.f32.mrb[0].mxu0
      %v441 = vadd.f32 0.0, %v440
      %v442 = vpop.f32.mrb[0].mxu0
      %v443 = vpop.f32.mrb[0].mxu0
      %v444 = vadd.f32 0.0, %v443
      %v445 = vpop.f32.mrb[0].mxu0
      %446 = vmatprep.mubr.bf16.mxu0 0
      %447 = vmatmul.mubr.bf16.gmra.mrb[0].mxu0 %v357
      %v448 = vpop.f32.mrb[0].mxu0
      %v449 = vadd.f32 0.0, %v448
      %v450 = vpop.f32.mrb[0].mxu0
      %v451 = vpop.f32.mrb[0].mxu0
      %v452 = vadd.f32 0.0, %v451
      %v453 = vpop.f32.mrb[0].mxu0
      %454 = vmatprep.mubr.bf16.mxu0 0
      %455 = vmatmul.mubr.bf16.gmra.mrb[0].mxu0 %v360
      %v456 = vpop.f32.mrb[0].mxu0
      %v457 = vadd.f32 0.0, %v456
      %v458 = vpop.f32.mrb[0].mxu0
      %v459 = vpop.f32.mrb[0].mxu0
      %v460 = vadd.f32 0.0, %v459
      %v461 = vpop.f32.mrb[0].mxu0
      %462 = vmatprep.mubr.bf16.mxu0 0
      %463 = vmatmul.mubr.bf16.gmra.mrb[0].mxu0 %v363
      %v464 = vpop.f32.mrb[0].mxu0
      %v465 = vadd.f32 0.0, %v464
      %v466 = vpop.f32.mrb[0].mxu0
      %v467 = vpop.f32.mrb[0].mxu0
      %v468 = vadd.f32 0.0, %v467
      %v469 = vpop.f32.mrb[0].mxu0
      %470 = vmatprep.mubr.bf16.mxu0 0
      %471 = vmatmul.mubr.bf16.gmra.mrb[0].mxu0 %v366
      %v472 = vpop.f32.mrb[0].mxu0
      %v473 = vadd.f32 0.0, %v472
      %v474 = vpop.f32.mrb[0].mxu0
      %v475 = vpop.f32.mrb[0].mxu0
      %v476 = vadd.f32 0.0, %v475
      %v477 = vpop.f32.mrb[0].mxu0
      %478 = vmatprep.mubr.bf16.mxu0 0
      %479 = vmatmul.mubr.bf16.gmra.mrb[0].mxu0 %v369
      %v480 = vpop.f32.mrb[0].mxu0
      %v481 = vadd.f32 0.0, %v480
      %v482 = vpop.f32.mrb[0].mxu0
      %v483 = vpop.f32.mrb[0].mxu0
      %v484 = vadd.f32 0.0, %v483
      %v485 = vpop.f32.mrb[0].mxu0
      %486 = vmatprep.mubr.bf16.mxu0 0
      %487 = vmatmul.mubr.bf16.gmra.mrb[0].mxu0 %v372
      %v488 = vpop.f32.mrb[0].mxu0
      %v489 = vadd.f32 0.0, %v488
      %v490 = vpop.f32.mrb[0].mxu0
      %v491 = vpop.f32.mrb[0].mxu0
      %v492 = vadd.f32 0.0, %v491
      %v493 = vpop.f32.mrb[0].mxu0
      %494 = vmatprep.mubr.bf16.mxu0 0
      %495 = vmatmul.mubr.bf16.gmra.mrb[0].mxu0 %v375
      %v496 = vpop.f32.mrb[0].mxu0
      %v497 = vadd.f32 0.0, %v496
      %v498 = vpop.f32.mrb[0].mxu0
      %v499 = vpop.f32.mrb[0].mxu0
      %v500 = vadd.f32 0.0, %v499
      %v501 = vpop.f32.mrb[0].mxu0
      %502 = vmatprep.mubr.bf16.mxu0 0
      %503 = vmatmul.mubr.bf16.gmra.mrb[0].mxu0 %v378
      %v504 = vpop.f32.mrb[0].mxu0
      %v505 = vadd.f32 0.0, %v504
      %v506 = vpop.f32.mrb[0].mxu0
      %v507 = vpop.f32.mrb[0].mxu0
      %v508 = vadd.f32 0.0, %v507
      %v509 = vpop.f32.mrb[0].mxu0
      %510 = vmatprep.mubr.bf16.mxu0 0
      %511 = vmatmul.mubr.bf16.gmra.mrb[0].mxu0 %v381
      %v512 = vpop.f32.mrb[0].mxu0
      %v513 = vadd.f32 0.0, %v512
      %v514 = vpop.f32.mrb[0].mxu0
      %v515 = vpop.f32.mrb[0].mxu0
      %v516 = vadd.f32 0.0, %v515
      %v517 = vpop.f32.mrb[0].mxu0
      %518 = vmatprep.mubr.bf16.mxu0 0
      %519 = vmatmul.mubr.bf16.gmra.mrb[0].mxu0 %v384
      %v520 = vpop.f32.mrb[0].mxu0
      %v521 = vadd.f32 0.0, %v520
      %v522 = vpop.f32.mrb[0].mxu0
      %v523 = vpop.f32.mrb[0].mxu0
      %v524 = vadd.f32 0.0, %v523
      %v525 = vpop.f32.mrb[0].mxu0
      %526 = vmatprep.mubr.bf16.mxu0 0
      %527 = vmatmul.mubr.bf16.gmra.mrb[0].mxu0 %v387
      %v528 = vpop.f32.mrb[0].mxu0
      %v529 = vadd.f32 0.0, %v528
      %v530 = vpop.f32.mrb[0].mxu0
      %v531 = vpop.f32.mrb[0].mxu0
      %v532 = vadd.f32 0.0, %v531
      %v533 = vpop.f32.mrb[0].mxu0
      %534 = vmatprep.mubr.bf16.mxu0 0
      %535 = vmatmul.mubr.bf16.gmra.mrb[0].mxu0 %v390
      %v536 = vpop.f32.mrb[0].mxu0
      %v537 = vadd.f32 0.0, %v536
      %v538 = vpop.f32.mrb[0].mxu0
      %v539 = vpop.f32.mrb[0].mxu0
      %v540 = vadd.f32 0.0, %v539
      %v541 = vpop.f32.mrb[0].mxu0
      %542 = vmatprep.mubr.bf16.mxu0 0
      %543 = vmatmul.mubr.bf16.gmra.mrb[0].mxu0 %v393
      %v544 = vpop.f32.mrb[0].mxu0
      %v545 = vadd.f32 0.0, %v544
      %v546 = vpop.f32.mrb[0].mxu0
      %v547 = vpop.f32.mrb[0].mxu0
      %v548 = vadd.f32 0.0, %v547
      %v549 = vpop.f32.mrb[0].mxu0
      %550 = vmatprep.mubr.bf16.mxu0 0
      %551 = vmatmul.mubr.bf16.gmra.mrb[0].mxu0 %v396
      %v552 = vpop.f32.mrb[0].mxu0
      %v553 = vadd.f32 0.0, %v552
      %v554 = vpop.f32.mrb[0].mxu0
      %v555 = vpop.f32.mrb[0].mxu0
      %v556 = vadd.f32 0.0, %v555
      %v557 = vpop.f32.mrb[0].mxu0
      %558 = vdwg.mxu0
      %v561 = vunpack.c.l.b16 %v172
      %v562 = vunpack.c.l.b16 %v173
      %v563 = vpack.c.b16 %v562, %v561
      %v576 = vunpack.c.l.b16 %v208
      %v577 = vunpack.c.l.b16 %v209
      %v578 = vunpack.c.l.b16 %v210
      %v579 = vunpack.c.l.b16 %v211
      %v580 = vunpack.c.l.b16 %v212
      %v581 = vunpack.c.l.b16 %v213
      %v582 = vunpack.c.l.b16 %v214
      %v583 = vunpack.c.l.b16 %v215
      %v584 = vunpack.c.l.b16 %v216
      %v585 = vunpack.c.l.b16 %v217
      %v586 = vunpack.c.l.b16 %v218
      %v587 = vunpack.c.l.b16 %v219
      %v588 = vpack.c.b16 %v577, %v576
      %v589 = vpack.c.b16 %v579, %v578
      %v590 = vpack.c.b16 %v581, %v580
      %v591 = vpack.c.b16 %v583, %v582
      %v592 = vpack.c.b16 %v585, %v584
      %v593 = vpack.c.b16 %v587, %v586
      %v601 = vsel %vm349, %v563, 0
      %603 = vmatprep.subr.bf16.mxu0 0
      %604 = vmatpush1.bf16.msra.mxu0 %v588
      %605 = vmatprep.subr.bf16.mxu0 0
      %606 = vmatpush1.bf16.msra.mxu0 %v589
      %607 = vmatprep.subr.bf16.mxu0 0
      %608 = vmatpush1.bf16.msra.mxu0 %v590
      %609 = vmatprep.subr.bf16.mxu0 0
      %610 = vmatpush1.bf16.msra.mxu0 %v591
      %611 = vmatprep.subr.bf16.mxu0 0
      %612 = vmatpush1.bf16.msra.mxu0 %v592
      %613 = vmatprep.subr.bf16.mxu0 0
      %614 = vmatpush1.bf16.msra.mxu0 %v593
      %615 = vmatprep.subr.bf16.mxu0 0
      %616 = vmatpush1.bf16.msra.mxu0 0
      %617 = vmatprep.subr.bf16.mxu0 0
      %618 = vmatpush1.bf16.msra.mxu0 0
      %619 = vmatprep.subr.bf16.mxu0 0
      %620 = vmatpush1.bf16.msra.mxu0 0
      %621 = vmatprep.subr.bf16.mxu0 0
      %622 = vmatpush1.bf16.msra.mxu0 0
      %623 = vmatprep.subr.bf16.mxu0 0
      %624 = vmatpush1.bf16.msra.mxu0 0
      %625 = vmatprep.subr.bf16.mxu0 0
      %626 = vmatpush1.bf16.msra.mxu0 0
      %627 = vmatprep.subr.bf16.mxu0 0
      %628 = vmatpush1.bf16.msra.mxu0 0
      %629 = vmatprep.subr.bf16.mxu0 0
      %630 = vmatpush1.bf16.msra.mxu0 0
      %631 = vmatprep.subr.bf16.mxu0 0
      %632 = vmatpush1.bf16.msra.mxu0 0
      %633 = vmatprep.subr.bf16.mxu0 0
      %634 = vmatpush1.bf16.msra.mxu0 0
      %635 = vmatprep.mubr.bf16.mxu0 0
      %636 = vmatmul.mubr.bf16.gmra.mrb[0].mxu0 %v601
      %v637 = vpop.f32.mrb[0].mxu0
      %v638 = vadd.f32 %v433, %v637
      %v639 = vpop.f32.mrb[0].mxu0
      %v640 = vpop.f32.mrb[0].mxu0
      %v641 = vadd.f32 %v436, %v640
      %v642 = vpop.f32.mrb[0].mxu0
      %643 = vmatprep.mubr.bf16.mxu0 0
      %644 = vmatmul.mubr.bf16.gmra.mrb[0].mxu0 %v351
      %v645 = vpop.f32.mrb[0].mxu0
      %v646 = vadd.f32 %v441, %v645
      %v647 = vpop.f32.mrb[0].mxu0
      %v648 = vpop.f32.mrb[0].mxu0
      %v649 = vadd.f32 %v444, %v648
      %v650 = vpop.f32.mrb[0].mxu0
      %651 = vmatprep.mubr.bf16.mxu0 0
      %652 = vmatmul.mubr.bf16.gmra.mrb[0].mxu0 %v354
      %v653 = vpop.f32.mrb[0].mxu0
      %v654 = vadd.f32 %v449, %v653
      %v655 = vpop.f32.mrb[0].mxu0
      %v656 = vpop.f32.mrb[0].mxu0
      %v657 = vadd.f32 %v452, %v656
      %v658 = vpop.f32.mrb[0].mxu0
      %659 = vmatprep.mubr.bf16.mxu0 0
      %660 = vmatmul.mubr.bf16.gmra.mrb[0].mxu0 %v357
      %v661 = vpop.f32.mrb[0].mxu0
      %v662 = vadd.f32 %v457, %v661
      %v663 = vpop.f32.mrb[0].mxu0
      %v664 = vpop.f32.mrb[0].mxu0
      %v665 = vadd.f32 %v460, %v664
      %v666 = vpop.f32.mrb[0].mxu0
      %667 = vmatprep.mubr.bf16.mxu0 0
      %668 = vmatmul.mubr.bf16.gmra.mrb[0].mxu0 %v360
      %v669 = vpop.f32.mrb[0].mxu0
      %v670 = vadd.f32 %v465, %v669
      %v671 = vpop.f32.mrb[0].mxu0
      %v672 = vpop.f32.mrb[0].mxu0
      %v673 = vadd.f32 %v468, %v672
      %v674 = vpop.f32.mrb[0].mxu0
      %675 = vmatprep.mubr.bf16.mxu0 0
      %676 = vmatmul.mubr.bf16.gmra.mrb[0].mxu0 %v363
      %v677 = vpop.f32.mrb[0].mxu0
      %v678 = vadd.f32 %v473, %v677
      %v679 = vpop.f32.mrb[0].mxu0
      %v680 = vpop.f32.mrb[0].mxu0
      %v681 = vadd.f32 %v476, %v680
      %v682 = vpop.f32.mrb[0].mxu0
      %683 = vmatprep.mubr.bf16.mxu0 0
      %684 = vmatmul.mubr.bf16.gmra.mrb[0].mxu0 %v366
      %v685 = vpop.f32.mrb[0].mxu0
      %v686 = vadd.f32 %v481, %v685
      %v687 = vpop.f32.mrb[0].mxu0
      %v688 = vpop.f32.mrb[0].mxu0
      %v689 = vadd.f32 %v484, %v688
      %v690 = vpop.f32.mrb[0].mxu0
      %691 = vmatprep.mubr.bf16.mxu0 0
      %692 = vmatmul.mubr.bf16.gmra.mrb[0].mxu0 %v369
      %v693 = vpop.f32.mrb[0].mxu0
      %v694 = vadd.f32 %v489, %v693
      %v695 = vpop.f32.mrb[0].mxu0
      %v696 = vpop.f32.mrb[0].mxu0
      %v697 = vadd.f32 %v492, %v696
      %v698 = vpop.f32.mrb[0].mxu0
      %699 = vmatprep.mubr.bf16.mxu0 0
      %700 = vmatmul.mubr.bf16.gmra.mrb[0].mxu0 %v372
      %v701 = vpop.f32.mrb[0].mxu0
      %v702 = vadd.f32 %v497, %v701
      %v703 = vpop.f32.mrb[0].mxu0
      %v704 = vpop.f32.mrb[0].mxu0
      %v705 = vadd.f32 %v500, %v704
      %v706 = vpop.f32.mrb[0].mxu0
      %707 = vmatprep.mubr.bf16.mxu0 0
      %708 = vmatmul.mubr.bf16.gmra.mrb[0].mxu0 %v375
      %v709 = vpop.f32.mrb[0].mxu0
      %v710 = vadd.f32 %v505, %v709
      %v711 = vpop.f32.mrb[0].mxu0
      %v712 = vpop.f32.mrb[0].mxu0
      %v713 = vadd.f32 %v508, %v712
      %v714 = vpop.f32.mrb[0].mxu0
      %715 = vmatprep.mubr.bf16.mxu0 0
      %716 = vmatmul.mubr.bf16.gmra.mrb[0].mxu0 %v378
      %v717 = vpop.f32.mrb[0].mxu0
      %v718 = vadd.f32 %v513, %v717
      %v719 = vpop.f32.mrb[0].mxu0
      %v720 = vpop.f32.mrb[0].mxu0
      %v721 = vadd.f32 %v516, %v720
      %v722 = vpop.f32.mrb[0].mxu0
      %723 = vmatprep.mubr.bf16.mxu0 0
      %724 = vmatmul.mubr.bf16.gmra.mrb[0].mxu0 %v381
      %v725 = vpop.f32.mrb[0].mxu0
      %v726 = vadd.f32 %v521, %v725
      %v727 = vpop.f32.mrb[0].mxu0
      %v728 = vpop.f32.mrb[0].mxu0
      %v729 = vadd.f32 %v524, %v728
      %v730 = vpop.f32.mrb[0].mxu0
      %731 = vmatprep.mubr.bf16.mxu0 0
      %732 = vmatmul.mubr.bf16.gmra.mrb[0].mxu0 %v384
      %v733 = vpop.f32.mrb[0].mxu0
      %v734 = vadd.f32 %v529, %v733
      %v735 = vpop.f32.mrb[0].mxu0
      %v736 = vpop.f32.mrb[0].mxu0
      %v737 = vadd.f32 %v532, %v736
      %v738 = vpop.f32.mrb[0].mxu0
      %739 = vmatprep.mubr.bf16.mxu0 0
      %740 = vmatmul.mubr.bf16.gmra.mrb[0].mxu0 %v387
      %v741 = vpop.f32.mrb[0].mxu0
      %v742 = vadd.f32 %v537, %v741
      %v743 = vpop.f32.mrb[0].mxu0
      %v744 = vpop.f32.mrb[0].mxu0
      %v745 = vadd.f32 %v540, %v744
      %v746 = vpop.f32.mrb[0].mxu0
      %747 = vmatprep.mubr.bf16.mxu0 0
      %748 = vmatmul.mubr.bf16.gmra.mrb[0].mxu0 %v390
      %v749 = vpop.f32.mrb[0].mxu0
      %v750 = vadd.f32 %v545, %v749
      %v751 = vpop.f32.mrb[0].mxu0
      %v752 = vpop.f32.mrb[0].mxu0
      %v753 = vadd.f32 %v548, %v752
      %v754 = vpop.f32.mrb[0].mxu0
      %755 = vmatprep.mubr.bf16.mxu0 0
      %756 = vmatmul.mubr.bf16.gmra.mrb[0].mxu0 %v393
      %v757 = vpop.f32.mrb[0].mxu0
      %v758 = vadd.f32 %v553, %v757
      %v759 = vpop.f32.mrb[0].mxu0
      %v760 = vpop.f32.mrb[0].mxu0
      %v761 = vadd.f32 %v556, %v760
      %v762 = vpop.f32.mrb[0].mxu0
      %763 = vdwg.mxu0
      %s764 = scalar_lea.vmem %s1, 96
      %v765 = vld [vmem:[%s764] sm:$0xf]
      %v766 = vld [vmem:[%s764 + $0x4] sm:$0xf]
      %v767 = vld [vmem:[%s764 + $0x8] sm:$0xf]
      %v768 = vld [vmem:[%s764 + $0xc] sm:$0xf]
      %v769 = vld [vmem:[%s764 + $0x10] sm:$0xf]
      %v770 = vld [vmem:[%s764 + $0x14] sm:$0xf]
      %v771 = vld [vmem:[%s764 + $0x18] sm:$0xf]
      %v772 = vld [vmem:[%s764 + $0x1c] sm:$0xf]
      %v773 = vld [vmem:[%s764 + $0x20] sm:$0xf]
      %v774 = vld [vmem:[%s764 + $0x24] sm:$0xf]
      %v775 = vld [vmem:[%s764 + $0x28] sm:$0xf]
      %v776 = vld [vmem:[%s764 + $0x2c] sm:$0xf]
      %v779 = vunpack.c.l.b16 %v206
      %v780 = vunpack.c.l.b16 %v207
      %v781 = vpack.c.b16 %v780, %v779
      %v794 = vunpack.c.l.b16 %v765
      %v795 = vunpack.c.l.b16 %v766
      %v796 = vunpack.c.l.b16 %v767
      %v797 = vunpack.c.l.b16 %v768
      %v798 = vunpack.c.l.b16 %v769
      %v799 = vunpack.c.l.b16 %v770
      %v800 = vunpack.c.l.b16 %v771
      %v801 = vunpack.c.l.b16 %v772
      %v802 = vunpack.c.l.b16 %v773
      %v803 = vunpack.c.l.b16 %v774
      %v804 = vunpack.c.l.b16 %v775
      %v805 = vunpack.c.l.b16 %v776
      %v806 = vpack.c.b16 %v795, %v794
      %v807 = vpack.c.b16 %v797, %v796
      %v808 = vpack.c.b16 %v799, %v798
      %v809 = vpack.c.b16 %v801, %v800
      %v810 = vpack.c.b16 %v803, %v802
      %v811 = vpack.c.b16 %v805, %v804
      %v819 = vsel %vm349, %v781, 0
      %821 = vmatprep.subr.bf16.mxu0 0
      %822 = vmatpush1.bf16.msra.mxu0 %v806
      %823 = vmatprep.subr.bf16.mxu0 0
      %824 = vmatpush1.bf16.msra.mxu0 %v807
      %825 = vmatprep.subr.bf16.mxu0 0
      %826 = vmatpush1.bf16.msra.mxu0 %v808
      %827 = vmatprep.subr.bf16.mxu0 0
      %828 = vmatpush1.bf16.msra.mxu0 %v809
      %829 = vmatprep.subr.bf16.mxu0 0
      %830 = vmatpush1.bf16.msra.mxu0 %v810
      %831 = vmatprep.subr.bf16.mxu0 0
      %832 = vmatpush1.bf16.msra.mxu0 %v811
      %833 = vmatprep.subr.bf16.mxu0 0
      %834 = vmatpush1.bf16.msra.mxu0 0
      %835 = vmatprep.subr.bf16.mxu0 0
      %836 = vmatpush1.bf16.msra.mxu0 0
      %837 = vmatprep.subr.bf16.mxu0 0
      %838 = vmatpush1.bf16.msra.mxu0 0
      %839 = vmatprep.subr.bf16.mxu0 0
      %840 = vmatpush1.bf16.msra.mxu0 0
      %841 = vmatprep.subr.bf16.mxu0 0
      %842 = vmatpush1.bf16.msra.mxu0 0
      %843 = vmatprep.subr.bf16.mxu0 0
      %844 = vmatpush1.bf16.msra.mxu0 0
      %845 = vmatprep.subr.bf16.mxu0 0
      %846 = vmatpush1.bf16.msra.mxu0 0
      %847 = vmatprep.subr.bf16.mxu0 0
      %848 = vmatpush1.bf16.msra.mxu0 0
      %849 = vmatprep.subr.bf16.mxu0 0
      %850 = vmatpush1.bf16.msra.mxu0 0
      %851 = vmatprep.subr.bf16.mxu0 0
      %852 = vmatpush1.bf16.msra.mxu0 0
      %853 = vmatprep.mubr.bf16.mxu0 0
      %854 = vmatmul.mubr.bf16.gmra.mrb[0].mxu0 %v354
      %v855 = vpop.f32.mrb[0].mxu0
      %v856 = vadd.f32 0.0, %v855
      %v857 = vpop.f32.mrb[0].mxu0
      %v858 = vpop.f32.mrb[0].mxu0
      %v859 = vadd.f32 0.0, %v858
      %v860 = vpop.f32.mrb[0].mxu0
      %861 = vmatprep.mubr.bf16.mxu0 0
      %862 = vmatmul.mubr.bf16.gmra.mrb[0].mxu0 %v357
      %v863 = vpop.f32.mrb[0].mxu0
      %v864 = vadd.f32 0.0, %v863
      %v865 = vpop.f32.mrb[0].mxu0
      %v866 = vpop.f32.mrb[0].mxu0
      %v867 = vadd.f32 0.0, %v866
      %v868 = vpop.f32.mrb[0].mxu0
      %869 = vmatprep.mubr.bf16.mxu0 0
      %870 = vmatmul.mubr.bf16.gmra.mrb[0].mxu0 %v360
      %v871 = vpop.f32.mrb[0].mxu0
      %v872 = vadd.f32 0.0, %v871
      %v873 = vpop.f32.mrb[0].mxu0
      %v874 = vpop.f32.mrb[0].mxu0
      %v875 = vadd.f32 0.0, %v874
      %v876 = vpop.f32.mrb[0].mxu0
      %877 = vmatprep.mubr.bf16.mxu0 0
      %878 = vmatmul.mubr.bf16.gmra.mrb[0].mxu0 %v363
      %v879 = vpop.f32.mrb[0].mxu0
      %v880 = vadd.f32 0.0, %v879
      %v881 = vpop.f32.mrb[0].mxu0
      %v882 = vpop.f32.mrb[0].mxu0
      %v883 = vadd.f32 0.0, %v882
      %v884 = vpop.f32.mrb[0].mxu0
      %885 = vmatprep.mubr.bf16.mxu0 0
      %886 = vmatmul.mubr.bf16.gmra.mrb[0].mxu0 %v366
      %v887 = vpop.f32.mrb[0].mxu0
      %v888 = vadd.f32 0.0, %v887
      %v889 = vpop.f32.mrb[0].mxu0
      %v890 = vpop.f32.mrb[0].mxu0
      %v891 = vadd.f32 0.0, %v890
      %v892 = vpop.f32.mrb[0].mxu0
      %893 = vmatprep.mubr.bf16.mxu0 0
      %894 = vmatmul.mubr.bf16.gmra.mrb[0].mxu0 %v369
      %v895 = vpop.f32.mrb[0].mxu0
      %v896 = vadd.f32 0.0, %v895
      %v897 = vpop.f32.mrb[0].mxu0
      %v898 = vpop.f32.mrb[0].mxu0
      %v899 = vadd.f32 0.0, %v898
      %v900 = vpop.f32.mrb[0].mxu0
      %901 = vmatprep.mubr.bf16.mxu0 0
      %902 = vmatmul.mubr.bf16.gmra.mrb[0].mxu0 %v372
      %v903 = vpop.f32.mrb[0].mxu0
      %v904 = vadd.f32 0.0, %v903
      %v905 = vpop.f32.mrb[0].mxu0
      %v906 = vpop.f32.mrb[0].mxu0
      %v907 = vadd.f32 0.0, %v906
      %v908 = vpop.f32.mrb[0].mxu0
      %909 = vmatprep.mubr.bf16.mxu0 0
      %910 = vmatmul.mubr.bf16.gmra.mrb[0].mxu0 %v375
      %v911 = vpop.f32.mrb[0].mxu0
      %v912 = vadd.f32 0.0, %v911
      %v913 = vpop.f32.mrb[0].mxu0
      %v914 = vpop.f32.mrb[0].mxu0
      %v915 = vadd.f32 0.0, %v914
      %v916 = vpop.f32.mrb[0].mxu0
      %917 = vmatprep.mubr.bf16.mxu0 0
      %918 = vmatmul.mubr.bf16.gmra.mrb[0].mxu0 %v378
      %v919 = vpop.f32.mrb[0].mxu0
      %v920 = vadd.f32 0.0, %v919
      %v921 = vpop.f32.mrb[0].mxu0
      %v922 = vpop.f32.mrb[0].mxu0
      %v923 = vadd.f32 0.0, %v922
      %v924 = vpop.f32.mrb[0].mxu0
      %925 = vmatprep.mubr.bf16.mxu0 0
      %926 = vmatmul.mubr.bf16.gmra.mrb[0].mxu0 %v381
      %v927 = vpop.f32.mrb[0].mxu0
      %v928 = vadd.f32 0.0, %v927
      %v929 = vpop.f32.mrb[0].mxu0
      %v930 = vpop.f32.mrb[0].mxu0
      %v931 = vadd.f32 0.0, %v930
      %v932 = vpop.f32.mrb[0].mxu0
      %933 = vmatprep.mubr.bf16.mxu0 0
      %934 = vmatmul.mubr.bf16.gmra.mrb[0].mxu0 %v384
      %v935 = vpop.f32.mrb[0].mxu0
      %v936 = vadd.f32 0.0, %v935
      %v937 = vpop.f32.mrb[0].mxu0
      %v938 = vpop.f32.mrb[0].mxu0
      %v939 = vadd.f32 0.0, %v938
      %v940 = vpop.f32.mrb[0].mxu0
      %941 = vmatprep.mubr.bf16.mxu0 0
      %942 = vmatmul.mubr.bf16.gmra.mrb[0].mxu0 %v387
      %v943 = vpop.f32.mrb[0].mxu0
      %v944 = vadd.f32 0.0, %v943
      %v945 = vpop.f32.mrb[0].mxu0
      %v946 = vpop.f32.mrb[0].mxu0
      %v947 = vadd.f32 0.0, %v946
      %v948 = vpop.f32.mrb[0].mxu0
      %949 = vmatprep.mubr.bf16.mxu0 0
      %950 = vmatmul.mubr.bf16.gmra.mrb[0].mxu0 %v390
      %v951 = vpop.f32.mrb[0].mxu0
      %v952 = vadd.f32 0.0, %v951
      %v953 = vpop.f32.mrb[0].mxu0
      %v954 = vpop.f32.mrb[0].mxu0
      %v955 = vadd.f32 0.0, %v954
      %v956 = vpop.f32.mrb[0].mxu0
      %957 = vmatprep.mubr.bf16.mxu0 0
      %958 = vmatmul.mubr.bf16.gmra.mrb[0].mxu0 %v393
      %v959 = vpop.f32.mrb[0].mxu0
      %v960 = vadd.f32 0.0, %v959
      %v961 = vpop.f32.mrb[0].mxu0
      %v962 = vpop.f32.mrb[0].mxu0
      %v963 = vadd.f32 0.0, %v962
      %v964 = vpop.f32.mrb[0].mxu0
      %965 = vmatprep.mubr.bf16.mxu0 0
      %966 = vmatmul.mubr.bf16.gmra.mrb[0].mxu0 %v396
      %v967 = vpop.f32.mrb[0].mxu0
      %v968 = vadd.f32 0.0, %v967
      %v969 = vpop.f32.mrb[0].mxu0
      %v970 = vpop.f32.mrb[0].mxu0
      %v971 = vadd.f32 0.0, %v970
      %v972 = vpop.f32.mrb[0].mxu0
      %973 = vmatprep.mubr.bf16.mxu0 0
      %974 = vmatmul.mubr.bf16.gmra.mrb[0].mxu0 %v819
      %v975 = vpop.f32.mrb[0].mxu0
      %v976 = vadd.f32 0.0, %v975
      %v977 = vpop.f32.mrb[0].mxu0
      %v978 = vpop.f32.mrb[0].mxu0
      %v979 = vadd.f32 0.0, %v978
      %v980 = vpop.f32.mrb[0].mxu0
      %981 = vdwg.mxu0
      %v982 = vadd.f32 %v638, %v856
      %v983 = vadd.f32 %v641, %v859
      %v984 = vadd.f32 %v646, %v864
      %v985 = vadd.f32 %v649, %v867
      %v986 = vadd.f32 %v654, %v872
      %v987 = vadd.f32 %v657, %v875
      %v988 = vadd.f32 %v662, %v880
      %v989 = vadd.f32 %v665, %v883
      %v990 = vadd.f32 %v670, %v888
      %v991 = vadd.f32 %v673, %v891
      %v992 = vadd.f32 %v678, %v896
      %v993 = vadd.f32 %v681, %v899
      %v994 = vadd.f32 %v686, %v904
      %v995 = vadd.f32 %v689, %v907
      %v996 = vadd.f32 %v694, %v912
      %v997 = vadd.f32 %v697, %v915
      %v998 = vadd.f32 %v702, %v920
      %v999 = vadd.f32 %v705, %v923
      %v1000 = vadd.f32 %v710, %v928
      %v1001 = vadd.f32 %v713, %v931
      %v1002 = vadd.f32 %v718, %v936
      %v1003 = vadd.f32 %v721, %v939
      %v1004 = vadd.f32 %v726, %v944
      %v1005 = vadd.f32 %v729, %v947
      %v1006 = vadd.f32 %v734, %v952
      %v1007 = vadd.f32 %v737, %v955
      %v1008 = vadd.f32 %v742, %v960
      %v1009 = vadd.f32 %v745, %v963
      %v1010 = vadd.f32 %v750, %v968
      %v1011 = vadd.f32 %v753, %v971
      %v1012 = vadd.f32 %v758, %v976
      %v1013 = vadd.f32 %v761, %v979
      %v1014 = vld [vmem:[%s2] sm:$0x1]
      %v1016 = vlaneseq
      %v1017 = vshrl.u32 %v1016, 7
      %v1018 = vsub.s32 0, %v1017
      %v1019 = vrot.slane %v1014, %v1018
      %v1021 = vadd.f32 %v982, %v1019
      %v1022 = vadd.f32 %v983, %v1019
      %v1023 = vadd.f32 %v984, %v1019
      %v1024 = vadd.f32 %v985, %v1019
      %v1025 = vadd.f32 %v986, %v1019
      %v1026 = vadd.f32 %v987, %v1019
      %v1027 = vadd.f32 %v988, %v1019
      %v1028 = vadd.f32 %v989, %v1019
      %v1029 = vadd.f32 %v990, %v1019
      %v1030 = vadd.f32 %v991, %v1019
      %v1031 = vadd.f32 %v992, %v1019
      %v1032 = vadd.f32 %v993, %v1019
      %v1033 = vadd.f32 %v994, %v1019
      %v1034 = vadd.f32 %v995, %v1019
      %v1035 = vadd.f32 %v996, %v1019
      %v1036 = vadd.f32 %v997, %v1019
      %v1037 = vadd.f32 %v998, %v1019
      %v1038 = vadd.f32 %v999, %v1019
      %v1039 = vadd.f32 %v1000, %v1019
      %v1040 = vadd.f32 %v1001, %v1019
      %v1041 = vadd.f32 %v1002, %v1019
      %v1042 = vadd.f32 %v1003, %v1019
      %v1043 = vadd.f32 %v1004, %v1019
      %v1044 = vadd.f32 %v1005, %v1019
      %v1045 = vadd.f32 %v1006, %v1019
      %v1046 = vadd.f32 %v1007, %v1019
      %v1047 = vadd.f32 %v1008, %v1019
      %v1048 = vadd.f32 %v1009, %v1019
      %v1049 = vadd.f32 %v1010, %v1019
      %v1050 = vadd.f32 %v1011, %v1019
      %v1051 = vadd.f32 %v1012, %v1019
      %v1052 = vadd.f32 %v1013, %v1019
      %v1053 = vmax.f32 %v1021, 0.0
      %v1054 = vmax.f32 %v1022, 0.0
      %v1055 = vmax.f32 %v1023, 0.0
      %v1056 = vmax.f32 %v1024, 0.0
      %v1057 = vmax.f32 %v1025, 0.0
      %v1058 = vmax.f32 %v1026, 0.0
      %v1059 = vmax.f32 %v1027, 0.0
      %v1060 = vmax.f32 %v1028, 0.0
      %v1061 = vmax.f32 %v1029, 0.0
      %v1062 = vmax.f32 %v1030, 0.0
      %v1063 = vmax.f32 %v1031, 0.0
      %v1064 = vmax.f32 %v1032, 0.0
      %v1065 = vmax.f32 %v1033, 0.0
      %v1066 = vmax.f32 %v1034, 0.0
      %v1067 = vmax.f32 %v1035, 0.0
      %v1068 = vmax.f32 %v1036, 0.0
      %v1069 = vmax.f32 %v1037, 0.0
      %v1070 = vmax.f32 %v1038, 0.0
      %v1071 = vmax.f32 %v1039, 0.0
      %v1072 = vmax.f32 %v1040, 0.0
      %v1073 = vmax.f32 %v1041, 0.0
      %v1074 = vmax.f32 %v1042, 0.0
      %v1075 = vmax.f32 %v1043, 0.0
      %v1076 = vmax.f32 %v1044, 0.0
      %v1077 = vmax.f32 %v1045, 0.0
      %v1078 = vmax.f32 %v1046, 0.0
      %v1079 = vmax.f32 %v1047, 0.0
      %v1080 = vmax.f32 %v1048, 0.0
      %v1081 = vmax.f32 %v1049, 0.0
      %v1082 = vmax.f32 %v1050, 0.0
      %v1083 = vmax.f32 %v1051, 0.0
      %v1084 = vmax.f32 %v1052, 0.0
      %v1085 = vmax.f32 %v1053, %v1055
      %v1086 = vmax.f32 %v1054, %v1056
      %v1087 = vmax.f32 %v1057, %v1059
      %v1088 = vmax.f32 %v1058, %v1060
      %v1089 = vmax.f32 %v1061, %v1063
      %v1090 = vmax.f32 %v1062, %v1064
      %v1091 = vmax.f32 %v1065, %v1067
      %v1092 = vmax.f32 %v1066, %v1068
      %v1093 = vmax.f32 %v1069, %v1071
      %v1094 = vmax.f32 %v1070, %v1072
      %v1095 = vmax.f32 %v1073, %v1075
      %v1096 = vmax.f32 %v1074, %v1076
      %v1097 = vmax.f32 %v1077, %v1079
      %v1098 = vmax.f32 %v1078, %v1080
      %v1099 = vmax.f32 %v1081, %v1083
      %v1100 = vmax.f32 %v1082, %v1084
      %v1101 = vmax.f32 %v1085, %v1086
      %v1102 = vmax.f32 %v1087, %v1088
      %v1103 = vmax.f32 %v1089, %v1090
      %v1104 = vmax.f32 %v1091, %v1092
      %v1105 = vmax.f32 %v1093, %v1094
      %v1106 = vmax.f32 %v1095, %v1096
      %v1107 = vmax.f32 %v1097, %v1098
      %v1108 = vmax.f32 %v1099, %v1100
      %v1109 = vpack.c.bf16 %v1101, %v1101
      %v1110 = vpack.c.bf16 %v1102, %v1102
      %v1111 = vpack.c.bf16 %v1103, %v1103
      %v1112 = vpack.c.bf16 %v1104, %v1104
      %v1113 = vpack.c.bf16 %v1105, %v1105
      %v1114 = vpack.c.bf16 %v1106, %v1106
      %v1115 = vpack.c.bf16 %v1107, %v1107
      %v1116 = vpack.c.bf16 %v1108, %v1108
      %vm1117 = vcmask 519168
      %1118 = vst.msk [vmem:[%s170] sm:$0xf] %vm1117, %v1109
      %1119 = vst.msk [vmem:[%s170 + $0x4] sm:$0xf] %vm1117, %v1110
      %1120 = vst.msk [vmem:[%s170 + $0x8] sm:$0xf] %vm1117, %v1111
      %1121 = vst.msk [vmem:[%s170 + $0xc] sm:$0xf] %vm1117, %v1112
      %1122 = vst.msk [vmem:[%s170 + $0x10] sm:$0xf] %vm1117, %v1113
      %1123 = vst.msk [vmem:[%s170 + $0x14] sm:$0xf] %vm1117, %v1114
      %1124 = vst.msk [vmem:[%s170 + $0x18] sm:$0xf] %vm1117, %v1115
      %1125 = vst.msk [vmem:[%s170 + $0x1c] sm:$0xf] %vm1117, %v1116
      %p1126 = scmp.lt.s32.totalorder %s14, 1
      %s1127 = scalar_select %p1126, %s14, 1
      %s1128 = smul.addr %s1127, 8
      %s1129 = smul.addr %s1128, 4
      %s1130 = scalar_lea.vmem %s3, %s1129
      // Predicated region
      $region33: #{forward.7} parent=31 // pred_check
        %p1131 = pneg %p100
      $region34: #{forward.7} parent=31 // pred_check_branch
        %1133 = sbr.rel (%p1131) target = $region36
      $region35: #{forward.7} parent=31 // pred_region
        _
      $region36: #{forward.7} parent=31 // pred_fallthru
        _
    $region32: #{forward.7} parent=5 // pred_fallthru
      _
    %p1134 = scmp.le.s32.totalorder 2, %s9
    // Predicated region
    $region37: #{forward.7} parent=5 // pred_check
      %p1135 = pneg %p1134
    $region38: #{forward.7} parent=5 // pred_check_branch
      %1137 = sbr.rel (%p1135) target = $region40
    $region39: #{forward.7} parent=5 // pred_region
      %s1138 = ssub.s32 %s9, 2
      // Predicated region
      $region41: #{forward.7} parent=39 // pred_check
        %p1139 = pneg %p106
      $region42: #{forward.7} parent=39 // pred_check_branch
        %1141 = sbr.rel (%p1139) target = $region44
      $region43: #{forward.7} parent=39 // pred_region
        %p1142 = scmp.lt.s32.totalorder %s15, 1
        %s1143 = scalar_select %p1142, %s15, 1
        %s1144 = smul.addr %s1143, 8
        %s1145 = smul.addr %s1144, 4
        %s1146 = scalar_lea.vmem %s3, %s1145
      $region44: #{forward.7} parent=39 // pred_fallthru
        _
    $region40: #{forward.7} parent=5 // pred_fallthru
      _
  $region6: #{forward.7} parent=0 // loop_footer
    %s13 = sadd.s32 1, %s9
  $region7: #{forward.7} parent=0 // loop_footer_branch
    %8 = sbr.rel target = $region3
  $region8: #{forward.7} parent=0 // loop_exit
    _

// kernel: forward.6
$region0: #{forward.6}
  #allocation0 [shape = 'u32[]', space=smem, size = 0x4, offset = 0x4, fixed_abs, tag = 'smem constant byte address 0x4 - core index']
  #allocation1 [shape = 'u32[144,128]{1,0:T(1,128)}', space=vmem, size = 0x12000, scoped, tag = 'internal scratch']
  %s0 = inlined_call_operand.vmem [shape: bf16[2,34,32,9], index: 0, kind: input, shape index: {}]
  %s1 = inlined_call_operand.vmem [shape: bf16[3,9,32], index: 1, kind: input, shape index: {}]
  %s2 = inlined_call_operand.vmem [shape: f32[1,32], index: 2, kind: input, shape index: {}]
  %s3 = inlined_call_operand.vmem [shape: bf16[2,16,16,32], index: 3, kind: output, shape index: {}]
  %s4 = sld [smem:[#allocation0]]
  $region45: #{forward.6} parent=0
    _
  %s6 = ssub.s32 1, %s4
  %s7 = scalar_select 0, %s6, %s4
  loop: start=0, step=1, limit=4
  $region2: #{forward.6} parent=0 // loop_pre_header
    _
  $region3: #{forward.6} parent=0 // loop_header
    %s9 = sphi 0, %s13
    %p10 = scmp.ge.s32.totalorder %s9, 4
    %s19 = sphi 0, %s21
    %s22 = sphi 0, %s19
    %s23 = sphi 0, %s22
    %s39 = sphi 0, %s23
    %s43 = sphi 0, %s43
    %s45 = sphi 0, %s43
    %s46 = sphi 0, %s45
    %s60 = sphi 0, %s46
    %s64 = sphi 0, %s64
    %s66 = sphi 0, %s64
    %s67 = sphi 0, %s66
    %s81 = sphi 0, %s67
    %s87 = sphi 0, %s89
    %s90 = sphi 0, %s87
    %s91 = sphi 0, %s90
    %s107 = sphi 0, %s91
  $region4: #{forward.6} parent=0 // loop_header_branch
    %12 = sbr.rel (%p10) target = $region8
  $region5: #{forward.6} parent=0 // loop_body
    %s14 = ssub.s32 %s9, 1
    %s15 = ssub.s32 %s9, 2
    %s16 = sadd.s32 %s9, 1
    %s17 = ssub.s32 %s9, %s16
    %p18 = scmp.eq.s32.totalorder %s17, 0
    %s20 = sadd.s32 %s19, 1
    %s21 = scalar_select %p18, %s19, %s20
    %p24 = pneg %p18
    %p25 = scmp.eq.s32.totalorder %s9, 1
    %p26 = por %p24, %p25
    %p27 = scmp.ne.s32.totalorder %s19, %s22
    %p28 = scmp.eq.s32.totalorder %s9, 0
    %p29 = por %p27, %p28
    %p30 = scmp.ne.s32.totalorder %s19, %s22
    %p31 = scmp.eq.s32.totalorder %s14, 1
    %p32 = por %p30, %p31
    %p33 = scmp.ne.s32.totalorder %s22, %s23
    %p34 = scmp.eq.s32.totalorder %s14, 0
    %p35 = por %p33, %p34
    %p36 = scmp.ne.s32.totalorder %s22, %s23
    %p37 = scmp.eq.s32.totalorder %s15, 1
    %p38 = por %p36, %p37
    %p40 = scmp.ne.s32.totalorder %s23, %s39
    %p41 = scmp.eq.s32.totalorder %s15, 0
    %p42 = por %p40, %p41
    %s44 = sadd.s32 %s43, 1
    %p47 = scmp.eq.s32.totalorder %s9, 1
    %p48 = scmp.ne.s32.totalorder %s43, %s45
    %p49 = scmp.eq.s32.totalorder %s9, 0
    %p50 = por %p48, %p49
    %p51 = scmp.ne.s32.totalorder %s43, %s45
    %p52 = scmp.eq.s32.totalorder %s14, 1
    %p53 = por %p51, %p52
    %p54 = scmp.ne.s32.totalorder %s45, %s46
    %p55 = scmp.eq.s32.totalorder %s14, 0
    %p56 = por %p54, %p55
    %p57 = scmp.ne.s32.totalorder %s45, %s46
    %p58 = scmp.eq.s32.totalorder %s15, 1
    %p59 = por %p57, %p58
    %p61 = scmp.ne.s32.totalorder %s46, %s60
    %p62 = scmp.eq.s32.totalorder %s15, 0
    %p63 = por %p61, %p62
    %s65 = sadd.s32 %s64, 1
    %p68 = scmp.eq.s32.totalorder %s9, 1
    %p69 = scmp.ne.s32.totalorder %s64, %s66
    %p70 = scmp.eq.s32.totalorder %s9, 0
    %p71 = por %p69, %p70
    %p72 = scmp.ne.s32.totalorder %s64, %s66
    %p73 = scmp.eq.s32.totalorder %s14, 1
    %p74 = por %p72, %p73
    %p75 = scmp.ne.s32.totalorder %s66, %s67
    %p76 = scmp.eq.s32.totalorder %s14, 0
    %p77 = por %p75, %p76
    %p78 = scmp.ne.s32.totalorder %s66, %s67
    %p79 = scmp.eq.s32.totalorder %s15, 1
    %p80 = por %p78, %p79
    %p82 = scmp.ne.s32.totalorder %s67, %s81
    %p83 = scmp.eq.s32.totalorder %s15, 0
    %p84 = por %p82, %p83
    %s85 = ssub.s32 %s9, %s16
    %p86 = scmp.eq.s32.totalorder %s85, 0
    %s88 = sadd.s32 %s87, 1
    %s89 = scalar_select %p86, %s87, %s88
    %p92 = pneg %p86
    %p93 = scmp.eq.s32.totalorder %s9, 1
    %p94 = por %p92, %p93
    %p95 = scmp.ne.s32.totalorder %s87, %s90
    %p96 = scmp.eq.s32.totalorder %s9, 0
    %p97 = por %p95, %p96
    %p98 = scmp.ne.s32.totalorder %s87, %s90
    %p99 = scmp.eq.s32.totalorder %s14, 1
    %p100 = por %p98, %p99
    %p101 = scmp.ne.s32.totalorder %s90, %s91
    %p102 = scmp.eq.s32.totalorder %s14, 0
    %p103 = por %p101, %p102
    %p104 = scmp.ne.s32.totalorder %s90, %s91
    %p105 = scmp.eq.s32.totalorder %s15, 1
    %p106 = por %p104, %p105
    %p108 = scmp.ne.s32.totalorder %s91, %s107
    %p109 = scmp.eq.s32.totalorder %s15, 0
    %p110 = por %p108, %p109
    %p111 = scmp.le.s32.totalorder 1, %s9
    %p112 = scmp.lt.s32.totalorder %s9, 3
    %p113 = pnand %p111, %p112
    %p114 = pneg %p113
    // Predicated region
    $region9: #{forward.6} parent=5 // pred_check
      _
    $region10: #{forward.6} parent=5 // pred_check_branch
      %116 = sbr.rel (%p113) target = $region12
    $region11: #{forward.6} parent=5 // pred_region
      %s117 = ssub.s32 %s9, 1
      // Predicated region
      $region13: #{forward.6} parent=11 // pred_check
        %p118 = pneg %p56
      $region14: #{forward.6} parent=11 // pred_check_branch
        %120 = sbr.rel (%p118) target = $region16
      $region15: #{forward.6} parent=11 // pred_region
        _
      $region16: #{forward.6} parent=11 // pred_fallthru
        _
      // Predicated region
      $region17: #{forward.6} parent=11 // pred_check
        %p121 = pneg %p77
      $region18: #{forward.6} parent=11 // pred_check_branch
        %123 = sbr.rel (%p121) target = $region20
      $region19: #{forward.6} parent=11 // pred_region
        _
      $region20: #{forward.6} parent=11 // pred_fallthru
        _
    $region12: #{forward.6} parent=5 // pred_fallthru
      _
    %p124 = scmp.lt.s32.totalorder %s9, 2
    // Predicated region
    $region21: #{forward.6} parent=5 // pred_check
      %p125 = pneg %p124
    $region22: #{forward.6} parent=5 // pred_check_branch
      %127 = sbr.rel (%p125) target = $region24
    $region23: #{forward.6} parent=5 // pred_region
      // Predicated region
      $region25: #{forward.6} parent=23 // pred_check
        %p128 = pneg %p29
      $region26: #{forward.6} parent=23 // pred_check_branch
        %130 = sbr.rel (%p128) target = $region28
      $region27: #{forward.6} parent=23 // pred_region
        %p131 = scmp.lt.s32.totalorder %s9, 1
        %s132 = scalar_select %p131, %s9, 1
        %s133 = smul.addr %s132, 136
        %s134 = smul.addr %s133, 4
        %s135 = scalar_lea.vmem %s0, %s134
      $region28: #{forward.6} parent=23 // pred_fallthru
        _
    $region24: #{forward.6} parent=5 // pred_fallthru
      _
    %p136 = scmp.le.s32.totalorder 1, %s9
    %p137 = scmp.lt.s32.totalorder %s9, 3
    %p138 = pnand %p136, %p137
    %p139 = pneg %p138
    // Predicated region
    $region29: #{forward.6} parent=5 // pred_check
      _
    $region30: #{forward.6} parent=5 // pred_check_branch
      %141 = sbr.rel (%p138) target = $region32
    $region31: #{forward.6} parent=5 // pred_region
      %s142 = ssub.s32 %s9, 1
      %p143 = scmp.lt.s32.totalorder %s14, 1
      %s144 = scalar_select %p143, %s14, 1
      %s145 = smul.addr %s144, 136
      %s146 = smul.addr %s145, 4
      %s147 = scalar_lea.vmem %s0, %s146
      %p148 = pneg %p35
      %p149 = pneg %p32
      %p150 = pneg %p56
      %p151 = pneg %p53
      %p152 = pneg %p77
      %p153 = pneg %p74
      %p154 = pneg %p103
      %p155 = pneg %p100
      %p156 = scmp.lt.s32.totalorder %s14, 1
      %s157 = scalar_select %p156, %s14, 1
      %s158 = smul.addr %s157, 32
      %s159 = smul.addr %s158, 4
      %s160 = scalar_lea.vmem %s3, %s159
      %p161 = scmp.lt.s32.totalorder %s14, 1
      %s162 = scalar_select %p161, %s14, 1
      %s163 = smul.addr %s162, 136
      %s164 = smul.addr %s163, 4
      %s165 = scalar_lea.vmem %s0, %s164
      %p166 = scmp.lt.s32.totalorder %s14, 1
      %s167 = scalar_select %p166, %s14, 1
      %s168 = smul.addr %s167, 32
      %s169 = smul.addr %s168, 4
      %s170 = scalar_lea.vmem %s3, %s169
      %v172 = vld [vmem:[%s165] sm:$0xf]
      %v173 = vld [vmem:[%s165 + $0x4] sm:$0xf]
      %v174 = vld [vmem:[%s165 + $0x8] sm:$0xf]
      %v175 = vld [vmem:[%s165 + $0xc] sm:$0xf]
      %v176 = vld [vmem:[%s165 + $0x10] sm:$0xf]
      %v177 = vld [vmem:[%s165 + $0x14] sm:$0xf]
      %v178 = vld [vmem:[%s165 + $0x18] sm:$0xf]
      %v179 = vld [vmem:[%s165 + $0x1c] sm:$0xf]
      %v180 = vld [vmem:[%s165 + $0x20] sm:$0xf]
      %v181 = vld [vmem:[%s165 + $0x24] sm:$0xf]
      %v182 = vld [vmem:[%s165 + $0x28] sm:$0xf]
      %v183 = vld [vmem:[%s165 + $0x2c] sm:$0xf]
      %v184 = vld [vmem:[%s165 + $0x30] sm:$0xf]
      %v185 = vld [vmem:[%s165 + $0x34] sm:$0xf]
      %v186 = vld [vmem:[%s165 + $0x38] sm:$0xf]
      %v187 = vld [vmem:[%s165 + $0x3c] sm:$0xf]
      %v188 = vld [vmem:[%s165 + $0x40] sm:$0xf]
      %v189 = vld [vmem:[%s165 + $0x44] sm:$0xf]
      %v190 = vld [vmem:[%s165 + $0x48] sm:$0xf]
      %v191 = vld [vmem:[%s165 + $0x4c] sm:$0xf]
      %v192 = vld [vmem:[%s165 + $0x50] sm:$0xf]
      %v193 = vld [vmem:[%s165 + $0x54] sm:$0xf]
      %v194 = vld [vmem:[%s165 + $0x58] sm:$0xf]
      %v195 = vld [vmem:[%s165 + $0x5c] sm:$0xf]
      %v196 = vld [vmem:[%s165 + $0x60] sm:$0xf]
      %v197 = vld [vmem:[%s165 + $0x64] sm:$0xf]
      %v198 = vld [vmem:[%s165 + $0x68] sm:$0xf]
      %v199 = vld [vmem:[%s165 + $0x6c] sm:$0xf]
      %v200 = vld [vmem:[%s165 + $0x70] sm:$0xf]
      %v201 = vld [vmem:[%s165 + $0x74] sm:$0xf]
      %v202 = vld [vmem:[%s165 + $0x78] sm:$0xf]
      %v203 = vld [vmem:[%s165 + $0x7c] sm:$0xf]
      %v204 = vld [vmem:[%s165 + $0x80] sm:$0xf]
      %v205 = vld [vmem:[%s165 + $0x84] sm:$0xf]
      %v206 = vld [vmem:[%s165 + $0x88] sm:$0xf]
      %v207 = vld [vmem:[%s165 + $0x8c] sm:$0xf]
      %v208 = vld [vmem:[%s165 + $0x90] sm:$0xf]
      %v209 = vld [vmem:[%s165 + $0x94] sm:$0xf]
      %v210 = vld [vmem:[%s165 + $0x98] sm:$0xf]
      %v211 = vld [vmem:[%s165 + $0x9c] sm:$0xf]
      %v212 = vld [vmem:[%s165 + $0xa0] sm:$0xf]
      %v213 = vld [vmem:[%s165 + $0xa4] sm:$0xf]
      %v214 = vld [vmem:[%s165 + $0xa8] sm:$0xf]
      %v215 = vld [vmem:[%s165 + $0xac] sm:$0xf]
      %v216 = vld [vmem:[%s165 + $0xb0] sm:$0xf]
      %v217 = vld [vmem:[%s165 + $0xb4] sm:$0xf]
      %v218 = vld [vmem:[%s165 + $0xb8] sm:$0xf]
      %v219 = vld [vmem:[%s165 + $0xbc] sm:$0xf]
      %v220 = vld [vmem:[%s165 + $0xc0] sm:$0xf]
      %v221 = vld [vmem:[%s165 + $0xc4] sm:$0xf]
      %v222 = vld [vmem:[%s165 + $0xc8] sm:$0xf]
      %v223 = vld [vmem:[%s165 + $0xcc] sm:$0xf]
      %v224 = vld [vmem:[%s165 + $0xd0] sm:$0xf]
      %v225 = vld [vmem:[%s165 + $0xd4] sm:$0xf]
      %v226 = vld [vmem:[%s165 + $0xd8] sm:$0xf]
      %v227 = vld [vmem:[%s165 + $0xdc] sm:$0xf]
      %v228 = vld [vmem:[%s165 + $0xe0] sm:$0xf]
      %v229 = vld [vmem:[%s165 + $0xe4] sm:$0xf]
      %v230 = vld [vmem:[%s165 + $0xe8] sm:$0xf]
      %v231 = vld [vmem:[%s165 + $0xec] sm:$0xf]
      %v232 = vld [vmem:[%s165 + $0xf0] sm:$0xf]
      %v233 = vld [vmem:[%s165 + $0xf4] sm:$0xf]
      %v234 = vld [vmem:[%s165 + $0xf8] sm:$0xf]
      %v235 = vld [vmem:[%s165 + $0xfc] sm:$0xf]
      %v236 = vld [vmem:[%s165 + $0x100] sm:$0xf]
      %v237 = vld [vmem:[%s165 + $0x104] sm:$0xf]
      %v238 = vld [vmem:[%s165 + $0x108] sm:$0xf]
      %v239 = vld [vmem:[%s165 + $0x10c] sm:$0xf]
      %v240 = vld [vmem:[%s165 + $0x110] sm:$0xf]
      %v241 = vld [vmem:[%s165 + $0x114] sm:$0xf]
      %v242 = vld [vmem:[%s165 + $0x118] sm:$0xf]
      %v243 = vld [vmem:[%s165 + $0x11c] sm:$0xf]
      %v244 = vld [vmem:[%s165 + $0x120] sm:$0xf]
      %v245 = vld [vmem:[%s165 + $0x124] sm:$0xf]
      %v246 = vld [vmem:[%s165 + $0x128] sm:$0xf]
      %v247 = vld [vmem:[%s165 + $0x12c] sm:$0xf]
      %v248 = vld [vmem:[%s165 + $0x130] sm:$0xf]
      %v249 = vld [vmem:[%s165 + $0x134] sm:$0xf]
      %v250 = vld [vmem:[%s165 + $0x138] sm:$0xf]
      %v251 = vld [vmem:[%s165 + $0x13c] sm:$0xf]
      %v252 = vld [vmem:[%s165 + $0x140] sm:$0xf]
      %v253 = vld [vmem:[%s165 + $0x144] sm:$0xf]
      %v254 = vld [vmem:[%s165 + $0x148] sm:$0xf]
      %v255 = vld [vmem:[%s165 + $0x14c] sm:$0xf]
      %v256 = vld [vmem:[%s165 + $0x150] sm:$0xf]
      %v257 = vld [vmem:[%s165 + $0x154] sm:$0xf]
      %v258 = vld [vmem:[%s165 + $0x158] sm:$0xf]
      %v259 = vld [vmem:[%s165 + $0x15c] sm:$0xf]
      %v260 = vld [vmem:[%s165 + $0x160] sm:$0xf]
      %v261 = vld [vmem:[%s165 + $0x164] sm:$0xf]
      %v262 = vld [vmem:[%s165 + $0x168] sm:$0xf]
      %v263 = vld [vmem:[%s165 + $0x16c] sm:$0xf]
      %v264 = vld [vmem:[%s165 + $0x170] sm:$0xf]
      %v265 = vld [vmem:[%s165 + $0x174] sm:$0xf]
      %v266 = vld [vmem:[%s165 + $0x178] sm:$0xf]
      %v267 = vld [vmem:[%s165 + $0x17c] sm:$0xf]
      %v268 = vld [vmem:[%s165 + $0x180] sm:$0xf]
      %v269 = vld [vmem:[%s165 + $0x184] sm:$0xf]
      %v270 = vld [vmem:[%s165 + $0x188] sm:$0xf]
      %v271 = vld [vmem:[%s165 + $0x18c] sm:$0xf]
      %v272 = vld [vmem:[%s165 + $0x190] sm:$0xf]
      %v273 = vld [vmem:[%s165 + $0x194] sm:$0xf]
      %v274 = vld [vmem:[%s165 + $0x198] sm:$0xf]
      %v275 = vld [vmem:[%s165 + $0x19c] sm:$0xf]
      %v276 = vld [vmem:[%s165 + $0x1a0] sm:$0xf]
      %v277 = vld [vmem:[%s165 + $0x1a4] sm:$0xf]
      %v278 = vld [vmem:[%s165 + $0x1a8] sm:$0xf]
      %v279 = vld [vmem:[%s165 + $0x1ac] sm:$0xf]
      %v280 = vld [vmem:[%s165 + $0x1b0] sm:$0xf]
      %v281 = vld [vmem:[%s165 + $0x1b4] sm:$0xf]
      %v282 = vld [vmem:[%s165 + $0x1b8] sm:$0xf]
      %v283 = vld [vmem:[%s165 + $0x1bc] sm:$0xf]
      %v284 = vld [vmem:[%s165 + $0x1c0] sm:$0xf]
      %v285 = vld [vmem:[%s165 + $0x1c4] sm:$0xf]
      %v286 = vld [vmem:[%s165 + $0x1c8] sm:$0xf]
      %v287 = vld [vmem:[%s165 + $0x1cc] sm:$0xf]
      %v288 = vld [vmem:[%s165 + $0x1d0] sm:$0xf]
      %v289 = vld [vmem:[%s165 + $0x1d4] sm:$0xf]
      %v290 = vld [vmem:[%s165 + $0x1d8] sm:$0xf]
      %v291 = vld [vmem:[%s165 + $0x1dc] sm:$0xf]
      %v292 = vld [vmem:[%s165 + $0x1e0] sm:$0xf]
      %v293 = vld [vmem:[%s165 + $0x1e4] sm:$0xf]
      %v294 = vld [vmem:[%s165 + $0x1e8] sm:$0xf]
      %v295 = vld [vmem:[%s165 + $0x1ec] sm:$0xf]
      %v296 = vld [vmem:[%s165 + $0x1f0] sm:$0xf]
      %v297 = vld [vmem:[%s165 + $0x1f4] sm:$0xf]
      %v298 = vld [vmem:[%s165 + $0x1f8] sm:$0xf]
      %v299 = vld [vmem:[%s165 + $0x1fc] sm:$0xf]
      %v300 = vld [vmem:[%s165 + $0x200] sm:$0xf]
      %v301 = vld [vmem:[%s165 + $0x204] sm:$0xf]
      %v302 = vld [vmem:[%s165 + $0x208] sm:$0xf]
      %v303 = vld [vmem:[%s165 + $0x20c] sm:$0xf]
      %v304 = vld [vmem:[%s165 + $0x210] sm:$0xf]
      %v305 = vld [vmem:[%s165 + $0x214] sm:$0xf]
      %v306 = vld [vmem:[%s165 + $0x218] sm:$0xf]
      %v307 = vld [vmem:[%s165 + $0x21c] sm:$0xf]
      %v308 = vld [vmem:[%s1] sm:$0xf]
      %v309 = vld [vmem:[%s1 + $0x4] sm:$0x1]
      %s310 = scalar_lea.vmem %s1, 8
      %v311 = vld [vmem:[%s310] sm:$0xf]
      %v312 = vld [vmem:[%s310 + $0x4] sm:$0x1]
      %v441 = vunpack.c.l.b16 %v176
      %v442 = vunpack.c.l.b16 %v177
      %v443 = vunpack.c.l.b16 %v178
      %v444 = vunpack.c.l.b16 %v179
      %v445 = vunpack.c.l.b16 %v180
      %v446 = vunpack.c.l.b16 %v181
      %v447 = vunpack.c.l.b16 %v182
      %v448 = vunpack.c.l.b16 %v183
      %v449 = vunpack.c.l.b16 %v184
      %v450 = vunpack.c.l.b16 %v185
      %v451 = vunpack.c.l.b16 %v186
      %v452 = vunpack.c.l.b16 %v187
      %v453 = vunpack.c.l.b16 %v188
      %v454 = vunpack.c.l.b16 %v189
      %v455 = vunpack.c.l.b16 %v190
      %v456 = vunpack.c.l.b16 %v191
      %v457 = vunpack.c.l.b16 %v192
      %v458 = vunpack.c.l.b16 %v193
      %v459 = vunpack.c.l.b16 %v194
      %v460 = vunpack.c.l.b16 %v195
      %v461 = vunpack.c.l.b16 %v196
      %v462 = vunpack.c.l.b16 %v197
      %v463 = vunpack.c.l.b16 %v198
      %v464 = vunpack.c.l.b16 %v199
      %v465 = vunpack.c.l.b16 %v200
      %v466 = vunpack.c.l.b16 %v201
      %v467 = vunpack.c.l.b16 %v202
      %v468 = vunpack.c.l.b16 %v203
      %v469 = vunpack.c.l.b16 %v204
      %v470 = vunpack.c.l.b16 %v205
      %v471 = vunpack.c.l.b16 %v206
      %v472 = vunpack.c.l.b16 %v207
      %v473 = vunpack.c.l.b16 %v208
      %v474 = vunpack.c.l.b16 %v209
      %v475 = vunpack.c.l.b16 %v210
      %v476 = vunpack.c.l.b16 %v211
      %v477 = vunpack.c.l.b16 %v212
      %v478 = vunpack.c.l.b16 %v213
      %v479 = vunpack.c.l.b16 %v214
      %v480 = vunpack.c.l.b16 %v215
      %v481 = vunpack.c.l.b16 %v216
      %v482 = vunpack.c.l.b16 %v217
      %v483 = vunpack.c.l.b16 %v218
      %v484 = vunpack.c.l.b16 %v219
      %v485 = vunpack.c.l.b16 %v220
      %v486 = vunpack.c.l.b16 %v221
      %v487 = vunpack.c.l.b16 %v222
      %v488 = vunpack.c.l.b16 %v223
      %v489 = vunpack.c.l.b16 %v224
      %v490 = vunpack.c.l.b16 %v225
      %v491 = vunpack.c.l.b16 %v226
      %v492 = vunpack.c.l.b16 %v227
      %v493 = vunpack.c.l.b16 %v228
      %v494 = vunpack.c.l.b16 %v229
      %v495 = vunpack.c.l.b16 %v230
      %v496 = vunpack.c.l.b16 %v231
      %v497 = vunpack.c.l.b16 %v232
      %v498 = vunpack.c.l.b16 %v233
      %v499 = vunpack.c.l.b16 %v234
      %v500 = vunpack.c.l.b16 %v235
      %v501 = vunpack.c.l.b16 %v236
      %v502 = vunpack.c.l.b16 %v237
      %v503 = vunpack.c.l.b16 %v238
      %v504 = vunpack.c.l.b16 %v239
      %v505 = vunpack.c.l.b16 %v240
      %v506 = vunpack.c.l.b16 %v241
      %v507 = vunpack.c.l.b16 %v242
      %v508 = vunpack.c.l.b16 %v243
      %v509 = vunpack.c.l.b16 %v244
      %v510 = vunpack.c.l.b16 %v245
      %v511 = vunpack.c.l.b16 %v246
      %v512 = vunpack.c.l.b16 %v247
      %v513 = vunpack.c.l.b16 %v248
      %v514 = vunpack.c.l.b16 %v249
      %v515 = vunpack.c.l.b16 %v250
      %v516 = vunpack.c.l.b16 %v251
      %v517 = vunpack.c.l.b16 %v252
      %v518 = vunpack.c.l.b16 %v253
      %v519 = vunpack.c.l.b16 %v254
      %v520 = vunpack.c.l.b16 %v255
      %v521 = vunpack.c.l.b16 %v256
      %v522 = vunpack.c.l.b16 %v257
      %v523 = vunpack.c.l.b16 %v258
      %v524 = vunpack.c.l.b16 %v259
      %v525 = vunpack.c.l.b16 %v260
      %v526 = vunpack.c.l.b16 %v261
      %v527 = vunpack.c.l.b16 %v262
      %v528 = vunpack.c.l.b16 %v263
      %v529 = vunpack.c.l.b16 %v264
      %v530 = vunpack.c.l.b16 %v265
      %v531 = vunpack.c.l.b16 %v266
      %v532 = vunpack.c.l.b16 %v267
      %v533 = vunpack.c.l.b16 %v268
      %v534 = vunpack.c.l.b16 %v269
      %v535 = vunpack.c.l.b16 %v270
      %v536 = vunpack.c.l.b16 %v271
      %v537 = vunpack.c.l.b16 %v272
      %v538 = vunpack.c.l.b16 %v273
      %v539 = vunpack.c.l.b16 %v274
      %v540 = vunpack.c.l.b16 %v275
      %v541 = vunpack.c.l.b16 %v276
      %v542 = vunpack.c.l.b16 %v277
      %v543 = vunpack.c.l.b16 %v278
      %v544 = vunpack.c.l.b16 %v279
      %v545 = vunpack.c.l.b16 %v280
      %v546 = vunpack.c.l.b16 %v281
      %v547 = vunpack.c.l.b16 %v282
      %v548 = vunpack.c.l.b16 %v283
      %v549 = vunpack.c.l.b16 %v284
      %v550 = vunpack.c.l.b16 %v285
      %v551 = vunpack.c.l.b16 %v286
      %v552 = vunpack.c.l.b16 %v287
      %v553 = vunpack.c.l.b16 %v288
      %v554 = vunpack.c.l.b16 %v289
      %v555 = vunpack.c.l.b16 %v290
      %v556 = vunpack.c.l.b16 %v291
      %v557 = vunpack.c.l.b16 %v292
      %v558 = vunpack.c.l.b16 %v293
      %v559 = vunpack.c.l.b16 %v294
      %v560 = vunpack.c.l.b16 %v295
      %v561 = vunpack.c.l.b16 %v296
      %v562 = vunpack.c.l.b16 %v297
      %v563 = vunpack.c.l.b16 %v298
      %v564 = vunpack.c.l.b16 %v299
      %v565 = vunpack.c.l.b16 %v300
      %v566 = vunpack.c.l.b16 %v301
      %v567 = vunpack.c.l.b16 %v302
      %v568 = vunpack.c.l.b16 %v303
      %v569 = vpack.c.b16 %v442, %v441
      %v570 = vpack.c.b16 %v444, %v443
      %v571 = vpack.c.b16 %v446, %v445
      %v572 = vpack.c.b16 %v448, %v447
      %v573 = vpack.c.b16 %v450, %v449
      %v574 = vpack.c.b16 %v452, %v451
      %v575 = vpack.c.b16 %v454, %v453
      %v576 = vpack.c.b16 %v456, %v455
      %v577 = vpack.c.b16 %v458, %v457
      %v578 = vpack.c.b16 %v460, %v459
      %v579 = vpack.c.b16 %v462, %v461
      %v580 = vpack.c.b16 %v464, %v463
      %v581 = vpack.c.b16 %v466, %v465
      %v582 = vpack.c.b16 %v468, %v467
      %v583 = vpack.c.b16 %v470, %v469
      %v584 = vpack.c.b16 %v472, %v471
      %v585 = vpack.c.b16 %v474, %v473
      %v586 = vpack.c.b16 %v476, %v475
      %v587 = vpack.c.b16 %v478, %v477
      %v588 = vpack.c.b16 %v480, %v479
      %v589 = vpack.c.b16 %v482, %v481
      %v590 = vpack.c.b16 %v484, %v483
      %v591 = vpack.c.b16 %v486, %v485
      %v592 = vpack.c.b16 %v488, %v487
      %v593 = vpack.c.b16 %v490, %v489
      %v594 = vpack.c.b16 %v492, %v491
      %v595 = vpack.c.b16 %v494, %v493
      %v596 = vpack.c.b16 %v496, %v495
      %v597 = vpack.c.b16 %v498, %v497
      %v598 = vpack.c.b16 %v500, %v499
      %v599 = vpack.c.b16 %v502, %v501
      %v600 = vpack.c.b16 %v504, %v503
      %v601 = vpack.c.b16 %v506, %v505
      %v602 = vpack.c.b16 %v508, %v507
      %v603 = vpack.c.b16 %v510, %v509
      %v604 = vpack.c.b16 %v512, %v511
      %v605 = vpack.c.b16 %v514, %v513
      %v606 = vpack.c.b16 %v516, %v515
      %v607 = vpack.c.b16 %v518, %v517
      %v608 = vpack.c.b16 %v520, %v519
      %v609 = vpack.c.b16 %v522, %v521
      %v610 = vpack.c.b16 %v524, %v523
      %v611 = vpack.c.b16 %v526, %v525
      %v612 = vpack.c.b16 %v528, %v527
      %v613 = vpack.c.b16 %v530, %v529
      %v614 = vpack.c.b16 %v532, %v531
      %v615 = vpack.c.b16 %v534, %v533
      %v616 = vpack.c.b16 %v536, %v535
      %v617 = vpack.c.b16 %v538, %v537
      %v618 = vpack.c.b16 %v540, %v539
      %v619 = vpack.c.b16 %v542, %v541
      %v620 = vpack.c.b16 %v544, %v543
      %v621 = vpack.c.b16 %v546, %v545
      %v622 = vpack.c.b16 %v548, %v547
      %v623 = vpack.c.b16 %v550, %v549
      %v624 = vpack.c.b16 %v552, %v551
      %v625 = vpack.c.b16 %v554, %v553
      %v626 = vpack.c.b16 %v556, %v555
      %v627 = vpack.c.b16 %v558, %v557
      %v628 = vpack.c.b16 %v560, %v559
      %v629 = vpack.c.b16 %v562, %v561
      %v630 = vpack.c.b16 %v564, %v563
      %v631 = vpack.c.b16 %v566, %v565
      %v632 = vpack.c.b16 %v568, %v567
      %v635 = vunpack.c.l.b16 %v311
      %v636 = vunpack.c.l.b16 %v312
      %v637 = vpack.c.b16 %v636, %v635
      %vm638 = vcmask 72704
      %v640 = vsel %vm638, %v569, 0
      %v643 = vsel %vm638, %v570, 0
      %v646 = vsel %vm638, %v571, 0
      %v649 = vsel %vm638, %v572, 0
      %v652 = vsel %vm638, %v573, 0
      %v655 = vsel %vm638, %v574, 0
      %v658 = vsel %vm638, %v575, 0
      %v661 = vsel %vm638, %v576, 0
      %v664 = vsel %vm638, %v577, 0
      %v667 = vsel %vm638, %v578, 0
      %v670 = vsel %vm638, %v579, 0
      %v673 = vsel %vm638, %v580, 0
      %v676 = vsel %vm638, %v581, 0
      %v679 = vsel %vm638, %v582, 0
      %v682 = vsel %vm638, %v583, 0
      %v685 = vsel %vm638, %v584, 0
      %v688 = vsel %vm638, %v585, 0
      %v691 = vsel %vm638, %v586, 0
      %v694 = vsel %vm638, %v587, 0
      %v697 = vsel %vm638, %v588, 0
      %v700 = vsel %vm638, %v589, 0
      %v703 = vsel %vm638, %v590, 0
      %v706 = vsel %vm638, %v591, 0
      %v709 = vsel %vm638, %v592, 0
      %v712 = vsel %vm638, %v593, 0
      %v715 = vsel %vm638, %v594, 0
      %v718 = vsel %vm638, %v595, 0
      %v721 = vsel %vm638, %v596, 0
      %v724 = vsel %vm638, %v597, 0
      %v727 = vsel %vm638, %v598, 0
      %v730 = vsel %vm638, %v599, 0
      %v733 = vsel %vm638, %v600, 0
      %v736 = vsel %vm638, %v601, 0
      %v739 = vsel %vm638, %v602, 0
      %v742 = vsel %vm638, %v603, 0
      %v745 = vsel %vm638, %v604, 0
      %v748 = vsel %vm638, %v605, 0
      %v751 = vsel %vm638, %v606, 0
      %v754 = vsel %vm638, %v607, 0
      %v757 = vsel %vm638, %v608, 0
      %v760 = vsel %vm638, %v609, 0
      %v763 = vsel %vm638, %v610, 0
      %v766 = vsel %vm638, %v611, 0
      %v769 = vsel %vm638, %v612, 0
      %v772 = vsel %vm638, %v613, 0
      %v775 = vsel %vm638, %v614, 0
      %v778 = vsel %vm638, %v615, 0
      %v781 = vsel %vm638, %v616, 0
      %v784 = vsel %vm638, %v617, 0
      %v787 = vsel %vm638, %v618, 0
      %v790 = vsel %vm638, %v619, 0
      %v793 = vsel %vm638, %v620, 0
      %v796 = vsel %vm638, %v621, 0
      %v799 = vsel %vm638, %v622, 0
      %v802 = vsel %vm638, %v623, 0
      %v805 = vsel %vm638, %v624, 0
      %v808 = vsel %vm638, %v625, 0
      %v811 = vsel %vm638, %v626, 0
      %v814 = vsel %vm638, %v627, 0
      %v817 = vsel %vm638, %v628, 0
      %v820 = vsel %vm638, %v629, 0
      %v823 = vsel %vm638, %v630, 0
      %v826 = vsel %vm638, %v631, 0
      %v829 = vsel %vm638, %v632, 0
      %vm831 = vcmask 1043456
      %vm832 = vcmask 1044480
      %v833 = vsel %vm831, 4294967295, 65535
      %v834 = vsel %vm832, %v833, 0
      %v836 = vand.u32 %v637, %v834
      %838 = vmatprep.subr.bf16.mxu0 0
      %839 = vmatpush1.bf16.msra.mxu0 %v836
      %840 = vmatprep.subr.bf16.mxu0 0
      %841 = vmatpush1.bf16.msra.mxu0 0
      %842 = vmatprep.subr.bf16.mxu0 0
      %843 = vmatpush1.bf16.msra.mxu0 0
      %844 = vmatprep.subr.bf16.mxu0 0
      %845 = vmatpush1.bf16.msra.mxu0 0
      %846 = vmatprep.subr.bf16.mxu0 0
      %847 = vmatpush1.bf16.msra.mxu0 0
      %848 = vmatprep.subr.bf16.mxu0 0
      %849 = vmatpush1.bf16.msra.mxu0 0
      %850 = vmatprep.subr.bf16.mxu0 0
      %851 = vmatpush1.bf16.msra.mxu0 0
      %852 = vmatprep.subr.bf16.mxu0 0
      %853 = vmatpush1.bf16.msra.mxu0 0
      %854 = vmatprep.subr.bf16.mxu0 0
      %855 = vmatpush1.bf16.msra.mxu0 0
      %856 = vmatprep.subr.bf16.mxu0 0
      %857 = vmatpush1.bf16.msra.mxu0 0
      %858 = vmatprep.subr.bf16.mxu0 0
      %859 = vmatpush1.bf16.msra.mxu0 0
      %860 = vmatprep.subr.bf16.mxu0 0
      %861 = vmatpush1.bf16.msra.mxu0 0
      %862 = vmatprep.subr.bf16.mxu0 0
      %863 = vmatpush1.bf16.msra.mxu0 0
      %864 = vmatprep.subr.bf16.mxu0 0
      %865 = vmatpush1.bf16.msra.mxu0 0
      %866 = vmatprep.subr.bf16.mxu0 0
      %867 = vmatpush1.bf16.msra.mxu0 0
      %868 = vmatprep.subr.bf16.mxu0 0
      %869 = vmatpush1.bf16.msra.mxu0 0
      %870 = vmatprep.mubr.bf16.mxu0 0
      %871 = vmatmul.mubr.bf16.gmra.mrb[0].mxu0 %v640
      %v872 = vpop.f32.mrb[0].mxu0
      %v873 = vadd.f32 0.0, %v872
      %v874 = vpop.f32.mrb[0].mxu0
      %v875 = vpop.f32.mrb[0].mxu0
      %v876 = vadd.f32 0.0, %v875
      %v877 = vpop.f32.mrb[0].mxu0
      %878 = vmatprep.mubr.bf16.mxu0 0
      %879 = vmatmul.mubr.bf16.gmra.mrb[0].mxu0 %v643
      %v880 = vpop.f32.mrb[0].mxu0
      %v881 = vadd.f32 0.0, %v880
      %v882 = vpop.f32.mrb[0].mxu0
      %v883 = vpop.f32.mrb[0].mxu0
      %v884 = vadd.f32 0.0, %v883
      %v885 = vpop.f32.mrb[0].mxu0
      %886 = vmatprep.mubr.bf16.mxu0 0
      %887 = vmatmul.mubr.bf16.gmra.mrb[0].mxu0 %v646
      %v888 = vpop.f32.mrb[0].mxu0
      %v889 = vadd.f32 0.0, %v888
      %v890 = vpop.f32.mrb[0].mxu0
      %v891 = vpop.f32.mrb[0].mxu0
      %v892 = vadd.f32 0.0, %v891
      %v893 = vpop.f32.mrb[0].mxu0
      %894 = vmatprep.mubr.bf16.mxu0 0
      %895 = vmatmul.mubr.bf16.gmra.mrb[0].mxu0 %v649
      %v896 = vpop.f32.mrb[0].mxu0
      %v897 = vadd.f32 0.0, %v896
      %v898 = vpop.f32.mrb[0].mxu0
      %v899 = vpop.f32.mrb[0].mxu0
      %v900 = vadd.f32 0.0, %v899
      %v901 = vpop.f32.mrb[0].mxu0
      %902 = vmatprep.mubr.bf16.mxu0 0
      %903 = vmatmul.mubr.bf16.gmra.mrb[0].mxu0 %v652
      %v904 = vpop.f32.mrb[0].mxu0
      %v905 = vadd.f32 0.0, %v904
      %v906 = vpop.f32.mrb[0].mxu0
      %v907 = vpop.f32.mrb[0].mxu0
      %v908 = vadd.f32 0.0, %v907
      %v909 = vpop.f32.mrb[0].mxu0
      %910 = vmatprep.mubr.bf16.mxu0 0
      %911 = vmatmul.mubr.bf16.gmra.mrb[0].mxu0 %v655
      %v912 = vpop.f32.mrb[0].mxu0
      %v913 = vadd.f32 0.0, %v912
      %v914 = vpop.f32.mrb[0].mxu0
      %v915 = vpop.f32.mrb[0].mxu0
      %v916 = vadd.f32 0.0, %v915
      %v917 = vpop.f32.mrb[0].mxu0
      %918 = vmatprep.mubr.bf16.mxu0 0
      %919 = vmatmul.mubr.bf16.gmra.mrb[0].mxu0 %v658
      %v920 = vpop.f32.mrb[0].mxu0
      %v921 = vadd.f32 0.0, %v920
      %v922 = vpop.f32.mrb[0].mxu0
      %v923 = vpop.f32.mrb[0].mxu0
      %v924 = vadd.f32 0.0, %v923
      %v925 = vpop.f32.mrb[0].mxu0
      %926 = vmatprep.mubr.bf16.mxu0 0
      %927 = vmatmul.mubr.bf16.gmra.mrb[0].mxu0 %v661
      %v928 = vpop.f32.mrb[0].mxu0
      %v929 = vadd.f32 0.0, %v928
      %v930 = vpop.f32.mrb[0].mxu0
      %v931 = vpop.f32.mrb[0].mxu0
      %v932 = vadd.f32 0.0, %v931
      %v933 = vpop.f32.mrb[0].mxu0
      %934 = vmatprep.mubr.bf16.mxu0 0
      %935 = vmatmul.mubr.bf16.gmra.mrb[0].mxu0 %v664
      %v936 = vpop.f32.mrb[0].mxu0
      %v937 = vadd.f32 0.0, %v936
      %v938 = vpop.f32.mrb[0].mxu0
      %v939 = vpop.f32.mrb[0].mxu0
      %v940 = vadd.f32 0.0, %v939
      %v941 = vpop.f32.mrb[0].mxu0
      %942 = vmatprep.mubr.bf16.mxu0 0
      %943 = vmatmul.mubr.bf16.gmra.mrb[0].mxu0 %v667
      %v944 = vpop.f32.mrb[0].mxu0
      %v945 = vadd.f32 0.0, %v944
      %v946 = vpop.f32.mrb[0].mxu0
      %v947 = vpop.f32.mrb[0].mxu0
      %v948 = vadd.f32 0.0, %v947
      %v949 = vpop.f32.mrb[0].mxu0
      %950 = vmatprep.mubr.bf16.mxu0 0
      %951 = vmatmul.mubr.bf16.gmra.mrb[0].mxu0 %v670
      %v952 = vpop.f32.mrb[0].mxu0
      %v953 = vadd.f32 0.0, %v952
      %v954 = vpop.f32.mrb[0].mxu0
      %v955 = vpop.f32.mrb[0].mxu0
      %v956 = vadd.f32 0.0, %v955
      %v957 = vpop.f32.mrb[0].mxu0
      %958 = vmatprep.mubr.bf16.mxu0 0
      %959 = vmatmul.mubr.bf16.gmra.mrb[0].mxu0 %v673
      %v960 = vpop.f32.mrb[0].mxu0
      %v961 = vadd.f32 0.0, %v960
      %v962 = vpop.f32.mrb[0].mxu0
      %v963 = vpop.f32.mrb[0].mxu0
      %v964 = vadd.f32 0.0, %v963
      %v965 = vpop.f32.mrb[0].mxu0
      %966 = vmatprep.mubr.bf16.mxu0 0
      %967 = vmatmul.mubr.bf16.gmra.mrb[0].mxu0 %v676
      %v968 = vpop.f32.mrb[0].mxu0
      %v969 = vadd.f32 0.0, %v968
      %v970 = vpop.f32.mrb[0].mxu0
      %v971 = vpop.f32.mrb[0].mxu0
      %v972 = vadd.f32 0.0, %v971
      %v973 = vpop.f32.mrb[0].mxu0
      %974 = vmatprep.mubr.bf16.mxu0 0
      %975 = vmatmul.mubr.bf16.gmra.mrb[0].mxu0 %v679
      %v976 = vpop.f32.mrb[0].mxu0
      %v977 = vadd.f32 0.0, %v976
      %v978 = vpop.f32.mrb[0].mxu0
      %v979 = vpop.f32.mrb[0].mxu0
      %v980 = vadd.f32 0.0, %v979
      %v981 = vpop.f32.mrb[0].mxu0
      %982 = vmatprep.mubr.bf16.mxu0 0
      %983 = vmatmul.mubr.bf16.gmra.mrb[0].mxu0 %v682
      %v984 = vpop.f32.mrb[0].mxu0
      %v985 = vadd.f32 0.0, %v984
      %v986 = vpop.f32.mrb[0].mxu0
      %v987 = vpop.f32.mrb[0].mxu0
      %v988 = vadd.f32 0.0, %v987
      %v989 = vpop.f32.mrb[0].mxu0
      %990 = vmatprep.mubr.bf16.mxu0 0
      %991 = vmatmul.mubr.bf16.gmra.mrb[0].mxu0 %v685
      %v992 = vpop.f32.mrb[0].mxu0
      %v993 = vadd.f32 0.0, %v992
      %v994 = vpop.f32.mrb[0].mxu0
      %v995 = vpop.f32.mrb[0].mxu0
      %v996 = vadd.f32 0.0, %v995
      %v997 = vpop.f32.mrb[0].mxu0
      %998 = vmatprep.mubr.bf16.mxu0 0
      %999 = vmatmul.mubr.bf16.gmra.mrb[0].mxu0 %v688
      %v1000 = vpop.f32.mrb[0].mxu0
      %v1001 = vadd.f32 0.0, %v1000
      %v1002 = vpop.f32.mrb[0].mxu0
      %v1003 = vpop.f32.mrb[0].mxu0
      %v1004 = vadd.f32 0.0, %v1003
      %v1005 = vpop.f32.mrb[0].mxu0
      %1006 = vmatprep.mubr.bf16.mxu0 0
      %1007 = vmatmul.mubr.bf16.gmra.mrb[0].mxu0 %v691
      %v1008 = vpop.f32.mrb[0].mxu0
      %v1009 = vadd.f32 0.0, %v1008
      %v1010 = vpop.f32.mrb[0].mxu0
      %v1011 = vpop.f32.mrb[0].mxu0
      %v1012 = vadd.f32 0.0, %v1011
      %v1013 = vpop.f32.mrb[0].mxu0
      %1014 = vmatprep.mubr.bf16.mxu0 0
      %1015 = vmatmul.mubr.bf16.gmra.mrb[0].mxu0 %v694
      %v1016 = vpop.f32.mrb[0].mxu0
      %v1017 = vadd.f32 0.0, %v1016
      %v1018 = vpop.f32.mrb[0].mxu0
      %v1019 = vpop.f32.mrb[0].mxu0
      %v1020 = vadd.f32 0.0, %v1019
      %v1021 = vpop.f32.mrb[0].mxu0
      %1022 = vmatprep.mubr.bf16.mxu0 0
      %1023 = vmatmul.mubr.bf16.gmra.mrb[0].mxu0 %v697
      %v1024 = vpop.f32.mrb[0].mxu0
      %v1025 = vadd.f32 0.0, %v1024
      %v1026 = vpop.f32.mrb[0].mxu0
      %v1027 = vpop.f32.mrb[0].mxu0
      %v1028 = vadd.f32 0.0, %v1027
      %v1029 = vpop.f32.mrb[0].mxu0
      %1030 = vmatprep.mubr.bf16.mxu0 0
      %1031 = vmatmul.mubr.bf16.gmra.mrb[0].mxu0 %v700
      %v1032 = vpop.f32.mrb[0].mxu0
      %v1033 = vadd.f32 0.0, %v1032
      %v1034 = vpop.f32.mrb[0].mxu0
      %v1035 = vpop.f32.mrb[0].mxu0
      %v1036 = vadd.f32 0.0, %v1035
      %v1037 = vpop.f32.mrb[0].mxu0
      %1038 = vmatprep.mubr.bf16.mxu0 0
      %1039 = vmatmul.mubr.bf16.gmra.mrb[0].mxu0 %v703
      %v1040 = vpop.f32.mrb[0].mxu0
      %v1041 = vadd.f32 0.0, %v1040
      %v1042 = vpop.f32.mrb[0].mxu0
      %v1043 = vpop.f32.mrb[0].mxu0
      %v1044 = vadd.f32 0.0, %v1043
      %v1045 = vpop.f32.mrb[0].mxu0
      %1046 = vmatprep.mubr.bf16.mxu0 0
      %1047 = vmatmul.mubr.bf16.gmra.mrb[0].mxu0 %v706
      %v1048 = vpop.f32.mrb[0].mxu0
      %v1049 = vadd.f32 0.0, %v1048
      %v1050 = vpop.f32.mrb[0].mxu0
      %v1051 = vpop.f32.mrb[0].mxu0
      %v1052 = vadd.f32 0.0, %v1051
      %v1053 = vpop.f32.mrb[0].mxu0
      %1054 = vmatprep.mubr.bf16.mxu0 0
      %1055 = vmatmul.mubr.bf16.gmra.mrb[0].mxu0 %v709
      %v1056 = vpop.f32.mrb[0].mxu0
      %v1057 = vadd.f32 0.0, %v1056
      %v1058 = vpop.f32.mrb[0].mxu0
      %v1059 = vpop.f32.mrb[0].mxu0
      %v1060 = vadd.f32 0.0, %v1059
      %v1061 = vpop.f32.mrb[0].mxu0
      %1062 = vmatprep.mubr.bf16.mxu0 0
      %1063 = vmatmul.mubr.bf16.gmra.mrb[0].mxu0 %v712
      %v1064 = vpop.f32.mrb[0].mxu0
      %v1065 = vadd.f32 0.0, %v1064
      %v1066 = vpop.f32.mrb[0].mxu0
      %v1067 = vpop.f32.mrb[0].mxu0
      %v1068 = vadd.f32 0.0, %v1067
      %v1069 = vpop.f32.mrb[0].mxu0
      %1070 = vmatprep.mubr.bf16.mxu0 0
      %1071 = vmatmul.mubr.bf16.gmra.mrb[0].mxu0 %v715
      %v1072 = vpop.f32.mrb[0].mxu0
      %v1073 = vadd.f32 0.0, %v1072
      %v1074 = vpop.f32.mrb[0].mxu0
      %v1075 = vpop.f32.mrb[0].mxu0
      %v1076 = vadd.f32 0.0, %v1075
      %v1077 = vpop.f32.mrb[0].mxu0
      %1078 = vmatprep.mubr.bf16.mxu0 0
      %1079 = vmatmul.mubr.bf16.gmra.mrb[0].mxu0 %v718
      %v1080 = vpop.f32.mrb[0].mxu0
      %v1081 = vadd.f32 0.0, %v1080
      %v1082 = vpop.f32.mrb[0].mxu0
      %v1083 = vpop.f32.mrb[0].mxu0
      %v1084 = vadd.f32 0.0, %v1083
      %v1085 = vpop.f32.mrb[0].mxu0
      %1086 = vmatprep.mubr.bf16.mxu0 0
      %1087 = vmatmul.mubr.bf16.gmra.mrb[0].mxu0 %v721
      %v1088 = vpop.f32.mrb[0].mxu0
      %v1089 = vadd.f32 0.0, %v1088
      %v1090 = vpop.f32.mrb[0].mxu0
      %v1091 = vpop.f32.mrb[0].mxu0
      %v1092 = vadd.f32 0.0, %v1091
      %v1093 = vpop.f32.mrb[0].mxu0
      %1094 = vmatprep.mubr.bf16.mxu0 0
      %1095 = vmatmul.mubr.bf16.gmra.mrb[0].mxu0 %v724
      %v1096 = vpop.f32.mrb[0].mxu0
      %v1097 = vadd.f32 0.0, %v1096
      %v1098 = vpop.f32.mrb[0].mxu0
      %v1099 = vpop.f32.mrb[0].mxu0
      %v1100 = vadd.f32 0.0, %v1099
      %v1101 = vpop.f32.mrb[0].mxu0
      %1102 = vmatprep.mubr.bf16.mxu0 0
      %1103 = vmatmul.mubr.bf16.gmra.mrb[0].mxu0 %v727
      %v1104 = vpop.f32.mrb[0].mxu0
      %v1105 = vadd.f32 0.0, %v1104
      %v1106 = vpop.f32.mrb[0].mxu0
      %v1107 = vpop.f32.mrb[0].mxu0
      %v1108 = vadd.f32 0.0, %v1107
      %v1109 = vpop.f32.mrb[0].mxu0
      %1110 = vmatprep.mubr.bf16.mxu0 0
      %1111 = vmatmul.mubr.bf16.gmra.mrb[0].mxu0 %v730
      %v1112 = vpop.f32.mrb[0].mxu0
      %v1113 = vadd.f32 0.0, %v1112
      %v1114 = vpop.f32.mrb[0].mxu0
      %v1115 = vpop.f32.mrb[0].mxu0
      %v1116 = vadd.f32 0.0, %v1115
      %v1117 = vpop.f32.mrb[0].mxu0
      %1118 = vmatprep.mubr.bf16.mxu0 0
      %1119 = vmatmul.mubr.bf16.gmra.mrb[0].mxu0 %v733
      %v1120 = vpop.f32.mrb[0].mxu0
      %v1121 = vadd.f32 0.0, %v1120
      %v1122 = vpop.f32.mrb[0].mxu0
      %v1123 = vpop.f32.mrb[0].mxu0
      %v1124 = vadd.f32 0.0, %v1123
      %v1125 = vpop.f32.mrb[0].mxu0
      %1126 = vmatprep.mubr.bf16.mxu0 0
      %1127 = vmatmul.mubr.bf16.gmra.mrb[0].mxu0 %v736
      %v1128 = vpop.f32.mrb[0].mxu0
      %v1129 = vadd.f32 0.0, %v1128
      %v1130 = vpop.f32.mrb[0].mxu0
      %v1131 = vpop.f32.mrb[0].mxu0
      %v1132 = vadd.f32 0.0, %v1131
      %v1133 = vpop.f32.mrb[0].mxu0
      %1134 = vmatprep.mubr.bf16.mxu0 0
      %1135 = vmatmul.mubr.bf16.gmra.mrb[0].mxu0 %v739
      %v1136 = vpop.f32.mrb[0].mxu0
      %v1137 = vadd.f32 0.0, %v1136
      %v1138 = vpop.f32.mrb[0].mxu0
      %v1139 = vpop.f32.mrb[0].mxu0
      %v1140 = vadd.f32 0.0, %v1139
      %v1141 = vpop.f32.mrb[0].mxu0
      %1142 = vmatprep.mubr.bf16.mxu0 0
      %1143 = vmatmul.mubr.bf16.gmra.mrb[0].mxu0 %v742
      %v1144 = vpop.f32.mrb[0].mxu0
      %v1145 = vadd.f32 0.0, %v1144
      %v1146 = vpop.f32.mrb[0].mxu0
      %v1147 = vpop.f32.mrb[0].mxu0
      %v1148 = vadd.f32 0.0, %v1147
      %v1149 = vpop.f32.mrb[0].mxu0
      %1150 = vmatprep.mubr.bf16.mxu0 0
      %1151 = vmatmul.mubr.bf16.gmra.mrb[0].mxu0 %v745
      %v1152 = vpop.f32.mrb[0].mxu0
      %v1153 = vadd.f32 0.0, %v1152
      %v1154 = vpop.f32.mrb[0].mxu0
      %v1155 = vpop.f32.mrb[0].mxu0
      %v1156 = vadd.f32 0.0, %v1155
      %v1157 = vpop.f32.mrb[0].mxu0
      %1158 = vmatprep.mubr.bf16.mxu0 0
      %1159 = vmatmul.mubr.bf16.gmra.mrb[0].mxu0 %v748
      %v1160 = vpop.f32.mrb[0].mxu0
      %v1161 = vadd.f32 0.0, %v1160
      %v1162 = vpop.f32.mrb[0].mxu0
      %v1163 = vpop.f32.mrb[0].mxu0
      %v1164 = vadd.f32 0.0, %v1163
      %v1165 = vpop.f32.mrb[0].mxu0
      %1166 = vmatprep.mubr.bf16.mxu0 0
      %1167 = vmatmul.mubr.bf16.gmra.mrb[0].mxu0 %v751
      %v1168 = vpop.f32.mrb[0].mxu0
      %v1169 = vadd.f32 0.0, %v1168
      %v1170 = vpop.f32.mrb[0].mxu0
      %v1171 = vpop.f32.mrb[0].mxu0
      %v1172 = vadd.f32 0.0, %v1171
      %v1173 = vpop.f32.mrb[0].mxu0
      %1174 = vmatprep.mubr.bf16.mxu0 0
      %1175 = vmatmul.mubr.bf16.gmra.mrb[0].mxu0 %v754
      %v1176 = vpop.f32.mrb[0].mxu0
      %v1177 = vadd.f32 0.0, %v1176
      %v1178 = vpop.f32.mrb[0].mxu0
      %v1179 = vpop.f32.mrb[0].mxu0
      %v1180 = vadd.f32 0.0, %v1179
      %v1181 = vpop.f32.mrb[0].mxu0
      %1182 = vmatprep.mubr.bf16.mxu0 0
      %1183 = vmatmul.mubr.bf16.gmra.mrb[0].mxu0 %v757
      %v1184 = vpop.f32.mrb[0].mxu0
      %v1185 = vadd.f32 0.0, %v1184
      %v1186 = vpop.f32.mrb[0].mxu0
      %v1187 = vpop.f32.mrb[0].mxu0
      %v1188 = vadd.f32 0.0, %v1187
      %v1189 = vpop.f32.mrb[0].mxu0
      %1190 = vmatprep.mubr.bf16.mxu0 0
      %1191 = vmatmul.mubr.bf16.gmra.mrb[0].mxu0 %v760
      %v1192 = vpop.f32.mrb[0].mxu0
      %v1193 = vadd.f32 0.0, %v1192
      %v1194 = vpop.f32.mrb[0].mxu0
      %v1195 = vpop.f32.mrb[0].mxu0
      %v1196 = vadd.f32 0.0, %v1195
      %v1197 = vpop.f32.mrb[0].mxu0
      %1198 = vmatprep.mubr.bf16.mxu0 0
      %1199 = vmatmul.mubr.bf16.gmra.mrb[0].mxu0 %v763
      %v1200 = vpop.f32.mrb[0].mxu0
      %v1201 = vadd.f32 0.0, %v1200
      %v1202 = vpop.f32.mrb[0].mxu0
      %v1203 = vpop.f32.mrb[0].mxu0
      %v1204 = vadd.f32 0.0, %v1203
      %v1205 = vpop.f32.mrb[0].mxu0
      %1206 = vmatprep.mubr.bf16.mxu0 0
      %1207 = vmatmul.mubr.bf16.gmra.mrb[0].mxu0 %v766
      %v1208 = vpop.f32.mrb[0].mxu0
      %v1209 = vadd.f32 0.0, %v1208
      %v1210 = vpop.f32.mrb[0].mxu0
      %v1211 = vpop.f32.mrb[0].mxu0
      %v1212 = vadd.f32 0.0, %v1211
      %v1213 = vpop.f32.mrb[0].mxu0
      %1214 = vmatprep.mubr.bf16.mxu0 0
      %1215 = vmatmul.mubr.bf16.gmra.mrb[0].mxu0 %v769
      %v1216 = vpop.f32.mrb[0].mxu0
      %v1217 = vadd.f32 0.0, %v1216
      %v1218 = vpop.f32.mrb[0].mxu0
      %v1219 = vpop.f32.mrb[0].mxu0
      %v1220 = vadd.f32 0.0, %v1219
      %v1221 = vpop.f32.mrb[0].mxu0
      %1222 = vmatprep.mubr.bf16.mxu0 0
      %1223 = vmatmul.mubr.bf16.gmra.mrb[0].mxu0 %v772
      %v1224 = vpop.f32.mrb[0].mxu0
      %v1225 = vadd.f32 0.0, %v1224
      %v1226 = vpop.f32.mrb[0].mxu0
      %v1227 = vpop.f32.mrb[0].mxu0
      %v1228 = vadd.f32 0.0, %v1227
      %v1229 = vpop.f32.mrb[0].mxu0
      %1230 = vmatprep.mubr.bf16.mxu0 0
      %1231 = vmatmul.mubr.bf16.gmra.mrb[0].mxu0 %v775
      %v1232 = vpop.f32.mrb[0].mxu0
      %v1233 = vadd.f32 0.0, %v1232
      %v1234 = vpop.f32.mrb[0].mxu0
      %v1235 = vpop.f32.mrb[0].mxu0
      %v1236 = vadd.f32 0.0, %v1235
      %v1237 = vpop.f32.mrb[0].mxu0
      %1238 = vmatprep.mubr.bf16.mxu0 0
      %1239 = vmatmul.mubr.bf16.gmra.mrb[0].mxu0 %v778
      %v1240 = vpop.f32.mrb[0].mxu0
      %v1241 = vadd.f32 0.0, %v1240
      %v1242 = vpop.f32.mrb[0].mxu0
      %v1243 = vpop.f32.mrb[0].mxu0
      %v1244 = vadd.f32 0.0, %v1243
      %v1245 = vpop.f32.mrb[0].mxu0
      %1246 = vmatprep.mubr.bf16.mxu0 0
      %1247 = vmatmul.mubr.bf16.gmra.mrb[0].mxu0 %v781
      %v1248 = vpop.f32.mrb[0].mxu0
      %v1249 = vadd.f32 0.0, %v1248
      %v1250 = vpop.f32.mrb[0].mxu0
      %v1251 = vpop.f32.mrb[0].mxu0
      %v1252 = vadd.f32 0.0, %v1251
      %v1253 = vpop.f32.mrb[0].mxu0
      %1254 = vmatprep.mubr.bf16.mxu0 0
      %1255 = vmatmul.mubr.bf16.gmra.mrb[0].mxu0 %v784
      %v1256 = vpop.f32.mrb[0].mxu0
      %v1257 = vadd.f32 0.0, %v1256
      %v1258 = vpop.f32.mrb[0].mxu0
      %v1259 = vpop.f32.mrb[0].mxu0
      %v1260 = vadd.f32 0.0, %v1259
      %v1261 = vpop.f32.mrb[0].mxu0
      %1262 = vmatprep.mubr.bf16.mxu0 0
      %1263 = vmatmul.mubr.bf16.gmra.mrb[0].mxu0 %v787
      %v1264 = vpop.f32.mrb[0].mxu0
      %v1265 = vadd.f32 0.0, %v1264
      %v1266 = vpop.f32.mrb[0].mxu0
      %v1267 = vpop.f32.mrb[0].mxu0
      %v1268 = vadd.f32 0.0, %v1267
      %v1269 = vpop.f32.mrb[0].mxu0
      %1270 = vmatprep.mubr.bf16.mxu0 0
      %1271 = vmatmul.mubr.bf16.gmra.mrb[0].mxu0 %v790
      %v1272 = vpop.f32.mrb[0].mxu0
      %v1273 = vadd.f32 0.0, %v1272
      %v1274 = vpop.f32.mrb[0].mxu0
      %v1275 = vpop.f32.mrb[0].mxu0
      %v1276 = vadd.f32 0.0, %v1275
      %v1277 = vpop.f32.mrb[0].mxu0
      %1278 = vmatprep.mubr.bf16.mxu0 0
      %1279 = vmatmul.mubr.bf16.gmra.mrb[0].mxu0 %v793
      %v1280 = vpop.f32.mrb[0].mxu0
      %v1281 = vadd.f32 0.0, %v1280
      %v1282 = vpop.f32.mrb[0].mxu0
      %v1283 = vpop.f32.mrb[0].mxu0
      %v1284 = vadd.f32 0.0, %v1283
      %v1285 = vpop.f32.mrb[0].mxu0
      %1286 = vmatprep.mubr.bf16.mxu0 0
      %1287 = vmatmul.mubr.bf16.gmra.mrb[0].mxu0 %v796
      %v1288 = vpop.f32.mrb[0].mxu0
      %v1289 = vadd.f32 0.0, %v1288
      %v1290 = vpop.f32.mrb[0].mxu0
      %v1291 = vpop.f32.mrb[0].mxu0
      %v1292 = vadd.f32 0.0, %v1291
      %v1293 = vpop.f32.mrb[0].mxu0
      %1294 = vmatprep.mubr.bf16.mxu0 0
      %1295 = vmatmul.mubr.bf16.gmra.mrb[0].mxu0 %v799
      %v1296 = vpop.f32.mrb[0].mxu0
      %v1297 = vadd.f32 0.0, %v1296
      %v1298 = vpop.f32.mrb[0].mxu0
      %v1299 = vpop.f32.mrb[0].mxu0
      %v1300 = vadd.f32 0.0, %v1299
      %v1301 = vpop.f32.mrb[0].mxu0
      %1302 = vmatprep.mubr.bf16.mxu0 0
      %1303 = vmatmul.mubr.bf16.gmra.mrb[0].mxu0 %v802
      %v1304 = vpop.f32.mrb[0].mxu0
      %v1305 = vadd.f32 0.0, %v1304
      %v1306 = vpop.f32.mrb[0].mxu0
      %v1307 = vpop.f32.mrb[0].mxu0
      %v1308 = vadd.f32 0.0, %v1307
      %v1309 = vpop.f32.mrb[0].mxu0
      %1310 = vmatprep.mubr.bf16.mxu0 0
      %1311 = vmatmul.mubr.bf16.gmra.mrb[0].mxu0 %v805
      %v1312 = vpop.f32.mrb[0].mxu0
      %v1313 = vadd.f32 0.0, %v1312
      %v1314 = vpop.f32.mrb[0].mxu0
      %v1315 = vpop.f32.mrb[0].mxu0
      %v1316 = vadd.f32 0.0, %v1315
      %v1317 = vpop.f32.mrb[0].mxu0
      %1318 = vmatprep.mubr.bf16.mxu0 0
      %1319 = vmatmul.mubr.bf16.gmra.mrb[0].mxu0 %v808
      %v1320 = vpop.f32.mrb[0].mxu0
      %v1321 = vadd.f32 0.0, %v1320
      %v1322 = vpop.f32.mrb[0].mxu0
      %v1323 = vpop.f32.mrb[0].mxu0
      %v1324 = vadd.f32 0.0, %v1323
      %v1325 = vpop.f32.mrb[0].mxu0
      %1326 = vmatprep.mubr.bf16.mxu0 0
      %1327 = vmatmul.mubr.bf16.gmra.mrb[0].mxu0 %v811
      %v1328 = vpop.f32.mrb[0].mxu0
      %v1329 = vadd.f32 0.0, %v1328
      %v1330 = vpop.f32.mrb[0].mxu0
      %v1331 = vpop.f32.mrb[0].mxu0
      %v1332 = vadd.f32 0.0, %v1331
      %v1333 = vpop.f32.mrb[0].mxu0
      %1334 = vmatprep.mubr.bf16.mxu0 0
      %1335 = vmatmul.mubr.bf16.gmra.mrb[0].mxu0 %v814
      %v1336 = vpop.f32.mrb[0].mxu0
      %v1337 = vadd.f32 0.0, %v1336
      %v1338 = vpop.f32.mrb[0].mxu0
      %v1339 = vpop.f32.mrb[0].mxu0
      %v1340 = vadd.f32 0.0, %v1339
      %v1341 = vpop.f32.mrb[0].mxu0
      %1342 = vmatprep.mubr.bf16.mxu0 0
      %1343 = vmatmul.mubr.bf16.gmra.mrb[0].mxu0 %v817
      %v1344 = vpop.f32.mrb[0].mxu0
      %v1345 = vadd.f32 0.0, %v1344
      %v1346 = vpop.f32.mrb[0].mxu0
      %v1347 = vpop.f32.mrb[0].mxu0
      %v1348 = vadd.f32 0.0, %v1347
      %v1349 = vpop.f32.mrb[0].mxu0
      %1350 = vmatprep.mubr.bf16.mxu0 0
      %1351 = vmatmul.mubr.bf16.gmra.mrb[0].mxu0 %v820
      %v1352 = vpop.f32.mrb[0].mxu0
      %v1353 = vadd.f32 0.0, %v1352
      %v1354 = vpop.f32.mrb[0].mxu0
      %v1355 = vpop.f32.mrb[0].mxu0
      %v1356 = vadd.f32 0.0, %v1355
      %v1357 = vpop.f32.mrb[0].mxu0
      %1358 = vmatprep.mubr.bf16.mxu0 0
      %1359 = vmatmul.mubr.bf16.gmra.mrb[0].mxu0 %v823
      %v1360 = vpop.f32.mrb[0].mxu0
      %v1361 = vadd.f32 0.0, %v1360
      %v1362 = vpop.f32.mrb[0].mxu0
      %v1363 = vpop.f32.mrb[0].mxu0
      %v1364 = vadd.f32 0.0, %v1363
      %v1365 = vpop.f32.mrb[0].mxu0
      %1366 = vmatprep.mubr.bf16.mxu0 0
      %1367 = vmatmul.mubr.bf16.gmra.mrb[0].mxu0 %v826
      %v1368 = vpop.f32.mrb[0].mxu0
      %v1369 = vadd.f32 0.0, %v1368
      %v1370 = vpop.f32.mrb[0].mxu0
      %v1371 = vpop.f32.mrb[0].mxu0
      %v1372 = vadd.f32 0.0, %v1371
      %v1373 = vpop.f32.mrb[0].mxu0
      %1374 = vmatprep.mubr.bf16.mxu0 0
      %1375 = vmatmul.mubr.bf16.gmra.mrb[0].mxu0 %v829
      %v1376 = vpop.f32.mrb[0].mxu0
      %v1377 = vadd.f32 0.0, %v1376
      %v1378 = vpop.f32.mrb[0].mxu0
      %v1379 = vpop.f32.mrb[0].mxu0
      %v1380 = vadd.f32 0.0, %v1379
      %v1381 = vpop.f32.mrb[0].mxu0
      %1382 = vdwg.mxu0
      %v1387 = vunpack.c.l.b16 %v172
      %v1388 = vunpack.c.l.b16 %v173
      %v1389 = vunpack.c.l.b16 %v174
      %v1390 = vunpack.c.l.b16 %v175
      %v1391 = vpack.c.b16 %v1388, %v1387
      %v1392 = vpack.c.b16 %v1390, %v1389
      %v1395 = vunpack.c.l.b16 %v308
      %v1396 = vunpack.c.l.b16 %v309
      %v1397 = vpack.c.b16 %v1396, %v1395
      %v1399 = vsel %vm638, %v1391, 0
      %v1402 = vsel %vm638, %v1392, 0
      %v1405 = vand.u32 %v1397, %v834
      %1407 = vmatprep.subr.bf16.mxu0 0
      %1408 = vmatpush1.bf16.msra.mxu0 %v1405
      %1409 = vmatprep.subr.bf16.mxu0 0
      %1410 = vmatpush1.bf16.msra.mxu0 0
      %1411 = vmatprep.subr.bf16.mxu0 0
      %1412 = vmatpush1.bf16.msra.mxu0 0
      %1413 = vmatprep.subr.bf16.mxu0 0
      %1414 = vmatpush1.bf16.msra.mxu0 0
      %1415 = vmatprep.subr.bf16.mxu0 0
      %1416 = vmatpush1.bf16.msra.mxu0 0
      %1417 = vmatprep.subr.bf16.mxu0 0
      %1418 = vmatpush1.bf16.msra.mxu0 0
      %1419 = vmatprep.subr.bf16.mxu0 0
      %1420 = vmatpush1.bf16.msra.mxu0 0
      %1421 = vmatprep.subr.bf16.mxu0 0
      %1422 = vmatpush1.bf16.msra.mxu0 0
      %1423 = vmatprep.subr.bf16.mxu0 0
      %1424 = vmatpush1.bf16.msra.mxu0 0
      %1425 = vmatprep.subr.bf16.mxu0 0
      %1426 = vmatpush1.bf16.msra.mxu0 0
      %1427 = vmatprep.subr.bf16.mxu0 0
      %1428 = vmatpush1.bf16.msra.mxu0 0
      %1429 = vmatprep.subr.bf16.mxu0 0
      %1430 = vmatpush1.bf16.msra.mxu0 0
      %1431 = vmatprep.subr.bf16.mxu0 0
      %1432 = vmatpush1.bf16.msra.mxu0 0
      %1433 = vmatprep.subr.bf16.mxu0 0
      %1434 = vmatpush1.bf16.msra.mxu0 0
      %1435 = vmatprep.subr.bf16.mxu0 0
      %1436 = vmatpush1.bf16.msra.mxu0 0
      %1437 = vmatprep.subr.bf16.mxu0 0
      %1438 = vmatpush1.bf16.msra.mxu0 0
      %1439 = vmatprep.mubr.bf16.mxu0 0
      %1440 = vmatmul.mubr.bf16.gmra.mrb[0].mxu0 %v1399
      %v1441 = vpop.f32.mrb[0].mxu0
      %v1442 = vadd.f32 %v873, %v1441
      %v1443 = vpop.f32.mrb[0].mxu0
      %v1444 = vpop.f32.mrb[0].mxu0
      %v1445 = vadd.f32 %v876, %v1444
      %v1446 = vpop.f32.mrb[0].mxu0
      %1447 = vmatprep.mubr.bf16.mxu0 0
      %1448 = vmatmul.mubr.bf16.gmra.mrb[0].mxu0 %v1402
      %v1449 = vpop.f32.mrb[0].mxu0
      %v1450 = vadd.f32 %v881, %v1449
      %v1451 = vpop.f32.mrb[0].mxu0
      %v1452 = vpop.f32.mrb[0].mxu0
      %v1453 = vadd.f32 %v884, %v1452
      %v1454 = vpop.f32.mrb[0].mxu0
      %1455 = vmatprep.mubr.bf16.mxu0 0
      %1456 = vmatmul.mubr.bf16.gmra.mrb[0].mxu0 %v640
      %v1457 = vpop.f32.mrb[0].mxu0
      %v1458 = vadd.f32 %v889, %v1457
      %v1459 = vpop.f32.mrb[0].mxu0
      %v1460 = vpop.f32.mrb[0].mxu0
      %v1461 = vadd.f32 %v892, %v1460
      %v1462 = vpop.f32.mrb[0].mxu0
      %1463 = vmatprep.mubr.bf16.mxu0 0
      %1464 = vmatmul.mubr.bf16.gmra.mrb[0].mxu0 %v643
      %v1465 = vpop.f32.mrb[0].mxu0
      %v1466 = vadd.f32 %v897, %v1465
      %v1467 = vpop.f32.mrb[0].mxu0
      %v1468 = vpop.f32.mrb[0].mxu0
      %v1469 = vadd.f32 %v900, %v1468
      %v1470 = vpop.f32.mrb[0].mxu0
      %1471 = vmatprep.mubr.bf16.mxu0 0
      %1472 = vmatmul.mubr.bf16.gmra.mrb[0].mxu0 %v646
      %v1473 = vpop.f32.mrb[0].mxu0
      %v1474 = vadd.f32 %v905, %v1473
      %v1475 = vpop.f32.mrb[0].mxu0
      %v1476 = vpop.f32.mrb[0].mxu0
      %v1477 = vadd.f32 %v908, %v1476
      %v1478 = vpop.f32.mrb[0].mxu0
      %1479 = vmatprep.mubr.bf16.mxu0 0
      %1480 = vmatmul.mubr.bf16.gmra.mrb[0].mxu0 %v649
      %v1481 = vpop.f32.mrb[0].mxu0
      %v1482 = vadd.f32 %v913, %v1481
      %v1483 = vpop.f32.mrb[0].mxu0
      %v1484 = vpop.f32.mrb[0].mxu0
      %v1485 = vadd.f32 %v916, %v1484
      %v1486 = vpop.f32.mrb[0].mxu0
      %1487 = vmatprep.mubr.bf16.mxu0 0
      %1488 = vmatmul.mubr.bf16.gmra.mrb[0].mxu0 %v652
      %v1489 = vpop.f32.mrb[0].mxu0
      %v1490 = vadd.f32 %v921, %v1489
      %v1491 = vpop.f32.mrb[0].mxu0
      %v1492 = vpop.f32.mrb[0].mxu0
      %v1493 = vadd.f32 %v924, %v1492
      %v1494 = vpop.f32.mrb[0].mxu0
      %1495 = vmatprep.mubr.bf16.mxu0 0
      %1496 = vmatmul.mubr.bf16.gmra.mrb[0].mxu0 %v655
      %v1497 = vpop.f32.mrb[0].mxu0
      %v1498 = vadd.f32 %v929, %v1497
      %v1499 = vpop.f32.mrb[0].mxu0
      %v1500 = vpop.f32.mrb[0].mxu0
      %v1501 = vadd.f32 %v932, %v1500
      %v1502 = vpop.f32.mrb[0].mxu0
      %1503 = vmatprep.mubr.bf16.mxu0 0
      %1504 = vmatmul.mubr.bf16.gmra.mrb[0].mxu0 %v658
      %v1505 = vpop.f32.mrb[0].mxu0
      %v1506 = vadd.f32 %v937, %v1505
      %v1507 = vpop.f32.mrb[0].mxu0
      %v1508 = vpop.f32.mrb[0].mxu0
      %v1509 = vadd.f32 %v940, %v1508
      %v1510 = vpop.f32.mrb[0].mxu0
      %1511 = vmatprep.mubr.bf16.mxu0 0
      %1512 = vmatmul.mubr.bf16.gmra.mrb[0].mxu0 %v661
      %v1513 = vpop.f32.mrb[0].mxu0
      %v1514 = vadd.f32 %v945, %v1513
      %v1515 = vpop.f32.mrb[0].mxu0
      %v1516 = vpop.f32.mrb[0].mxu0
      %v1517 = vadd.f32 %v948, %v1516
      %v1518 = vpop.f32.mrb[0].mxu0
      %1519 = vmatprep.mubr.bf16.mxu0 0
      %1520 = vmatmul.mubr.bf16.gmra.mrb[0].mxu0 %v664
      %v1521 = vpop.f32.mrb[0].mxu0
      %v1522 = vadd.f32 %v953, %v1521
      %v1523 = vpop.f32.mrb[0].mxu0
      %v1524 = vpop.f32.mrb[0].mxu0
      %v1525 = vadd.f32 %v956, %v1524
      %v1526 = vpop.f32.mrb[0].mxu0
      %1527 = vmatprep.mubr.bf16.mxu0 0
      %1528 = vmatmul.mubr.bf16.gmra.mrb[0].mxu0 %v667
      %v1529 = vpop.f32.mrb[0].mxu0
      %v1530 = vadd.f32 %v961, %v1529
      %v1531 = vpop.f32.mrb[0].mxu0
      %v1532 = vpop.f32.mrb[0].mxu0
      %v1533 = vadd.f32 %v964, %v1532
      %v1534 = vpop.f32.mrb[0].mxu0
      %1535 = vmatprep.mubr.bf16.mxu0 0
      %1536 = vmatmul.mubr.bf16.gmra.mrb[0].mxu0 %v670
      %v1537 = vpop.f32.mrb[0].mxu0
      %v1538 = vadd.f32 %v969, %v1537
      %v1539 = vpop.f32.mrb[0].mxu0
      %v1540 = vpop.f32.mrb[0].mxu0
      %v1541 = vadd.f32 %v972, %v1540
      %v1542 = vpop.f32.mrb[0].mxu0
      %1543 = vmatprep.mubr.bf16.mxu0 0
      %1544 = vmatmul.mubr.bf16.gmra.mrb[0].mxu0 %v673
      %v1545 = vpop.f32.mrb[0].mxu0
      %v1546 = vadd.f32 %v977, %v1545
      %v1547 = vpop.f32.mrb[0].mxu0
      %v1548 = vpop.f32.mrb[0].mxu0
      %v1549 = vadd.f32 %v980, %v1548
      %v1550 = vpop.f32.mrb[0].mxu0
      %1551 = vmatprep.mubr.bf16.mxu0 0
      %1552 = vmatmul.mubr.bf16.gmra.mrb[0].mxu0 %v676
      %v1553 = vpop.f32.mrb[0].mxu0
      %v1554 = vadd.f32 %v985, %v1553
      %v1555 = vpop.f32.mrb[0].mxu0
      %v1556 = vpop.f32.mrb[0].mxu0
      %v1557 = vadd.f32 %v988, %v1556
      %v1558 = vpop.f32.mrb[0].mxu0
      %1559 = vmatprep.mubr.bf16.mxu0 0
      %1560 = vmatmul.mubr.bf16.gmra.mrb[0].mxu0 %v679
      %v1561 = vpop.f32.mrb[0].mxu0
      %v1562 = vadd.f32 %v993, %v1561
      %v1563 = vpop.f32.mrb[0].mxu0
      %v1564 = vpop.f32.mrb[0].mxu0
      %v1565 = vadd.f32 %v996, %v1564
      %v1566 = vpop.f32.mrb[0].mxu0
      %1567 = vmatprep.mubr.bf16.mxu0 0
      %1568 = vmatmul.mubr.bf16.gmra.mrb[0].mxu0 %v682
      %v1569 = vpop.f32.mrb[0].mxu0
      %v1570 = vadd.f32 %v1001, %v1569
      %v1571 = vpop.f32.mrb[0].mxu0
      %v1572 = vpop.f32.mrb[0].mxu0
      %v1573 = vadd.f32 %v1004, %v1572
      %v1574 = vpop.f32.mrb[0].mxu0
      %1575 = vmatprep.mubr.bf16.mxu0 0
      %1576 = vmatmul.mubr.bf16.gmra.mrb[0].mxu0 %v685
      %v1577 = vpop.f32.mrb[0].mxu0
      %v1578 = vadd.f32 %v1009, %v1577
      %v1579 = vpop.f32.mrb[0].mxu0
      %v1580 = vpop.f32.mrb[0].mxu0
      %v1581 = vadd.f32 %v1012, %v1580
      %v1582 = vpop.f32.mrb[0].mxu0
      %1583 = vmatprep.mubr.bf16.mxu0 0
      %1584 = vmatmul.mubr.bf16.gmra.mrb[0].mxu0 %v688
      %v1585 = vpop.f32.mrb[0].mxu0
      %v1586 = vadd.f32 %v1017, %v1585
      %v1587 = vpop.f32.mrb[0].mxu0
      %v1588 = vpop.f32.mrb[0].mxu0
      %v1589 = vadd.f32 %v1020, %v1588
      %v1590 = vpop.f32.mrb[0].mxu0
      %1591 = vmatprep.mubr.bf16.mxu0 0
      %1592 = vmatmul.mubr.bf16.gmra.mrb[0].mxu0 %v691
      %v1593 = vpop.f32.mrb[0].mxu0
      %v1594 = vadd.f32 %v1025, %v1593
      %v1595 = vpop.f32.mrb[0].mxu0
      %v1596 = vpop.f32.mrb[0].mxu0
      %v1597 = vadd.f32 %v1028, %v1596
      %v1598 = vpop.f32.mrb[0].mxu0
      %1599 = vmatprep.mubr.bf16.mxu0 0
      %1600 = vmatmul.mubr.bf16.gmra.mrb[0].mxu0 %v694
      %v1601 = vpop.f32.mrb[0].mxu0
      %v1602 = vadd.f32 %v1033, %v1601
      %v1603 = vpop.f32.mrb[0].mxu0
      %v1604 = vpop.f32.mrb[0].mxu0
      %v1605 = vadd.f32 %v1036, %v1604
      %v1606 = vpop.f32.mrb[0].mxu0
      %1607 = vmatprep.mubr.bf16.mxu0 0
      %1608 = vmatmul.mubr.bf16.gmra.mrb[0].mxu0 %v697
      %v1609 = vpop.f32.mrb[0].mxu0
      %v1610 = vadd.f32 %v1041, %v1609
      %v1611 = vpop.f32.mrb[0].mxu0
      %v1612 = vpop.f32.mrb[0].mxu0
      %v1613 = vadd.f32 %v1044, %v1612
      %v1614 = vpop.f32.mrb[0].mxu0
      %1615 = vmatprep.mubr.bf16.mxu0 0
      %1616 = vmatmul.mubr.bf16.gmra.mrb[0].mxu0 %v700
      %v1617 = vpop.f32.mrb[0].mxu0
      %v1618 = vadd.f32 %v1049, %v1617
      %v1619 = vpop.f32.mrb[0].mxu0
      %v1620 = vpop.f32.mrb[0].mxu0
      %v1621 = vadd.f32 %v1052, %v1620
      %v1622 = vpop.f32.mrb[0].mxu0
      %1623 = vmatprep.mubr.bf16.mxu0 0
      %1624 = vmatmul.mubr.bf16.gmra.mrb[0].mxu0 %v703
      %v1625 = vpop.f32.mrb[0].mxu0
      %v1626 = vadd.f32 %v1057, %v1625
      %v1627 = vpop.f32.mrb[0].mxu0
      %v1628 = vpop.f32.mrb[0].mxu0
      %v1629 = vadd.f32 %v1060, %v1628
      %v1630 = vpop.f32.mrb[0].mxu0
      %1631 = vmatprep.mubr.bf16.mxu0 0
      %1632 = vmatmul.mubr.bf16.gmra.mrb[0].mxu0 %v706
      %v1633 = vpop.f32.mrb[0].mxu0
      %v1634 = vadd.f32 %v1065, %v1633
      %v1635 = vpop.f32.mrb[0].mxu0
      %v1636 = vpop.f32.mrb[0].mxu0
      %v1637 = vadd.f32 %v1068, %v1636
      %v1638 = vpop.f32.mrb[0].mxu0
      %1639 = vmatprep.mubr.bf16.mxu0 0
      %1640 = vmatmul.mubr.bf16.gmra.mrb[0].mxu0 %v709
      %v1641 = vpop.f32.mrb[0].mxu0
      %v1642 = vadd.f32 %v1073, %v1641
      %v1643 = vpop.f32.mrb[0].mxu0
      %v1644 = vpop.f32.mrb[0].mxu0
      %v1645 = vadd.f32 %v1076, %v1644
      %v1646 = vpop.f32.mrb[0].mxu0
      %1647 = vmatprep.mubr.bf16.mxu0 0
      %1648 = vmatmul.mubr.bf16.gmra.mrb[0].mxu0 %v712
      %v1649 = vpop.f32.mrb[0].mxu0
      %v1650 = vadd.f32 %v1081, %v1649
      %v1651 = vpop.f32.mrb[0].mxu0
      %v1652 = vpop.f32.mrb[0].mxu0
      %v1653 = vadd.f32 %v1084, %v1652
      %v1654 = vpop.f32.mrb[0].mxu0
      %1655 = vmatprep.mubr.bf16.mxu0 0
      %1656 = vmatmul.mubr.bf16.gmra.mrb[0].mxu0 %v715
      %v1657 = vpop.f32.mrb[0].mxu0
      %v1658 = vadd.f32 %v1089, %v1657
      %v1659 = vpop.f32.mrb[0].mxu0
      %v1660 = vpop.f32.mrb[0].mxu0
      %v1661 = vadd.f32 %v1092, %v1660
      %v1662 = vpop.f32.mrb[0].mxu0
      %1663 = vmatprep.mubr.bf16.mxu0 0
      %1664 = vmatmul.mubr.bf16.gmra.mrb[0].mxu0 %v718
      %v1665 = vpop.f32.mrb[0].mxu0
      %v1666 = vadd.f32 %v1097, %v1665
      %v1667 = vpop.f32.mrb[0].mxu0
      %v1668 = vpop.f32.mrb[0].mxu0
      %v1669 = vadd.f32 %v1100, %v1668
      %v1670 = vpop.f32.mrb[0].mxu0
      %1671 = vmatprep.mubr.bf16.mxu0 0
      %1672 = vmatmul.mubr.bf16.gmra.mrb[0].mxu0 %v721
      %v1673 = vpop.f32.mrb[0].mxu0
      %v1674 = vadd.f32 %v1105, %v1673
      %v1675 = vpop.f32.mrb[0].mxu0
      %v1676 = vpop.f32.mrb[0].mxu0
      %v1677 = vadd.f32 %v1108, %v1676
      %v1678 = vpop.f32.mrb[0].mxu0
      %1679 = vmatprep.mubr.bf16.mxu0 0
      %1680 = vmatmul.mubr.bf16.gmra.mrb[0].mxu0 %v724
      %v1681 = vpop.f32.mrb[0].mxu0
      %v1682 = vadd.f32 %v1113, %v1681
      %v1683 = vpop.f32.mrb[0].mxu0
      %v1684 = vpop.f32.mrb[0].mxu0
      %v1685 = vadd.f32 %v1116, %v1684
      %v1686 = vpop.f32.mrb[0].mxu0
      %1687 = vmatprep.mubr.bf16.mxu0 0
      %1688 = vmatmul.mubr.bf16.gmra.mrb[0].mxu0 %v727
      %v1689 = vpop.f32.mrb[0].mxu0
      %v1690 = vadd.f32 %v1121, %v1689
      %v1691 = vpop.f32.mrb[0].mxu0
      %v1692 = vpop.f32.mrb[0].mxu0
      %v1693 = vadd.f32 %v1124, %v1692
      %v1694 = vpop.f32.mrb[0].mxu0
      %1695 = vmatprep.mubr.bf16.mxu0 0
      %1696 = vmatmul.mubr.bf16.gmra.mrb[0].mxu0 %v730
      %v1697 = vpop.f32.mrb[0].mxu0
      %v1698 = vadd.f32 %v1129, %v1697
      %v1699 = vpop.f32.mrb[0].mxu0
      %v1700 = vpop.f32.mrb[0].mxu0
      %v1701 = vadd.f32 %v1132, %v1700
      %v1702 = vpop.f32.mrb[0].mxu0
      %1703 = vmatprep.mubr.bf16.mxu0 0
      %1704 = vmatmul.mubr.bf16.gmra.mrb[0].mxu0 %v733
      %v1705 = vpop.f32.mrb[0].mxu0
      %v1706 = vadd.f32 %v1137, %v1705
      %v1707 = vpop.f32.mrb[0].mxu0
      %v1708 = vpop.f32.mrb[0].mxu0
      %v1709 = vadd.f32 %v1140, %v1708
      %v1710 = vpop.f32.mrb[0].mxu0
      %1711 = vmatprep.mubr.bf16.mxu0 0
      %1712 = vmatmul.mubr.bf16.gmra.mrb[0].mxu0 %v736
      %v1713 = vpop.f32.mrb[0].mxu0
      %v1714 = vadd.f32 %v1145, %v1713
      %v1715 = vpop.f32.mrb[0].mxu0
      %v1716 = vpop.f32.mrb[0].mxu0
      %v1717 = vadd.f32 %v1148, %v1716
      %v1718 = vpop.f32.mrb[0].mxu0
      %1719 = vmatprep.mubr.bf16.mxu0 0
      %1720 = vmatmul.mubr.bf16.gmra.mrb[0].mxu0 %v739
      %v1721 = vpop.f32.mrb[0].mxu0
      %v1722 = vadd.f32 %v1153, %v1721
      %v1723 = vpop.f32.mrb[0].mxu0
      %v1724 = vpop.f32.mrb[0].mxu0
      %v1725 = vadd.f32 %v1156, %v1724
      %v1726 = vpop.f32.mrb[0].mxu0
      %1727 = vmatprep.mubr.bf16.mxu0 0
      %1728 = vmatmul.mubr.bf16.gmra.mrb[0].mxu0 %v742
      %v1729 = vpop.f32.mrb[0].mxu0
      %v1730 = vadd.f32 %v1161, %v1729
      %v1731 = vpop.f32.mrb[0].mxu0
      %v1732 = vpop.f32.mrb[0].mxu0
      %v1733 = vadd.f32 %v1164, %v1732
      %v1734 = vpop.f32.mrb[0].mxu0
      %1735 = vmatprep.mubr.bf16.mxu0 0
      %1736 = vmatmul.mubr.bf16.gmra.mrb[0].mxu0 %v745
      %v1737 = vpop.f32.mrb[0].mxu0
      %v1738 = vadd.f32 %v1169, %v1737
      %v1739 = vpop.f32.mrb[0].mxu0
      %v1740 = vpop.f32.mrb[0].mxu0
      %v1741 = vadd.f32 %v1172, %v1740
      %v1742 = vpop.f32.mrb[0].mxu0
      %1743 = vmatprep.mubr.bf16.mxu0 0
      %1744 = vmatmul.mubr.bf16.gmra.mrb[0].mxu0 %v748
      %v1745 = vpop.f32.mrb[0].mxu0
      %v1746 = vadd.f32 %v1177, %v1745
      %v1747 = vpop.f32.mrb[0].mxu0
      %v1748 = vpop.f32.mrb[0].mxu0
      %v1749 = vadd.f32 %v1180, %v1748
      %v1750 = vpop.f32.mrb[0].mxu0
      %1751 = vmatprep.mubr.bf16.mxu0 0
      %1752 = vmatmul.mubr.bf16.gmra.mrb[0].mxu0 %v751
      %v1753 = vpop.f32.mrb[0].mxu0
      %v1754 = vadd.f32 %v1185, %v1753
      %v1755 = vpop.f32.mrb[0].mxu0
      %v1756 = vpop.f32.mrb[0].mxu0
      %v1757 = vadd.f32 %v1188, %v1756
      %v1758 = vpop.f32.mrb[0].mxu0
      %1759 = vmatprep.mubr.bf16.mxu0 0
      %1760 = vmatmul.mubr.bf16.gmra.mrb[0].mxu0 %v754
      %v1761 = vpop.f32.mrb[0].mxu0
      %v1762 = vadd.f32 %v1193, %v1761
      %v1763 = vpop.f32.mrb[0].mxu0
      %v1764 = vpop.f32.mrb[0].mxu0
      %v1765 = vadd.f32 %v1196, %v1764
      %v1766 = vpop.f32.mrb[0].mxu0
      %1767 = vmatprep.mubr.bf16.mxu0 0
      %1768 = vmatmul.mubr.bf16.gmra.mrb[0].mxu0 %v757
      %v1769 = vpop.f32.mrb[0].mxu0
      %v1770 = vadd.f32 %v1201, %v1769
      %v1771 = vpop.f32.mrb[0].mxu0
      %v1772 = vpop.f32.mrb[0].mxu0
      %v1773 = vadd.f32 %v1204, %v1772
      %v1774 = vpop.f32.mrb[0].mxu0
      %1775 = vmatprep.mubr.bf16.mxu0 0
      %1776 = vmatmul.mubr.bf16.gmra.mrb[0].mxu0 %v760
      %v1777 = vpop.f32.mrb[0].mxu0
      %v1778 = vadd.f32 %v1209, %v1777
      %v1779 = vpop.f32.mrb[0].mxu0
      %v1780 = vpop.f32.mrb[0].mxu0
      %v1781 = vadd.f32 %v1212, %v1780
      %v1782 = vpop.f32.mrb[0].mxu0
      %1783 = vmatprep.mubr.bf16.mxu0 0
      %1784 = vmatmul.mubr.bf16.gmra.mrb[0].mxu0 %v763
      %v1785 = vpop.f32.mrb[0].mxu0
      %v1786 = vadd.f32 %v1217, %v1785
      %v1787 = vpop.f32.mrb[0].mxu0
      %v1788 = vpop.f32.mrb[0].mxu0
      %v1789 = vadd.f32 %v1220, %v1788
      %v1790 = vpop.f32.mrb[0].mxu0
      %1791 = vmatprep.mubr.bf16.mxu0 0
      %1792 = vmatmul.mubr.bf16.gmra.mrb[0].mxu0 %v766
      %v1793 = vpop.f32.mrb[0].mxu0
      %v1794 = vadd.f32 %v1225, %v1793
      %v1795 = vpop.f32.mrb[0].mxu0
      %v1796 = vpop.f32.mrb[0].mxu0
      %v1797 = vadd.f32 %v1228, %v1796
      %v1798 = vpop.f32.mrb[0].mxu0
      %1799 = vmatprep.mubr.bf16.mxu0 0
      %1800 = vmatmul.mubr.bf16.gmra.mrb[0].mxu0 %v769
      %v1801 = vpop.f32.mrb[0].mxu0
      %v1802 = vadd.f32 %v1233, %v1801
      %v1803 = vpop.f32.mrb[0].mxu0
      %v1804 = vpop.f32.mrb[0].mxu0
      %v1805 = vadd.f32 %v1236, %v1804
      %v1806 = vpop.f32.mrb[0].mxu0
      %1807 = vmatprep.mubr.bf16.mxu0 0
      %1808 = vmatmul.mubr.bf16.gmra.mrb[0].mxu0 %v772
      %v1809 = vpop.f32.mrb[0].mxu0
      %v1810 = vadd.f32 %v1241, %v1809
      %v1811 = vpop.f32.mrb[0].mxu0
      %v1812 = vpop.f32.mrb[0].mxu0
      %v1813 = vadd.f32 %v1244, %v1812
      %v1814 = vpop.f32.mrb[0].mxu0
      %1815 = vmatprep.mubr.bf16.mxu0 0
      %1816 = vmatmul.mubr.bf16.gmra.mrb[0].mxu0 %v775
      %v1817 = vpop.f32.mrb[0].mxu0
      %v1818 = vadd.f32 %v1249, %v1817
      %v1819 = vpop.f32.mrb[0].mxu0
      %v1820 = vpop.f32.mrb[0].mxu0
      %v1821 = vadd.f32 %v1252, %v1820
      %v1822 = vpop.f32.mrb[0].mxu0
      %1823 = vmatprep.mubr.bf16.mxu0 0
      %1824 = vmatmul.mubr.bf16.gmra.mrb[0].mxu0 %v778
      %v1825 = vpop.f32.mrb[0].mxu0
      %v1826 = vadd.f32 %v1257, %v1825
      %v1827 = vpop.f32.mrb[0].mxu0
      %v1828 = vpop.f32.mrb[0].mxu0
      %v1829 = vadd.f32 %v1260, %v1828
      %v1830 = vpop.f32.mrb[0].mxu0
      %1831 = vmatprep.mubr.bf16.mxu0 0
      %1832 = vmatmul.mubr.bf16.gmra.mrb[0].mxu0 %v781
      %v1833 = vpop.f32.mrb[0].mxu0
      %v1834 = vadd.f32 %v1265, %v1833
      %v1835 = vpop.f32.mrb[0].mxu0
      %v1836 = vpop.f32.mrb[0].mxu0
      %v1837 = vadd.f32 %v1268, %v1836
      %v1838 = vpop.f32.mrb[0].mxu0
      %1839 = vmatprep.mubr.bf16.mxu0 0
      %1840 = vmatmul.mubr.bf16.gmra.mrb[0].mxu0 %v784
      %v1841 = vpop.f32.mrb[0].mxu0
      %v1842 = vadd.f32 %v1273, %v1841
      %v1843 = vpop.f32.mrb[0].mxu0
      %v1844 = vpop.f32.mrb[0].mxu0
      %v1845 = vadd.f32 %v1276, %v1844
      %v1846 = vpop.f32.mrb[0].mxu0
      %1847 = vmatprep.mubr.bf16.mxu0 0
      %1848 = vmatmul.mubr.bf16.gmra.mrb[0].mxu0 %v787
      %v1849 = vpop.f32.mrb[0].mxu0
      %v1850 = vadd.f32 %v1281, %v1849
      %v1851 = vpop.f32.mrb[0].mxu0
      %v1852 = vpop.f32.mrb[0].mxu0
      %v1853 = vadd.f32 %v1284, %v1852
      %v1854 = vpop.f32.mrb[0].mxu0
      %1855 = vmatprep.mubr.bf16.mxu0 0
      %1856 = vmatmul.mubr.bf16.gmra.mrb[0].mxu0 %v790
      %v1857 = vpop.f32.mrb[0].mxu0
      %v1858 = vadd.f32 %v1289, %v1857
      %v1859 = vpop.f32.mrb[0].mxu0
      %v1860 = vpop.f32.mrb[0].mxu0
      %v1861 = vadd.f32 %v1292, %v1860
      %v1862 = vpop.f32.mrb[0].mxu0
      %1863 = vmatprep.mubr.bf16.mxu0 0
      %1864 = vmatmul.mubr.bf16.gmra.mrb[0].mxu0 %v793
      %v1865 = vpop.f32.mrb[0].mxu0
      %v1866 = vadd.f32 %v1297, %v1865
      %v1867 = vpop.f32.mrb[0].mxu0
      %v1868 = vpop.f32.mrb[0].mxu0
      %v1869 = vadd.f32 %v1300, %v1868
      %v1870 = vpop.f32.mrb[0].mxu0
      %1871 = vmatprep.mubr.bf16.mxu0 0
      %1872 = vmatmul.mubr.bf16.gmra.mrb[0].mxu0 %v796
      %v1873 = vpop.f32.mrb[0].mxu0
      %v1874 = vadd.f32 %v1305, %v1873
      %v1875 = vpop.f32.mrb[0].mxu0
      %v1876 = vpop.f32.mrb[0].mxu0
      %v1877 = vadd.f32 %v1308, %v1876
      %v1878 = vpop.f32.mrb[0].mxu0
      %1879 = vmatprep.mubr.bf16.mxu0 0
      %1880 = vmatmul.mubr.bf16.gmra.mrb[0].mxu0 %v799
      %v1881 = vpop.f32.mrb[0].mxu0
      %v1882 = vadd.f32 %v1313, %v1881
      %v1883 = vpop.f32.mrb[0].mxu0
      %v1884 = vpop.f32.mrb[0].mxu0
      %v1885 = vadd.f32 %v1316, %v1884
      %v1886 = vpop.f32.mrb[0].mxu0
      %1887 = vmatprep.mubr.bf16.mxu0 0
      %1888 = vmatmul.mubr.bf16.gmra.mrb[0].mxu0 %v802
      %v1889 = vpop.f32.mrb[0].mxu0
      %v1890 = vadd.f32 %v1321, %v1889
      %v1891 = vpop.f32.mrb[0].mxu0
      %v1892 = vpop.f32.mrb[0].mxu0
      %v1893 = vadd.f32 %v1324, %v1892
      %v1894 = vpop.f32.mrb[0].mxu0
      %1895 = vmatprep.mubr.bf16.mxu0 0
      %1896 = vmatmul.mubr.bf16.gmra.mrb[0].mxu0 %v805
      %v1897 = vpop.f32.mrb[0].mxu0
      %v1898 = vadd.f32 %v1329, %v1897
      %v1899 = vpop.f32.mrb[0].mxu0
      %v1900 = vpop.f32.mrb[0].mxu0
      %v1901 = vadd.f32 %v1332, %v1900
      %v1902 = vpop.f32.mrb[0].mxu0
      %1903 = vmatprep.mubr.bf16.mxu0 0
      %1904 = vmatmul.mubr.bf16.gmra.mrb[0].mxu0 %v808
      %v1905 = vpop.f32.mrb[0].mxu0
      %v1906 = vadd.f32 %v1337, %v1905
      %v1907 = vpop.f32.mrb[0].mxu0
      %v1908 = vpop.f32.mrb[0].mxu0
      %v1909 = vadd.f32 %v1340, %v1908
      %v1910 = vpop.f32.mrb[0].mxu0
      %1911 = vmatprep.mubr.bf16.mxu0 0
      %1912 = vmatmul.mubr.bf16.gmra.mrb[0].mxu0 %v811
      %v1913 = vpop.f32.mrb[0].mxu0
      %v1914 = vadd.f32 %v1345, %v1913
      %v1915 = vpop.f32.mrb[0].mxu0
      %v1916 = vpop.f32.mrb[0].mxu0
      %v1917 = vadd.f32 %v1348, %v1916
      %v1918 = vpop.f32.mrb[0].mxu0
      %1919 = vmatprep.mubr.bf16.mxu0 0
      %1920 = vmatmul.mubr.bf16.gmra.mrb[0].mxu0 %v814
      %v1921 = vpop.f32.mrb[0].mxu0
      %v1922 = vadd.f32 %v1353, %v1921
      %v1923 = vpop.f32.mrb[0].mxu0
      %v1924 = vpop.f32.mrb[0].mxu0
      %v1925 = vadd.f32 %v1356, %v1924
      %v1926 = vpop.f32.mrb[0].mxu0
      %1927 = vmatprep.mubr.bf16.mxu0 0
      %1928 = vmatmul.mubr.bf16.gmra.mrb[0].mxu0 %v817
      %v1929 = vpop.f32.mrb[0].mxu0
      %v1930 = vadd.f32 %v1361, %v1929
      %v1931 = vpop.f32.mrb[0].mxu0
      %v1932 = vpop.f32.mrb[0].mxu0
      %v1933 = vadd.f32 %v1364, %v1932
      %v1934 = vpop.f32.mrb[0].mxu0
      %1935 = vmatprep.mubr.bf16.mxu0 0
      %1936 = vmatmul.mubr.bf16.gmra.mrb[0].mxu0 %v820
      %v1937 = vpop.f32.mrb[0].mxu0
      %v1938 = vadd.f32 %v1369, %v1937
      %v1939 = vpop.f32.mrb[0].mxu0
      %v1940 = vpop.f32.mrb[0].mxu0
      %v1941 = vadd.f32 %v1372, %v1940
      %v1942 = vpop.f32.mrb[0].mxu0
      %1943 = vmatprep.mubr.bf16.mxu0 0
      %1944 = vmatmul.mubr.bf16.gmra.mrb[0].mxu0 %v823
      %v1945 = vpop.f32.mrb[0].mxu0
      %v1946 = vadd.f32 %v1377, %v1945
      %v1947 = vpop.f32.mrb[0].mxu0
      %v1948 = vpop.f32.mrb[0].mxu0
      %v1949 = vadd.f32 %v1380, %v1948
      %v1950 = vpop.f32.mrb[0].mxu0
      %1951 = vdwg.mxu0
      %s1952 = scalar_lea.vmem %s1, 16
      %v1953 = vld [vmem:[%s1952] sm:$0xf]
      %v1954 = vld [vmem:[%s1952 + $0x4] sm:$0x1]
      %v1959 = vunpack.c.l.b16 %v304
      %v1960 = vunpack.c.l.b16 %v305
      %v1961 = vunpack.c.l.b16 %v306
      %v1962 = vunpack.c.l.b16 %v307
      %v1963 = vpack.c.b16 %v1960, %v1959
      %v1964 = vpack.c.b16 %v1962, %v1961
      %v1967 = vunpack.c.l.b16 %v1953
      %v1968 = vunpack.c.l.b16 %v1954
      %v1969 = vpack.c.b16 %v1968, %v1967
      %v1971 = vsel %vm638, %v1963, 0
      %v1974 = vsel %vm638, %v1964, 0
      %v1977 = vand.u32 %v1969, %v834
      %1979 = vmatprep.subr.bf16.mxu0 0
      %1980 = vmatpush1.bf16.msra.mxu0 %v1977
      %1981 = vmatprep.subr.bf16.mxu0 0
      %1982 = vmatpush1.bf16.msra.mxu0 0
      %1983 = vmatprep.subr.bf16.mxu0 0
      %1984 = vmatpush1.bf16.msra.mxu0 0
      %1985 = vmatprep.subr.bf16.mxu0 0
      %1986 = vmatpush1.bf16.msra.mxu0 0
      %1987 = vmatprep.subr.bf16.mxu0 0
      %1988 = vmatpush1.bf16.msra.mxu0 0
      %1989 = vmatprep.subr.bf16.mxu0 0
      %1990 = vmatpush1.bf16.msra.mxu0 0
      %1991 = vmatprep.subr.bf16.mxu0 0
      %1992 = vmatpush1.bf16.msra.mxu0 0
      %1993 = vmatprep.subr.bf16.mxu0 0
      %1994 = vmatpush1.bf16.msra.mxu0 0
      %1995 = vmatprep.subr.bf16.mxu0 0
      %1996 = vmatpush1.bf16.msra.mxu0 0
      %1997 = vmatprep.subr.bf16.mxu0 0
      %1998 = vmatpush1.bf16.msra.mxu0 0
      %1999 = vmatprep.subr.bf16.mxu0 0
      %2000 = vmatpush1.bf16.msra.mxu0 0
      %2001 = vmatprep.subr.bf16.mxu0 0
      %2002 = vmatpush1.bf16.msra.mxu0 0
      %2003 = vmatprep.subr.bf16.mxu0 0
      %2004 = vmatpush1.bf16.msra.mxu0 0
      %2005 = vmatprep.subr.bf16.mxu0 0
      %2006 = vmatpush1.bf16.msra.mxu0 0
      %2007 = vmatprep.subr.bf16.mxu0 0
      %2008 = vmatpush1.bf16.msra.mxu0 0
      %2009 = vmatprep.subr.bf16.mxu0 0
      %2010 = vmatpush1.bf16.msra.mxu0 0
      %2011 = vmatprep.mubr.bf16.mxu0 0
      %2012 = vmatmul.mubr.bf16.gmra.mrb[0].mxu0 %v646
      %v2013 = vpop.f32.mrb[0].mxu0
      %v2014 = vadd.f32 0.0, %v2013
      %v2015 = vpop.f32.mrb[0].mxu0
      %v2016 = vpop.f32.mrb[0].mxu0
      %v2017 = vadd.f32 0.0, %v2016
      %v2018 = vpop.f32.mrb[0].mxu0
      %2019 = vmatprep.mubr.bf16.mxu0 0
      %2020 = vmatmul.mubr.bf16.gmra.mrb[0].mxu0 %v649
      %v2021 = vpop.f32.mrb[0].mxu0
      %v2022 = vadd.f32 0.0, %v2021
      %v2023 = vpop.f32.mrb[0].mxu0
      %v2024 = vpop.f32.mrb[0].mxu0
      %v2025 = vadd.f32 0.0, %v2024
      %v2026 = vpop.f32.mrb[0].mxu0
      %2027 = vmatprep.mubr.bf16.mxu0 0
      %2028 = vmatmul.mubr.bf16.gmra.mrb[0].mxu0 %v652
      %v2029 = vpop.f32.mrb[0].mxu0
      %v2030 = vadd.f32 0.0, %v2029
      %v2031 = vpop.f32.mrb[0].mxu0
      %v2032 = vpop.f32.mrb[0].mxu0
      %v2033 = vadd.f32 0.0, %v2032
      %v2034 = vpop.f32.mrb[0].mxu0
      %2035 = vmatprep.mubr.bf16.mxu0 0
      %2036 = vmatmul.mubr.bf16.gmra.mrb[0].mxu0 %v655
      %v2037 = vpop.f32.mrb[0].mxu0
      %v2038 = vadd.f32 0.0, %v2037
      %v2039 = vpop.f32.mrb[0].mxu0
      %v2040 = vpop.f32.mrb[0].mxu0
      %v2041 = vadd.f32 0.0, %v2040
      %v2042 = vpop.f32.mrb[0].mxu0
      %2043 = vmatprep.mubr.bf16.mxu0 0
      %2044 = vmatmul.mubr.bf16.gmra.mrb[0].mxu0 %v658
      %v2045 = vpop.f32.mrb[0].mxu0
      %v2046 = vadd.f32 0.0, %v2045
      %v2047 = vpop.f32.mrb[0].mxu0
      %v2048 = vpop.f32.mrb[0].mxu0
      %v2049 = vadd.f32 0.0, %v2048
      %v2050 = vpop.f32.mrb[0].mxu0
      %2051 = vmatprep.mubr.bf16.mxu0 0
      %2052 = vmatmul.mubr.bf16.gmra.mrb[0].mxu0 %v661
      %v2053 = vpop.f32.mrb[0].mxu0
      %v2054 = vadd.f32 0.0, %v2053
      %v2055 = vpop.f32.mrb[0].mxu0
      %v2056 = vpop.f32.mrb[0].mxu0
      %v2057 = vadd.f32 0.0, %v2056
      %v2058 = vpop.f32.mrb[0].mxu0
      %2059 = vmatprep.mubr.bf16.mxu0 0
      %2060 = vmatmul.mubr.bf16.gmra.mrb[0].mxu0 %v664
      %v2061 = vpop.f32.mrb[0].mxu0
      %v2062 = vadd.f32 0.0, %v2061
      %v2063 = vpop.f32.mrb[0].mxu0
      %v2064 = vpop.f32.mrb[0].mxu0
      %v2065 = vadd.f32 0.0, %v2064
      %v2066 = vpop.f32.mrb[0].mxu0
      %2067 = vmatprep.mubr.bf16.mxu0 0
      %2068 = vmatmul.mubr.bf16.gmra.mrb[0].mxu0 %v667
      %v2069 = vpop.f32.mrb[0].mxu0
      %v2070 = vadd.f32 0.0, %v2069
      %v2071 = vpop.f32.mrb[0].mxu0
      %v2072 = vpop.f32.mrb[0].mxu0
      %v2073 = vadd.f32 0.0, %v2072
      %v2074 = vpop.f32.mrb[0].mxu0
      %2075 = vmatprep.mubr.bf16.mxu0 0
      %2076 = vmatmul.mubr.bf16.gmra.mrb[0].mxu0 %v670
      %v2077 = vpop.f32.mrb[0].mxu0
      %v2078 = vadd.f32 0.0, %v2077
      %v2079 = vpop.f32.mrb[0].mxu0
      %v2080 = vpop.f32.mrb[0].mxu0
      %v2081 = vadd.f32 0.0, %v2080
      %v2082 = vpop.f32.mrb[0].mxu0
      %2083 = vmatprep.mubr.bf16.mxu0 0
      %2084 = vmatmul.mubr.bf16.gmra.mrb[0].mxu0 %v673
      %v2085 = vpop.f32.mrb[0].mxu0
      %v2086 = vadd.f32 0.0, %v2085
      %v2087 = vpop.f32.mrb[0].mxu0
      %v2088 = vpop.f32.mrb[0].mxu0
      %v2089 = vadd.f32 0.0, %v2088
      %v2090 = vpop.f32.mrb[0].mxu0
      %2091 = vmatprep.mubr.bf16.mxu0 0
      %2092 = vmatmul.mubr.bf16.gmra.mrb[0].mxu0 %v676
      %v2093 = vpop.f32.mrb[0].mxu0
      %v2094 = vadd.f32 0.0, %v2093
      %v2095 = vpop.f32.mrb[0].mxu0
      %v2096 = vpop.f32.mrb[0].mxu0
      %v2097 = vadd.f32 0.0, %v2096
      %v2098 = vpop.f32.mrb[0].mxu0
      %2099 = vmatprep.mubr.bf16.mxu0 0
      %2100 = vmatmul.mubr.bf16.gmra.mrb[0].mxu0 %v679
      %v2101 = vpop.f32.mrb[0].mxu0
      %v2102 = vadd.f32 0.0, %v2101
      %v2103 = vpop.f32.mrb[0].mxu0
      %v2104 = vpop.f32.mrb[0].mxu0
      %v2105 = vadd.f32 0.0, %v2104
      %v2106 = vpop.f32.mrb[0].mxu0
      %2107 = vmatprep.mubr.bf16.mxu0 0
      %2108 = vmatmul.mubr.bf16.gmra.mrb[0].mxu0 %v682
      %v2109 = vpop.f32.mrb[0].mxu0
      %v2110 = vadd.f32 0.0, %v2109
      %v2111 = vpop.f32.mrb[0].mxu0
      %v2112 = vpop.f32.mrb[0].mxu0
      %v2113 = vadd.f32 0.0, %v2112
      %v2114 = vpop.f32.mrb[0].mxu0
      %2115 = vmatprep.mubr.bf16.mxu0 0
      %2116 = vmatmul.mubr.bf16.gmra.mrb[0].mxu0 %v685
      %v2117 = vpop.f32.mrb[0].mxu0
      %v2118 = vadd.f32 0.0, %v2117
      %v2119 = vpop.f32.mrb[0].mxu0
      %v2120 = vpop.f32.mrb[0].mxu0
      %v2121 = vadd.f32 0.0, %v2120
      %v2122 = vpop.f32.mrb[0].mxu0
      %2123 = vmatprep.mubr.bf16.mxu0 0
      %2124 = vmatmul.mubr.bf16.gmra.mrb[0].mxu0 %v688
      %v2125 = vpop.f32.mrb[0].mxu0
      %v2126 = vadd.f32 0.0, %v2125
      %v2127 = vpop.f32.mrb[0].mxu0
      %v2128 = vpop.f32.mrb[0].mxu0
      %v2129 = vadd.f32 0.0, %v2128
      %v2130 = vpop.f32.mrb[0].mxu0
      %2131 = vmatprep.mubr.bf16.mxu0 0
      %2132 = vmatmul.mubr.bf16.gmra.mrb[0].mxu0 %v691
      %v2133 = vpop.f32.mrb[0].mxu0
      %v2134 = vadd.f32 0.0, %v2133
      %v2135 = vpop.f32.mrb[0].mxu0
      %v2136 = vpop.f32.mrb[0].mxu0
      %v2137 = vadd.f32 0.0, %v2136
      %v2138 = vpop.f32.mrb[0].mxu0
      %2139 = vmatprep.mubr.bf16.mxu0 0
      %2140 = vmatmul.mubr.bf16.gmra.mrb[0].mxu0 %v694
      %v2141 = vpop.f32.mrb[0].mxu0
      %v2142 = vadd.f32 0.0, %v2141
      %v2143 = vpop.f32.mrb[0].mxu0
      %v2144 = vpop.f32.mrb[0].mxu0
      %v2145 = vadd.f32 0.0, %v2144
      %v2146 = vpop.f32.mrb[0].mxu0
      %2147 = vmatprep.mubr.bf16.mxu0 0
      %2148 = vmatmul.mubr.bf16.gmra.mrb[0].mxu0 %v697
      %v2149 = vpop.f32.mrb[0].mxu0
      %v2150 = vadd.f32 0.0, %v2149
      %v2151 = vpop.f32.mrb[0].mxu0
      %v2152 = vpop.f32.mrb[0].mxu0
      %v2153 = vadd.f32 0.0, %v2152
      %v2154 = vpop.f32.mrb[0].mxu0
      %2155 = vmatprep.mubr.bf16.mxu0 0
      %2156 = vmatmul.mubr.bf16.gmra.mrb[0].mxu0 %v700
      %v2157 = vpop.f32.mrb[0].mxu0
      %v2158 = vadd.f32 0.0, %v2157
      %v2159 = vpop.f32.mrb[0].mxu0
      %v2160 = vpop.f32.mrb[0].mxu0
      %v2161 = vadd.f32 0.0, %v2160
      %v2162 = vpop.f32.mrb[0].mxu0
      %2163 = vmatprep.mubr.bf16.mxu0 0
      %2164 = vmatmul.mubr.bf16.gmra.mrb[0].mxu0 %v703
      %v2165 = vpop.f32.mrb[0].mxu0
      %v2166 = vadd.f32 0.0, %v2165
      %v2167 = vpop.f32.mrb[0].mxu0
      %v2168 = vpop.f32.mrb[0].mxu0
      %v2169 = vadd.f32 0.0, %v2168
      %v2170 = vpop.f32.mrb[0].mxu0
      %2171 = vmatprep.mubr.bf16.mxu0 0
      %2172 = vmatmul.mubr.bf16.gmra.mrb[0].mxu0 %v706
      %v2173 = vpop.f32.mrb[0].mxu0
      %v2174 = vadd.f32 0.0, %v2173
      %v2175 = vpop.f32.mrb[0].mxu0
      %v2176 = vpop.f32.mrb[0].mxu0
      %v2177 = vadd.f32 0.0, %v2176
      %v2178 = vpop.f32.mrb[0].mxu0
      %2179 = vmatprep.mubr.bf16.mxu0 0
      %2180 = vmatmul.mubr.bf16.gmra.mrb[0].mxu0 %v709
      %v2181 = vpop.f32.mrb[0].mxu0
      %v2182 = vadd.f32 0.0, %v2181
      %v2183 = vpop.f32.mrb[0].mxu0
      %v2184 = vpop.f32.mrb[0].mxu0
      %v2185 = vadd.f32 0.0, %v2184
      %v2186 = vpop.f32.mrb[0].mxu0
      %2187 = vmatprep.mubr.bf16.mxu0 0
      %2188 = vmatmul.mubr.bf16.gmra.mrb[0].mxu0 %v712
      %v2189 = vpop.f32.mrb[0].mxu0
      %v2190 = vadd.f32 0.0, %v2189
      %v2191 = vpop.f32.mrb[0].mxu0
      %v2192 = vpop.f32.mrb[0].mxu0
      %v2193 = vadd.f32 0.0, %v2192
      %v2194 = vpop.f32.mrb[0].mxu0
      %2195 = vmatprep.mubr.bf16.mxu0 0
      %2196 = vmatmul.mubr.bf16.gmra.mrb[0].mxu0 %v715
      %v2197 = vpop.f32.mrb[0].mxu0
      %v2198 = vadd.f32 0.0, %v2197
      %v2199 = vpop.f32.mrb[0].mxu0
      %v2200 = vpop.f32.mrb[0].mxu0
      %v2201 = vadd.f32 0.0, %v2200
      %v2202 = vpop.f32.mrb[0].mxu0
      %2203 = vmatprep.mubr.bf16.mxu0 0
      %2204 = vmatmul.mubr.bf16.gmra.mrb[0].mxu0 %v718
      %v2205 = vpop.f32.mrb[0].mxu0
      %v2206 = vadd.f32 0.0, %v2205
      %v2207 = vpop.f32.mrb[0].mxu0
      %v2208 = vpop.f32.mrb[0].mxu0
      %v2209 = vadd.f32 0.0, %v2208
      %v2210 = vpop.f32.mrb[0].mxu0
      %2211 = vmatprep.mubr.bf16.mxu0 0
      %2212 = vmatmul.mubr.bf16.gmra.mrb[0].mxu0 %v721
      %v2213 = vpop.f32.mrb[0].mxu0
      %v2214 = vadd.f32 0.0, %v2213
      %v2215 = vpop.f32.mrb[0].mxu0
      %v2216 = vpop.f32.mrb[0].mxu0
      %v2217 = vadd.f32 0.0, %v2216
      %v2218 = vpop.f32.mrb[0].mxu0
      %2219 = vmatprep.mubr.bf16.mxu0 0
      %2220 = vmatmul.mubr.bf16.gmra.mrb[0].mxu0 %v724
      %v2221 = vpop.f32.mrb[0].mxu0
      %v2222 = vadd.f32 0.0, %v2221
      %v2223 = vpop.f32.mrb[0].mxu0
      %v2224 = vpop.f32.mrb[0].mxu0
      %v2225 = vadd.f32 0.0, %v2224
      %v2226 = vpop.f32.mrb[0].mxu0
      %2227 = vmatprep.mubr.bf16.mxu0 0
      %2228 = vmatmul.mubr.bf16.gmra.mrb[0].mxu0 %v727
      %v2229 = vpop.f32.mrb[0].mxu0
      %v2230 = vadd.f32 0.0, %v2229
      %v2231 = vpop.f32.mrb[0].mxu0
      %v2232 = vpop.f32.mrb[0].mxu0
      %v2233 = vadd.f32 0.0, %v2232
      %v2234 = vpop.f32.mrb[0].mxu0
      %2235 = vmatprep.mubr.bf16.mxu0 0
      %2236 = vmatmul.mubr.bf16.gmra.mrb[0].mxu0 %v730
      %v2237 = vpop.f32.mrb[0].mxu0
      %v2238 = vadd.f32 0.0, %v2237
      %v2239 = vpop.f32.mrb[0].mxu0
      %v2240 = vpop.f32.mrb[0].mxu0
      %v2241 = vadd.f32 0.0, %v2240
      %v2242 = vpop.f32.mrb[0].mxu0
      %2243 = vmatprep.mubr.bf16.mxu0 0
      %2244 = vmatmul.mubr.bf16.gmra.mrb[0].mxu0 %v733
      %v2245 = vpop.f32.mrb[0].mxu0
      %v2246 = vadd.f32 0.0, %v2245
      %v2247 = vpop.f32.mrb[0].mxu0
      %v2248 = vpop.f32.mrb[0].mxu0
      %v2249 = vadd.f32 0.0, %v2248
      %v2250 = vpop.f32.mrb[0].mxu0
      %2251 = vmatprep.mubr.bf16.mxu0 0
      %2252 = vmatmul.mubr.bf16.gmra.mrb[0].mxu0 %v736
      %v2253 = vpop.f32.mrb[0].mxu0
      %v2254 = vadd.f32 0.0, %v2253
      %v2255 = vpop.f32.mrb[0].mxu0
      %v2256 = vpop.f32.mrb[0].mxu0
      %v2257 = vadd.f32 0.0, %v2256
      %v2258 = vpop.f32.mrb[0].mxu0
      %2259 = vmatprep.mubr.bf16.mxu0 0
      %2260 = vmatmul.mubr.bf16.gmra.mrb[0].mxu0 %v739
      %v2261 = vpop.f32.mrb[0].mxu0
      %v2262 = vadd.f32 0.0, %v2261
      %v2263 = vpop.f32.mrb[0].mxu0
      %v2264 = vpop.f32.mrb[0].mxu0
      %v2265 = vadd.f32 0.0, %v2264
      %v2266 = vpop.f32.mrb[0].mxu0
      %2267 = vmatprep.mubr.bf16.mxu0 0
      %2268 = vmatmul.mubr.bf16.gmra.mrb[0].mxu0 %v742
      %v2269 = vpop.f32.mrb[0].mxu0
      %v2270 = vadd.f32 0.0, %v2269
      %v2271 = vpop.f32.mrb[0].mxu0
      %v2272 = vpop.f32.mrb[0].mxu0
      %v2273 = vadd.f32 0.0, %v2272
      %v2274 = vpop.f32.mrb[0].mxu0
      %2275 = vmatprep.mubr.bf16.mxu0 0
      %2276 = vmatmul.mubr.bf16.gmra.mrb[0].mxu0 %v745
      %v2277 = vpop.f32.mrb[0].mxu0
      %v2278 = vadd.f32 0.0, %v2277
      %v2279 = vpop.f32.mrb[0].mxu0
      %v2280 = vpop.f32.mrb[0].mxu0
      %v2281 = vadd.f32 0.0, %v2280
      %v2282 = vpop.f32.mrb[0].mxu0
      %2283 = vmatprep.mubr.bf16.mxu0 0
      %2284 = vmatmul.mubr.bf16.gmra.mrb[0].mxu0 %v748
      %v2285 = vpop.f32.mrb[0].mxu0
      %v2286 = vadd.f32 0.0, %v2285
      %v2287 = vpop.f32.mrb[0].mxu0
      %v2288 = vpop.f32.mrb[0].mxu0
      %v2289 = vadd.f32 0.0, %v2288
      %v2290 = vpop.f32.mrb[0].mxu0
      %2291 = vmatprep.mubr.bf16.mxu0 0
      %2292 = vmatmul.mubr.bf16.gmra.mrb[0].mxu0 %v751
      %v2293 = vpop.f32.mrb[0].mxu0
      %v2294 = vadd.f32 0.0, %v2293
      %v2295 = vpop.f32.mrb[0].mxu0
      %v2296 = vpop.f32.mrb[0].mxu0
      %v2297 = vadd.f32 0.0, %v2296
      %v2298 = vpop.f32.mrb[0].mxu0
      %2299 = vmatprep.mubr.bf16.mxu0 0
      %2300 = vmatmul.mubr.bf16.gmra.mrb[0].mxu0 %v754
      %v2301 = vpop.f32.mrb[0].mxu0
      %v2302 = vadd.f32 0.0, %v2301
      %v2303 = vpop.f32.mrb[0].mxu0
      %v2304 = vpop.f32.mrb[0].mxu0
      %v2305 = vadd.f32 0.0, %v2304
      %v2306 = vpop.f32.mrb[0].mxu0
      %2307 = vmatprep.mubr.bf16.mxu0 0
      %2308 = vmatmul.mubr.bf16.gmra.mrb[0].mxu0 %v757
      %v2309 = vpop.f32.mrb[0].mxu0
      %v2310 = vadd.f32 0.0, %v2309
      %v2311 = vpop.f32.mrb[0].mxu0
      %v2312 = vpop.f32.mrb[0].mxu0
      %v2313 = vadd.f32 0.0, %v2312
      %v2314 = vpop.f32.mrb[0].mxu0
      %2315 = vmatprep.mubr.bf16.mxu0 0
      %2316 = vmatmul.mubr.bf16.gmra.mrb[0].mxu0 %v760
      %v2317 = vpop.f32.mrb[0].mxu0
      %v2318 = vadd.f32 0.0, %v2317
      %v2319 = vpop.f32.mrb[0].mxu0
      %v2320 = vpop.f32.mrb[0].mxu0
      %v2321 = vadd.f32 0.0, %v2320
      %v2322 = vpop.f32.mrb[0].mxu0
      %2323 = vmatprep.mubr.bf16.mxu0 0
      %2324 = vmatmul.mubr.bf16.gmra.mrb[0].mxu0 %v763
      %v2325 = vpop.f32.mrb[0].mxu0
      %v2326 = vadd.f32 0.0, %v2325
      %v2327 = vpop.f32.mrb[0].mxu0
      %v2328 = vpop.f32.mrb[0].mxu0
      %v2329 = vadd.f32 0.0, %v2328
      %v2330 = vpop.f32.mrb[0].mxu0
      %2331 = vmatprep.mubr.bf16.mxu0 0
      %2332 = vmatmul.mubr.bf16.gmra.mrb[0].mxu0 %v766
      %v2333 = vpop.f32.mrb[0].mxu0
      %v2334 = vadd.f32 0.0, %v2333
      %v2335 = vpop.f32.mrb[0].mxu0
      %v2336 = vpop.f32.mrb[0].mxu0
      %v2337 = vadd.f32 0.0, %v2336
      %v2338 = vpop.f32.mrb[0].mxu0
      %2339 = vmatprep.mubr.bf16.mxu0 0
      %2340 = vmatmul.mubr.bf16.gmra.mrb[0].mxu0 %v769
      %v2341 = vpop.f32.mrb[0].mxu0
      %v2342 = vadd.f32 0.0, %v2341
      %v2343 = vpop.f32.mrb[0].mxu0
      %v2344 = vpop.f32.mrb[0].mxu0
      %v2345 = vadd.f32 0.0, %v2344
      %v2346 = vpop.f32.mrb[0].mxu0
      %2347 = vmatprep.mubr.bf16.mxu0 0
      %2348 = vmatmul.mubr.bf16.gmra.mrb[0].mxu0 %v772
      %v2349 = vpop.f32.mrb[0].mxu0
      %v2350 = vadd.f32 0.0, %v2349
      %v2351 = vpop.f32.mrb[0].mxu0
      %v2352 = vpop.f32.mrb[0].mxu0
      %v2353 = vadd.f32 0.0, %v2352
      %v2354 = vpop.f32.mrb[0].mxu0
      %2355 = vmatprep.mubr.bf16.mxu0 0
      %2356 = vmatmul.mubr.bf16.gmra.mrb[0].mxu0 %v775
      %v2357 = vpop.f32.mrb[0].mxu0
      %v2358 = vadd.f32 0.0, %v2357
      %v2359 = vpop.f32.mrb[0].mxu0
      %v2360 = vpop.f32.mrb[0].mxu0
      %v2361 = vadd.f32 0.0, %v2360
      %v2362 = vpop.f32.mrb[0].mxu0
      %2363 = vmatprep.mubr.bf16.mxu0 0
      %2364 = vmatmul.mubr.bf16.gmra.mrb[0].mxu0 %v778
      %v2365 = vpop.f32.mrb[0].mxu0
      %v2366 = vadd.f32 0.0, %v2365
      %v2367 = vpop.f32.mrb[0].mxu0
      %v2368 = vpop.f32.mrb[0].mxu0
      %v2369 = vadd.f32 0.0, %v2368
      %v2370 = vpop.f32.mrb[0].mxu0
      %2371 = vmatprep.mubr.bf16.mxu0 0
      %2372 = vmatmul.mubr.bf16.gmra.mrb[0].mxu0 %v781
      %v2373 = vpop.f32.mrb[0].mxu0
      %v2374 = vadd.f32 0.0, %v2373
      %v2375 = vpop.f32.mrb[0].mxu0
      %v2376 = vpop.f32.mrb[0].mxu0
      %v2377 = vadd.f32 0.0, %v2376
      %v2378 = vpop.f32.mrb[0].mxu0
      %2379 = vmatprep.mubr.bf16.mxu0 0
      %2380 = vmatmul.mubr.bf16.gmra.mrb[0].mxu0 %v784
      %v2381 = vpop.f32.mrb[0].mxu0
      %v2382 = vadd.f32 0.0, %v2381
      %v2383 = vpop.f32.mrb[0].mxu0
      %v2384 = vpop.f32.mrb[0].mxu0
      %v2385 = vadd.f32 0.0, %v2384
      %v2386 = vpop.f32.mrb[0].mxu0
      %2387 = vmatprep.mubr.bf16.mxu0 0
      %2388 = vmatmul.mubr.bf16.gmra.mrb[0].mxu0 %v787
      %v2389 = vpop.f32.mrb[0].mxu0
      %v2390 = vadd.f32 0.0, %v2389
      %v2391 = vpop.f32.mrb[0].mxu0
      %v2392 = vpop.f32.mrb[0].mxu0
      %v2393 = vadd.f32 0.0, %v2392
      %v2394 = vpop.f32.mrb[0].mxu0
      %2395 = vmatprep.mubr.bf16.mxu0 0
      %2396 = vmatmul.mubr.bf16.gmra.mrb[0].mxu0 %v790
      %v2397 = vpop.f32.mrb[0].mxu0
      %v2398 = vadd.f32 0.0, %v2397
      %v2399 = vpop.f32.mrb[0].mxu0
      %v2400 = vpop.f32.mrb[0].mxu0
      %v2401 = vadd.f32 0.0, %v2400
      %v2402 = vpop.f32.mrb[0].mxu0
      %2403 = vmatprep.mubr.bf16.mxu0 0
      %2404 = vmatmul.mubr.bf16.gmra.mrb[0].mxu0 %v793
      %v2405 = vpop.f32.mrb[0].mxu0
      %v2406 = vadd.f32 0.0, %v2405
      %v2407 = vpop.f32.mrb[0].mxu0
      %v2408 = vpop.f32.mrb[0].mxu0
      %v2409 = vadd.f32 0.0, %v2408
      %v2410 = vpop.f32.mrb[0].mxu0
      %2411 = vmatprep.mubr.bf16.mxu0 0
      %2412 = vmatmul.mubr.bf16.gmra.mrb[0].mxu0 %v796
      %v2413 = vpop.f32.mrb[0].mxu0
      %v2414 = vadd.f32 0.0, %v2413
      %v2415 = vpop.f32.mrb[0].mxu0
      %v2416 = vpop.f32.mrb[0].mxu0
      %v2417 = vadd.f32 0.0, %v2416
      %v2418 = vpop.f32.mrb[0].mxu0
      %2419 = vmatprep.mubr.bf16.mxu0 0
      %2420 = vmatmul.mubr.bf16.gmra.mrb[0].mxu0 %v799
      %v2421 = vpop.f32.mrb[0].mxu0
      %v2422 = vadd.f32 0.0, %v2421
      %v2423 = vpop.f32.mrb[0].mxu0
      %v2424 = vpop.f32.mrb[0].mxu0
      %v2425 = vadd.f32 0.0, %v2424
      %v2426 = vpop.f32.mrb[0].mxu0
      %2427 = vmatprep.mubr.bf16.mxu0 0
      %2428 = vmatmul.mubr.bf16.gmra.mrb[0].mxu0 %v802
      %v2429 = vpop.f32.mrb[0].mxu0
      %v2430 = vadd.f32 0.0, %v2429
      %v2431 = vpop.f32.mrb[0].mxu0
      %v2432 = vpop.f32.mrb[0].mxu0
      %v2433 = vadd.f32 0.0, %v2432
      %v2434 = vpop.f32.mrb[0].mxu0
      %2435 = vmatprep.mubr.bf16.mxu0 0
      %2436 = vmatmul.mubr.bf16.gmra.mrb[0].mxu0 %v805
      %v2437 = vpop.f32.mrb[0].mxu0
      %v2438 = vadd.f32 0.0, %v2437
      %v2439 = vpop.f32.mrb[0].mxu0
      %v2440 = vpop.f32.mrb[0].mxu0
      %v2441 = vadd.f32 0.0, %v2440
      %v2442 = vpop.f32.mrb[0].mxu0
      %2443 = vmatprep.mubr.bf16.mxu0 0
      %2444 = vmatmul.mubr.bf16.gmra.mrb[0].mxu0 %v808
      %v2445 = vpop.f32.mrb[0].mxu0
      %v2446 = vadd.f32 0.0, %v2445
      %v2447 = vpop.f32.mrb[0].mxu0
      %v2448 = vpop.f32.mrb[0].mxu0
      %v2449 = vadd.f32 0.0, %v2448
      %v2450 = vpop.f32.mrb[0].mxu0
      %2451 = vmatprep.mubr.bf16.mxu0 0
      %2452 = vmatmul.mubr.bf16.gmra.mrb[0].mxu0 %v811
      %v2453 = vpop.f32.mrb[0].mxu0
      %v2454 = vadd.f32 0.0, %v2453
      %v2455 = vpop.f32.mrb[0].mxu0
      %v2456 = vpop.f32.mrb[0].mxu0
      %v2457 = vadd.f32 0.0, %v2456
      %v2458 = vpop.f32.mrb[0].mxu0
      %2459 = vmatprep.mubr.bf16.mxu0 0
      %2460 = vmatmul.mubr.bf16.gmra.mrb[0].mxu0 %v814
      %v2461 = vpop.f32.mrb[0].mxu0
      %v2462 = vadd.f32 0.0, %v2461
      %v2463 = vpop.f32.mrb[0].mxu0
      %v2464 = vpop.f32.mrb[0].mxu0
      %v2465 = vadd.f32 0.0, %v2464
      %v2466 = vpop.f32.mrb[0].mxu0
      %2467 = vmatprep.mubr.bf16.mxu0 0
      %2468 = vmatmul.mubr.bf16.gmra.mrb[0].mxu0 %v817
      %v2469 = vpop.f32.mrb[0].mxu0
      %v2470 = vadd.f32 0.0, %v2469
      %v2471 = vpop.f32.mrb[0].mxu0
      %v2472 = vpop.f32.mrb[0].mxu0
      %v2473 = vadd.f32 0.0, %v2472
      %v2474 = vpop.f32.mrb[0].mxu0
      %2475 = vmatprep.mubr.bf16.mxu0 0
      %2476 = vmatmul.mubr.bf16.gmra.mrb[0].mxu0 %v820
      %v2477 = vpop.f32.mrb[0].mxu0
      %v2478 = vadd.f32 0.0, %v2477
      %v2479 = vpop.f32.mrb[0].mxu0
      %v2480 = vpop.f32.mrb[0].mxu0
      %v2481 = vadd.f32 0.0, %v2480
      %v2482 = vpop.f32.mrb[0].mxu0
      %2483 = vmatprep.mubr.bf16.mxu0 0
      %2484 = vmatmul.mubr.bf16.gmra.mrb[0].mxu0 %v823
      %v2485 = vpop.f32.mrb[0].mxu0
      %v2486 = vadd.f32 0.0, %v2485
      %v2487 = vpop.f32.mrb[0].mxu0
      %v2488 = vpop.f32.mrb[0].mxu0
      %v2489 = vadd.f32 0.0, %v2488
      %v2490 = vpop.f32.mrb[0].mxu0
      %2491 = vmatprep.mubr.bf16.mxu0 0
      %2492 = vmatmul.mubr.bf16.gmra.mrb[0].mxu0 %v826
      %v2493 = vpop.f32.mrb[0].mxu0
      %v2494 = vadd.f32 0.0, %v2493
      %v2495 = vpop.f32.mrb[0].mxu0
      %v2496 = vpop.f32.mrb[0].mxu0
      %v2497 = vadd.f32 0.0, %v2496
      %v2498 = vpop.f32.mrb[0].mxu0
      %2499 = vmatprep.mubr.bf16.mxu0 0
      %2500 = vmatmul.mubr.bf16.gmra.mrb[0].mxu0 %v829
      %v2501 = vpop.f32.mrb[0].mxu0
      %v2502 = vadd.f32 0.0, %v2501
      %v2503 = vpop.f32.mrb[0].mxu0
      %v2504 = vpop.f32.mrb[0].mxu0
      %v2505 = vadd.f32 0.0, %v2504
      %v2506 = vpop.f32.mrb[0].mxu0
      %2507 = vmatprep.mubr.bf16.mxu0 0
      %2508 = vmatmul.mubr.bf16.gmra.mrb[0].mxu0 %v1971
      %v2509 = vpop.f32.mrb[0].mxu0
      %v2510 = vadd.f32 0.0, %v2509
      %v2511 = vpop.f32.mrb[0].mxu0
      %v2512 = vpop.f32.mrb[0].mxu0
      %v2513 = vadd.f32 0.0, %v2512
      %v2514 = vpop.f32.mrb[0].mxu0
      %2515 = vmatprep.mubr.bf16.mxu0 0
      %2516 = vmatmul.mubr.bf16.gmra.mrb[0].mxu0 %v1974
      %v2517 = vpop.f32.mrb[0].mxu0
      %v2518 = vadd.f32 0.0, %v2517
      %v2519 = vpop.f32.mrb[0].mxu0
      %v2520 = vpop.f32.mrb[0].mxu0
      %v2521 = vadd.f32 0.0, %v2520
      %v2522 = vpop.f32.mrb[0].mxu0
      %2523 = vdwg.mxu0
      %v2524 = vadd.f32 %v1442, %v2014
      %v2525 = vadd.f32 %v1445, %v2017
      %v2526 = vadd.f32 %v1450, %v2022
      %v2527 = vadd.f32 %v1453, %v2025
      %v2528 = vadd.f32 %v1458, %v2030
      %v2529 = vadd.f32 %v1461, %v2033
      %v2530 = vadd.f32 %v1466, %v2038
      %v2531 = vadd.f32 %v1469, %v2041
      %v2532 = vadd.f32 %v1474, %v2046
      %v2533 = vadd.f32 %v1477, %v2049
      %v2534 = vadd.f32 %v1482, %v2054
      %v2535 = vadd.f32 %v1485, %v2057
      %v2536 = vadd.f32 %v1490, %v2062
      %v2537 = vadd.f32 %v1493, %v2065
      %v2538 = vadd.f32 %v1498, %v2070
      %v2539 = vadd.f32 %v1501, %v2073
      %v2540 = vadd.f32 %v1506, %v2078
      %v2541 = vadd.f32 %v1509, %v2081
      %v2542 = vadd.f32 %v1514, %v2086
      %v2543 = vadd.f32 %v1517, %v2089
      %v2544 = vadd.f32 %v1522, %v2094
      %v2545 = vadd.f32 %v1525, %v2097
      %v2546 = vadd.f32 %v1530, %v2102
      %v2547 = vadd.f32 %v1533, %v2105
      %v2548 = vadd.f32 %v1538, %v2110
      %v2549 = vadd.f32 %v1541, %v2113
      %v2550 = vadd.f32 %v1546, %v2118
      %v2551 = vadd.f32 %v1549, %v2121
      %v2552 = vadd.f32 %v1554, %v2126
      %v2553 = vadd.f32 %v1557, %v2129
      %v2554 = vadd.f32 %v1562, %v2134
      %v2555 = vadd.f32 %v1565, %v2137
      %v2556 = vadd.f32 %v1570, %v2142
      %v2557 = vadd.f32 %v1573, %v2145
      %v2558 = vadd.f32 %v1578, %v2150
      %v2559 = vadd.f32 %v1581, %v2153
      %v2560 = vadd.f32 %v1586, %v2158
      %v2561 = vadd.f32 %v1589, %v2161
      %v2562 = vadd.f32 %v1594, %v2166
      %v2563 = vadd.f32 %v1597, %v2169
      %v2564 = vadd.f32 %v1602, %v2174
      %v2565 = vadd.f32 %v1605, %v2177
      %v2566 = vadd.f32 %v1610, %v2182
      %v2567 = vadd.f32 %v1613, %v2185
      %v2568 = vadd.f32 %v1618, %v2190
      %v2569 = vadd.f32 %v1621, %v2193
      %v2570 = vadd.f32 %v1626, %v2198
      %v2571 = vadd.f32 %v1629, %v2201
      %v2572 = vadd.f32 %v1634, %v2206
      %v2573 = vadd.f32 %v1637, %v2209
      %v2574 = vadd.f32 %v1642, %v2214
      %v2575 = vadd.f32 %v1645, %v2217
      %v2576 = vadd.f32 %v1650, %v2222
      %v2577 = vadd.f32 %v1653, %v2225
      %v2578 = vadd.f32 %v1658, %v2230
      %v2579 = vadd.f32 %v1661, %v2233
      %v2580 = vadd.f32 %v1666, %v2238
      %v2581 = vadd.f32 %v1669, %v2241
      %v2582 = vadd.f32 %v1674, %v2246
      %v2583 = vadd.f32 %v1677, %v2249
      %v2584 = vadd.f32 %v1682, %v2254
      %v2585 = vadd.f32 %v1685, %v2257
      %v2586 = vadd.f32 %v1690, %v2262
      %v2587 = vadd.f32 %v1693, %v2265
      %v2588 = vadd.f32 %v1698, %v2270
      %v2589 = vadd.f32 %v1701, %v2273
      %v2590 = vadd.f32 %v1706, %v2278
      %v2591 = vadd.f32 %v1709, %v2281
      %v2592 = vadd.f32 %v1714, %v2286
      %v2593 = vadd.f32 %v1717, %v2289
      %v2594 = vadd.f32 %v1722, %v2294
      %v2595 = vadd.f32 %v1725, %v2297
      %v2596 = vadd.f32 %v1730, %v2302
      %v2597 = vadd.f32 %v1733, %v2305
      %v2598 = vadd.f32 %v1738, %v2310
      %v2599 = vadd.f32 %v1741, %v2313
      %v2600 = vadd.f32 %v1746, %v2318
      %v2601 = vadd.f32 %v1749, %v2321
      %v2602 = vadd.f32 %v1754, %v2326
      %v2603 = vadd.f32 %v1757, %v2329
      %v2604 = vadd.f32 %v1762, %v2334
      %v2605 = vadd.f32 %v1765, %v2337
      %v2606 = vadd.f32 %v1770, %v2342
      %v2607 = vadd.f32 %v1773, %v2345
      %v2608 = vadd.f32 %v1778, %v2350
      %v2609 = vadd.f32 %v1781, %v2353
      %v2610 = vadd.f32 %v1786, %v2358
      %v2611 = vadd.f32 %v1789, %v2361
      %v2612 = vadd.f32 %v1794, %v2366
      %v2613 = vadd.f32 %v1797, %v2369
      %v2614 = vadd.f32 %v1802, %v2374
      %v2615 = vadd.f32 %v1805, %v2377
      %v2616 = vadd.f32 %v1810, %v2382
      %v2617 = vadd.f32 %v1813, %v2385
      %v2618 = vadd.f32 %v1818, %v2390
      %v2619 = vadd.f32 %v1821, %v2393
      %v2620 = vadd.f32 %v1826, %v2398
      %v2621 = vadd.f32 %v1829, %v2401
      %v2622 = vadd.f32 %v1834, %v2406
      %v2623 = vadd.f32 %v1837, %v2409
      %v2624 = vadd.f32 %v1842, %v2414
      %v2625 = vadd.f32 %v1845, %v2417
      %v2626 = vadd.f32 %v1850, %v2422
      %v2627 = vadd.f32 %v1853, %v2425
      %v2628 = vadd.f32 %v1858, %v2430
      %v2629 = vadd.f32 %v1861, %v2433
      %v2630 = vadd.f32 %v1866, %v2438
      %v2631 = vadd.f32 %v1869, %v2441
      %v2632 = vadd.f32 %v1874, %v2446
      %v2633 = vadd.f32 %v1877, %v2449
      %v2634 = vadd.f32 %v1882, %v2454
      %v2635 = vadd.f32 %v1885, %v2457
      %v2636 = vadd.f32 %v1890, %v2462
      %v2637 = vadd.f32 %v1893, %v2465
      %v2638 = vadd.f32 %v1898, %v2470
      %v2639 = vadd.f32 %v1901, %v2473
      %v2640 = vadd.f32 %v1906, %v2478
      %v2641 = vadd.f32 %v1909, %v2481
      %v2642 = vadd.f32 %v1914, %v2486
      %v2643 = vadd.f32 %v1917, %v2489
      %v2644 = vadd.f32 %v1922, %v2494
      %v2645 = vadd.f32 %v1925, %v2497
      %v2646 = vadd.f32 %v1930, %v2502
      %v2647 = vadd.f32 %v1933, %v2505
      %v2648 = vadd.f32 %v1938, %v2510
      %v2649 = vadd.f32 %v1941, %v2513
      %v2650 = vadd.f32 %v1946, %v2518
      %v2651 = vadd.f32 %v1949, %v2521
      %v2652 = vld [vmem:[%s2] sm:$0x1]
      %v2654 = vlaneseq
      %v2655 = vshrl.u32 %v2654, 7
      %v2656 = vsub.s32 0, %v2655
      %v2657 = vrot.slane %v2652, %v2656
      %v2659 = vadd.f32 %v2524, %v2657
      %v2660 = vadd.f32 %v2525, %v2657
      %v2661 = vadd.f32 %v2526, %v2657
      %v2662 = vadd.f32 %v2527, %v2657
      %v2663 = vadd.f32 %v2528, %v2657
      %v2664 = vadd.f32 %v2529, %v2657
      %v2665 = vadd.f32 %v2530, %v2657
      %v2666 = vadd.f32 %v2531, %v2657
      %v2667 = vadd.f32 %v2532, %v2657
      %v2668 = vadd.f32 %v2533, %v2657
      %v2669 = vadd.f32 %v2534, %v2657
      %v2670 = vadd.f32 %v2535, %v2657
      %v2671 = vadd.f32 %v2536, %v2657
      %v2672 = vadd.f32 %v2537, %v2657
      %v2673 = vadd.f32 %v2538, %v2657
      %v2674 = vadd.f32 %v2539, %v2657
      %v2675 = vadd.f32 %v2540, %v2657
      %v2676 = vadd.f32 %v2541, %v2657
      %v2677 = vadd.f32 %v2542, %v2657
      %v2678 = vadd.f32 %v2543, %v2657
      %v2679 = vadd.f32 %v2544, %v2657
      %v2680 = vadd.f32 %v2545, %v2657
      %v2681 = vadd.f32 %v2546, %v2657
      %v2682 = vadd.f32 %v2547, %v2657
      %v2683 = vadd.f32 %v2548, %v2657
      %v2684 = vadd.f32 %v2549, %v2657
      %v2685 = vadd.f32 %v2550, %v2657
      %v2686 = vadd.f32 %v2551, %v2657
      %v2687 = vadd.f32 %v2552, %v2657
      %v2688 = vadd.f32 %v2553, %v2657
      %v2689 = vadd.f32 %v2554, %v2657
      %v2690 = vadd.f32 %v2555, %v2657
      %v2691 = vadd.f32 %v2556, %v2657
      %v2692 = vadd.f32 %v2557, %v2657
      %v2693 = vadd.f32 %v2558, %v2657
      %v2694 = vadd.f32 %v2559, %v2657
      %v2695 = vadd.f32 %v2560, %v2657
      %v2696 = vadd.f32 %v2561, %v2657
      %v2697 = vadd.f32 %v2562, %v2657
      %v2698 = vadd.f32 %v2563, %v2657
      %v2699 = vadd.f32 %v2564, %v2657
      %v2700 = vadd.f32 %v2565, %v2657
      %v2701 = vadd.f32 %v2566, %v2657
      %v2702 = vadd.f32 %v2567, %v2657
      %v2703 = vadd.f32 %v2568, %v2657
      %v2704 = vadd.f32 %v2569, %v2657
      %v2705 = vadd.f32 %v2570, %v2657
      %v2706 = vadd.f32 %v2571, %v2657
      %v2707 = vadd.f32 %v2572, %v2657
      %v2708 = vadd.f32 %v2573, %v2657
      %v2709 = vadd.f32 %v2574, %v2657
      %v2710 = vadd.f32 %v2575, %v2657
      %v2711 = vadd.f32 %v2576, %v2657
      %v2712 = vadd.f32 %v2577, %v2657
      %v2713 = vadd.f32 %v2578, %v2657
      %v2714 = vadd.f32 %v2579, %v2657
      %v2715 = vadd.f32 %v2580, %v2657
      %v2716 = vadd.f32 %v2581, %v2657
      %v2717 = vadd.f32 %v2582, %v2657
      %v2718 = vadd.f32 %v2583, %v2657
      %v2719 = vadd.f32 %v2584, %v2657
      %v2720 = vadd.f32 %v2585, %v2657
      %v2721 = vadd.f32 %v2586, %v2657
      %v2722 = vadd.f32 %v2587, %v2657
      %v2723 = vadd.f32 %v2588, %v2657
      %v2724 = vadd.f32 %v2589, %v2657
      %v2725 = vadd.f32 %v2590, %v2657
      %v2726 = vadd.f32 %v2591, %v2657
      %v2727 = vadd.f32 %v2592, %v2657
      %v2728 = vadd.f32 %v2593, %v2657
      %v2729 = vadd.f32 %v2594, %v2657
      %v2730 = vadd.f32 %v2595, %v2657
      %v2731 = vadd.f32 %v2596, %v2657
      %v2732 = vadd.f32 %v2597, %v2657
      %v2733 = vadd.f32 %v2598, %v2657
      %v2734 = vadd.f32 %v2599, %v2657
      %v2735 = vadd.f32 %v2600, %v2657
      %v2736 = vadd.f32 %v2601, %v2657
      %v2737 = vadd.f32 %v2602, %v2657
      %v2738 = vadd.f32 %v2603, %v2657
      %v2739 = vadd.f32 %v2604, %v2657
      %v2740 = vadd.f32 %v2605, %v2657
      %v2741 = vadd.f32 %v2606, %v2657
      %v2742 = vadd.f32 %v2607, %v2657
      %v2743 = vadd.f32 %v2608, %v2657
      %v2744 = vadd.f32 %v2609, %v2657
      %v2745 = vadd.f32 %v2610, %v2657
      %v2746 = vadd.f32 %v2611, %v2657
      %v2747 = vadd.f32 %v2612, %v2657
      %v2748 = vadd.f32 %v2613, %v2657
      %v2749 = vadd.f32 %v2614, %v2657
      %v2750 = vadd.f32 %v2615, %v2657
      %v2751 = vadd.f32 %v2616, %v2657
      %v2752 = vadd.f32 %v2617, %v2657
      %v2753 = vadd.f32 %v2618, %v2657
      %v2754 = vadd.f32 %v2619, %v2657
      %v2755 = vadd.f32 %v2620, %v2657
      %v2756 = vadd.f32 %v2621, %v2657
      %v2757 = vadd.f32 %v2622, %v2657
      %v2758 = vadd.f32 %v2623, %v2657
      %v2759 = vadd.f32 %v2624, %v2657
      %v2760 = vadd.f32 %v2625, %v2657
      %v2761 = vadd.f32 %v2626, %v2657
      %v2762 = vadd.f32 %v2627, %v2657
      %v2763 = vadd.f32 %v2628, %v2657
      %v2764 = vadd.f32 %v2629, %v2657
      %v2765 = vadd.f32 %v2630, %v2657
      %v2766 = vadd.f32 %v2631, %v2657
      %v2767 = vadd.f32 %v2632, %v2657
      %v2768 = vadd.f32 %v2633, %v2657
      %v2769 = vadd.f32 %v2634, %v2657
      %v2770 = vadd.f32 %v2635, %v2657
      %v2771 = vadd.f32 %v2636, %v2657
      %v2772 = vadd.f32 %v2637, %v2657
      %v2773 = vadd.f32 %v2638, %v2657
      %v2774 = vadd.f32 %v2639, %v2657
      %v2775 = vadd.f32 %v2640, %v2657
      %v2776 = vadd.f32 %v2641, %v2657
      %v2777 = vadd.f32 %v2642, %v2657
      %v2778 = vadd.f32 %v2643, %v2657
      %v2779 = vadd.f32 %v2644, %v2657
      %v2780 = vadd.f32 %v2645, %v2657
      %v2781 = vadd.f32 %v2646, %v2657
      %v2782 = vadd.f32 %v2647, %v2657
      %v2783 = vadd.f32 %v2648, %v2657
      %v2784 = vadd.f32 %v2649, %v2657
      %v2785 = vadd.f32 %v2650, %v2657
      %v2786 = vadd.f32 %v2651, %v2657
      %v2787 = vmax.f32 %v2659, 0.0
      %v2788 = vmax.f32 %v2660, 0.0
      %v2789 = vmax.f32 %v2661, 0.0
      %v2790 = vmax.f32 %v2662, 0.0
      %v2791 = vmax.f32 %v2663, 0.0
      %v2792 = vmax.f32 %v2664, 0.0
      %v2793 = vmax.f32 %v2665, 0.0
      %v2794 = vmax.f32 %v2666, 0.0
      %v2795 = vmax.f32 %v2667, 0.0
      %v2796 = vmax.f32 %v2668, 0.0
      %v2797 = vmax.f32 %v2669, 0.0
      %v2798 = vmax.f32 %v2670, 0.0
      %v2799 = vmax.f32 %v2671, 0.0
      %v2800 = vmax.f32 %v2672, 0.0
      %v2801 = vmax.f32 %v2673, 0.0
      %v2802 = vmax.f32 %v2674, 0.0
      %v2803 = vmax.f32 %v2675, 0.0
      %v2804 = vmax.f32 %v2676, 0.0
      %v2805 = vmax.f32 %v2677, 0.0
      %v2806 = vmax.f32 %v2678, 0.0
      %v2807 = vmax.f32 %v2679, 0.0
      %v2808 = vmax.f32 %v2680, 0.0
      %v2809 = vmax.f32 %v2681, 0.0
      %v2810 = vmax.f32 %v2682, 0.0
      %v2811 = vmax.f32 %v2683, 0.0
      %v2812 = vmax.f32 %v2684, 0.0
      %v2813 = vmax.f32 %v2685, 0.0
      %v2814 = vmax.f32 %v2686, 0.0
      %v2815 = vmax.f32 %v2687, 0.0
      %v2816 = vmax.f32 %v2688, 0.0
      %v2817 = vmax.f32 %v2689, 0.0
      %v2818 = vmax.f32 %v2690, 0.0
      %v2819 = vmax.f32 %v2691, 0.0
      %v2820 = vmax.f32 %v2692, 0.0
      %v2821 = vmax.f32 %v2693, 0.0
      %v2822 = vmax.f32 %v2694, 0.0
      %v2823 = vmax.f32 %v2695, 0.0
      %v2824 = vmax.f32 %v2696, 0.0
      %v2825 = vmax.f32 %v2697, 0.0
      %v2826 = vmax.f32 %v2698, 0.0
      %v2827 = vmax.f32 %v2699, 0.0
      %v2828 = vmax.f32 %v2700, 0.0
      %v2829 = vmax.f32 %v2701, 0.0
      %v2830 = vmax.f32 %v2702, 0.0
      %v2831 = vmax.f32 %v2703, 0.0
      %v2832 = vmax.f32 %v2704, 0.0
      %v2833 = vmax.f32 %v2705, 0.0
      %v2834 = vmax.f32 %v2706, 0.0
      %v2835 = vmax.f32 %v2707, 0.0
      %v2836 = vmax.f32 %v2708, 0.0
      %v2837 = vmax.f32 %v2709, 0.0
      %v2838 = vmax.f32 %v2710, 0.0
      %v2839 = vmax.f32 %v2711, 0.0
      %v2840 = vmax.f32 %v2712, 0.0
      %v2841 = vmax.f32 %v2713, 0.0
      %v2842 = vmax.f32 %v2714, 0.0
      %v2843 = vmax.f32 %v2715, 0.0
      %v2844 = vmax.f32 %v2716, 0.0
      %v2845 = vmax.f32 %v2717, 0.0
      %v2846 = vmax.f32 %v2718, 0.0
      %v2847 = vmax.f32 %v2719, 0.0
      %v2848 = vmax.f32 %v2720, 0.0
      %v2849 = vmax.f32 %v2721, 0.0
      %v2850 = vmax.f32 %v2722, 0.0
      %v2851 = vmax.f32 %v2723, 0.0
      %v2852 = vmax.f32 %v2724, 0.0
      %v2853 = vmax.f32 %v2725, 0.0
      %v2854 = vmax.f32 %v2726, 0.0
      %v2855 = vmax.f32 %v2727, 0.0
      %v2856 = vmax.f32 %v2728, 0.0
      %v2857 = vmax.f32 %v2729, 0.0
      %v2858 = vmax.f32 %v2730, 0.0
      %v2859 = vmax.f32 %v2731, 0.0
      %v2860 = vmax.f32 %v2732, 0.0
      %v2861 = vmax.f32 %v2733, 0.0
      %v2862 = vmax.f32 %v2734, 0.0
      %v2863 = vmax.f32 %v2735, 0.0
      %v2864 = vmax.f32 %v2736, 0.0
      %v2865 = vmax.f32 %v2737, 0.0
      %v2866 = vmax.f32 %v2738, 0.0
      %v2867 = vmax.f32 %v2739, 0.0
      %v2868 = vmax.f32 %v2740, 0.0
      %v2869 = vmax.f32 %v2741, 0.0
      %v2870 = vmax.f32 %v2742, 0.0
      %v2871 = vmax.f32 %v2743, 0.0
      %v2872 = vmax.f32 %v2744, 0.0
      %v2873 = vmax.f32 %v2745, 0.0
      %v2874 = vmax.f32 %v2746, 0.0
      %v2875 = vmax.f32 %v2747, 0.0
      %v2876 = vmax.f32 %v2748, 0.0
      %v2877 = vmax.f32 %v2749, 0.0
      %v2878 = vmax.f32 %v2750, 0.0
      %v2879 = vmax.f32 %v2751, 0.0
      %v2880 = vmax.f32 %v2752, 0.0
      %v2881 = vmax.f32 %v2753, 0.0
      %v2882 = vmax.f32 %v2754, 0.0
      %v2883 = vmax.f32 %v2755, 0.0
      %v2884 = vmax.f32 %v2756, 0.0
      %v2885 = vmax.f32 %v2757, 0.0
      %v2886 = vmax.f32 %v2758, 0.0
      %v2887 = vmax.f32 %v2759, 0.0
      %v2888 = vmax.f32 %v2760, 0.0
      %v2889 = vmax.f32 %v2761, 0.0
      %v2890 = vmax.f32 %v2762, 0.0
      %v2891 = vmax.f32 %v2763, 0.0
      %v2892 = vmax.f32 %v2764, 0.0
      %v2893 = vmax.f32 %v2765, 0.0
      %v2894 = vmax.f32 %v2766, 0.0
      %v2895 = vmax.f32 %v2767, 0.0
      %v2896 = vmax.f32 %v2768, 0.0
      %v2897 = vmax.f32 %v2769, 0.0
      %v2898 = vmax.f32 %v2770, 0.0
      %v2899 = vmax.f32 %v2771, 0.0
      %v2900 = vmax.f32 %v2772, 0.0
      %v2901 = vmax.f32 %v2773, 0.0
      %v2902 = vmax.f32 %v2774, 0.0
      %v2903 = vmax.f32 %v2775, 0.0
      %v2904 = vmax.f32 %v2776, 0.0
      %v2905 = vmax.f32 %v2777, 0.0
      %v2906 = vmax.f32 %v2778, 0.0
      %v2907 = vmax.f32 %v2779, 0.0
      %v2908 = vmax.f32 %v2780, 0.0
      %v2909 = vmax.f32 %v2781, 0.0
      %v2910 = vmax.f32 %v2782, 0.0
      %v2911 = vmax.f32 %v2783, 0.0
      %v2912 = vmax.f32 %v2784, 0.0
      %v2913 = vmax.f32 %v2785, 0.0
      %v2914 = vmax.f32 %v2786, 0.0
      %v2915 = vmax.f32 %v2787, %v2791
      %v2916 = vmax.f32 %v2788, %v2792
      %v2917 = vmax.f32 %v2789, %v2793
      %v2918 = vmax.f32 %v2790, %v2794
      %v2919 = vmax.f32 %v2795, %v2799
      %v2920 = vmax.f32 %v2796, %v2800
      %v2921 = vmax.f32 %v2797, %v2801
      %v2922 = vmax.f32 %v2798, %v2802
      %v2923 = vmax.f32 %v2803, %v2807
      %v2924 = vmax.f32 %v2804, %v2808
      %v2925 = vmax.f32 %v2805, %v2809
      %v2926 = vmax.f32 %v2806, %v2810
      %v2927 = vmax.f32 %v2811, %v2815
      %v2928 = vmax.f32 %v2812, %v2816
      %v2929 = vmax.f32 %v2813, %v2817
      %v2930 = vmax.f32 %v2814, %v2818
      %v2931 = vmax.f32 %v2819, %v2823
      %v2932 = vmax.f32 %v2820, %v2824
      %v2933 = vmax.f32 %v2821, %v2825
      %v2934 = vmax.f32 %v2822, %v2826
      %v2935 = vmax.f32 %v2827, %v2831
      %v2936 = vmax.f32 %v2828, %v2832
      %v2937 = vmax.f32 %v2829, %v2833
      %v2938 = vmax.f32 %v2830, %v2834
      %v2939 = vmax.f32 %v2835, %v2839
      %v2940 = vmax.f32 %v2836, %v2840
      %v2941 = vmax.f32 %v2837, %v2841
      %v2942 = vmax.f32 %v2838, %v2842
      %v2943 = vmax.f32 %v2843, %v2847
      %v2944 = vmax.f32 %v2844, %v2848
      %v2945 = vmax.f32 %v2845, %v2849
      %v2946 = vmax.f32 %v2846, %v2850
      %v2947 = vmax.f32 %v2851, %v2855
      %v2948 = vmax.f32 %v2852, %v2856
      %v2949 = vmax.f32 %v2853, %v2857
      %v2950 = vmax.f32 %v2854, %v2858
      %v2951 = vmax.f32 %v2859, %v2863
      %v2952 = vmax.f32 %v2860, %v2864
      %v2953 = vmax.f32 %v2861, %v2865
      %v2954 = vmax.f32 %v2862, %v2866
      %v2955 = vmax.f32 %v2867, %v2871
      %v2956 = vmax.f32 %v2868, %v2872
      %v2957 = vmax.f32 %v2869, %v2873
      %v2958 = vmax.f32 %v2870, %v2874
      %v2959 = vmax.f32 %v2875, %v2879
      %v2960 = vmax.f32 %v2876, %v2880
      %v2961 = vmax.f32 %v2877, %v2881
      %v2962 = vmax.f32 %v2878, %v2882
      %v2963 = vmax.f32 %v2883, %v2887
      %v2964 = vmax.f32 %v2884, %v2888
      %v2965 = vmax.f32 %v2885, %v2889
      %v2966 = vmax.f32 %v2886, %v2890
      %v2967 = vmax.f32 %v2891, %v2895
      %v2968 = vmax.f32 %v2892, %v2896
      %v2969 = vmax.f32 %v2893, %v2897
      %v2970 = vmax.f32 %v2894, %v2898
      %v2971 = vmax.f32 %v2899, %v2903
      %v2972 = vmax.f32 %v2900, %v2904
      %v2973 = vmax.f32 %v2901, %v2905
      %v2974 = vmax.f32 %v2902, %v2906
      %v2975 = vmax.f32 %v2907, %v2911
      %v2976 = vmax.f32 %v2908, %v2912
      %v2977 = vmax.f32 %v2909, %v2913
      %v2978 = vmax.f32 %v2910, %v2914
      %v2979 = vmax.f32 %v2915, %v2917
      %v2980 = vmax.f32 %v2916, %v2918
      %v2981 = vmax.f32 %v2919, %v2921
      %v2982 = vmax.f32 %v2920, %v2922
      %v2983 = vmax.f32 %v2923, %v2925
      %v2984 = vmax.f32 %v2924, %v2926
      %v2985 = vmax.f32 %v2927, %v2929
      %v2986 = vmax.f32 %v2928, %v2930
      %v2987 = vmax.f32 %v2931, %v2933
      %v2988 = vmax.f32 %v2932, %v2934
      %v2989 = vmax.f32 %v2935, %v2937
      %v2990 = vmax.f32 %v2936, %v2938
      %v2991 = vmax.f32 %v2939, %v2941
      %v2992 = vmax.f32 %v2940, %v2942
      %v2993 = vmax.f32 %v2943, %v2945
      %v2994 = vmax.f32 %v2944, %v2946
      %v2995 = vmax.f32 %v2947, %v2949
      %v2996 = vmax.f32 %v2948, %v2950
      %v2997 = vmax.f32 %v2951, %v2953
      %v2998 = vmax.f32 %v2952, %v2954
      %v2999 = vmax.f32 %v2955, %v2957
      %v3000 = vmax.f32 %v2956, %v2958
      %v3001 = vmax.f32 %v2959, %v2961
      %v3002 = vmax.f32 %v2960, %v2962
      %v3003 = vmax.f32 %v2963, %v2965
      %v3004 = vmax.f32 %v2964, %v2966
      %v3005 = vmax.f32 %v2967, %v2969
      %v3006 = vmax.f32 %v2968, %v2970
      %v3007 = vmax.f32 %v2971, %v2973
      %v3008 = vmax.f32 %v2972, %v2974
      %v3009 = vmax.f32 %v2975, %v2977
      %v3010 = vmax.f32 %v2976, %v2978
      %v3011 = vpack.c.bf16 %v2980, %v2979
      %v3012 = vpack.c.bf16 %v2982, %v2981
      %v3013 = vpack.c.bf16 %v2984, %v2983
      %v3014 = vpack.c.bf16 %v2986, %v2985
      %v3015 = vpack.c.bf16 %v2988, %v2987
      %v3016 = vpack.c.bf16 %v2990, %v2989
      %v3017 = vpack.c.bf16 %v2992, %v2991
      %v3018 = vpack.c.bf16 %v2994, %v2993
      %v3019 = vpack.c.bf16 %v2996, %v2995
      %v3020 = vpack.c.bf16 %v2998, %v2997
      %v3021 = vpack.c.bf16 %v3000, %v2999
      %v3022 = vpack.c.bf16 %v3002, %v3001
      %v3023 = vpack.c.bf16 %v3004, %v3003
      %v3024 = vpack.c.bf16 %v3006, %v3005
      %v3025 = vpack.c.bf16 %v3008, %v3007
      %v3026 = vpack.c.bf16 %v3010, %v3009
      %v3043 = vunpack.c.l.b16 %v3011
      %v3044 = vunpack.c.h.b16 %v3011
      %v3045 = vunpack.c.l.b16 %v3012
      %v3046 = vunpack.c.h.b16 %v3012
      %v3047 = vunpack.c.l.b16 %v3013
      %v3048 = vunpack.c.h.b16 %v3013
      %v3049 = vunpack.c.l.b16 %v3014
      %v3050 = vunpack.c.h.b16 %v3014
      %v3051 = vunpack.c.l.b16 %v3015
      %v3052 = vunpack.c.h.b16 %v3015
      %v3053 = vunpack.c.l.b16 %v3016
      %v3054 = vunpack.c.h.b16 %v3016
      %v3055 = vunpack.c.l.b16 %v3017
      %v3056 = vunpack.c.h.b16 %v3017
      %v3057 = vunpack.c.l.b16 %v3018
      %v3058 = vunpack.c.h.b16 %v3018
      %v3059 = vunpack.c.l.b16 %v3019
      %v3060 = vunpack.c.h.b16 %v3019
      %v3061 = vunpack.c.l.b16 %v3020
      %v3062 = vunpack.c.h.b16 %v3020
      %v3063 = vunpack.c.l.b16 %v3021
      %v3064 = vunpack.c.h.b16 %v3021
      %v3065 = vunpack.c.l.b16 %v3022
      %v3066 = vunpack.c.h.b16 %v3022
      %v3067 = vunpack.c.l.b16 %v3023
      %v3068 = vunpack.c.h.b16 %v3023
      %v3069 = vunpack.c.l.b16 %v3024
      %v3070 = vunpack.c.h.b16 %v3024
      %v3071 = vunpack.c.l.b16 %v3025
      %v3072 = vunpack.c.h.b16 %v3025
      %v3073 = vunpack.c.l.b16 %v3026
      %v3074 = vunpack.c.h.b16 %v3026
      %v3075 = vpack.c.b16 %v3043, %v3043
      %v3076 = vpack.c.b16 %v3044, %v3044
      %v3077 = vpack.c.b16 %v3045, %v3045
      %v3078 = vpack.c.b16 %v3046, %v3046
      %v3079 = vpack.c.b16 %v3047, %v3047
      %v3080 = vpack.c.b16 %v3048, %v3048
      %v3081 = vpack.c.b16 %v3049, %v3049
      %v3082 = vpack.c.b16 %v3050, %v3050
      %v3083 = vpack.c.b16 %v3051, %v3051
      %v3084 = vpack.c.b16 %v3052, %v3052
      %v3085 = vpack.c.b16 %v3053, %v3053
      %v3086 = vpack.c.b16 %v3054, %v3054
      %v3087 = vpack.c.b16 %v3055, %v3055
      %v3088 = vpack.c.b16 %v3056, %v3056
      %v3089 = vpack.c.b16 %v3057, %v3057
      %v3090 = vpack.c.b16 %v3058, %v3058
      %v3091 = vpack.c.b16 %v3059, %v3059
      %v3092 = vpack.c.b16 %v3060, %v3060
      %v3093 = vpack.c.b16 %v3061, %v3061
      %v3094 = vpack.c.b16 %v3062, %v3062
      %v3095 = vpack.c.b16 %v3063, %v3063
      %v3096 = vpack.c.b16 %v3064, %v3064
      %v3097 = vpack.c.b16 %v3065, %v3065
      %v3098 = vpack.c.b16 %v3066, %v3066
      %v3099 = vpack.c.b16 %v3067, %v3067
      %v3100 = vpack.c.b16 %v3068, %v3068
      %v3101 = vpack.c.b16 %v3069, %v3069
      %v3102 = vpack.c.b16 %v3070, %v3070
      %v3103 = vpack.c.b16 %v3071, %v3071
      %v3104 = vpack.c.b16 %v3072, %v3072
      %v3105 = vpack.c.b16 %v3073, %v3073
      %v3106 = vpack.c.b16 %v3074, %v3074
      %vm3139 = vcmask 257024
      %3140 = vst.msk [vmem:[%s170] sm:$0xf] %vm3139, %v3075
      %3141 = vst.msk [vmem:[%s170 + $0x4] sm:$0xf] %vm3139, %v3076
      %3142 = vst.msk [vmem:[%s170 + $0x8] sm:$0xf] %vm3139, %v3077
      %3143 = vst.msk [vmem:[%s170 + $0xc] sm:$0xf] %vm3139, %v3078
      %3144 = vst.msk [vmem:[%s170 + $0x10] sm:$0xf] %vm3139, %v3079
      %3145 = vst.msk [vmem:[%s170 + $0x14] sm:$0xf] %vm3139, %v3080
      %3146 = vst.msk [vmem:[%s170 + $0x18] sm:$0xf] %vm3139, %v3081
      %3147 = vst.msk [vmem:[%s170 + $0x1c] sm:$0xf] %vm3139, %v3082
      %3148 = vst.msk [vmem:[%s170 + $0x20] sm:$0xf] %vm3139, %v3083
      %3149 = vst.msk [vmem:[%s170 + $0x24] sm:$0xf] %vm3139, %v3084
      %3150 = vst.msk [vmem:[%s170 + $0x28] sm:$0xf] %vm3139, %v3085
      %3151 = vst.msk [vmem:[%s170 + $0x2c] sm:$0xf] %vm3139, %v3086
      %3152 = vst.msk [vmem:[%s170 + $0x30] sm:$0xf] %vm3139, %v3087
      %3153 = vst.msk [vmem:[%s170 + $0x34] sm:$0xf] %vm3139, %v3088
      %3154 = vst.msk [vmem:[%s170 + $0x38] sm:$0xf] %vm3139, %v3089
      %3155 = vst.msk [vmem:[%s170 + $0x3c] sm:$0xf] %vm3139, %v3090
      %3156 = vst.msk [vmem:[%s170 + $0x40] sm:$0xf] %vm3139, %v3091
      %3157 = vst.msk [vmem:[%s170 + $0x44] sm:$0xf] %vm3139, %v3092
      %3158 = vst.msk [vmem:[%s170 + $0x48] sm:$0xf] %vm3139, %v3093
      %3159 = vst.msk [vmem:[%s170 + $0x4c] sm:$0xf] %vm3139, %v3094
      %3160 = vst.msk [vmem:[%s170 + $0x50] sm:$0xf] %vm3139, %v3095
      %3161 = vst.msk [vmem:[%s170 + $0x54] sm:$0xf] %vm3139, %v3096
      %3162 = vst.msk [vmem:[%s170 + $0x58] sm:$0xf] %vm3139, %v3097
      %3163 = vst.msk [vmem:[%s170 + $0x5c] sm:$0xf] %vm3139, %v3098
      %3164 = vst.msk [vmem:[%s170 + $0x60] sm:$0xf] %vm3139, %v3099
      %3165 = vst.msk [vmem:[%s170 + $0x64] sm:$0xf] %vm3139, %v3100
      %3166 = vst.msk [vmem:[%s170 + $0x68] sm:$0xf] %vm3139, %v3101
      %3167 = vst.msk [vmem:[%s170 + $0x6c] sm:$0xf] %vm3139, %v3102
      %3168 = vst.msk [vmem:[%s170 + $0x70] sm:$0xf] %vm3139, %v3103
      %3169 = vst.msk [vmem:[%s170 + $0x74] sm:$0xf] %vm3139, %v3104
      %3170 = vst.msk [vmem:[%s170 + $0x78] sm:$0xf] %vm3139, %v3105
      %3171 = vst.msk [vmem:[%s170 + $0x7c] sm:$0xf] %vm3139, %v3106
      %p3172 = scmp.lt.s32.totalorder %s14, 1
      %s3173 = scalar_select %p3172, %s14, 1
      %s3174 = smul.addr %s3173, 32
      %s3175 = smul.addr %s3174, 4
      %s3176 = scalar_lea.vmem %s3, %s3175
      // Predicated region
      $region33: #{forward.6} parent=31 // pred_check
        %p3177 = pneg %p100
      $region34: #{forward.6} parent=31 // pred_check_branch
        %3179 = sbr.rel (%p3177) target = $region36
      $region35: #{forward.6} parent=31 // pred_region
        _
      $region36: #{forward.6} parent=31 // pred_fallthru
        _
    $region32: #{forward.6} parent=5 // pred_fallthru
      _
    %p3180 = scmp.le.s32.totalorder 2, %s9
    // Predicated region
    $region37: #{forward.6} parent=5 // pred_check
      %p3181 = pneg %p3180
    $region38: #{forward.6} parent=5 // pred_check_branch
      %3183 = sbr.rel (%p3181) target = $region40
    $region39: #{forward.6} parent=5 // pred_region
      %s3184 = ssub.s32 %s9, 2
      // Predicated region
      $region41: #{forward.6} parent=39 // pred_check
        %p3185 = pneg %p106
      $region42: #{forward.6} parent=39 // pred_check_branch
        %3187 = sbr.rel (%p3185) target = $region44
      $region43: #{forward.6} parent=39 // pred_region
        %p3188 = scmp.lt.s32.totalorder %s15, 1
        %s3189 = scalar_select %p3188, %s15, 1
        %s3190 = smul.addr %s3189, 32
        %s3191 = smul.addr %s3190, 4
        %s3192 = scalar_lea.vmem %s3, %s3191
      $region44: #{forward.6} parent=39 // pred_fallthru
        _
    $region40: #{forward.6} parent=5 // pred_fallthru
      _
  $region6: #{forward.6} parent=0 // loop_footer
    %s13 = sadd.s32 1, %s9
  $region7: #{forward.6} parent=0 // loop_footer_branch
    %8 = sbr.rel target = $region3
  $region8: #{forward.6} parent=0 // loop_exit
    _

// kernel: forward.8
$region0: #{forward.8}
  #allocation0 [shape = 'u32[]', space=smem, size = 0x4, offset = 0x4, fixed_abs, tag = 'smem constant byte address 0x4 - core index']
  #allocation1 [shape = 'u32[144,128]{1,0:T(1,128)}', space=vmem, size = 0x12000, scoped, tag = 'internal scratch']
  #allocation2 [shape = 'f32[1,1]{1,0:T(1,128)S(1)}', space=vmem, size = 0x200, scoped, tag = 'scoped memory for forward.8']
  %s0 = inlined_call_operand.vmem [shape: bf16[2,64,64], index: 0, kind: input, shape index: {}]
  %s1 = inlined_call_operand.vmem [shape: bf16[64,1536], index: 1, kind: input, shape index: {}]
  %s2 = inlined_call_operand.vmem [shape: f32[1,1536], index: 2, kind: input, shape index: {}]
  %s3 = inlined_call_operand.vmem [shape: bf16[512,64], index: 3, kind: input, shape index: {}]
  %s4 = inlined_call_operand.vmem [shape: f32[1,64], index: 4, kind: input, shape index: {}]
  %s5 = inlined_call_operand.<no memory space> [shape: f32[1,1], index: 5, kind: input, shape index: {}]
  %s6 = inlined_call_operand.vmem [shape: bf16[2,64,64], index: 6, kind: output, shape index: {}]
  %s7 = sld [smem:[#allocation0]]
  $region57: #{forward.8} parent=0
    _
  %s9 = ssub.s32 1, %s7
  %s10 = scalar_select 0, %s9, %s7
  %v11 = vstv %s5
  %12 = vst [vmem:[#allocation2] sm:$0x1] %v11
  loop: start=0, step=1, limit=4
  $region2: #{forward.8} parent=0 // loop_pre_header
    _
  $region3: #{forward.8} parent=0 // loop_header
    %s14 = sphi 0, %s18
    %p15 = scmp.ge.s32.totalorder %s14, 4
    %s24 = sphi 0, %s26
    %s27 = sphi 0, %s24
    %s28 = sphi 0, %s27
    %s44 = sphi 0, %s28
    %s48 = sphi 0, %s48
    %s50 = sphi 0, %s48
    %s51 = sphi 0, %s50
    %s65 = sphi 0, %s51
    %s69 = sphi 0, %s69
    %s71 = sphi 0, %s69
    %s72 = sphi 0, %s71
    %s86 = sphi 0, %s72
    %s90 = sphi 0, %s90
    %s92 = sphi 0, %s90
    %s93 = sphi 0, %s92
    %s107 = sphi 0, %s93
    %s111 = sphi 0, %s111
    %s113 = sphi 0, %s111
    %s114 = sphi 0, %s113
    %s128 = sphi 0, %s114
    %s132 = sphi 0, %s132
    %s134 = sphi 0, %s132
    %s135 = sphi 0, %s134
    %s149 = sphi 0, %s135
    %s155 = sphi 0, %s157
    %s158 = sphi 0, %s155
    %s159 = sphi 0, %s158
    %s175 = sphi 0, %s159
  $region4: #{forward.8} parent=0 // loop_header_branch
    %17 = sbr.rel (%p15) target = $region8
  $region5: #{forward.8} parent=0 // loop_body
    %s19 = ssub.s32 %s14, 1
    %s20 = ssub.s32 %s14, 2
    %s21 = sadd.s32 %s14, 1
    %s22 = ssub.s32 %s14, %s21
    %p23 = scmp.eq.s32.totalorder %s22, 0
    %s25 = sadd.s32 %s24, 1
    %s26 = scalar_select %p23, %s24, %s25
    %p29 = pneg %p23
    %p30 = scmp.eq.s32.totalorder %s14, 1
    %p31 = por %p29, %p30
    %p32 = scmp.ne.s32.totalorder %s24, %s27
    %p33 = scmp.eq.s32.totalorder %s14, 0
    %p34 = por %p32, %p33
    %p35 = scmp.ne.s32.totalorder %s24, %s27
    %p36 = scmp.eq.s32.totalorder %s19, 1
    %p37 = por %p35, %p36
    %p38 = scmp.ne.s32.totalorder %s27, %s28
    %p39 = scmp.eq.s32.totalorder %s19, 0
    %p40 = por %p38, %p39
    %p41 = scmp.ne.s32.totalorder %s27, %s28
    %p42 = scmp.eq.s32.totalorder %s20, 1
    %p43 = por %p41, %p42
    %p45 = scmp.ne.s32.totalorder %s28, %s44
    %p46 = scmp.eq.s32.totalorder %s20, 0
    %p47 = por %p45, %p46
    %s49 = sadd.s32 %s48, 1
    %p52 = scmp.eq.s32.totalorder %s14, 1
    %p53 = scmp.ne.s32.totalorder %s48, %s50
    %p54 = scmp.eq.s32.totalorder %s14, 0
    %p55 = por %p53, %p54
    %p56 = scmp.ne.s32.totalorder %s48, %s50
    %p57 = scmp.eq.s32.totalorder %s19, 1
    %p58 = por %p56, %p57
    %p59 = scmp.ne.s32.totalorder %s50, %s51
    %p60 = scmp.eq.s32.totalorder %s19, 0
    %p61 = por %p59, %p60
    %p62 = scmp.ne.s32.totalorder %s50, %s51
    %p63 = scmp.eq.s32.totalorder %s20, 1
    %p64 = por %p62, %p63
    %p66 = scmp.ne.s32.totalorder %s51, %s65
    %p67 = scmp.eq.s32.totalorder %s20, 0
    %p68 = por %p66, %p67
    %s70 = sadd.s32 %s69, 1
    %p73 = scmp.eq.s32.totalorder %s14, 1
    %p74 = scmp.ne.s32.totalorder %s69, %s71
    %p75 = scmp.eq.s32.totalorder %s14, 0
    %p76 = por %p74, %p75
    %p77 = scmp.ne.s32.totalorder %s69, %s71
    %p78 = scmp.eq.s32.totalorder %s19, 1
    %p79 = por %p77, %p78
    %p80 = scmp.ne.s32.totalorder %s71, %s72
    %p81 = scmp.eq.s32.totalorder %s19, 0
    %p82 = por %p80, %p81
    %p83 = scmp.ne.s32.totalorder %s71, %s72
    %p84 = scmp.eq.s32.totalorder %s20, 1
    %p85 = por %p83, %p84
    %p87 = scmp.ne.s32.totalorder %s72, %s86
    %p88 = scmp.eq.s32.totalorder %s20, 0
    %p89 = por %p87, %p88
    %s91 = sadd.s32 %s90, 1
    %p94 = scmp.eq.s32.totalorder %s14, 1
    %p95 = scmp.ne.s32.totalorder %s90, %s92
    %p96 = scmp.eq.s32.totalorder %s14, 0
    %p97 = por %p95, %p96
    %p98 = scmp.ne.s32.totalorder %s90, %s92
    %p99 = scmp.eq.s32.totalorder %s19, 1
    %p100 = por %p98, %p99
    %p101 = scmp.ne.s32.totalorder %s92, %s93
    %p102 = scmp.eq.s32.totalorder %s19, 0
    %p103 = por %p101, %p102
    %p104 = scmp.ne.s32.totalorder %s92, %s93
    %p105 = scmp.eq.s32.totalorder %s20, 1
    %p106 = por %p104, %p105
    %p108 = scmp.ne.s32.totalorder %s93, %s107
    %p109 = scmp.eq.s32.totalorder %s20, 0
    %p110 = por %p108, %p109
    %s112 = sadd.s32 %s111, 1
    %p115 = scmp.eq.s32.totalorder %s14, 1
    %p116 = scmp.ne.s32.totalorder %s111, %s113
    %p117 = scmp.eq.s32.totalorder %s14, 0
    %p118 = por %p116, %p117
    %p119 = scmp.ne.s32.totalorder %s111, %s113
    %p120 = scmp.eq.s32.totalorder %s19, 1
    %p121 = por %p119, %p120
    %p122 = scmp.ne.s32.totalorder %s113, %s114
    %p123 = scmp.eq.s32.totalorder %s19, 0
    %p124 = por %p122, %p123
    %p125 = scmp.ne.s32.totalorder %s113, %s114
    %p126 = scmp.eq.s32.totalorder %s20, 1
    %p127 = por %p125, %p126
    %p129 = scmp.ne.s32.totalorder %s114, %s128
    %p130 = scmp.eq.s32.totalorder %s20, 0
    %p131 = por %p129, %p130
    %s133 = sadd.s32 %s132, 1
    %p136 = scmp.eq.s32.totalorder %s14, 1
    %p137 = scmp.ne.s32.totalorder %s132, %s134
    %p138 = scmp.eq.s32.totalorder %s14, 0
    %p139 = por %p137, %p138
    %p140 = scmp.ne.s32.totalorder %s132, %s134
    %p141 = scmp.eq.s32.totalorder %s19, 1
    %p142 = por %p140, %p141
    %p143 = scmp.ne.s32.totalorder %s134, %s135
    %p144 = scmp.eq.s32.totalorder %s19, 0
    %p145 = por %p143, %p144
    %p146 = scmp.ne.s32.totalorder %s134, %s135
    %p147 = scmp.eq.s32.totalorder %s20, 1
    %p148 = por %p146, %p147
    %p150 = scmp.ne.s32.totalorder %s135, %s149
    %p151 = scmp.eq.s32.totalorder %s20, 0
    %p152 = por %p150, %p151
    %s153 = ssub.s32 %s14, %s21
    %p154 = scmp.eq.s32.totalorder %s153, 0
    %s156 = sadd.s32 %s155, 1
    %s157 = scalar_select %p154, %s155, %s156
    %p160 = pneg %p154
    %p161 = scmp.eq.s32.totalorder %s14, 1
    %p162 = por %p160, %p161
    %p163 = scmp.ne.s32.totalorder %s155, %s158
    %p164 = scmp.eq.s32.totalorder %s14, 0
    %p165 = por %p163, %p164
    %p166 = scmp.ne.s32.totalorder %s155, %s158
    %p167 = scmp.eq.s32.totalorder %s19, 1
    %p168 = por %p166, %p167
    %p169 = scmp.ne.s32.totalorder %s158, %s159
    %p170 = scmp.eq.s32.totalorder %s19, 0
    %p171 = por %p169, %p170
    %p172 = scmp.ne.s32.totalorder %s158, %s159
    %p173 = scmp.eq.s32.totalorder %s20, 1
    %p174 = por %p172, %p173
    %p176 = scmp.ne.s32.totalorder %s159, %s175
    %p177 = scmp.eq.s32.totalorder %s20, 0
    %p178 = por %p176, %p177
    %p179 = scmp.le.s32.totalorder 1, %s14
    %p180 = scmp.lt.s32.totalorder %s14, 3
    %p181 = pnand %p179, %p180
    %p182 = pneg %p181
    // Predicated region
    $region9: #{forward.8} parent=5 // pred_check
      _
    $region10: #{forward.8} parent=5 // pred_check_branch
      %184 = sbr.rel (%p181) target = $region12
    $region11: #{forward.8} parent=5 // pred_region
      %s185 = ssub.s32 %s14, 1
      // Predicated region
      $region13: #{forward.8} parent=11 // pred_check
        %p186 = pneg %p61
      $region14: #{forward.8} parent=11 // pred_check_branch
        %188 = sbr.rel (%p186) target = $region16
      $region15: #{forward.8} parent=11 // pred_region
        _
      $region16: #{forward.8} parent=11 // pred_fallthru
        _
      // Predicated region
      $region17: #{forward.8} parent=11 // pred_check
        %p189 = pneg %p82
      $region18: #{forward.8} parent=11 // pred_check_branch
        %191 = sbr.rel (%p189) target = $region20
      $region19: #{forward.8} parent=11 // pred_region
        _
      $region20: #{forward.8} parent=11 // pred_fallthru
        _
      // Predicated region
      $region21: #{forward.8} parent=11 // pred_check
        %p192 = pneg %p103
      $region22: #{forward.8} parent=11 // pred_check_branch
        %194 = sbr.rel (%p192) target = $region24
      $region23: #{forward.8} parent=11 // pred_region
        _
      $region24: #{forward.8} parent=11 // pred_fallthru
        _
      // Predicated region
      $region25: #{forward.8} parent=11 // pred_check
        %p195 = pneg %p124
      $region26: #{forward.8} parent=11 // pred_check_branch
        %197 = sbr.rel (%p195) target = $region28
      $region27: #{forward.8} parent=11 // pred_region
        _
      $region28: #{forward.8} parent=11 // pred_fallthru
        _
      // Predicated region
      $region29: #{forward.8} parent=11 // pred_check
        %p198 = pneg %p145
      $region30: #{forward.8} parent=11 // pred_check_branch
        %200 = sbr.rel (%p198) target = $region32
      $region31: #{forward.8} parent=11 // pred_region
        _
      $region32: #{forward.8} parent=11 // pred_fallthru
        _
    $region12: #{forward.8} parent=5 // pred_fallthru
      _
    %p201 = scmp.lt.s32.totalorder %s14, 2
    // Predicated region
    $region33: #{forward.8} parent=5 // pred_check
      %p202 = pneg %p201
    $region34: #{forward.8} parent=5 // pred_check_branch
      %204 = sbr.rel (%p202) target = $region36
    $region35: #{forward.8} parent=5 // pred_region
      // Predicated region
      $region37: #{forward.8} parent=35 // pred_check
        %p205 = pneg %p34
      $region38: #{forward.8} parent=35 // pred_check_branch
        %207 = sbr.rel (%p205) target = $region40
      $region39: #{forward.8} parent=35 // pred_region
        %p208 = scmp.lt.s32.totalorder %s14, 1
        %s209 = scalar_select %p208, %s14, 1
        %s210 = smul.addr %s209, 8
        %s211 = smul.addr %s210, 4
        %s212 = scalar_lea.vmem %s0, %s211
      $region40: #{forward.8} parent=35 // pred_fallthru
        _
    $region36: #{forward.8} parent=5 // pred_fallthru
      _
    %p213 = scmp.le.s32.totalorder 1, %s14
    %p214 = scmp.lt.s32.totalorder %s14, 3
    %p215 = pnand %p213, %p214
    %p216 = pneg %p215
    // Predicated region
    $region41: #{forward.8} parent=5 // pred_check
      _
    $region42: #{forward.8} parent=5 // pred_check_branch
      %218 = sbr.rel (%p215) target = $region44
    $region43: #{forward.8} parent=5 // pred_region
      %s219 = ssub.s32 %s14, 1
      %p220 = scmp.lt.s32.totalorder %s19, 1
      %s221 = scalar_select %p220, %s19, 1
      %s222 = smul.addr %s221, 8
      %s223 = smul.addr %s222, 4
      %s224 = scalar_lea.vmem %s0, %s223
      %p225 = pneg %p40
      %p226 = pneg %p37
      %p227 = pneg %p61
      %p228 = pneg %p58
      %p229 = pneg %p82
      %p230 = pneg %p79
      %p231 = pneg %p103
      %p232 = pneg %p100
      %p233 = pneg %p124
      %p234 = pneg %p121
      %p235 = pneg %p145
      %p236 = pneg %p142
      %p237 = pneg %p171
      %p238 = pneg %p168
      %p239 = scmp.lt.s32.totalorder %s19, 1
      %s240 = scalar_select %p239, %s19, 1
      %s241 = smul.addr %s240, 8
      %s242 = smul.addr %s241, 4
      %s243 = scalar_lea.vmem %s6, %s242
      %p244 = scmp.lt.s32.totalorder %s19, 1
      %s245 = scalar_select %p244, %s19, 1
      %s246 = smul.addr %s245, 8
      %s247 = smul.addr %s246, 4
      %s248 = scalar_lea.vmem %s0, %s247
      %p249 = scmp.lt.s32.totalorder %s19, 1
      %s250 = scalar_select %p249, %s19, 1
      %s251 = smul.addr %s250, 8
      %s252 = smul.addr %s251, 4
      %s253 = scalar_lea.vmem %s6, %s252
      %v255 = vld [vmem:[%s248] sm:$0xf]
      %v256 = vld [vmem:[%s248 + $0x4] sm:$0xf]
      %v257 = vld [vmem:[%s248 + $0x8] sm:$0xf]
      %v258 = vld [vmem:[%s248 + $0xc] sm:$0xf]
      %v259 = vld [vmem:[%s248 + $0x10] sm:$0xf]
      %v260 = vld [vmem:[%s248 + $0x14] sm:$0xf]
      %v261 = vld [vmem:[%s248 + $0x18] sm:$0xf]
      %v262 = vld [vmem:[%s248 + $0x1c] sm:$0xf]
      %v263 = vld [vmem:[%s1] sm:$0xff]
      %v264 = vld [vmem:[%s1 + $0x8] sm:$0xff]
      %v265 = vld [vmem:[%s1 + $0x10] sm:$0xff]
      %v266 = vld [vmem:[%s1 + $0x18] sm:$0xff]
      %v267 = vld [vmem:[%s1 + $0x20] sm:$0xff]
      %v268 = vld [vmem:[%s1 + $0x28] sm:$0xff]
      %v269 = vld [vmem:[%s1 + $0x30] sm:$0xff]
      %v270 = vld [vmem:[%s1 + $0x38] sm:$0xff]
      %v271 = vld [vmem:[%s1 + $0x40] sm:$0xff]
      %v272 = vld [vmem:[%s1 + $0x48] sm:$0xff]
      %v273 = vld [vmem:[%s1 + $0x50] sm:$0xff]
      %v274 = vld [vmem:[%s1 + $0x58] sm:$0xff]
      %v275 = vld [vmem:[%s1 + $0x60] sm:$0xff]
      %v276 = vld [vmem:[%s1 + $0x68] sm:$0xff]
      %v277 = vld [vmem:[%s1 + $0x70] sm:$0xff]
      %v278 = vld [vmem:[%s1 + $0x78] sm:$0xff]
      %v279 = vld [vmem:[%s1 + $0x80] sm:$0xff]
      %v280 = vld [vmem:[%s1 + $0x88] sm:$0xff]
      %v281 = vld [vmem:[%s1 + $0x90] sm:$0xff]
      %v282 = vld [vmem:[%s1 + $0x98] sm:$0xff]
      %v283 = vld [vmem:[%s1 + $0xa0] sm:$0xff]
      %v284 = vld [vmem:[%s1 + $0xa8] sm:$0xff]
      %v285 = vld [vmem:[%s1 + $0xb0] sm:$0xff]
      %v286 = vld [vmem:[%s1 + $0xb8] sm:$0xff]
      %v287 = vld [vmem:[%s1 + $0xc0] sm:$0xff]
      %v288 = vld [vmem:[%s1 + $0xc8] sm:$0xff]
      %v289 = vld [vmem:[%s1 + $0xd0] sm:$0xff]
      %v290 = vld [vmem:[%s1 + $0xd8] sm:$0xff]
      %v291 = vld [vmem:[%s1 + $0xe0] sm:$0xff]
      %v292 = vld [vmem:[%s1 + $0xe8] sm:$0xff]
      %v293 = vld [vmem:[%s1 + $0xf0] sm:$0xff]
      %v294 = vld [vmem:[%s1 + $0xf8] sm:$0xff]
      %v295 = vld [vmem:[%s1 + $0x100] sm:$0xff]
      %v296 = vld [vmem:[%s1 + $0x108] sm:$0xff]
      %v297 = vld [vmem:[%s1 + $0x110] sm:$0xff]
      %v298 = vld [vmem:[%s1 + $0x118] sm:$0xff]
      %v299 = vld [vmem:[%s1 + $0x120] sm:$0xff]
      %v300 = vld [vmem:[%s1 + $0x128] sm:$0xff]
      %v301 = vld [vmem:[%s1 + $0x130] sm:$0xff]
      %v302 = vld [vmem:[%s1 + $0x138] sm:$0xff]
      %v303 = vld [vmem:[%s1 + $0x140] sm:$0xff]
      %v304 = vld [vmem:[%s1 + $0x148] sm:$0xff]
      %v305 = vld [vmem:[%s1 + $0x150] sm:$0xff]
      %v306 = vld [vmem:[%s1 + $0x158] sm:$0xff]
      %v307 = vld [vmem:[%s1 + $0x160] sm:$0xff]
      %v308 = vld [vmem:[%s1 + $0x168] sm:$0xff]
      %v309 = vld [vmem:[%s1 + $0x170] sm:$0xff]
      %v310 = vld [vmem:[%s1 + $0x178] sm:$0xff]
      %v311 = vld [vmem:[%s2] sm:$0xff]
      %v312 = vld [vmem:[%s2 + $0x8] sm:$0xf]
      %v315 = vlaneseq
      %v316 = vshrl.u32 %v315, 7
      %v317 = vsub.s32 0, %v316
      %v318 = vrot.slane %v311, %v317
      %v319 = vlaneseq
      %v320 = vshrl.u32 %v319, 7
      %v321 = vsub.s32 1, %v320
      %v322 = vrot.slane %v311, %v321
      %v323 = vlaneseq
      %v324 = vshrl.u32 %v323, 7
      %v325 = vsub.s32 2, %v324
      %v326 = vrot.slane %v311, %v325
      %v327 = vlaneseq
      %v328 = vshrl.u32 %v327, 7
      %v329 = vsub.s32 3, %v328
      %v330 = vrot.slane %v311, %v329
      %v331 = vlaneseq
      %v332 = vshrl.u32 %v331, 7
      %v333 = vsub.s32 4, %v332
      %v334 = vrot.slane %v311, %v333
      %v335 = vlaneseq
      %v336 = vshrl.u32 %v335, 7
      %v337 = vsub.s32 5, %v336
      %v338 = vrot.slane %v311, %v337
      %v339 = vlaneseq
      %v340 = vshrl.u32 %v339, 7
      %v341 = vsub.s32 6, %v340
      %v342 = vrot.slane %v311, %v341
      %v343 = vlaneseq
      %v344 = vshrl.u32 %v343, 7
      %v345 = vsub.s32 7, %v344
      %v346 = vrot.slane %v311, %v345
      %v347 = vlaneseq
      %v348 = vshrl.u32 %v347, 7
      %v349 = vsub.s32 0, %v348
      %v350 = vrot.slane %v312, %v349
      %v351 = vlaneseq
      %v352 = vshrl.u32 %v351, 7
      %v353 = vsub.s32 1, %v352
      %v354 = vrot.slane %v312, %v353
      %v355 = vlaneseq
      %v356 = vshrl.u32 %v355, 7
      %v357 = vsub.s32 2, %v356
      %v358 = vrot.slane %v312, %v357
      %v359 = vlaneseq
      %v360 = vshrl.u32 %v359, 7
      %v361 = vsub.s32 3, %v360
      %v362 = vrot.slane %v312, %v361
      %v383 = vunpack.c.l.b16 %v255
      %v384 = vunpack.c.l.b16 %v256
      %v385 = vunpack.c.l.b16 %v257
      %v386 = vunpack.c.l.b16 %v258
      %v387 = vunpack.c.l.b16 %v259
      %v388 = vunpack.c.l.b16 %v260
      %v389 = vunpack.c.l.b16 %v261
      %v390 = vunpack.c.l.b16 %v262
      %v391 = vpack.c.b16 %v384, %v383
      %v392 = vpack.c.b16 %v386, %v385
      %v393 = vpack.c.b16 %v388, %v387
      %v394 = vpack.c.b16 %v390, %v389
      %v443 = vunpack.c.l.b16 %v263
      %v444 = vunpack.c.h.b16 %v263
      %v445 = vunpack.c.l.b16 %v264
      %v446 = vunpack.c.h.b16 %v264
      %v447 = vunpack.c.l.b16 %v265
      %v448 = vunpack.c.h.b16 %v265
      %v449 = vunpack.c.l.b16 %v266
      %v450 = vunpack.c.h.b16 %v266
      %v451 = vunpack.c.l.b16 %v267
      %v452 = vunpack.c.h.b16 %v267
      %v453 = vunpack.c.l.b16 %v268
      %v454 = vunpack.c.h.b16 %v268
      %v455 = vunpack.c.l.b16 %v269
      %v456 = vunpack.c.h.b16 %v269
      %v457 = vunpack.c.l.b16 %v270
      %v458 = vunpack.c.h.b16 %v270
      %v459 = vunpack.c.l.b16 %v271
      %v460 = vunpack.c.h.b16 %v271
      %v461 = vunpack.c.l.b16 %v272
      %v462 = vunpack.c.h.b16 %v272
      %v463 = vunpack.c.l.b16 %v273
      %v464 = vunpack.c.h.b16 %v273
      %v465 = vunpack.c.l.b16 %v274
      %v466 = vunpack.c.h.b16 %v274
      %v467 = vunpack.c.l.b16 %v275
      %v468 = vunpack.c.h.b16 %v275
      %v469 = vunpack.c.l.b16 %v276
      %v470 = vunpack.c.h.b16 %v276
      %v471 = vunpack.c.l.b16 %v277
      %v472 = vunpack.c.h.b16 %v277
      %v473 = vunpack.c.l.b16 %v278
      %v474 = vunpack.c.h.b16 %v278
      %v475 = vunpack.c.l.b16 %v279
      %v476 = vunpack.c.h.b16 %v279
      %v477 = vunpack.c.l.b16 %v280
      %v478 = vunpack.c.h.b16 %v280
      %v479 = vunpack.c.l.b16 %v281
      %v480 = vunpack.c.h.b16 %v281
      %v481 = vunpack.c.l.b16 %v282
      %v482 = vunpack.c.h.b16 %v282
      %v483 = vunpack.c.l.b16 %v283
      %v484 = vunpack.c.h.b16 %v283
      %v485 = vunpack.c.l.b16 %v284
      %v486 = vunpack.c.h.b16 %v284
      %v487 = vunpack.c.l.b16 %v285
      %v488 = vunpack.c.h.b16 %v285
      %v489 = vunpack.c.l.b16 %v286
      %v490 = vunpack.c.h.b16 %v286
      %v491 = vunpack.c.l.b16 %v287
      %v492 = vunpack.c.h.b16 %v287
      %v493 = vunpack.c.l.b16 %v288
      %v494 = vunpack.c.h.b16 %v288
      %v495 = vunpack.c.l.b16 %v289
      %v496 = vunpack.c.h.b16 %v289
      %v497 = vunpack.c.l.b16 %v290
      %v498 = vunpack.c.h.b16 %v290
      %v499 = vunpack.c.l.b16 %v291
      %v500 = vunpack.c.h.b16 %v291
      %v501 = vunpack.c.l.b16 %v292
      %v502 = vunpack.c.h.b16 %v292
      %v503 = vunpack.c.l.b16 %v293
      %v504 = vunpack.c.h.b16 %v293
      %v505 = vunpack.c.l.b16 %v294
      %v506 = vunpack.c.h.b16 %v294
      %v507 = vunpack.c.l.b16 %v295
      %v508 = vunpack.c.h.b16 %v295
      %v509 = vunpack.c.l.b16 %v296
      %v510 = vunpack.c.h.b16 %v296
      %v511 = vunpack.c.l.b16 %v297
      %v512 = vunpack.c.h.b16 %v297
      %v513 = vunpack.c.l.b16 %v298
      %v514 = vunpack.c.h.b16 %v298
      %v515 = vunpack.c.l.b16 %v299
      %v516 = vunpack.c.h.b16 %v299
      %v517 = vunpack.c.l.b16 %v300
      %v518 = vunpack.c.h.b16 %v300
      %v519 = vunpack.c.l.b16 %v301
      %v520 = vunpack.c.h.b16 %v301
      %v521 = vunpack.c.l.b16 %v302
      %v522 = vunpack.c.h.b16 %v302
      %v523 = vunpack.c.l.b16 %v303
      %v524 = vunpack.c.h.b16 %v303
      %v525 = vunpack.c.l.b16 %v304
      %v526 = vunpack.c.h.b16 %v304
      %v527 = vunpack.c.l.b16 %v305
      %v528 = vunpack.c.h.b16 %v305
      %v529 = vunpack.c.l.b16 %v306
      %v530 = vunpack.c.h.b16 %v306
      %v531 = vunpack.c.l.b16 %v307
      %v532 = vunpack.c.h.b16 %v307
      %v533 = vunpack.c.l.b16 %v308
      %v534 = vunpack.c.h.b16 %v308
      %v535 = vunpack.c.l.b16 %v309
      %v536 = vunpack.c.h.b16 %v309
      %v537 = vunpack.c.l.b16 %v310
      %v538 = vunpack.c.h.b16 %v310
      %v539 = vpack.c.b16 %v455, %v443
      %v540 = vpack.c.b16 %v456, %v444
      %v541 = vpack.c.b16 %v457, %v445
      %v542 = vpack.c.b16 %v458, %v446
      %v543 = vpack.c.b16 %v459, %v447
      %v544 = vpack.c.b16 %v460, %v448
      %v545 = vpack.c.b16 %v461, %v449
      %v546 = vpack.c.b16 %v462, %v450
      %v547 = vpack.c.b16 %v463, %v451
      %v548 = vpack.c.b16 %v464, %v452
      %v549 = vpack.c.b16 %v465, %v453
      %v550 = vpack.c.b16 %v466, %v454
      %v551 = vpack.c.b16 %v479, %v467
      %v552 = vpack.c.b16 %v480, %v468
      %v553 = vpack.c.b16 %v481, %v469
      %v554 = vpack.c.b16 %v482, %v470
      %v555 = vpack.c.b16 %v483, %v471
      %v556 = vpack.c.b16 %v484, %v472
      %v557 = vpack.c.b16 %v485, %v473
      %v558 = vpack.c.b16 %v486, %v474
      %v559 = vpack.c.b16 %v487, %v475
      %v560 = vpack.c.b16 %v488, %v476
      %v561 = vpack.c.b16 %v489, %v477
      %v562 = vpack.c.b16 %v490, %v478
      %v563 = vpack.c.b16 %v503, %v491
      %v564 = vpack.c.b16 %v504, %v492
      %v565 = vpack.c.b16 %v505, %v493
      %v566 = vpack.c.b16 %v506, %v494
      %v567 = vpack.c.b16 %v507, %v495
      %v568 = vpack.c.b16 %v508, %v496
      %v569 = vpack.c.b16 %v509, %v497
      %v570 = vpack.c.b16 %v510, %v498
      %v571 = vpack.c.b16 %v511, %v499
      %v572 = vpack.c.b16 %v512, %v500
      %v573 = vpack.c.b16 %v513, %v501
      %v574 = vpack.c.b16 %v514, %v502
      %v575 = vpack.c.b16 %v527, %v515
      %v576 = vpack.c.b16 %v528, %v516
      %v577 = vpack.c.b16 %v529, %v517
      %v578 = vpack.c.b16 %v530, %v518
      %v579 = vpack.c.b16 %v531, %v519
      %v580 = vpack.c.b16 %v532, %v520
      %v581 = vpack.c.b16 %v533, %v521
      %v582 = vpack.c.b16 %v534, %v522
      %v583 = vpack.c.b16 %v535, %v523
      %v584 = vpack.c.b16 %v536, %v524
      %v585 = vpack.c.b16 %v537, %v525
      %v586 = vpack.c.b16 %v538, %v526
      %vm635 = vcmask 523264
      %v637 = vsel %vm635, %v391, 0
      %v640 = vsel %vm635, %v392, 0
      %v643 = vsel %vm635, %v393, 0
      %v646 = vsel %vm635, %v394, 0
      %648 = vmatprep.subr.bf16.mxu0 %v540
      %649 = vmatpush1.bf16.msra.mxu0 %v539
      %650 = vmatprep.subr.bf16.mxu0 %v552
      %651 = vmatpush1.bf16.msra.mxu0 %v551
      %652 = vmatprep.subr.bf16.mxu0 %v564
      %653 = vmatpush1.bf16.msra.mxu0 %v563
      %654 = vmatprep.subr.bf16.mxu0 %v576
      %655 = vmatpush1.bf16.msra.mxu0 %v575
      %656 = vmatprep.subr.bf16.mxu0 0
      %657 = vmatpush1.bf16.msra.mxu0 0
      %658 = vmatprep.subr.bf16.mxu0 0
      %659 = vmatpush1.bf16.msra.mxu0 0
      %660 = vmatprep.subr.bf16.mxu0 0
      %661 = vmatpush1.bf16.msra.mxu0 0
      %662 = vmatprep.subr.bf16.mxu0 0
      %663 = vmatpush1.bf16.msra.mxu0 0
      %664 = vmatprep.subr.bf16.mxu0 0
      %665 = vmatpush1.bf16.msra.mxu0 0
      %666 = vmatprep.subr.bf16.mxu0 0
      %667 = vmatpush1.bf16.msra.mxu0 0
      %668 = vmatprep.subr.bf16.mxu0 0
      %669 = vmatpush1.bf16.msra.mxu0 0
      %670 = vmatprep.subr.bf16.mxu0 0
      %671 = vmatpush1.bf16.msra.mxu0 0
      %672 = vmatprep.subr.bf16.mxu0 0
      %673 = vmatpush1.bf16.msra.mxu0 0
      %674 = vmatprep.subr.bf16.mxu0 0
      %675 = vmatpush1.bf16.msra.mxu0 0
      %676 = vmatprep.subr.bf16.mxu0 0
      %677 = vmatpush1.bf16.msra.mxu0 0
      %678 = vmatprep.subr.bf16.mxu0 0
      %679 = vmatpush1.bf16.msra.mxu0 0
      %680 = vmatprep.mubr.bf16.mxu0 0
      %681 = vmatmul.mubr.bf16.gmra.mrb[0].mxu0 %v637
      %v682 = vpop.f32.mrb[0].mxu0
      %v683 = vadd.f32 %v318, %v682
      %v684 = vpop.f32.mrb[0].mxu0
      %v685 = vadd.f32 %v322, %v684
      %v686 = vpop.f32.mrb[0].mxu0
      %v687 = vadd.f32 %v318, %v686
      %v688 = vpop.f32.mrb[0].mxu0
      %v689 = vadd.f32 %v322, %v688
      %690 = vmatprep.mubr.bf16.mxu0 0
      %691 = vmatmul.mubr.bf16.gmra.mrb[0].mxu0 %v640
      %v692 = vpop.f32.mrb[0].mxu0
      %v693 = vadd.f32 %v318, %v692
      %v694 = vpop.f32.mrb[0].mxu0
      %v695 = vadd.f32 %v322, %v694
      %v696 = vpop.f32.mrb[0].mxu0
      %v697 = vadd.f32 %v318, %v696
      %v698 = vpop.f32.mrb[0].mxu0
      %v699 = vadd.f32 %v322, %v698
      %700 = vmatprep.mubr.bf16.mxu0 0
      %701 = vmatmul.mubr.bf16.gmra.mrb[0].mxu0 %v643
      %v702 = vpop.f32.mrb[0].mxu0
      %v703 = vadd.f32 %v318, %v702
      %v704 = vpop.f32.mrb[0].mxu0
      %v705 = vadd.f32 %v322, %v704
      %v706 = vpop.f32.mrb[0].mxu0
      %v707 = vadd.f32 %v318, %v706
      %v708 = vpop.f32.mrb[0].mxu0
      %v709 = vadd.f32 %v322, %v708
      %710 = vmatprep.mubr.bf16.mxu0 0
      %711 = vmatmul.mubr.bf16.gmra.mrb[0].mxu0 %v646
      %v712 = vpop.f32.mrb[0].mxu0
      %v713 = vadd.f32 %v318, %v712
      %v714 = vpop.f32.mrb[0].mxu0
      %v715 = vadd.f32 %v322, %v714
      %v716 = vpop.f32.mrb[0].mxu0
      %v717 = vadd.f32 %v318, %v716
      %v718 = vpop.f32.mrb[0].mxu0
      %v719 = vadd.f32 %v322, %v718
      %720 = vdwg.mxu0
      %721 = vmatprep.subr.bf16.mxu0 %v542
      %722 = vmatpush1.bf16.msra.mxu0 %v541
      %723 = vmatprep.subr.bf16.mxu0 %v554
      %724 = vmatpush1.bf16.msra.mxu0 %v553
      %725 = vmatprep.subr.bf16.mxu0 %v566
      %726 = vmatpush1.bf16.msra.mxu0 %v565
      %727 = vmatprep.subr.bf16.mxu0 %v578
      %728 = vmatpush1.bf16.msra.mxu0 %v577
      %729 = vmatprep.subr.bf16.mxu0 0
      %730 = vmatpush1.bf16.msra.mxu0 0
      %731 = vmatprep.subr.bf16.mxu0 0
      %732 = vmatpush1.bf16.msra.mxu0 0
      %733 = vmatprep.subr.bf16.mxu0 0
      %734 = vmatpush1.bf16.msra.mxu0 0
      %735 = vmatprep.subr.bf16.mxu0 0
      %736 = vmatpush1.bf16.msra.mxu0 0
      %737 = vmatprep.subr.bf16.mxu0 0
      %738 = vmatpush1.bf16.msra.mxu0 0
      %739 = vmatprep.subr.bf16.mxu0 0
      %740 = vmatpush1.bf16.msra.mxu0 0
      %741 = vmatprep.subr.bf16.mxu0 0
      %742 = vmatpush1.bf16.msra.mxu0 0
      %743 = vmatprep.subr.bf16.mxu0 0
      %744 = vmatpush1.bf16.msra.mxu0 0
      %745 = vmatprep.subr.bf16.mxu0 0
      %746 = vmatpush1.bf16.msra.mxu0 0
      %747 = vmatprep.subr.bf16.mxu0 0
      %748 = vmatpush1.bf16.msra.mxu0 0
      %749 = vmatprep.subr.bf16.mxu0 0
      %750 = vmatpush1.bf16.msra.mxu0 0
      %751 = vmatprep.subr.bf16.mxu0 0
      %752 = vmatpush1.bf16.msra.mxu0 0
      %753 = vmatprep.mubr.bf16.mxu0 0
      %754 = vmatmul.mubr.bf16.gmra.mrb[0].mxu0 %v637
      %v755 = vpop.f32.mrb[0].mxu0
      %v756 = vadd.f32 %v326, %v755
      %v757 = vpop.f32.mrb[0].mxu0
      %v758 = vadd.f32 %v330, %v757
      %v759 = vpop.f32.mrb[0].mxu0
      %v760 = vadd.f32 %v326, %v759
      %v761 = vpop.f32.mrb[0].mxu0
      %v762 = vadd.f32 %v330, %v761
      %763 = vmatprep.mubr.bf16.mxu0 0
      %764 = vmatmul.mubr.bf16.gmra.mrb[0].mxu0 %v640
      %v765 = vpop.f32.mrb[0].mxu0
      %v766 = vadd.f32 %v326, %v765
      %v767 = vpop.f32.mrb[0].mxu0
      %v768 = vadd.f32 %v330, %v767
      %v769 = vpop.f32.mrb[0].mxu0
      %v770 = vadd.f32 %v326, %v769
      %v771 = vpop.f32.mrb[0].mxu0
      %v772 = vadd.f32 %v330, %v771
      %773 = vmatprep.mubr.bf16.mxu0 0
      %774 = vmatmul.mubr.bf16.gmra.mrb[0].mxu0 %v643
      %v775 = vpop.f32.mrb[0].mxu0
      %v776 = vadd.f32 %v326, %v775
      %v777 = vpop.f32.mrb[0].mxu0
      %v778 = vadd.f32 %v330, %v777
      %v779 = vpop.f32.mrb[0].mxu0
      %v780 = vadd.f32 %v326, %v779
      %v781 = vpop.f32.mrb[0].mxu0
      %v782 = vadd.f32 %v330, %v781
      %783 = vmatprep.mubr.bf16.mxu0 0
      %784 = vmatmul.mubr.bf16.gmra.mrb[0].mxu0 %v646
      %v785 = vpop.f32.mrb[0].mxu0
      %v786 = vadd.f32 %v326, %v785
      %v787 = vpop.f32.mrb[0].mxu0
      %v788 = vadd.f32 %v330, %v787
      %v789 = vpop.f32.mrb[0].mxu0
      %v790 = vadd.f32 %v326, %v789
      %v791 = vpop.f32.mrb[0].mxu0
      %v792 = vadd.f32 %v330, %v791
      %793 = vdwg.mxu0
      %794 = vmatprep.subr.bf16.mxu0 %v544
      %795 = vmatpush1.bf16.msra.mxu0 %v543
      %796 = vmatprep.subr.bf16.mxu0 %v556
      %797 = vmatpush1.bf16.msra.mxu0 %v555
      %798 = vmatprep.subr.bf16.mxu0 %v568
      %799 = vmatpush1.bf16.msra.mxu0 %v567
      %800 = vmatprep.subr.bf16.mxu0 %v580
      %801 = vmatpush1.bf16.msra.mxu0 %v579
      %802 = vmatprep.subr.bf16.mxu0 0
      %803 = vmatpush1.bf16.msra.mxu0 0
      %804 = vmatprep.subr.bf16.mxu0 0
      %805 = vmatpush1.bf16.msra.mxu0 0
      %806 = vmatprep.subr.bf16.mxu0 0
      %807 = vmatpush1.bf16.msra.mxu0 0
      %808 = vmatprep.subr.bf16.mxu0 0
      %809 = vmatpush1.bf16.msra.mxu0 0
      %810 = vmatprep.subr.bf16.mxu0 0
      %811 = vmatpush1.bf16.msra.mxu0 0
      %812 = vmatprep.subr.bf16.mxu0 0
      %813 = vmatpush1.bf16.msra.mxu0 0
      %814 = vmatprep.subr.bf16.mxu0 0
      %815 = vmatpush1.bf16.msra.mxu0 0
      %816 = vmatprep.subr.bf16.mxu0 0
      %817 = vmatpush1.bf16.msra.mxu0 0
      %818 = vmatprep.subr.bf16.mxu0 0
      %819 = vmatpush1.bf16.msra.mxu0 0
      %820 = vmatprep.subr.bf16.mxu0 0
      %821 = vmatpush1.bf16.msra.mxu0 0
      %822 = vmatprep.subr.bf16.mxu0 0
      %823 = vmatpush1.bf16.msra.mxu0 0
      %824 = vmatprep.subr.bf16.mxu0 0
      %825 = vmatpush1.bf16.msra.mxu0 0
      %826 = vmatprep.mubr.bf16.mxu0 0
      %827 = vmatmul.mubr.bf16.gmra.mrb[0].mxu0 %v637
      %v828 = vpop.f32.mrb[0].mxu0
      %v829 = vadd.f32 %v334, %v828
      %v830 = vpop.f32.mrb[0].mxu0
      %v831 = vadd.f32 %v338, %v830
      %v832 = vpop.f32.mrb[0].mxu0
      %v833 = vadd.f32 %v334, %v832
      %v834 = vpop.f32.mrb[0].mxu0
      %v835 = vadd.f32 %v338, %v834
      %836 = vmatprep.mubr.bf16.mxu0 0
      %837 = vmatmul.mubr.bf16.gmra.mrb[0].mxu0 %v640
      %v838 = vpop.f32.mrb[0].mxu0
      %v839 = vadd.f32 %v334, %v838
      %v840 = vpop.f32.mrb[0].mxu0
      %v841 = vadd.f32 %v338, %v840
      %v842 = vpop.f32.mrb[0].mxu0
      %v843 = vadd.f32 %v334, %v842
      %v844 = vpop.f32.mrb[0].mxu0
      %v845 = vadd.f32 %v338, %v844
      %846 = vmatprep.mubr.bf16.mxu0 0
      %847 = vmatmul.mubr.bf16.gmra.mrb[0].mxu0 %v643
      %v848 = vpop.f32.mrb[0].mxu0
      %v849 = vadd.f32 %v334, %v848
      %v850 = vpop.f32.mrb[0].mxu0
      %v851 = vadd.f32 %v338, %v850
      %v852 = vpop.f32.mrb[0].mxu0
      %v853 = vadd.f32 %v334, %v852
      %v854 = vpop.f32.mrb[0].mxu0
      %v855 = vadd.f32 %v338, %v854
      %856 = vmatprep.mubr.bf16.mxu0 0
      %857 = vmatmul.mubr.bf16.gmra.mrb[0].mxu0 %v646
      %v858 = vpop.f32.mrb[0].mxu0
      %v859 = vadd.f32 %v334, %v858
      %v860 = vpop.f32.mrb[0].mxu0
      %v861 = vadd.f32 %v338, %v860
      %v862 = vpop.f32.mrb[0].mxu0
      %v863 = vadd.f32 %v334, %v862
      %v864 = vpop.f32.mrb[0].mxu0
      %v865 = vadd.f32 %v338, %v864
      %866 = vdwg.mxu0
      %867 = vmatprep.subr.bf16.mxu0 %v546
      %868 = vmatpush1.bf16.msra.mxu0 %v545
      %869 = vmatprep.subr.bf16.mxu0 %v558
      %870 = vmatpush1.bf16.msra.mxu0 %v557
      %871 = vmatprep.subr.bf16.mxu0 %v570
      %872 = vmatpush1.bf16.msra.mxu0 %v569
      %873 = vmatprep.subr.bf16.mxu0 %v582
      %874 = vmatpush1.bf16.msra.mxu0 %v581
      %875 = vmatprep.subr.bf16.mxu0 0
      %876 = vmatpush1.bf16.msra.mxu0 0
      %877 = vmatprep.subr.bf16.mxu0 0
      %878 = vmatpush1.bf16.msra.mxu0 0
      %879 = vmatprep.subr.bf16.mxu0 0
      %880 = vmatpush1.bf16.msra.mxu0 0
      %881 = vmatprep.subr.bf16.mxu0 0
      %882 = vmatpush1.bf16.msra.mxu0 0
      %883 = vmatprep.subr.bf16.mxu0 0
      %884 = vmatpush1.bf16.msra.mxu0 0
      %885 = vmatprep.subr.bf16.mxu0 0
      %886 = vmatpush1.bf16.msra.mxu0 0
      %887 = vmatprep.subr.bf16.mxu0 0
      %888 = vmatpush1.bf16.msra.mxu0 0
      %889 = vmatprep.subr.bf16.mxu0 0
      %890 = vmatpush1.bf16.msra.mxu0 0
      %891 = vmatprep.subr.bf16.mxu0 0
      %892 = vmatpush1.bf16.msra.mxu0 0
      %893 = vmatprep.subr.bf16.mxu0 0
      %894 = vmatpush1.bf16.msra.mxu0 0
      %895 = vmatprep.subr.bf16.mxu0 0
      %896 = vmatpush1.bf16.msra.mxu0 0
      %897 = vmatprep.subr.bf16.mxu0 0
      %898 = vmatpush1.bf16.msra.mxu0 0
      %899 = vmatprep.mubr.bf16.mxu0 0
      %900 = vmatmul.mubr.bf16.gmra.mrb[0].mxu0 %v637
      %v901 = vpop.f32.mrb[0].mxu0
      %v902 = vadd.f32 %v342, %v901
      %v903 = vpop.f32.mrb[0].mxu0
      %v904 = vadd.f32 %v346, %v903
      %v905 = vpop.f32.mrb[0].mxu0
      %v906 = vadd.f32 %v342, %v905
      %v907 = vpop.f32.mrb[0].mxu0
      %v908 = vadd.f32 %v346, %v907
      %909 = vmatprep.mubr.bf16.mxu0 0
      %910 = vmatmul.mubr.bf16.gmra.mrb[0].mxu0 %v640
      %v911 = vpop.f32.mrb[0].mxu0
      %v912 = vadd.f32 %v342, %v911
      %v913 = vpop.f32.mrb[0].mxu0
      %v914 = vadd.f32 %v346, %v913
      %v915 = vpop.f32.mrb[0].mxu0
      %v916 = vadd.f32 %v342, %v915
      %v917 = vpop.f32.mrb[0].mxu0
      %v918 = vadd.f32 %v346, %v917
      %919 = vmatprep.mubr.bf16.mxu0 0
      %920 = vmatmul.mubr.bf16.gmra.mrb[0].mxu0 %v643
      %v921 = vpop.f32.mrb[0].mxu0
      %v922 = vadd.f32 %v342, %v921
      %v923 = vpop.f32.mrb[0].mxu0
      %v924 = vadd.f32 %v346, %v923
      %v925 = vpop.f32.mrb[0].mxu0
      %v926 = vadd.f32 %v342, %v925
      %v927 = vpop.f32.mrb[0].mxu0
      %v928 = vadd.f32 %v346, %v927
      %929 = vmatprep.mubr.bf16.mxu0 0
      %930 = vmatmul.mubr.bf16.gmra.mrb[0].mxu0 %v646
      %v931 = vpop.f32.mrb[0].mxu0
      %v932 = vadd.f32 %v342, %v931
      %v933 = vpop.f32.mrb[0].mxu0
      %v934 = vadd.f32 %v346, %v933
      %v935 = vpop.f32.mrb[0].mxu0
      %v936 = vadd.f32 %v342, %v935
      %v937 = vpop.f32.mrb[0].mxu0
      %v938 = vadd.f32 %v346, %v937
      %939 = vdwg.mxu0
      %940 = vmatprep.subr.bf16.mxu0 %v548
      %941 = vmatpush1.bf16.msra.mxu0 %v547
      %942 = vmatprep.subr.bf16.mxu0 %v560
      %943 = vmatpush1.bf16.msra.mxu0 %v559
      %944 = vmatprep.subr.bf16.mxu0 %v572
      %945 = vmatpush1.bf16.msra.mxu0 %v571
      %946 = vmatprep.subr.bf16.mxu0 %v584
      %947 = vmatpush1.bf16.msra.mxu0 %v583
      %948 = vmatprep.subr.bf16.mxu0 0
      %949 = vmatpush1.bf16.msra.mxu0 0
      %950 = vmatprep.subr.bf16.mxu0 0
      %951 = vmatpush1.bf16.msra.mxu0 0
      %952 = vmatprep.subr.bf16.mxu0 0
      %953 = vmatpush1.bf16.msra.mxu0 0
      %954 = vmatprep.subr.bf16.mxu0 0
      %955 = vmatpush1.bf16.msra.mxu0 0
      %956 = vmatprep.subr.bf16.mxu0 0
      %957 = vmatpush1.bf16.msra.mxu0 0
      %958 = vmatprep.subr.bf16.mxu0 0
      %959 = vmatpush1.bf16.msra.mxu0 0
      %960 = vmatprep.subr.bf16.mxu0 0
      %961 = vmatpush1.bf16.msra.mxu0 0
      %962 = vmatprep.subr.bf16.mxu0 0
      %963 = vmatpush1.bf16.msra.mxu0 0
      %964 = vmatprep.subr.bf16.mxu0 0
      %965 = vmatpush1.bf16.msra.mxu0 0
      %966 = vmatprep.subr.bf16.mxu0 0
      %967 = vmatpush1.bf16.msra.mxu0 0
      %968 = vmatprep.subr.bf16.mxu0 0
      %969 = vmatpush1.bf16.msra.mxu0 0
      %970 = vmatprep.subr.bf16.mxu0 0
      %971 = vmatpush1.bf16.msra.mxu0 0
      %972 = vmatprep.mubr.bf16.mxu0 0
      %973 = vmatmul.mubr.bf16.gmra.mrb[0].mxu0 %v637
      %v974 = vpop.f32.mrb[0].mxu0
      %v975 = vadd.f32 %v350, %v974
      %v976 = vpop.f32.mrb[0].mxu0
      %v977 = vadd.f32 %v354, %v976
      %v978 = vpop.f32.mrb[0].mxu0
      %v979 = vadd.f32 %v350, %v978
      %v980 = vpop.f32.mrb[0].mxu0
      %v981 = vadd.f32 %v354, %v980
      %982 = vmatprep.mubr.bf16.mxu0 0
      %983 = vmatmul.mubr.bf16.gmra.mrb[0].mxu0 %v640
      %v984 = vpop.f32.mrb[0].mxu0
      %v985 = vadd.f32 %v350, %v984
      %v986 = vpop.f32.mrb[0].mxu0
      %v987 = vadd.f32 %v354, %v986
      %v988 = vpop.f32.mrb[0].mxu0
      %v989 = vadd.f32 %v350, %v988
      %v990 = vpop.f32.mrb[0].mxu0
      %v991 = vadd.f32 %v354, %v990
      %992 = vmatprep.mubr.bf16.mxu0 0
      %993 = vmatmul.mubr.bf16.gmra.mrb[0].mxu0 %v643
      %v994 = vpop.f32.mrb[0].mxu0
      %v995 = vadd.f32 %v350, %v994
      %v996 = vpop.f32.mrb[0].mxu0
      %v997 = vadd.f32 %v354, %v996
      %v998 = vpop.f32.mrb[0].mxu0
      %v999 = vadd.f32 %v350, %v998
      %v1000 = vpop.f32.mrb[0].mxu0
      %v1001 = vadd.f32 %v354, %v1000
      %1002 = vmatprep.mubr.bf16.mxu0 0
      %1003 = vmatmul.mubr.bf16.gmra.mrb[0].mxu0 %v646
      %v1004 = vpop.f32.mrb[0].mxu0
      %v1005 = vadd.f32 %v350, %v1004
      %v1006 = vpop.f32.mrb[0].mxu0
      %v1007 = vadd.f32 %v354, %v1006
      %v1008 = vpop.f32.mrb[0].mxu0
      %v1009 = vadd.f32 %v350, %v1008
      %v1010 = vpop.f32.mrb[0].mxu0
      %v1011 = vadd.f32 %v354, %v1010
      %1012 = vdwg.mxu0
      %1013 = vmatprep.subr.bf16.mxu0 %v550
      %1014 = vmatpush1.bf16.msra.mxu0 %v549
      %1015 = vmatprep.subr.bf16.mxu0 %v562
      %1016 = vmatpush1.bf16.msra.mxu0 %v561
      %1017 = vmatprep.subr.bf16.mxu0 %v574
      %1018 = vmatpush1.bf16.msra.mxu0 %v573
      %1019 = vmatprep.subr.bf16.mxu0 %v586
      %1020 = vmatpush1.bf16.msra.mxu0 %v585
      %1021 = vmatprep.subr.bf16.mxu0 0
      %1022 = vmatpush1.bf16.msra.mxu0 0
      %1023 = vmatprep.subr.bf16.mxu0 0
      %1024 = vmatpush1.bf16.msra.mxu0 0
      %1025 = vmatprep.subr.bf16.mxu0 0
      %1026 = vmatpush1.bf16.msra.mxu0 0
      %1027 = vmatprep.subr.bf16.mxu0 0
      %1028 = vmatpush1.bf16.msra.mxu0 0
      %1029 = vmatprep.subr.bf16.mxu0 0
      %1030 = vmatpush1.bf16.msra.mxu0 0
      %1031 = vmatprep.subr.bf16.mxu0 0
      %1032 = vmatpush1.bf16.msra.mxu0 0
      %1033 = vmatprep.subr.bf16.mxu0 0
      %1034 = vmatpush1.bf16.msra.mxu0 0
      %1035 = vmatprep.subr.bf16.mxu0 0
      %1036 = vmatpush1.bf16.msra.mxu0 0
      %1037 = vmatprep.subr.bf16.mxu0 0
      %1038 = vmatpush1.bf16.msra.mxu0 0
      %1039 = vmatprep.subr.bf16.mxu0 0
      %1040 = vmatpush1.bf16.msra.mxu0 0
      %1041 = vmatprep.subr.bf16.mxu0 0
      %1042 = vmatpush1.bf16.msra.mxu0 0
      %1043 = vmatprep.subr.bf16.mxu0 0
      %1044 = vmatpush1.bf16.msra.mxu0 0
      %1045 = vmatprep.mubr.bf16.mxu0 0
      %1046 = vmatmul.mubr.bf16.gmra.mrb[0].mxu0 %v637
      %v1047 = vpop.f32.mrb[0].mxu0
      %v1048 = vadd.f32 %v358, %v1047
      %v1049 = vpop.f32.mrb[0].mxu0
      %v1050 = vadd.f32 %v362, %v1049
      %v1051 = vpop.f32.mrb[0].mxu0
      %v1052 = vadd.f32 %v358, %v1051
      %v1053 = vpop.f32.mrb[0].mxu0
      %v1054 = vadd.f32 %v362, %v1053
      %1055 = vmatprep.mubr.bf16.mxu0 0
      %1056 = vmatmul.mubr.bf16.gmra.mrb[0].mxu0 %v640
      %v1057 = vpop.f32.mrb[0].mxu0
      %v1058 = vadd.f32 %v358, %v1057
      %v1059 = vpop.f32.mrb[0].mxu0
      %v1060 = vadd.f32 %v362, %v1059
      %v1061 = vpop.f32.mrb[0].mxu0
      %v1062 = vadd.f32 %v358, %v1061
      %v1063 = vpop.f32.mrb[0].mxu0
      %v1064 = vadd.f32 %v362, %v1063
      %1065 = vmatprep.mubr.bf16.mxu0 0
      %1066 = vmatmul.mubr.bf16.gmra.mrb[0].mxu0 %v643
      %v1067 = vpop.f32.mrb[0].mxu0
      %v1068 = vadd.f32 %v358, %v1067
      %v1069 = vpop.f32.mrb[0].mxu0
      %v1070 = vadd.f32 %v362, %v1069
      %v1071 = vpop.f32.mrb[0].mxu0
      %v1072 = vadd.f32 %v358, %v1071
      %v1073 = vpop.f32.mrb[0].mxu0
      %v1074 = vadd.f32 %v362, %v1073
      %1075 = vmatprep.mubr.bf16.mxu0 0
      %1076 = vmatmul.mubr.bf16.gmra.mrb[0].mxu0 %v646
      %v1077 = vpop.f32.mrb[0].mxu0
      %v1078 = vadd.f32 %v358, %v1077
      %v1079 = vpop.f32.mrb[0].mxu0
      %v1080 = vadd.f32 %v362, %v1079
      %v1081 = vpop.f32.mrb[0].mxu0
      %v1082 = vadd.f32 %v358, %v1081
      %v1083 = vpop.f32.mrb[0].mxu0
      %v1084 = vadd.f32 %v362, %v1083
      %1085 = vdwg.mxu0
      %v1086 = vpack.c.bf16 %v687, %v683
      %v1087 = vpack.c.bf16 %v689, %v685
      %v1088 = vpack.c.bf16 %v760, %v756
      %v1089 = vpack.c.bf16 %v762, %v758
      %v1090 = vpack.c.bf16 %v833, %v829
      %v1091 = vpack.c.bf16 %v835, %v831
      %v1092 = vpack.c.bf16 %v906, %v902
      %v1093 = vpack.c.bf16 %v908, %v904
      %v1094 = vpack.c.bf16 %v979, %v975
      %v1095 = vpack.c.bf16 %v981, %v977
      %v1096 = vpack.c.bf16 %v1052, %v1048
      %v1097 = vpack.c.bf16 %v1054, %v1050
      %v1098 = vpack.c.bf16 %v697, %v693
      %v1099 = vpack.c.bf16 %v699, %v695
      %v1100 = vpack.c.bf16 %v770, %v766
      %v1101 = vpack.c.bf16 %v772, %v768
      %v1102 = vpack.c.bf16 %v843, %v839
      %v1103 = vpack.c.bf16 %v845, %v841
      %v1104 = vpack.c.bf16 %v916, %v912
      %v1105 = vpack.c.bf16 %v918, %v914
      %v1106 = vpack.c.bf16 %v989, %v985
      %v1107 = vpack.c.bf16 %v991, %v987
      %v1108 = vpack.c.bf16 %v1062, %v1058
      %v1109 = vpack.c.bf16 %v1064, %v1060
      %v1110 = vpack.c.bf16 %v707, %v703
      %v1111 = vpack.c.bf16 %v709, %v705
      %v1112 = vpack.c.bf16 %v780, %v776
      %v1113 = vpack.c.bf16 %v782, %v778
      %v1114 = vpack.c.bf16 %v853, %v849
      %v1115 = vpack.c.bf16 %v855, %v851
      %v1116 = vpack.c.bf16 %v926, %v922
      %v1117 = vpack.c.bf16 %v928, %v924
      %v1118 = vpack.c.bf16 %v999, %v995
      %v1119 = vpack.c.bf16 %v1001, %v997
      %v1120 = vpack.c.bf16 %v1072, %v1068
      %v1121 = vpack.c.bf16 %v1074, %v1070
      %v1122 = vpack.c.bf16 %v717, %v713
      %v1123 = vpack.c.bf16 %v719, %v715
      %v1124 = vpack.c.bf16 %v790, %v786
      %v1125 = vpack.c.bf16 %v792, %v788
      %v1126 = vpack.c.bf16 %v863, %v859
      %v1127 = vpack.c.bf16 %v865, %v861
      %v1128 = vpack.c.bf16 %v936, %v932
      %v1129 = vpack.c.bf16 %v938, %v934
      %v1130 = vpack.c.bf16 %v1009, %v1005
      %v1131 = vpack.c.bf16 %v1011, %v1007
      %v1132 = vpack.c.bf16 %v1082, %v1078
      %v1133 = vpack.c.bf16 %v1084, %v1080
      %1134 = vmatprep.subr.bf16.mxu0 0
      %1135 = vmatpush1.bf16.xpose.msra.mxu0 %v1090
      %1136 = vmatprep.subr.bf16.mxu0 0
      %1137 = vmatpush1.bf16.xpose.msra.mxu0 %v1102
      %1138 = vmatprep.subr.bf16.mxu0 0
      %1139 = vmatpush1.bf16.xpose.msra.mxu0 %v1114
      %1140 = vmatprep.subr.bf16.mxu0 0
      %1141 = vmatpush1.bf16.xpose.msra.mxu0 %v1126
      %1142 = vmatprep.subr.bf16.mxu0 0
      %1143 = vmatpush1.bf16.xpose.msra.mxu0 0
      %1144 = vmatprep.subr.bf16.mxu0 0
      %1145 = vmatpush1.bf16.xpose.msra.mxu0 0
      %1146 = vmatprep.subr.bf16.mxu0 0
      %1147 = vmatpush1.bf16.xpose.msra.mxu0 0
      %1148 = vmatprep.subr.bf16.mxu0 0
      %1149 = vmatpush1.bf16.xpose.msra.mxu0 0
      %1150 = vmatprep.subr.bf16.mxu0 0
      %1151 = vmatpush1.bf16.xpose.msra.mxu0 0
      %1152 = vmatprep.subr.bf16.mxu0 0
      %1153 = vmatpush1.bf16.xpose.msra.mxu0 0
      %1154 = vmatprep.subr.bf16.mxu0 0
      %1155 = vmatpush1.bf16.xpose.msra.mxu0 0
      %1156 = vmatprep.subr.bf16.mxu0 0
      %1157 = vmatpush1.bf16.xpose.msra.mxu0 0
      %1158 = vmatprep.subr.bf16.mxu0 0
      %1159 = vmatpush1.bf16.xpose.msra.mxu0 0
      %1160 = vmatprep.subr.bf16.mxu0 0
      %1161 = vmatpush1.bf16.xpose.msra.mxu0 0
      %1162 = vmatprep.subr.bf16.mxu0 0
      %1163 = vmatpush1.bf16.xpose.msra.mxu0 0
      %1164 = vmatprep.subr.bf16.mxu0 0
      %1165 = vmatpush1.bf16.xpose.msra.mxu0 0
      %1166 = vmatprep.mubr.bf16.mxu0 0
      %1167 = vmatmul.mubr.bf16.gmra.mrb[0].mxu0 %v1086
      %v1168 = vpop.f32.mrb[0].mxu0
      %v1169 = vadd.f32 0.0, %v1168
      %v1170 = vpop.f32.mrb[0].mxu0
      %v1171 = vpop.f32.mrb[0].mxu0
      %v1172 = vadd.f32 0.0, %v1171
      %v1173 = vpop.f32.mrb[0].mxu0
      %1174 = vmatprep.mubr.bf16.mxu0 0
      %1175 = vmatmul.mubr.bf16.gmra.mrb[0].mxu0 %v1098
      %v1176 = vpop.f32.mrb[0].mxu0
      %v1177 = vadd.f32 0.0, %v1176
      %v1178 = vpop.f32.mrb[0].mxu0
      %v1179 = vpop.f32.mrb[0].mxu0
      %v1180 = vadd.f32 0.0, %v1179
      %v1181 = vpop.f32.mrb[0].mxu0
      %1182 = vmatprep.mubr.bf16.mxu0 0
      %1183 = vmatmul.mubr.bf16.gmra.mrb[0].mxu0 %v1110
      %v1184 = vpop.f32.mrb[0].mxu0
      %v1185 = vadd.f32 0.0, %v1184
      %v1186 = vpop.f32.mrb[0].mxu0
      %v1187 = vpop.f32.mrb[0].mxu0
      %v1188 = vadd.f32 0.0, %v1187
      %v1189 = vpop.f32.mrb[0].mxu0
      %1190 = vmatprep.mubr.bf16.mxu0 0
      %1191 = vmatmul.mubr.bf16.gmra.mrb[0].mxu0 %v1122
      %v1192 = vpop.f32.mrb[0].mxu0
      %v1193 = vadd.f32 0.0, %v1192
      %v1194 = vpop.f32.mrb[0].mxu0
      %v1195 = vpop.f32.mrb[0].mxu0
      %v1196 = vadd.f32 0.0, %v1195
      %v1197 = vpop.f32.mrb[0].mxu0
      %1198 = vdwg.mxu0
      %v1199 = vmul.f32 %v1169, 0.25
      %v1200 = vmul.f32 %v1172, 0.25
      %v1201 = vmul.f32 %v1177, 0.25
      %v1202 = vmul.f32 %v1180, 0.25
      %v1203 = vmul.f32 %v1185, 0.25
      %v1204 = vmul.f32 %v1188, 0.25
      %v1205 = vmul.f32 %v1193, 0.25
      %v1206 = vmul.f32 %v1196, 0.25
      %v1207 = vsel %vm635, %v1199, -inf
      %1208 = vmax.xlane.f32.xlu0 %v1207
      %v1209 = vpop.xlane.xlu0 %1208
      %v1210 = vsel %vm635, %v1200, -inf
      %1211 = vmax.xlane.f32.xlu0 %v1210
      %v1212 = vpop.xlane.xlu0 %1211
      %v1213 = vsel %vm635, %v1201, -inf
      %1214 = vmax.xlane.f32.xlu0 %v1213
      %v1215 = vpop.xlane.xlu0 %1214
      %v1216 = vsel %vm635, %v1202, -inf
      %1217 = vmax.xlane.f32.xlu0 %v1216
      %v1218 = vpop.xlane.xlu0 %1217
      %v1219 = vsel %vm635, %v1203, -inf
      %1220 = vmax.xlane.f32.xlu0 %v1219
      %v1221 = vpop.xlane.xlu0 %1220
      %v1222 = vsel %vm635, %v1204, -inf
      %1223 = vmax.xlane.f32.xlu0 %v1222
      %v1224 = vpop.xlane.xlu0 %1223
      %v1225 = vsel %vm635, %v1205, -inf
      %1226 = vmax.xlane.f32.xlu0 %v1225
      %v1227 = vpop.xlane.xlu0 %1226
      %v1228 = vsel %vm635, %v1206, -inf
      %1229 = vmax.xlane.f32.xlu0 %v1228
      %v1230 = vpop.xlane.xlu0 %1229
      %v1231 = vsub.f32 %v1199, %v1209
      %v1232 = vsub.f32 %v1200, %v1212
      %v1233 = vsub.f32 %v1201, %v1215
      %v1234 = vsub.f32 %v1202, %v1218
      %v1235 = vsub.f32 %v1203, %v1221
      %v1236 = vsub.f32 %v1204, %v1224
      %v1237 = vsub.f32 %v1205, %v1227
      %v1238 = vsub.f32 %v1206, %v1230
      %v1239 = vmul.f32 %v1231, 1.442695
      %v1240 = vpow.pop %v1239
      %v1241 = vmul.f32 %v1232, 1.442695
      %v1242 = vpow.pop %v1241
      %v1243 = vmul.f32 %v1233, 1.442695
      %v1244 = vpow.pop %v1243
      %v1245 = vmul.f32 %v1234, 1.442695
      %v1246 = vpow.pop %v1245
      %v1247 = vmul.f32 %v1235, 1.442695
      %v1248 = vpow.pop %v1247
      %v1249 = vmul.f32 %v1236, 1.442695
      %v1250 = vpow.pop %v1249
      %v1251 = vmul.f32 %v1237, 1.442695
      %v1252 = vpow.pop %v1251
      %v1253 = vmul.f32 %v1238, 1.442695
      %v1254 = vpow.pop %v1253
      %v1255 = vsel %vm635, %v1240, 0.0
      %1256 = vadd.xlane.f32.xlu0 %v1255
      %v1257 = vpop.xlane.xlu0 %1256
      %v1258 = vsel %vm635, %v1242, 0.0
      %1259 = vadd.xlane.f32.xlu0 %v1258
      %v1260 = vpop.xlane.xlu0 %1259
      %v1261 = vsel %vm635, %v1244, 0.0
      %1262 = vadd.xlane.f32.xlu0 %v1261
      %v1263 = vpop.xlane.xlu0 %1262
      %v1264 = vsel %vm635, %v1246, 0.0
      %1265 = vadd.xlane.f32.xlu0 %v1264
      %v1266 = vpop.xlane.xlu0 %1265
      %v1267 = vsel %vm635, %v1248, 0.0
      %1268 = vadd.xlane.f32.xlu0 %v1267
      %v1269 = vpop.xlane.xlu0 %1268
      %v1270 = vsel %vm635, %v1250, 0.0
      %1271 = vadd.xlane.f32.xlu0 %v1270
      %v1272 = vpop.xlane.xlu0 %1271
      %v1273 = vsel %vm635, %v1252, 0.0
      %1274 = vadd.xlane.f32.xlu0 %v1273
      %v1275 = vpop.xlane.xlu0 %1274
      %v1276 = vsel %vm635, %v1254, 0.0
      %1277 = vadd.xlane.f32.xlu0 %v1276
      %v1278 = vpop.xlane.xlu0 %1277
      %v1279 = vrcp.pop %v1257
      %v1280 = vmul.f32 %v1240, %v1279
      %v1281 = vrcp.pop %v1260
      %v1282 = vmul.f32 %v1242, %v1281
      %v1283 = vrcp.pop %v1263
      %v1284 = vmul.f32 %v1244, %v1283
      %v1285 = vrcp.pop %v1266
      %v1286 = vmul.f32 %v1246, %v1285
      %v1287 = vrcp.pop %v1269
      %v1288 = vmul.f32 %v1248, %v1287
      %v1289 = vrcp.pop %v1272
      %v1290 = vmul.f32 %v1250, %v1289
      %v1291 = vrcp.pop %v1275
      %v1292 = vmul.f32 %v1252, %v1291
      %v1293 = vrcp.pop %v1278
      %v1294 = vmul.f32 %v1254, %v1293
      %v1295 = vpack.c.bf16 %v1282, %v1280
      %v1296 = vpack.c.bf16 %v1286, %v1284
      %v1297 = vpack.c.bf16 %v1290, %v1288
      %v1298 = vpack.c.bf16 %v1294, %v1292
      %v1300 = vsel %vm635, %v1295, 0
      %v1303 = vsel %vm635, %v1296, 0
      %v1306 = vsel %vm635, %v1297, 0
      %v1309 = vsel %vm635, %v1298, 0
      %1311 = vmatprep.subr.bf16.mxu0 0
      %1312 = vmatpush1.bf16.msra.mxu0 %v1094
      %1313 = vmatprep.subr.bf16.mxu0 0
      %1314 = vmatpush1.bf16.msra.mxu0 %v1106
      %1315 = vmatprep.subr.bf16.mxu0 0
      %1316 = vmatpush1.bf16.msra.mxu0 %v1118
      %1317 = vmatprep.subr.bf16.mxu0 0
      %1318 = vmatpush1.bf16.msra.mxu0 %v1130
      %1319 = vmatprep.subr.bf16.mxu0 0
      %1320 = vmatpush1.bf16.msra.mxu0 0
      %1321 = vmatprep.subr.bf16.mxu0 0
      %1322 = vmatpush1.bf16.msra.mxu0 0
      %1323 = vmatprep.subr.bf16.mxu0 0
      %1324 = vmatpush1.bf16.msra.mxu0 0
      %1325 = vmatprep.subr.bf16.mxu0 0
      %1326 = vmatpush1.bf16.msra.mxu0 0
      %1327 = vmatprep.subr.bf16.mxu0 0
      %1328 = vmatpush1.bf16.msra.mxu0 0
      %1329 = vmatprep.subr.bf16.mxu0 0
      %1330 = vmatpush1.bf16.msra.mxu0 0
      %1331 = vmatprep.subr.bf16.mxu0 0
      %1332 = vmatpush1.bf16.msra.mxu0 0
      %1333 = vmatprep.subr.bf16.mxu0 0
      %1334 = vmatpush1.bf16.msra.mxu0 0
      %1335 = vmatprep.subr.bf16.mxu0 0
      %1336 = vmatpush1.bf16.msra.mxu0 0
      %1337 = vmatprep.subr.bf16.mxu0 0
      %1338 = vmatpush1.bf16.msra.mxu0 0
      %1339 = vmatprep.subr.bf16.mxu0 0
      %1340 = vmatpush1.bf16.msra.mxu0 0
      %1341 = vmatprep.subr.bf16.mxu0 0
      %1342 = vmatpush1.bf16.msra.mxu0 0
      %1343 = vmatprep.mubr.bf16.mxu0 0
      %1344 = vmatmul.mubr.bf16.gmra.mrb[0].mxu0 %v1300
      %v1345 = vpop.f32.mrb[0].mxu0
      %v1346 = vadd.f32 0.0, %v1345
      %v1347 = vpop.f32.mrb[0].mxu0
      %v1348 = vpop.f32.mrb[0].mxu0
      %v1349 = vadd.f32 0.0, %v1348
      %v1350 = vpop.f32.mrb[0].mxu0
      %1351 = vmatprep.mubr.bf16.mxu0 0
      %1352 = vmatmul.mubr.bf16.gmra.mrb[0].mxu0 %v1303
      %v1353 = vpop.f32.mrb[0].mxu0
      %v1354 = vadd.f32 0.0, %v1353
      %v1355 = vpop.f32.mrb[0].mxu0
      %v1356 = vpop.f32.mrb[0].mxu0
      %v1357 = vadd.f32 0.0, %v1356
      %v1358 = vpop.f32.mrb[0].mxu0
      %1359 = vmatprep.mubr.bf16.mxu0 0
      %1360 = vmatmul.mubr.bf16.gmra.mrb[0].mxu0 %v1306
      %v1361 = vpop.f32.mrb[0].mxu0
      %v1362 = vadd.f32 0.0, %v1361
      %v1363 = vpop.f32.mrb[0].mxu0
      %v1364 = vpop.f32.mrb[0].mxu0
      %v1365 = vadd.f32 0.0, %v1364
      %v1366 = vpop.f32.mrb[0].mxu0
      %1367 = vmatprep.mubr.bf16.mxu0 0
      %1368 = vmatmul.mubr.bf16.gmra.mrb[0].mxu0 %v1309
      %v1369 = vpop.f32.mrb[0].mxu0
      %v1370 = vadd.f32 0.0, %v1369
      %v1371 = vpop.f32.mrb[0].mxu0
      %v1372 = vpop.f32.mrb[0].mxu0
      %v1373 = vadd.f32 0.0, %v1372
      %v1374 = vpop.f32.mrb[0].mxu0
      %1375 = vdwg.mxu0
      %v1376 = vpack.c.bf16 %v1349, %v1346
      %v1377 = vpack.c.bf16 %v1357, %v1354
      %v1378 = vpack.c.bf16 %v1365, %v1362
      %v1379 = vpack.c.bf16 %v1373, %v1370
      %1380 = vmatprep.subr.bf16.mxu0 0
      %1381 = vmatpush1.bf16.xpose.msra.mxu0 %v1091
      %1382 = vmatprep.subr.bf16.mxu0 0
      %1383 = vmatpush1.bf16.xpose.msra.mxu0 %v1103
      %1384 = vmatprep.subr.bf16.mxu0 0
      %1385 = vmatpush1.bf16.xpose.msra.mxu0 %v1115
      %1386 = vmatprep.subr.bf16.mxu0 0
      %1387 = vmatpush1.bf16.xpose.msra.mxu0 %v1127
      %1388 = vmatprep.subr.bf16.mxu0 0
      %1389 = vmatpush1.bf16.xpose.msra.mxu0 0
      %1390 = vmatprep.subr.bf16.mxu0 0
      %1391 = vmatpush1.bf16.xpose.msra.mxu0 0
      %1392 = vmatprep.subr.bf16.mxu0 0
      %1393 = vmatpush1.bf16.xpose.msra.mxu0 0
      %1394 = vmatprep.subr.bf16.mxu0 0
      %1395 = vmatpush1.bf16.xpose.msra.mxu0 0
      %1396 = vmatprep.subr.bf16.mxu0 0
      %1397 = vmatpush1.bf16.xpose.msra.mxu0 0
      %1398 = vmatprep.subr.bf16.mxu0 0
      %1399 = vmatpush1.bf16.xpose.msra.mxu0 0
      %1400 = vmatprep.subr.bf16.mxu0 0
      %1401 = vmatpush1.bf16.xpose.msra.mxu0 0
      %1402 = vmatprep.subr.bf16.mxu0 0
      %1403 = vmatpush1.bf16.xpose.msra.mxu0 0
      %1404 = vmatprep.subr.bf16.mxu0 0
      %1405 = vmatpush1.bf16.xpose.msra.mxu0 0
      %1406 = vmatprep.subr.bf16.mxu0 0
      %1407 = vmatpush1.bf16.xpose.msra.mxu0 0
      %1408 = vmatprep.subr.bf16.mxu0 0
      %1409 = vmatpush1.bf16.xpose.msra.mxu0 0
      %1410 = vmatprep.subr.bf16.mxu0 0
      %1411 = vmatpush1.bf16.xpose.msra.mxu0 0
      %1412 = vmatprep.mubr.bf16.mxu0 0
      %1413 = vmatmul.mubr.bf16.gmra.mrb[0].mxu0 %v1087
      %v1414 = vpop.f32.mrb[0].mxu0
      %v1415 = vadd.f32 0.0, %v1414
      %v1416 = vpop.f32.mrb[0].mxu0
      %v1417 = vpop.f32.mrb[0].mxu0
      %v1418 = vadd.f32 0.0, %v1417
      %v1419 = vpop.f32.mrb[0].mxu0
      %1420 = vmatprep.mubr.bf16.mxu0 0
      %1421 = vmatmul.mubr.bf16.gmra.mrb[0].mxu0 %v1099
      %v1422 = vpop.f32.mrb[0].mxu0
      %v1423 = vadd.f32 0.0, %v1422
      %v1424 = vpop.f32.mrb[0].mxu0
      %v1425 = vpop.f32.mrb[0].mxu0
      %v1426 = vadd.f32 0.0, %v1425
      %v1427 = vpop.f32.mrb[0].mxu0
      %1428 = vmatprep.mubr.bf16.mxu0 0
      %1429 = vmatmul.mubr.bf16.gmra.mrb[0].mxu0 %v1111
      %v1430 = vpop.f32.mrb[0].mxu0
      %v1431 = vadd.f32 0.0, %v1430
      %v1432 = vpop.f32.mrb[0].mxu0
      %v1433 = vpop.f32.mrb[0].mxu0
      %v1434 = vadd.f32 0.0, %v1433
      %v1435 = vpop.f32.mrb[0].mxu0
      %1436 = vmatprep.mubr.bf16.mxu0 0
      %1437 = vmatmul.mubr.bf16.gmra.mrb[0].mxu0 %v1123
      %v1438 = vpop.f32.mrb[0].mxu0
      %v1439 = vadd.f32 0.0, %v1438
      %v1440 = vpop.f32.mrb[0].mxu0
      %v1441 = vpop.f32.mrb[0].mxu0
      %v1442 = vadd.f32 0.0, %v1441
      %v1443 = vpop.f32.mrb[0].mxu0
      %1444 = vdwg.mxu0
      %v1445 = vmul.f32 %v1415, 0.25
      %v1446 = vmul.f32 %v1418, 0.25
      %v1447 = vmul.f32 %v1423, 0.25
      %v1448 = vmul.f32 %v1426, 0.25
      %v1449 = vmul.f32 %v1431, 0.25
      %v1450 = vmul.f32 %v1434, 0.25
      %v1451 = vmul.f32 %v1439, 0.25
      %v1452 = vmul.f32 %v1442, 0.25
      %v1453 = vsel %vm635, %v1445, -inf
      %1454 = vmax.xlane.f32.xlu0 %v1453
      %v1455 = vpop.xlane.xlu0 %1454
      %v1456 = vsel %vm635, %v1446, -inf
      %1457 = vmax.xlane.f32.xlu0 %v1456
      %v1458 = vpop.xlane.xlu0 %1457
      %v1459 = vsel %vm635, %v1447, -inf
      %1460 = vmax.xlane.f32.xlu0 %v1459
      %v1461 = vpop.xlane.xlu0 %1460
      %v1462 = vsel %vm635, %v1448, -inf
      %1463 = vmax.xlane.f32.xlu0 %v1462
      %v1464 = vpop.xlane.xlu0 %1463
      %v1465 = vsel %vm635, %v1449, -inf
      %1466 = vmax.xlane.f32.xlu0 %v1465
      %v1467 = vpop.xlane.xlu0 %1466
      %v1468 = vsel %vm635, %v1450, -inf
      %1469 = vmax.xlane.f32.xlu0 %v1468
      %v1470 = vpop.xlane.xlu0 %1469
      %v1471 = vsel %vm635, %v1451, -inf
      %1472 = vmax.xlane.f32.xlu0 %v1471
      %v1473 = vpop.xlane.xlu0 %1472
      %v1474 = vsel %vm635, %v1452, -inf
      %1475 = vmax.xlane.f32.xlu0 %v1474
      %v1476 = vpop.xlane.xlu0 %1475
      %v1477 = vsub.f32 %v1445, %v1455
      %v1478 = vsub.f32 %v1446, %v1458
      %v1479 = vsub.f32 %v1447, %v1461
      %v1480 = vsub.f32 %v1448, %v1464
      %v1481 = vsub.f32 %v1449, %v1467
      %v1482 = vsub.f32 %v1450, %v1470
      %v1483 = vsub.f32 %v1451, %v1473
      %v1484 = vsub.f32 %v1452, %v1476
      %v1485 = vmul.f32 %v1477, 1.442695
      %v1486 = vpow.pop %v1485
      %v1487 = vmul.f32 %v1478, 1.442695
      %v1488 = vpow.pop %v1487
      %v1489 = vmul.f32 %v1479, 1.442695
      %v1490 = vpow.pop %v1489
      %v1491 = vmul.f32 %v1480, 1.442695
      %v1492 = vpow.pop %v1491
      %v1493 = vmul.f32 %v1481, 1.442695
      %v1494 = vpow.pop %v1493
      %v1495 = vmul.f32 %v1482, 1.442695
      %v1496 = vpow.pop %v1495
      %v1497 = vmul.f32 %v1483, 1.442695
      %v1498 = vpow.pop %v1497
      %v1499 = vmul.f32 %v1484, 1.442695
      %v1500 = vpow.pop %v1499
      %v1501 = vsel %vm635, %v1486, 0.0
      %1502 = vadd.xlane.f32.xlu0 %v1501
      %v1503 = vpop.xlane.xlu0 %1502
      %v1504 = vsel %vm635, %v1488, 0.0
      %1505 = vadd.xlane.f32.xlu0 %v1504
      %v1506 = vpop.xlane.xlu0 %1505
      %v1507 = vsel %vm635, %v1490, 0.0
      %1508 = vadd.xlane.f32.xlu0 %v1507
      %v1509 = vpop.xlane.xlu0 %1508
      %v1510 = vsel %vm635, %v1492, 0.0
      %1511 = vadd.xlane.f32.xlu0 %v1510
      %v1512 = vpop.xlane.xlu0 %1511
      %v1513 = vsel %vm635, %v1494, 0.0
      %1514 = vadd.xlane.f32.xlu0 %v1513
      %v1515 = vpop.xlane.xlu0 %1514
      %v1516 = vsel %vm635, %v1496, 0.0
      %1517 = vadd.xlane.f32.xlu0 %v1516
      %v1518 = vpop.xlane.xlu0 %1517
      %v1519 = vsel %vm635, %v1498, 0.0
      %1520 = vadd.xlane.f32.xlu0 %v1519
      %v1521 = vpop.xlane.xlu0 %1520
      %v1522 = vsel %vm635, %v1500, 0.0
      %1523 = vadd.xlane.f32.xlu0 %v1522
      %v1524 = vpop.xlane.xlu0 %1523
      %v1525 = vrcp.pop %v1503
      %v1526 = vmul.f32 %v1486, %v1525
      %v1527 = vrcp.pop %v1506
      %v1528 = vmul.f32 %v1488, %v1527
      %v1529 = vrcp.pop %v1509
      %v1530 = vmul.f32 %v1490, %v1529
      %v1531 = vrcp.pop %v1512
      %v1532 = vmul.f32 %v1492, %v1531
      %v1533 = vrcp.pop %v1515
      %v1534 = vmul.f32 %v1494, %v1533
      %v1535 = vrcp.pop %v1518
      %v1536 = vmul.f32 %v1496, %v1535
      %v1537 = vrcp.pop %v1521
      %v1538 = vmul.f32 %v1498, %v1537
      %v1539 = vrcp.pop %v1524
      %v1540 = vmul.f32 %v1500, %v1539
      %v1541 = vpack.c.bf16 %v1528, %v1526
      %v1542 = vpack.c.bf16 %v1532, %v1530
      %v1543 = vpack.c.bf16 %v1536, %v1534
      %v1544 = vpack.c.bf16 %v1540, %v1538
      %v1546 = vsel %vm635, %v1541, 0
      %v1549 = vsel %vm635, %v1542, 0
      %v1552 = vsel %vm635, %v1543, 0
      %v1555 = vsel %vm635, %v1544, 0
      %1557 = vmatprep.subr.bf16.mxu0 0
      %1558 = vmatpush1.bf16.msra.mxu0 %v1095
      %1559 = vmatprep.subr.bf16.mxu0 0
      %1560 = vmatpush1.bf16.msra.mxu0 %v1107
      %1561 = vmatprep.subr.bf16.mxu0 0
      %1562 = vmatpush1.bf16.msra.mxu0 %v1119
      %1563 = vmatprep.subr.bf16.mxu0 0
      %1564 = vmatpush1.bf16.msra.mxu0 %v1131
      %1565 = vmatprep.subr.bf16.mxu0 0
      %1566 = vmatpush1.bf16.msra.mxu0 0
      %1567 = vmatprep.subr.bf16.mxu0 0
      %1568 = vmatpush1.bf16.msra.mxu0 0
      %1569 = vmatprep.subr.bf16.mxu0 0
      %1570 = vmatpush1.bf16.msra.mxu0 0
      %1571 = vmatprep.subr.bf16.mxu0 0
      %1572 = vmatpush1.bf16.msra.mxu0 0
      %1573 = vmatprep.subr.bf16.mxu0 0
      %1574 = vmatpush1.bf16.msra.mxu0 0
      %1575 = vmatprep.subr.bf16.mxu0 0
      %1576 = vmatpush1.bf16.msra.mxu0 0
      %1577 = vmatprep.subr.bf16.mxu0 0
      %1578 = vmatpush1.bf16.msra.mxu0 0
      %1579 = vmatprep.subr.bf16.mxu0 0
      %1580 = vmatpush1.bf16.msra.mxu0 0
      %1581 = vmatprep.subr.bf16.mxu0 0
      %1582 = vmatpush1.bf16.msra.mxu0 0
      %1583 = vmatprep.subr.bf16.mxu0 0
      %1584 = vmatpush1.bf16.msra.mxu0 0
      %1585 = vmatprep.subr.bf16.mxu0 0
      %1586 = vmatpush1.bf16.msra.mxu0 0
      %1587 = vmatprep.subr.bf16.mxu0 0
      %1588 = vmatpush1.bf16.msra.mxu0 0
      %1589 = vmatprep.mubr.bf16.mxu0 0
      %1590 = vmatmul.mubr.bf16.gmra.mrb[0].mxu0 %v1546
      %v1591 = vpop.f32.mrb[0].mxu0
      %v1592 = vadd.f32 0.0, %v1591
      %v1593 = vpop.f32.mrb[0].mxu0
      %v1594 = vpop.f32.mrb[0].mxu0
      %v1595 = vadd.f32 0.0, %v1594
      %v1596 = vpop.f32.mrb[0].mxu0
      %1597 = vmatprep.mubr.bf16.mxu0 0
      %1598 = vmatmul.mubr.bf16.gmra.mrb[0].mxu0 %v1549
      %v1599 = vpop.f32.mrb[0].mxu0
      %v1600 = vadd.f32 0.0, %v1599
      %v1601 = vpop.f32.mrb[0].mxu0
      %v1602 = vpop.f32.mrb[0].mxu0
      %v1603 = vadd.f32 0.0, %v1602
      %v1604 = vpop.f32.mrb[0].mxu0
      %1605 = vmatprep.mubr.bf16.mxu0 0
      %1606 = vmatmul.mubr.bf16.gmra.mrb[0].mxu0 %v1552
      %v1607 = vpop.f32.mrb[0].mxu0
      %v1608 = vadd.f32 0.0, %v1607
      %v1609 = vpop.f32.mrb[0].mxu0
      %v1610 = vpop.f32.mrb[0].mxu0
      %v1611 = vadd.f32 0.0, %v1610
      %v1612 = vpop.f32.mrb[0].mxu0
      %1613 = vmatprep.mubr.bf16.mxu0 0
      %1614 = vmatmul.mubr.bf16.gmra.mrb[0].mxu0 %v1555
      %v1615 = vpop.f32.mrb[0].mxu0
      %v1616 = vadd.f32 0.0, %v1615
      %v1617 = vpop.f32.mrb[0].mxu0
      %v1618 = vpop.f32.mrb[0].mxu0
      %v1619 = vadd.f32 0.0, %v1618
      %v1620 = vpop.f32.mrb[0].mxu0
      %1621 = vdwg.mxu0
      %v1622 = vpack.c.bf16 %v1595, %v1592
      %v1623 = vpack.c.bf16 %v1603, %v1600
      %v1624 = vpack.c.bf16 %v1611, %v1608
      %v1625 = vpack.c.bf16 %v1619, %v1616
      %1626 = vmatprep.subr.bf16.mxu0 0
      %1627 = vmatpush1.bf16.xpose.msra.mxu0 %v1092
      %1628 = vmatprep.subr.bf16.mxu0 0
      %1629 = vmatpush1.bf16.xpose.msra.mxu0 %v1104
      %1630 = vmatprep.subr.bf16.mxu0 0
      %1631 = vmatpush1.bf16.xpose.msra.mxu0 %v1116
      %1632 = vmatprep.subr.bf16.mxu0 0
      %1633 = vmatpush1.bf16.xpose.msra.mxu0 %v1128
      %1634 = vmatprep.subr.bf16.mxu0 0
      %1635 = vmatpush1.bf16.xpose.msra.mxu0 0
      %1636 = vmatprep.subr.bf16.mxu0 0
      %1637 = vmatpush1.bf16.xpose.msra.mxu0 0
      %1638 = vmatprep.subr.bf16.mxu0 0
      %1639 = vmatpush1.bf16.xpose.msra.mxu0 0
      %1640 = vmatprep.subr.bf16.mxu0 0
      %1641 = vmatpush1.bf16.xpose.msra.mxu0 0
      %1642 = vmatprep.subr.bf16.mxu0 0
      %1643 = vmatpush1.bf16.xpose.msra.mxu0 0
      %1644 = vmatprep.subr.bf16.mxu0 0
      %1645 = vmatpush1.bf16.xpose.msra.mxu0 0
      %1646 = vmatprep.subr.bf16.mxu0 0
      %1647 = vmatpush1.bf16.xpose.msra.mxu0 0
      %1648 = vmatprep.subr.bf16.mxu0 0
      %1649 = vmatpush1.bf16.xpose.msra.mxu0 0
      %1650 = vmatprep.subr.bf16.mxu0 0
      %1651 = vmatpush1.bf16.xpose.msra.mxu0 0
      %1652 = vmatprep.subr.bf16.mxu0 0
      %1653 = vmatpush1.bf16.xpose.msra.mxu0 0
      %1654 = vmatprep.subr.bf16.mxu0 0
      %1655 = vmatpush1.bf16.xpose.msra.mxu0 0
      %1656 = vmatprep.subr.bf16.mxu0 0
      %1657 = vmatpush1.bf16.xpose.msra.mxu0 0
      %1658 = vmatprep.mubr.bf16.mxu0 0
      %1659 = vmatmul.mubr.bf16.gmra.mrb[0].mxu0 %v1088
      %v1660 = vpop.f32.mrb[0].mxu0
      %v1661 = vadd.f32 0.0, %v1660
      %v1662 = vpop.f32.mrb[0].mxu0
      %v1663 = vpop.f32.mrb[0].mxu0
      %v1664 = vadd.f32 0.0, %v1663
      %v1665 = vpop.f32.mrb[0].mxu0
      %1666 = vmatprep.mubr.bf16.mxu0 0
      %1667 = vmatmul.mubr.bf16.gmra.mrb[0].mxu0 %v1100
      %v1668 = vpop.f32.mrb[0].mxu0
      %v1669 = vadd.f32 0.0, %v1668
      %v1670 = vpop.f32.mrb[0].mxu0
      %v1671 = vpop.f32.mrb[0].mxu0
      %v1672 = vadd.f32 0.0, %v1671
      %v1673 = vpop.f32.mrb[0].mxu0
      %1674 = vmatprep.mubr.bf16.mxu0 0
      %1675 = vmatmul.mubr.bf16.gmra.mrb[0].mxu0 %v1112
      %v1676 = vpop.f32.mrb[0].mxu0
      %v1677 = vadd.f32 0.0, %v1676
      %v1678 = vpop.f32.mrb[0].mxu0
      %v1679 = vpop.f32.mrb[0].mxu0
      %v1680 = vadd.f32 0.0, %v1679
      %v1681 = vpop.f32.mrb[0].mxu0
      %1682 = vmatprep.mubr.bf16.mxu0 0
      %1683 = vmatmul.mubr.bf16.gmra.mrb[0].mxu0 %v1124
      %v1684 = vpop.f32.mrb[0].mxu0
      %v1685 = vadd.f32 0.0, %v1684
      %v1686 = vpop.f32.mrb[0].mxu0
      %v1687 = vpop.f32.mrb[0].mxu0
      %v1688 = vadd.f32 0.0, %v1687
      %v1689 = vpop.f32.mrb[0].mxu0
      %1690 = vdwg.mxu0
      %v1691 = vmul.f32 %v1661, 0.25
      %v1692 = vmul.f32 %v1664, 0.25
      %v1693 = vmul.f32 %v1669, 0.25
      %v1694 = vmul.f32 %v1672, 0.25
      %v1695 = vmul.f32 %v1677, 0.25
      %v1696 = vmul.f32 %v1680, 0.25
      %v1697 = vmul.f32 %v1685, 0.25
      %v1698 = vmul.f32 %v1688, 0.25
      %v1699 = vsel %vm635, %v1691, -inf
      %1700 = vmax.xlane.f32.xlu0 %v1699
      %v1701 = vpop.xlane.xlu0 %1700
      %v1702 = vsel %vm635, %v1692, -inf
      %1703 = vmax.xlane.f32.xlu0 %v1702
      %v1704 = vpop.xlane.xlu0 %1703
      %v1705 = vsel %vm635, %v1693, -inf
      %1706 = vmax.xlane.f32.xlu0 %v1705
      %v1707 = vpop.xlane.xlu0 %1706
      %v1708 = vsel %vm635, %v1694, -inf
      %1709 = vmax.xlane.f32.xlu0 %v1708
      %v1710 = vpop.xlane.xlu0 %1709
      %v1711 = vsel %vm635, %v1695, -inf
      %1712 = vmax.xlane.f32.xlu0 %v1711
      %v1713 = vpop.xlane.xlu0 %1712
      %v1714 = vsel %vm635, %v1696, -inf
      %1715 = vmax.xlane.f32.xlu0 %v1714
      %v1716 = vpop.xlane.xlu0 %1715
      %v1717 = vsel %vm635, %v1697, -inf
      %1718 = vmax.xlane.f32.xlu0 %v1717
      %v1719 = vpop.xlane.xlu0 %1718
      %v1720 = vsel %vm635, %v1698, -inf
      %1721 = vmax.xlane.f32.xlu0 %v1720
      %v1722 = vpop.xlane.xlu0 %1721
      %v1723 = vsub.f32 %v1691, %v1701
      %v1724 = vsub.f32 %v1692, %v1704
      %v1725 = vsub.f32 %v1693, %v1707
      %v1726 = vsub.f32 %v1694, %v1710
      %v1727 = vsub.f32 %v1695, %v1713
      %v1728 = vsub.f32 %v1696, %v1716
      %v1729 = vsub.f32 %v1697, %v1719
      %v1730 = vsub.f32 %v1698, %v1722
      %v1731 = vmul.f32 %v1723, 1.442695
      %v1732 = vpow.pop %v1731
      %v1733 = vmul.f32 %v1724, 1.442695
      %v1734 = vpow.pop %v1733
      %v1735 = vmul.f32 %v1725, 1.442695
      %v1736 = vpow.pop %v1735
      %v1737 = vmul.f32 %v1726, 1.442695
      %v1738 = vpow.pop %v1737
      %v1739 = vmul.f32 %v1727, 1.442695
      %v1740 = vpow.pop %v1739
      %v1741 = vmul.f32 %v1728, 1.442695
      %v1742 = vpow.pop %v1741
      %v1743 = vmul.f32 %v1729, 1.442695
      %v1744 = vpow.pop %v1743
      %v1745 = vmul.f32 %v1730, 1.442695
      %v1746 = vpow.pop %v1745
      %v1747 = vsel %vm635, %v1732, 0.0
      %1748 = vadd.xlane.f32.xlu0 %v1747
      %v1749 = vpop.xlane.xlu0 %1748
      %v1750 = vsel %vm635, %v1734, 0.0
      %1751 = vadd.xlane.f32.xlu0 %v1750
      %v1752 = vpop.xlane.xlu0 %1751
      %v1753 = vsel %vm635, %v1736, 0.0
      %1754 = vadd.xlane.f32.xlu0 %v1753
      %v1755 = vpop.xlane.xlu0 %1754
      %v1756 = vsel %vm635, %v1738, 0.0
      %1757 = vadd.xlane.f32.xlu0 %v1756
      %v1758 = vpop.xlane.xlu0 %1757
      %v1759 = vsel %vm635, %v1740, 0.0
      %1760 = vadd.xlane.f32.xlu0 %v1759
      %v1761 = vpop.xlane.xlu0 %1760
      %v1762 = vsel %vm635, %v1742, 0.0
      %1763 = vadd.xlane.f32.xlu0 %v1762
      %v1764 = vpop.xlane.xlu0 %1763
      %v1765 = vsel %vm635, %v1744, 0.0
      %1766 = vadd.xlane.f32.xlu0 %v1765
      %v1767 = vpop.xlane.xlu0 %1766
      %v1768 = vsel %vm635, %v1746, 0.0
      %1769 = vadd.xlane.f32.xlu0 %v1768
      %v1770 = vpop.xlane.xlu0 %1769
      %v1771 = vrcp.pop %v1749
      %v1772 = vmul.f32 %v1732, %v1771
      %v1773 = vrcp.pop %v1752
      %v1774 = vmul.f32 %v1734, %v1773
      %v1775 = vrcp.pop %v1755
      %v1776 = vmul.f32 %v1736, %v1775
      %v1777 = vrcp.pop %v1758
      %v1778 = vmul.f32 %v1738, %v1777
      %v1779 = vrcp.pop %v1761
      %v1780 = vmul.f32 %v1740, %v1779
      %v1781 = vrcp.pop %v1764
      %v1782 = vmul.f32 %v1742, %v1781
      %v1783 = vrcp.pop %v1767
      %v1784 = vmul.f32 %v1744, %v1783
      %v1785 = vrcp.pop %v1770
      %v1786 = vmul.f32 %v1746, %v1785
      %v1787 = vpack.c.bf16 %v1774, %v1772
      %v1788 = vpack.c.bf16 %v1778, %v1776
      %v1789 = vpack.c.bf16 %v1782, %v1780
      %v1790 = vpack.c.bf16 %v1786, %v1784
      %v1792 = vsel %vm635, %v1787, 0
      %v1795 = vsel %vm635, %v1788, 0
      %v1798 = vsel %vm635, %v1789, 0
      %v1801 = vsel %vm635, %v1790, 0
      %1803 = vmatprep.subr.bf16.mxu0 0
      %1804 = vmatpush1.bf16.msra.mxu0 %v1096
      %1805 = vmatprep.subr.bf16.mxu0 0
      %1806 = vmatpush1.bf16.msra.mxu0 %v1108
      %1807 = vmatprep.subr.bf16.mxu0 0
      %1808 = vmatpush1.bf16.msra.mxu0 %v1120
      %1809 = vmatprep.subr.bf16.mxu0 0
      %1810 = vmatpush1.bf16.msra.mxu0 %v1132
      %1811 = vmatprep.subr.bf16.mxu0 0
      %1812 = vmatpush1.bf16.msra.mxu0 0
      %1813 = vmatprep.subr.bf16.mxu0 0
      %1814 = vmatpush1.bf16.msra.mxu0 0
      %1815 = vmatprep.subr.bf16.mxu0 0
      %1816 = vmatpush1.bf16.msra.mxu0 0
      %1817 = vmatprep.subr.bf16.mxu0 0
      %1818 = vmatpush1.bf16.msra.mxu0 0
      %1819 = vmatprep.subr.bf16.mxu0 0
      %1820 = vmatpush1.bf16.msra.mxu0 0
      %1821 = vmatprep.subr.bf16.mxu0 0
      %1822 = vmatpush1.bf16.msra.mxu0 0
      %1823 = vmatprep.subr.bf16.mxu0 0
      %1824 = vmatpush1.bf16.msra.mxu0 0
      %1825 = vmatprep.subr.bf16.mxu0 0
      %1826 = vmatpush1.bf16.msra.mxu0 0
      %1827 = vmatprep.subr.bf16.mxu0 0
      %1828 = vmatpush1.bf16.msra.mxu0 0
      %1829 = vmatprep.subr.bf16.mxu0 0
      %1830 = vmatpush1.bf16.msra.mxu0 0
      %1831 = vmatprep.subr.bf16.mxu0 0
      %1832 = vmatpush1.bf16.msra.mxu0 0
      %1833 = vmatprep.subr.bf16.mxu0 0
      %1834 = vmatpush1.bf16.msra.mxu0 0
      %1835 = vmatprep.mubr.bf16.mxu0 0
      %1836 = vmatmul.mubr.bf16.gmra.mrb[0].mxu0 %v1792
      %v1837 = vpop.f32.mrb[0].mxu0
      %v1838 = vadd.f32 0.0, %v1837
      %v1839 = vpop.f32.mrb[0].mxu0
      %v1840 = vpop.f32.mrb[0].mxu0
      %v1841 = vadd.f32 0.0, %v1840
      %v1842 = vpop.f32.mrb[0].mxu0
      %1843 = vmatprep.mubr.bf16.mxu0 0
      %1844 = vmatmul.mubr.bf16.gmra.mrb[0].mxu0 %v1795
      %v1845 = vpop.f32.mrb[0].mxu0
      %v1846 = vadd.f32 0.0, %v1845
      %v1847 = vpop.f32.mrb[0].mxu0
      %v1848 = vpop.f32.mrb[0].mxu0
      %v1849 = vadd.f32 0.0, %v1848
      %v1850 = vpop.f32.mrb[0].mxu0
      %1851 = vmatprep.mubr.bf16.mxu0 0
      %1852 = vmatmul.mubr.bf16.gmra.mrb[0].mxu0 %v1798
      %v1853 = vpop.f32.mrb[0].mxu0
      %v1854 = vadd.f32 0.0, %v1853
      %v1855 = vpop.f32.mrb[0].mxu0
      %v1856 = vpop.f32.mrb[0].mxu0
      %v1857 = vadd.f32 0.0, %v1856
      %v1858 = vpop.f32.mrb[0].mxu0
      %1859 = vmatprep.mubr.bf16.mxu0 0
      %1860 = vmatmul.mubr.bf16.gmra.mrb[0].mxu0 %v1801
      %v1861 = vpop.f32.mrb[0].mxu0
      %v1862 = vadd.f32 0.0, %v1861
      %v1863 = vpop.f32.mrb[0].mxu0
      %v1864 = vpop.f32.mrb[0].mxu0
      %v1865 = vadd.f32 0.0, %v1864
      %v1866 = vpop.f32.mrb[0].mxu0
      %1867 = vdwg.mxu0
      %v1868 = vpack.c.bf16 %v1841, %v1838
      %v1869 = vpack.c.bf16 %v1849, %v1846
      %v1870 = vpack.c.bf16 %v1857, %v1854
      %v1871 = vpack.c.bf16 %v1865, %v1862
      %1872 = vmatprep.subr.bf16.mxu0 0
      %1873 = vmatpush1.bf16.xpose.msra.mxu0 %v1093
      %1874 = vmatprep.subr.bf16.mxu0 0
      %1875 = vmatpush1.bf16.xpose.msra.mxu0 %v1105
      %1876 = vmatprep.subr.bf16.mxu0 0
      %1877 = vmatpush1.bf16.xpose.msra.mxu0 %v1117
      %1878 = vmatprep.subr.bf16.mxu0 0
      %1879 = vmatpush1.bf16.xpose.msra.mxu0 %v1129
      %1880 = vmatprep.subr.bf16.mxu0 0
      %1881 = vmatpush1.bf16.xpose.msra.mxu0 0
      %1882 = vmatprep.subr.bf16.mxu0 0
      %1883 = vmatpush1.bf16.xpose.msra.mxu0 0
      %1884 = vmatprep.subr.bf16.mxu0 0
      %1885 = vmatpush1.bf16.xpose.msra.mxu0 0
      %1886 = vmatprep.subr.bf16.mxu0 0
      %1887 = vmatpush1.bf16.xpose.msra.mxu0 0
      %1888 = vmatprep.subr.bf16.mxu0 0
      %1889 = vmatpush1.bf16.xpose.msra.mxu0 0
      %1890 = vmatprep.subr.bf16.mxu0 0
      %1891 = vmatpush1.bf16.xpose.msra.mxu0 0
      %1892 = vmatprep.subr.bf16.mxu0 0
      %1893 = vmatpush1.bf16.xpose.msra.mxu0 0
      %1894 = vmatprep.subr.bf16.mxu0 0
      %1895 = vmatpush1.bf16.xpose.msra.mxu0 0
      %1896 = vmatprep.subr.bf16.mxu0 0
      %1897 = vmatpush1.bf16.xpose.msra.mxu0 0
      %1898 = vmatprep.subr.bf16.mxu0 0
      %1899 = vmatpush1.bf16.xpose.msra.mxu0 0
      %1900 = vmatprep.subr.bf16.mxu0 0
      %1901 = vmatpush1.bf16.xpose.msra.mxu0 0
      %1902 = vmatprep.subr.bf16.mxu0 0
      %1903 = vmatpush1.bf16.xpose.msra.mxu0 0
      %1904 = vmatprep.mubr.bf16.mxu0 0
      %1905 = vmatmul.mubr.bf16.gmra.mrb[0].mxu0 %v1089
      %v1906 = vpop.f32.mrb[0].mxu0
      %v1907 = vadd.f32 0.0, %v1906
      %v1908 = vpop.f32.mrb[0].mxu0
      %v1909 = vpop.f32.mrb[0].mxu0
      %v1910 = vadd.f32 0.0, %v1909
      %v1911 = vpop.f32.mrb[0].mxu0
      %1912 = vmatprep.mubr.bf16.mxu0 0
      %1913 = vmatmul.mubr.bf16.gmra.mrb[0].mxu0 %v1101
      %v1914 = vpop.f32.mrb[0].mxu0
      %v1915 = vadd.f32 0.0, %v1914
      %v1916 = vpop.f32.mrb[0].mxu0
      %v1917 = vpop.f32.mrb[0].mxu0
      %v1918 = vadd.f32 0.0, %v1917
      %v1919 = vpop.f32.mrb[0].mxu0
      %1920 = vmatprep.mubr.bf16.mxu0 0
      %1921 = vmatmul.mubr.bf16.gmra.mrb[0].mxu0 %v1113
      %v1922 = vpop.f32.mrb[0].mxu0
      %v1923 = vadd.f32 0.0, %v1922
      %v1924 = vpop.f32.mrb[0].mxu0
      %v1925 = vpop.f32.mrb[0].mxu0
      %v1926 = vadd.f32 0.0, %v1925
      %v1927 = vpop.f32.mrb[0].mxu0
      %1928 = vmatprep.mubr.bf16.mxu0 0
      %1929 = vmatmul.mubr.bf16.gmra.mrb[0].mxu0 %v1125
      %v1930 = vpop.f32.mrb[0].mxu0
      %v1931 = vadd.f32 0.0, %v1930
      %v1932 = vpop.f32.mrb[0].mxu0
      %v1933 = vpop.f32.mrb[0].mxu0
      %v1934 = vadd.f32 0.0, %v1933
      %v1935 = vpop.f32.mrb[0].mxu0
      %1936 = vdwg.mxu0
      %v1937 = vmul.f32 %v1907, 0.25
      %v1938 = vmul.f32 %v1910, 0.25
      %v1939 = vmul.f32 %v1915, 0.25
      %v1940 = vmul.f32 %v1918, 0.25
      %v1941 = vmul.f32 %v1923, 0.25
      %v1942 = vmul.f32 %v1926, 0.25
      %v1943 = vmul.f32 %v1931, 0.25
      %v1944 = vmul.f32 %v1934, 0.25
      %v1945 = vsel %vm635, %v1937, -inf
      %1946 = vmax.xlane.f32.xlu0 %v1945
      %v1947 = vpop.xlane.xlu0 %1946
      %v1948 = vsel %vm635, %v1938, -inf
      %1949 = vmax.xlane.f32.xlu0 %v1948
      %v1950 = vpop.xlane.xlu0 %1949
      %v1951 = vsel %vm635, %v1939, -inf
      %1952 = vmax.xlane.f32.xlu0 %v1951
      %v1953 = vpop.xlane.xlu0 %1952
      %v1954 = vsel %vm635, %v1940, -inf
      %1955 = vmax.xlane.f32.xlu0 %v1954
      %v1956 = vpop.xlane.xlu0 %1955
      %v1957 = vsel %vm635, %v1941, -inf
      %1958 = vmax.xlane.f32.xlu0 %v1957
      %v1959 = vpop.xlane.xlu0 %1958
      %v1960 = vsel %vm635, %v1942, -inf
      %1961 = vmax.xlane.f32.xlu0 %v1960
      %v1962 = vpop.xlane.xlu0 %1961
      %v1963 = vsel %vm635, %v1943, -inf
      %1964 = vmax.xlane.f32.xlu0 %v1963
      %v1965 = vpop.xlane.xlu0 %1964
      %v1966 = vsel %vm635, %v1944, -inf
      %1967 = vmax.xlane.f32.xlu0 %v1966
      %v1968 = vpop.xlane.xlu0 %1967
      %v1969 = vsub.f32 %v1937, %v1947
      %v1970 = vsub.f32 %v1938, %v1950
      %v1971 = vsub.f32 %v1939, %v1953
      %v1972 = vsub.f32 %v1940, %v1956
      %v1973 = vsub.f32 %v1941, %v1959
      %v1974 = vsub.f32 %v1942, %v1962
      %v1975 = vsub.f32 %v1943, %v1965
      %v1976 = vsub.f32 %v1944, %v1968
      %v1977 = vmul.f32 %v1969, 1.442695
      %v1978 = vpow.pop %v1977
      %v1979 = vmul.f32 %v1970, 1.442695
      %v1980 = vpow.pop %v1979
      %v1981 = vmul.f32 %v1971, 1.442695
      %v1982 = vpow.pop %v1981
      %v1983 = vmul.f32 %v1972, 1.442695
      %v1984 = vpow.pop %v1983
      %v1985 = vmul.f32 %v1973, 1.442695
      %v1986 = vpow.pop %v1985
      %v1987 = vmul.f32 %v1974, 1.442695
      %v1988 = vpow.pop %v1987
      %v1989 = vmul.f32 %v1975, 1.442695
      %v1990 = vpow.pop %v1989
      %v1991 = vmul.f32 %v1976, 1.442695
      %v1992 = vpow.pop %v1991
      %v1993 = vsel %vm635, %v1978, 0.0
      %1994 = vadd.xlane.f32.xlu0 %v1993
      %v1995 = vpop.xlane.xlu0 %1994
      %v1996 = vsel %vm635, %v1980, 0.0
      %1997 = vadd.xlane.f32.xlu0 %v1996
      %v1998 = vpop.xlane.xlu0 %1997
      %v1999 = vsel %vm635, %v1982, 0.0
      %2000 = vadd.xlane.f32.xlu0 %v1999
      %v2001 = vpop.xlane.xlu0 %2000
      %v2002 = vsel %vm635, %v1984, 0.0
      %2003 = vadd.xlane.f32.xlu0 %v2002
      %v2004 = vpop.xlane.xlu0 %2003
      %v2005 = vsel %vm635, %v1986, 0.0
      %2006 = vadd.xlane.f32.xlu0 %v2005
      %v2007 = vpop.xlane.xlu0 %2006
      %v2008 = vsel %vm635, %v1988, 0.0
      %2009 = vadd.xlane.f32.xlu0 %v2008
      %v2010 = vpop.xlane.xlu0 %2009
      %v2011 = vsel %vm635, %v1990, 0.0
      %2012 = vadd.xlane.f32.xlu0 %v2011
      %v2013 = vpop.xlane.xlu0 %2012
      %v2014 = vsel %vm635, %v1992, 0.0
      %2015 = vadd.xlane.f32.xlu0 %v2014
      %v2016 = vpop.xlane.xlu0 %2015
      %v2017 = vrcp.pop %v1995
      %v2018 = vmul.f32 %v1978, %v2017
      %v2019 = vrcp.pop %v1998
      %v2020 = vmul.f32 %v1980, %v2019
      %v2021 = vrcp.pop %v2001
      %v2022 = vmul.f32 %v1982, %v2021
      %v2023 = vrcp.pop %v2004
      %v2024 = vmul.f32 %v1984, %v2023
      %v2025 = vrcp.pop %v2007
      %v2026 = vmul.f32 %v1986, %v2025
      %v2027 = vrcp.pop %v2010
      %v2028 = vmul.f32 %v1988, %v2027
      %v2029 = vrcp.pop %v2013
      %v2030 = vmul.f32 %v1990, %v2029
      %v2031 = vrcp.pop %v2016
      %v2032 = vmul.f32 %v1992, %v2031
      %v2033 = vpack.c.bf16 %v2020, %v2018
      %v2034 = vpack.c.bf16 %v2024, %v2022
      %v2035 = vpack.c.bf16 %v2028, %v2026
      %v2036 = vpack.c.bf16 %v2032, %v2030
      %v2038 = vsel %vm635, %v2033, 0
      %v2041 = vsel %vm635, %v2034, 0
      %v2044 = vsel %vm635, %v2035, 0
      %v2047 = vsel %vm635, %v2036, 0
      %2049 = vmatprep.subr.bf16.mxu0 0
      %2050 = vmatpush1.bf16.msra.mxu0 %v1097
      %2051 = vmatprep.subr.bf16.mxu0 0
      %2052 = vmatpush1.bf16.msra.mxu0 %v1109
      %2053 = vmatprep.subr.bf16.mxu0 0
      %2054 = vmatpush1.bf16.msra.mxu0 %v1121
      %2055 = vmatprep.subr.bf16.mxu0 0
      %2056 = vmatpush1.bf16.msra.mxu0 %v1133
      %2057 = vmatprep.subr.bf16.mxu0 0
      %2058 = vmatpush1.bf16.msra.mxu0 0
      %2059 = vmatprep.subr.bf16.mxu0 0
      %2060 = vmatpush1.bf16.msra.mxu0 0
      %2061 = vmatprep.subr.bf16.mxu0 0
      %2062 = vmatpush1.bf16.msra.mxu0 0
      %2063 = vmatprep.subr.bf16.mxu0 0
      %2064 = vmatpush1.bf16.msra.mxu0 0
      %2065 = vmatprep.subr.bf16.mxu0 0
      %2066 = vmatpush1.bf16.msra.mxu0 0
      %2067 = vmatprep.subr.bf16.mxu0 0
      %2068 = vmatpush1.bf16.msra.mxu0 0
      %2069 = vmatprep.subr.bf16.mxu0 0
      %2070 = vmatpush1.bf16.msra.mxu0 0
      %2071 = vmatprep.subr.bf16.mxu0 0
      %2072 = vmatpush1.bf16.msra.mxu0 0
      %2073 = vmatprep.subr.bf16.mxu0 0
      %2074 = vmatpush1.bf16.msra.mxu0 0
      %2075 = vmatprep.subr.bf16.mxu0 0
      %2076 = vmatpush1.bf16.msra.mxu0 0
      %2077 = vmatprep.subr.bf16.mxu0 0
      %2078 = vmatpush1.bf16.msra.mxu0 0
      %2079 = vmatprep.subr.bf16.mxu0 0
      %2080 = vmatpush1.bf16.msra.mxu0 0
      %2081 = vmatprep.mubr.bf16.mxu0 0
      %2082 = vmatmul.mubr.bf16.gmra.mrb[0].mxu0 %v2038
      %v2083 = vpop.f32.mrb[0].mxu0
      %v2084 = vadd.f32 0.0, %v2083
      %v2085 = vpop.f32.mrb[0].mxu0
      %v2086 = vpop.f32.mrb[0].mxu0
      %v2087 = vadd.f32 0.0, %v2086
      %v2088 = vpop.f32.mrb[0].mxu0
      %2089 = vmatprep.mubr.bf16.mxu0 0
      %2090 = vmatmul.mubr.bf16.gmra.mrb[0].mxu0 %v2041
      %v2091 = vpop.f32.mrb[0].mxu0
      %v2092 = vadd.f32 0.0, %v2091
      %v2093 = vpop.f32.mrb[0].mxu0
      %v2094 = vpop.f32.mrb[0].mxu0
      %v2095 = vadd.f32 0.0, %v2094
      %v2096 = vpop.f32.mrb[0].mxu0
      %2097 = vmatprep.mubr.bf16.mxu0 0
      %2098 = vmatmul.mubr.bf16.gmra.mrb[0].mxu0 %v2044
      %v2099 = vpop.f32.mrb[0].mxu0
      %v2100 = vadd.f32 0.0, %v2099
      %v2101 = vpop.f32.mrb[0].mxu0
      %v2102 = vpop.f32.mrb[0].mxu0
      %v2103 = vadd.f32 0.0, %v2102
      %v2104 = vpop.f32.mrb[0].mxu0
      %2105 = vmatprep.mubr.bf16.mxu0 0
      %2106 = vmatmul.mubr.bf16.gmra.mrb[0].mxu0 %v2047
      %v2107 = vpop.f32.mrb[0].mxu0
      %v2108 = vadd.f32 0.0, %v2107
      %v2109 = vpop.f32.mrb[0].mxu0
      %v2110 = vpop.f32.mrb[0].mxu0
      %v2111 = vadd.f32 0.0, %v2110
      %v2112 = vpop.f32.mrb[0].mxu0
      %2113 = vdwg.mxu0
      %v2114 = vpack.c.bf16 %v2087, %v2084
      %v2115 = vpack.c.bf16 %v2095, %v2092
      %v2116 = vpack.c.bf16 %v2103, %v2100
      %v2117 = vpack.c.bf16 %v2111, %v2108
      %v2118 = vld [vmem:[%s3] sm:$0xf]
      %v2119 = vld [vmem:[%s3 + $0x4] sm:$0xf]
      %v2120 = vld [vmem:[%s3 + $0x8] sm:$0xf]
      %v2121 = vld [vmem:[%s3 + $0xc] sm:$0xf]
      %v2122 = vld [vmem:[%s3 + $0x10] sm:$0xf]
      %v2123 = vld [vmem:[%s3 + $0x14] sm:$0xf]
      %v2124 = vld [vmem:[%s3 + $0x18] sm:$0xf]
      %v2125 = vld [vmem:[%s3 + $0x1c] sm:$0xf]
      %v2126 = vld [vmem:[%s3 + $0x20] sm:$0xf]
      %v2127 = vld [vmem:[%s3 + $0x24] sm:$0xf]
      %v2128 = vld [vmem:[%s3 + $0x28] sm:$0xf]
      %v2129 = vld [vmem:[%s3 + $0x2c] sm:$0xf]
      %v2130 = vld [vmem:[%s3 + $0x30] sm:$0xf]
      %v2131 = vld [vmem:[%s3 + $0x34] sm:$0xf]
      %v2132 = vld [vmem:[%s3 + $0x38] sm:$0xf]
      %v2133 = vld [vmem:[%s3 + $0x3c] sm:$0xf]
      %v2134 = vld [vmem:[%s3 + $0x40] sm:$0xf]
      %v2135 = vld [vmem:[%s3 + $0x44] sm:$0xf]
      %v2136 = vld [vmem:[%s3 + $0x48] sm:$0xf]
      %v2137 = vld [vmem:[%s3 + $0x4c] sm:$0xf]
      %v2138 = vld [vmem:[%s3 + $0x50] sm:$0xf]
      %v2139 = vld [vmem:[%s3 + $0x54] sm:$0xf]
      %v2140 = vld [vmem:[%s3 + $0x58] sm:$0xf]
      %v2141 = vld [vmem:[%s3 + $0x5c] sm:$0xf]
      %v2142 = vld [vmem:[%s3 + $0x60] sm:$0xf]
      %v2143 = vld [vmem:[%s3 + $0x64] sm:$0xf]
      %v2144 = vld [vmem:[%s3 + $0x68] sm:$0xf]
      %v2145 = vld [vmem:[%s3 + $0x6c] sm:$0xf]
      %v2146 = vld [vmem:[%s3 + $0x70] sm:$0xf]
      %v2147 = vld [vmem:[%s3 + $0x74] sm:$0xf]
      %v2148 = vld [vmem:[%s3 + $0x78] sm:$0xf]
      %v2149 = vld [vmem:[%s3 + $0x7c] sm:$0xf]
      %v2150 = vld [vmem:[%s3 + $0x80] sm:$0xf]
      %v2151 = vld [vmem:[%s3 + $0x84] sm:$0xf]
      %v2152 = vld [vmem:[%s3 + $0x88] sm:$0xf]
      %v2153 = vld [vmem:[%s3 + $0x8c] sm:$0xf]
      %v2154 = vld [vmem:[%s3 + $0x90] sm:$0xf]
      %v2155 = vld [vmem:[%s3 + $0x94] sm:$0xf]
      %v2156 = vld [vmem:[%s3 + $0x98] sm:$0xf]
      %v2157 = vld [vmem:[%s3 + $0x9c] sm:$0xf]
      %v2158 = vld [vmem:[%s3 + $0xa0] sm:$0xf]
      %v2159 = vld [vmem:[%s3 + $0xa4] sm:$0xf]
      %v2160 = vld [vmem:[%s3 + $0xa8] sm:$0xf]
      %v2161 = vld [vmem:[%s3 + $0xac] sm:$0xf]
      %v2162 = vld [vmem:[%s3 + $0xb0] sm:$0xf]
      %v2163 = vld [vmem:[%s3 + $0xb4] sm:$0xf]
      %v2164 = vld [vmem:[%s3 + $0xb8] sm:$0xf]
      %v2165 = vld [vmem:[%s3 + $0xbc] sm:$0xf]
      %v2166 = vld [vmem:[%s3 + $0xc0] sm:$0xf]
      %v2167 = vld [vmem:[%s3 + $0xc4] sm:$0xf]
      %v2168 = vld [vmem:[%s3 + $0xc8] sm:$0xf]
      %v2169 = vld [vmem:[%s3 + $0xcc] sm:$0xf]
      %v2170 = vld [vmem:[%s3 + $0xd0] sm:$0xf]
      %v2171 = vld [vmem:[%s3 + $0xd4] sm:$0xf]
      %v2172 = vld [vmem:[%s3 + $0xd8] sm:$0xf]
      %v2173 = vld [vmem:[%s3 + $0xdc] sm:$0xf]
      %v2174 = vld [vmem:[%s3 + $0xe0] sm:$0xf]
      %v2175 = vld [vmem:[%s3 + $0xe4] sm:$0xf]
      %v2176 = vld [vmem:[%s3 + $0xe8] sm:$0xf]
      %v2177 = vld [vmem:[%s3 + $0xec] sm:$0xf]
      %v2178 = vld [vmem:[%s3 + $0xf0] sm:$0xf]
      %v2179 = vld [vmem:[%s3 + $0xf4] sm:$0xf]
      %v2180 = vld [vmem:[%s3 + $0xf8] sm:$0xf]
      %v2181 = vld [vmem:[%s3 + $0xfc] sm:$0xf]
      %v2182 = vld [vmem:[%s4] sm:$0x1]
      %v2184 = vlaneseq
      %v2185 = vshrl.u32 %v2184, 7
      %v2186 = vsub.s32 0, %v2185
      %v2187 = vrot.slane %v2182, %v2186
      %v2253 = vunpack.c.l.b16 %v2118
      %v2254 = vunpack.c.l.b16 %v2119
      %v2255 = vunpack.c.l.b16 %v2120
      %v2256 = vunpack.c.l.b16 %v2121
      %v2257 = vunpack.c.l.b16 %v2122
      %v2258 = vunpack.c.l.b16 %v2123
      %v2259 = vunpack.c.l.b16 %v2124
      %v2260 = vunpack.c.l.b16 %v2125
      %v2261 = vunpack.c.l.b16 %v2126
      %v2262 = vunpack.c.l.b16 %v2127
      %v2263 = vunpack.c.l.b16 %v2128
      %v2264 = vunpack.c.l.b16 %v2129
      %v2265 = vunpack.c.l.b16 %v2130
      %v2266 = vunpack.c.l.b16 %v2131
      %v2267 = vunpack.c.l.b16 %v2132
      %v2268 = vunpack.c.l.b16 %v2133
      %v2269 = vunpack.c.l.b16 %v2134
      %v2270 = vunpack.c.l.b16 %v2135
      %v2271 = vunpack.c.l.b16 %v2136
      %v2272 = vunpack.c.l.b16 %v2137
      %v2273 = vunpack.c.l.b16 %v2138
      %v2274 = vunpack.c.l.b16 %v2139
      %v2275 = vunpack.c.l.b16 %v2140
      %v2276 = vunpack.c.l.b16 %v2141
      %v2277 = vunpack.c.l.b16 %v2142
      %v2278 = vunpack.c.l.b16 %v2143
      %v2279 = vunpack.c.l.b16 %v2144
      %v2280 = vunpack.c.l.b16 %v2145
      %v2281 = vunpack.c.l.b16 %v2146
      %v2282 = vunpack.c.l.b16 %v2147
      %v2283 = vunpack.c.l.b16 %v2148
      %v2284 = vunpack.c.l.b16 %v2149
      %v2285 = vunpack.c.l.b16 %v2150
      %v2286 = vunpack.c.l.b16 %v2151
      %v2287 = vunpack.c.l.b16 %v2152
      %v2288 = vunpack.c.l.b16 %v2153
      %v2289 = vunpack.c.l.b16 %v2154
      %v2290 = vunpack.c.l.b16 %v2155
      %v2291 = vunpack.c.l.b16 %v2156
      %v2292 = vunpack.c.l.b16 %v2157
      %v2293 = vunpack.c.l.b16 %v2158
      %v2294 = vunpack.c.l.b16 %v2159
      %v2295 = vunpack.c.l.b16 %v2160
      %v2296 = vunpack.c.l.b16 %v2161
      %v2297 = vunpack.c.l.b16 %v2162
      %v2298 = vunpack.c.l.b16 %v2163
      %v2299 = vunpack.c.l.b16 %v2164
      %v2300 = vunpack.c.l.b16 %v2165
      %v2301 = vunpack.c.l.b16 %v2166
      %v2302 = vunpack.c.l.b16 %v2167
      %v2303 = vunpack.c.l.b16 %v2168
      %v2304 = vunpack.c.l.b16 %v2169
      %v2305 = vunpack.c.l.b16 %v2170
      %v2306 = vunpack.c.l.b16 %v2171
      %v2307 = vunpack.c.l.b16 %v2172
      %v2308 = vunpack.c.l.b16 %v2173
      %v2309 = vunpack.c.l.b16 %v2174
      %v2310 = vunpack.c.l.b16 %v2175
      %v2311 = vunpack.c.l.b16 %v2176
      %v2312 = vunpack.c.l.b16 %v2177
      %v2313 = vunpack.c.l.b16 %v2178
      %v2314 = vunpack.c.l.b16 %v2179
      %v2315 = vunpack.c.l.b16 %v2180
      %v2316 = vunpack.c.l.b16 %v2181
      %v2317 = vpack.c.b16 %v2254, %v2253
      %v2318 = vpack.c.b16 %v2256, %v2255
      %v2319 = vpack.c.b16 %v2258, %v2257
      %v2320 = vpack.c.b16 %v2260, %v2259
      %v2321 = vpack.c.b16 %v2262, %v2261
      %v2322 = vpack.c.b16 %v2264, %v2263
      %v2323 = vpack.c.b16 %v2266, %v2265
      %v2324 = vpack.c.b16 %v2268, %v2267
      %v2325 = vpack.c.b16 %v2270, %v2269
      %v2326 = vpack.c.b16 %v2272, %v2271
      %v2327 = vpack.c.b16 %v2274, %v2273
      %v2328 = vpack.c.b16 %v2276, %v2275
      %v2329 = vpack.c.b16 %v2278, %v2277
      %v2330 = vpack.c.b16 %v2280, %v2279
      %v2331 = vpack.c.b16 %v2282, %v2281
      %v2332 = vpack.c.b16 %v2284, %v2283
      %v2333 = vpack.c.b16 %v2286, %v2285
      %v2334 = vpack.c.b16 %v2288, %v2287
      %v2335 = vpack.c.b16 %v2290, %v2289
      %v2336 = vpack.c.b16 %v2292, %v2291
      %v2337 = vpack.c.b16 %v2294, %v2293
      %v2338 = vpack.c.b16 %v2296, %v2295
      %v2339 = vpack.c.b16 %v2298, %v2297
      %v2340 = vpack.c.b16 %v2300, %v2299
      %v2341 = vpack.c.b16 %v2302, %v2301
      %v2342 = vpack.c.b16 %v2304, %v2303
      %v2343 = vpack.c.b16 %v2306, %v2305
      %v2344 = vpack.c.b16 %v2308, %v2307
      %v2345 = vpack.c.b16 %v2310, %v2309
      %v2346 = vpack.c.b16 %v2312, %v2311
      %v2347 = vpack.c.b16 %v2314, %v2313
      %v2348 = vpack.c.b16 %v2316, %v2315
      %2381 = vmatprep.subr.bf16.mxu0 0
      %2382 = vmatpush1.bf16.msra.mxu0 %v2317
      %2383 = vmatprep.subr.bf16.mxu0 0
      %2384 = vmatpush1.bf16.msra.mxu0 %v2318
      %2385 = vmatprep.subr.bf16.mxu0 0
      %2386 = vmatpush1.bf16.msra.mxu0 %v2319
      %2387 = vmatprep.subr.bf16.mxu0 0
      %2388 = vmatpush1.bf16.msra.mxu0 %v2320
      %2389 = vmatprep.subr.bf16.mxu0 0
      %2390 = vmatpush1.bf16.msra.mxu0 %v2321
      %2391 = vmatprep.subr.bf16.mxu0 0
      %2392 = vmatpush1.bf16.msra.mxu0 %v2322
      %2393 = vmatprep.subr.bf16.mxu0 0
      %2394 = vmatpush1.bf16.msra.mxu0 %v2323
      %2395 = vmatprep.subr.bf16.mxu0 0
      %2396 = vmatpush1.bf16.msra.mxu0 %v2324
      %2397 = vmatprep.subr.bf16.mxu0 0
      %2398 = vmatpush1.bf16.msra.mxu0 %v2325
      %2399 = vmatprep.subr.bf16.mxu0 0
      %2400 = vmatpush1.bf16.msra.mxu0 %v2326
      %2401 = vmatprep.subr.bf16.mxu0 0
      %2402 = vmatpush1.bf16.msra.mxu0 %v2327
      %2403 = vmatprep.subr.bf16.mxu0 0
      %2404 = vmatpush1.bf16.msra.mxu0 %v2328
      %2405 = vmatprep.subr.bf16.mxu0 0
      %2406 = vmatpush1.bf16.msra.mxu0 %v2329
      %2407 = vmatprep.subr.bf16.mxu0 0
      %2408 = vmatpush1.bf16.msra.mxu0 %v2330
      %2409 = vmatprep.subr.bf16.mxu0 0
      %2410 = vmatpush1.bf16.msra.mxu0 %v2331
      %2411 = vmatprep.subr.bf16.mxu0 0
      %2412 = vmatpush1.bf16.msra.mxu0 %v2332
      %2413 = vmatprep.mubr.bf16.mxu0 %v1622
      %2414 = vmatmul.mubr.bf16.gmra.mrb[0].mxu0 %v1376
      %v2415 = vpop.f32.mrb[0].mxu0
      %v2416 = vadd.f32 %v2187, %v2415
      %v2417 = vpop.f32.mrb[0].mxu0
      %v2418 = vpop.f32.mrb[0].mxu0
      %v2419 = vadd.f32 %v2187, %v2418
      %v2420 = vpop.f32.mrb[0].mxu0
      %2421 = vmatprep.mubr.bf16.mxu0 %v1623
      %2422 = vmatmul.mubr.bf16.gmra.mrb[0].mxu0 %v1377
      %v2423 = vpop.f32.mrb[0].mxu0
      %v2424 = vadd.f32 %v2187, %v2423
      %v2425 = vpop.f32.mrb[0].mxu0
      %v2426 = vpop.f32.mrb[0].mxu0
      %v2427 = vadd.f32 %v2187, %v2426
      %v2428 = vpop.f32.mrb[0].mxu0
      %2429 = vmatprep.mubr.bf16.mxu0 %v1624
      %2430 = vmatmul.mubr.bf16.gmra.mrb[0].mxu0 %v1378
      %v2431 = vpop.f32.mrb[0].mxu0
      %v2432 = vadd.f32 %v2187, %v2431
      %v2433 = vpop.f32.mrb[0].mxu0
      %v2434 = vpop.f32.mrb[0].mxu0
      %v2435 = vadd.f32 %v2187, %v2434
      %v2436 = vpop.f32.mrb[0].mxu0
      %2437 = vmatprep.mubr.bf16.mxu0 %v1625
      %2438 = vmatmul.mubr.bf16.gmra.mrb[0].mxu0 %v1379
      %v2439 = vpop.f32.mrb[0].mxu0
      %v2440 = vadd.f32 %v2187, %v2439
      %v2441 = vpop.f32.mrb[0].mxu0
      %v2442 = vpop.f32.mrb[0].mxu0
      %v2443 = vadd.f32 %v2187, %v2442
      %v2444 = vpop.f32.mrb[0].mxu0
      %2445 = vdwg.mxu0
      %2446 = vmatprep.subr.bf16.mxu0 0
      %2447 = vmatpush1.bf16.msra.mxu0 %v2333
      %2448 = vmatprep.subr.bf16.mxu0 0
      %2449 = vmatpush1.bf16.msra.mxu0 %v2334
      %2450 = vmatprep.subr.bf16.mxu0 0
      %2451 = vmatpush1.bf16.msra.mxu0 %v2335
      %2452 = vmatprep.subr.bf16.mxu0 0
      %2453 = vmatpush1.bf16.msra.mxu0 %v2336
      %2454 = vmatprep.subr.bf16.mxu0 0
      %2455 = vmatpush1.bf16.msra.mxu0 %v2337
      %2456 = vmatprep.subr.bf16.mxu0 0
      %2457 = vmatpush1.bf16.msra.mxu0 %v2338
      %2458 = vmatprep.subr.bf16.mxu0 0
      %2459 = vmatpush1.bf16.msra.mxu0 %v2339
      %2460 = vmatprep.subr.bf16.mxu0 0
      %2461 = vmatpush1.bf16.msra.mxu0 %v2340
      %2462 = vmatprep.subr.bf16.mxu0 0
      %2463 = vmatpush1.bf16.msra.mxu0 %v2341
      %2464 = vmatprep.subr.bf16.mxu0 0
      %2465 = vmatpush1.bf16.msra.mxu0 %v2342
      %2466 = vmatprep.subr.bf16.mxu0 0
      %2467 = vmatpush1.bf16.msra.mxu0 %v2343
      %2468 = vmatprep.subr.bf16.mxu0 0
      %2469 = vmatpush1.bf16.msra.mxu0 %v2344
      %2470 = vmatprep.subr.bf16.mxu0 0
      %2471 = vmatpush1.bf16.msra.mxu0 %v2345
      %2472 = vmatprep.subr.bf16.mxu0 0
      %2473 = vmatpush1.bf16.msra.mxu0 %v2346
      %2474 = vmatprep.subr.bf16.mxu0 0
      %2475 = vmatpush1.bf16.msra.mxu0 %v2347
      %2476 = vmatprep.subr.bf16.mxu0 0
      %2477 = vmatpush1.bf16.msra.mxu0 %v2348
      %2478 = vmatprep.mubr.bf16.mxu0 %v2114
      %2479 = vmatmul.mubr.bf16.gmra.mrb[0].mxu0 %v1868
      %v2480 = vpop.f32.mrb[0].mxu0
      %v2481 = vadd.f32 %v2416, %v2480
      %v2482 = vpop.f32.mrb[0].mxu0
      %v2483 = vpop.f32.mrb[0].mxu0
      %v2484 = vadd.f32 %v2419, %v2483
      %v2485 = vpop.f32.mrb[0].mxu0
      %2486 = vmatprep.mubr.bf16.mxu0 %v2115
      %2487 = vmatmul.mubr.bf16.gmra.mrb[0].mxu0 %v1869
      %v2488 = vpop.f32.mrb[0].mxu0
      %v2489 = vadd.f32 %v2424, %v2488
      %v2490 = vpop.f32.mrb[0].mxu0
      %v2491 = vpop.f32.mrb[0].mxu0
      %v2492 = vadd.f32 %v2427, %v2491
      %v2493 = vpop.f32.mrb[0].mxu0
      %2494 = vmatprep.mubr.bf16.mxu0 %v2116
      %2495 = vmatmul.mubr.bf16.gmra.mrb[0].mxu0 %v1870
      %v2496 = vpop.f32.mrb[0].mxu0
      %v2497 = vadd.f32 %v2432, %v2496
      %v2498 = vpop.f32.mrb[0].mxu0
      %v2499 = vpop.f32.mrb[0].mxu0
      %v2500 = vadd.f32 %v2435, %v2499
      %v2501 = vpop.f32.mrb[0].mxu0
      %2502 = vmatprep.mubr.bf16.mxu0 %v2117
      %2503 = vmatmul.mubr.bf16.gmra.mrb[0].mxu0 %v1871
      %v2504 = vpop.f32.mrb[0].mxu0
      %v2505 = vadd.f32 %v2440, %v2504
      %v2506 = vpop.f32.mrb[0].mxu0
      %v2507 = vpop.f32.mrb[0].mxu0
      %v2508 = vadd.f32 %v2443, %v2507
      %v2509 = vpop.f32.mrb[0].mxu0
      %2510 = vdwg.mxu0
      %v2511 = vld [vmem:[#allocation2] sm:$0x1]
      %s2512 = vtos %v2511
      %v2513 = vstv %s2512
      %v2514 = vmul.f32 %v2513, %v2481
      %v2515 = vmul.f32 %v2513, %v2484
      %v2516 = vmul.f32 %v2513, %v2489
      %v2517 = vmul.f32 %v2513, %v2492
      %v2518 = vmul.f32 %v2513, %v2497
      %v2519 = vmul.f32 %v2513, %v2500
      %v2520 = vmul.f32 %v2513, %v2505
      %v2521 = vmul.f32 %v2513, %v2508
      %v2522 = vunpack.c.l.bf16 %v255
      %v2523 = vunpack.c.l.bf16 %v256
      %v2524 = vunpack.c.l.bf16 %v257
      %v2525 = vunpack.c.l.bf16 %v258
      %v2526 = vunpack.c.l.bf16 %v259
      %v2527 = vunpack.c.l.bf16 %v260
      %v2528 = vunpack.c.l.bf16 %v261
      %v2529 = vunpack.c.l.bf16 %v262
      %v2530 = vadd.f32 %v2514, %v2522
      %v2531 = vadd.f32 %v2515, %v2523
      %v2532 = vadd.f32 %v2516, %v2524
      %v2533 = vadd.f32 %v2517, %v2525
      %v2534 = vadd.f32 %v2518, %v2526
      %v2535 = vadd.f32 %v2519, %v2527
      %v2536 = vadd.f32 %v2520, %v2528
      %v2537 = vadd.f32 %v2521, %v2529
      %v2538 = vpack.c.bf16 %v2531, %v2530
      %v2539 = vpack.c.bf16 %v2533, %v2532
      %v2540 = vpack.c.bf16 %v2535, %v2534
      %v2541 = vpack.c.bf16 %v2537, %v2536
      %v2546 = vunpack.c.l.b16 %v2538
      %v2547 = vunpack.c.h.b16 %v2538
      %v2548 = vunpack.c.l.b16 %v2539
      %v2549 = vunpack.c.h.b16 %v2539
      %v2550 = vunpack.c.l.b16 %v2540
      %v2551 = vunpack.c.h.b16 %v2540
      %v2552 = vunpack.c.l.b16 %v2541
      %v2553 = vunpack.c.h.b16 %v2541
      %v2554 = vpack.c.b16 %v2546, %v2546
      %v2555 = vpack.c.b16 %v2547, %v2547
      %v2556 = vpack.c.b16 %v2548, %v2548
      %v2557 = vpack.c.b16 %v2549, %v2549
      %v2558 = vpack.c.b16 %v2550, %v2550
      %v2559 = vpack.c.b16 %v2551, %v2551
      %v2560 = vpack.c.b16 %v2552, %v2552
      %v2561 = vpack.c.b16 %v2553, %v2553
      %vm2570 = vcmask 519168
      %2571 = vst.msk [vmem:[%s253] sm:$0xf] %vm2570, %v2554
      %2572 = vst.msk [vmem:[%s253 + $0x4] sm:$0xf] %vm2570, %v2555
      %2573 = vst.msk [vmem:[%s253 + $0x8] sm:$0xf] %vm2570, %v2556
      %2574 = vst.msk [vmem:[%s253 + $0xc] sm:$0xf] %vm2570, %v2557
      %2575 = vst.msk [vmem:[%s253 + $0x10] sm:$0xf] %vm2570, %v2558
      %2576 = vst.msk [vmem:[%s253 + $0x14] sm:$0xf] %vm2570, %v2559
      %2577 = vst.msk [vmem:[%s253 + $0x18] sm:$0xf] %vm2570, %v2560
      %2578 = vst.msk [vmem:[%s253 + $0x1c] sm:$0xf] %vm2570, %v2561
      %p2579 = scmp.lt.s32.totalorder %s19, 1
      %s2580 = scalar_select %p2579, %s19, 1
      %s2581 = smul.addr %s2580, 8
      %s2582 = smul.addr %s2581, 4
      %s2583 = scalar_lea.vmem %s6, %s2582
      // Predicated region
      $region45: #{forward.8} parent=43 // pred_check
        %p2584 = pneg %p168
      $region46: #{forward.8} parent=43 // pred_check_branch
        %2586 = sbr.rel (%p2584) target = $region48
      $region47: #{forward.8} parent=43 // pred_region
        _
      $region48: #{forward.8} parent=43 // pred_fallthru
        _
    $region44: #{forward.8} parent=5 // pred_fallthru
      _
    %p2587 = scmp.le.s32.totalorder 2, %s14
    // Predicated region
    $region49: #{forward.8} parent=5 // pred_check
      %p2588 = pneg %p2587
    $region50: #{forward.8} parent=5 // pred_check_branch
      %2590 = sbr.rel (%p2588) target = $region52
    $region51: #{forward.8} parent=5 // pred_region
      %s2591 = ssub.s32 %s14, 2
      // Predicated region
      $region53: #{forward.8} parent=51 // pred_check
        %p2592 = pneg %p174
      $region54: #{forward.8} parent=51 // pred_check_branch
        %2594 = sbr.rel (%p2592) target = $region56
      $region55: #{forward.8} parent=51 // pred_region
        %p2595 = scmp.lt.s32.totalorder %s20, 1
        %s2596 = scalar_select %p2595, %s20, 1
        %s2597 = smul.addr %s2596, 8
        %s2598 = smul.addr %s2597, 4
        %s2599 = scalar_lea.vmem %s6, %s2598
      $region56: #{forward.8} parent=51 // pred_fallthru
        _
    $region52: #{forward.8} parent=5 // pred_fallthru
      _
  $region6: #{forward.8} parent=0 // loop_footer
    %s18 = sadd.s32 1, %s14
  $region7: #{forward.8} parent=0 // loop_footer_branch
    %13 = sbr.rel target = $region3
  $region8: #{forward.8} parent=0 // loop_exit
    _

// kernel: forward.9
$region0: #{forward.9}
  #allocation0 [shape = 'u32[]', space=smem, size = 0x4, offset = 0x4, fixed_abs, tag = 'smem constant byte address 0x4 - core index']
  #allocation1 [shape = 'u32[144,128]{1,0:T(1,128)}', space=vmem, size = 0x12000, scoped, tag = 'internal scratch']
  %s0 = inlined_call_operand.vmem [shape: bf16[2,10,8,192], index: 0, kind: input, shape index: {}]
  %s1 = inlined_call_operand.vmem [shape: bf16[3,192,128], index: 1, kind: input, shape index: {}]
  %s2 = inlined_call_operand.vmem [shape: f32[1,128], index: 2, kind: input, shape index: {}]
  %s3 = inlined_call_operand.vmem [shape: bf16[2,4,4,128], index: 3, kind: output, shape index: {}]
  %s4 = sld [smem:[#allocation0]]
  $region45: #{forward.9} parent=0
    _
  %s6 = ssub.s32 1, %s4
  %s7 = scalar_select 0, %s6, %s4
  loop: start=0, step=1, limit=4
  $region2: #{forward.9} parent=0 // loop_pre_header
    _
  $region3: #{forward.9} parent=0 // loop_header
    %s9 = sphi 0, %s13
    %p10 = scmp.ge.s32.totalorder %s9, 4
    %s19 = sphi 0, %s21
    %s22 = sphi 0, %s19
    %s23 = sphi 0, %s22
    %s39 = sphi 0, %s23
    %s43 = sphi 0, %s43
    %s45 = sphi 0, %s43
    %s46 = sphi 0, %s45
    %s60 = sphi 0, %s46
    %s64 = sphi 0, %s64
    %s66 = sphi 0, %s64
    %s67 = sphi 0, %s66
    %s81 = sphi 0, %s67
    %s87 = sphi 0, %s89
    %s90 = sphi 0, %s87
    %s91 = sphi 0, %s90
    %s107 = sphi 0, %s91
  $region4: #{forward.9} parent=0 // loop_header_branch
    %12 = sbr.rel (%p10) target = $region8
  $region5: #{forward.9} parent=0 // loop_body
    %s14 = ssub.s32 %s9, 1
    %s15 = ssub.s32 %s9, 2
    %s16 = sadd.s32 %s9, 1
    %s17 = ssub.s32 %s9, %s16
    %p18 = scmp.eq.s32.totalorder %s17, 0
    %s20 = sadd.s32 %s19, 1
    %s21 = scalar_select %p18, %s19, %s20
    %p24 = pneg %p18
    %p25 = scmp.eq.s32.totalorder %s9, 1
    %p26 = por %p24, %p25
    %p27 = scmp.ne.s32.totalorder %s19, %s22
    %p28 = scmp.eq.s32.totalorder %s9, 0
    %p29 = por %p27, %p28
    %p30 = scmp.ne.s32.totalorder %s19, %s22
    %p31 = scmp.eq.s32.totalorder %s14, 1
    %p32 = por %p30, %p31
    %p33 = scmp.ne.s32.totalorder %s22, %s23
    %p34 = scmp.eq.s32.totalorder %s14, 0
    %p35 = por %p33, %p34
    %p36 = scmp.ne.s32.totalorder %s22, %s23
    %p37 = scmp.eq.s32.totalorder %s15, 1
    %p38 = por %p36, %p37
    %p40 = scmp.ne.s32.totalorder %s23, %s39
    %p41 = scmp.eq.s32.totalorder %s15, 0
    %p42 = por %p40, %p41
    %s44 = sadd.s32 %s43, 1
    %p47 = scmp.eq.s32.totalorder %s9, 1
    %p48 = scmp.ne.s32.totalorder %s43, %s45
    %p49 = scmp.eq.s32.totalorder %s9, 0
    %p50 = por %p48, %p49
    %p51 = scmp.ne.s32.totalorder %s43, %s45
    %p52 = scmp.eq.s32.totalorder %s14, 1
    %p53 = por %p51, %p52
    %p54 = scmp.ne.s32.totalorder %s45, %s46
    %p55 = scmp.eq.s32.totalorder %s14, 0
    %p56 = por %p54, %p55
    %p57 = scmp.ne.s32.totalorder %s45, %s46
    %p58 = scmp.eq.s32.totalorder %s15, 1
    %p59 = por %p57, %p58
    %p61 = scmp.ne.s32.totalorder %s46, %s60
    %p62 = scmp.eq.s32.totalorder %s15, 0
    %p63 = por %p61, %p62
    %s65 = sadd.s32 %s64, 1
    %p68 = scmp.eq.s32.totalorder %s9, 1
    %p69 = scmp.ne.s32.totalorder %s64, %s66
    %p70 = scmp.eq.s32.totalorder %s9, 0
    %p71 = por %p69, %p70
    %p72 = scmp.ne.s32.totalorder %s64, %s66
    %p73 = scmp.eq.s32.totalorder %s14, 1
    %p74 = por %p72, %p73
    %p75 = scmp.ne.s32.totalorder %s66, %s67
    %p76 = scmp.eq.s32.totalorder %s14, 0
    %p77 = por %p75, %p76
    %p78 = scmp.ne.s32.totalorder %s66, %s67
    %p79 = scmp.eq.s32.totalorder %s15, 1
    %p80 = por %p78, %p79
    %p82 = scmp.ne.s32.totalorder %s67, %s81
    %p83 = scmp.eq.s32.totalorder %s15, 0
    %p84 = por %p82, %p83
    %s85 = ssub.s32 %s9, %s16
    %p86 = scmp.eq.s32.totalorder %s85, 0
    %s88 = sadd.s32 %s87, 1
    %s89 = scalar_select %p86, %s87, %s88
    %p92 = pneg %p86
    %p93 = scmp.eq.s32.totalorder %s9, 1
    %p94 = por %p92, %p93
    %p95 = scmp.ne.s32.totalorder %s87, %s90
    %p96 = scmp.eq.s32.totalorder %s9, 0
    %p97 = por %p95, %p96
    %p98 = scmp.ne.s32.totalorder %s87, %s90
    %p99 = scmp.eq.s32.totalorder %s14, 1
    %p100 = por %p98, %p99
    %p101 = scmp.ne.s32.totalorder %s90, %s91
    %p102 = scmp.eq.s32.totalorder %s14, 0
    %p103 = por %p101, %p102
    %p104 = scmp.ne.s32.totalorder %s90, %s91
    %p105 = scmp.eq.s32.totalorder %s15, 1
    %p106 = por %p104, %p105
    %p108 = scmp.ne.s32.totalorder %s91, %s107
    %p109 = scmp.eq.s32.totalorder %s15, 0
    %p110 = por %p108, %p109
    %p111 = scmp.le.s32.totalorder 1, %s9
    %p112 = scmp.lt.s32.totalorder %s9, 3
    %p113 = pnand %p111, %p112
    %p114 = pneg %p113
    // Predicated region
    $region9: #{forward.9} parent=5 // pred_check
      _
    $region10: #{forward.9} parent=5 // pred_check_branch
      %116 = sbr.rel (%p113) target = $region12
    $region11: #{forward.9} parent=5 // pred_region
      %s117 = ssub.s32 %s9, 1
      // Predicated region
      $region13: #{forward.9} parent=11 // pred_check
        %p118 = pneg %p56
      $region14: #{forward.9} parent=11 // pred_check_branch
        %120 = sbr.rel (%p118) target = $region16
      $region15: #{forward.9} parent=11 // pred_region
        _
      $region16: #{forward.9} parent=11 // pred_fallthru
        _
      // Predicated region
      $region17: #{forward.9} parent=11 // pred_check
        %p121 = pneg %p77
      $region18: #{forward.9} parent=11 // pred_check_branch
        %123 = sbr.rel (%p121) target = $region20
      $region19: #{forward.9} parent=11 // pred_region
        _
      $region20: #{forward.9} parent=11 // pred_fallthru
        _
    $region12: #{forward.9} parent=5 // pred_fallthru
      _
    %p124 = scmp.lt.s32.totalorder %s9, 2
    // Predicated region
    $region21: #{forward.9} parent=5 // pred_check
      %p125 = pneg %p124
    $region22: #{forward.9} parent=5 // pred_check_branch
      %127 = sbr.rel (%p125) target = $region24
    $region23: #{forward.9} parent=5 // pred_region
      // Predicated region
      $region25: #{forward.9} parent=23 // pred_check
        %p128 = pneg %p29
      $region26: #{forward.9} parent=23 // pred_check_branch
        %130 = sbr.rel (%p128) target = $region28
      $region27: #{forward.9} parent=23 // pred_region
        %p131 = scmp.lt.s32.totalorder %s9, 1
        %s132 = scalar_select %p131, %s9, 1
        %s133 = smul.addr %s132, 20
        %s134 = smul.addr %s133, 4
        %s135 = scalar_lea.vmem %s0, %s134
      $region28: #{forward.9} parent=23 // pred_fallthru
        _
    $region24: #{forward.9} parent=5 // pred_fallthru
      _
    %p136 = scmp.le.s32.totalorder 1, %s9
    %p137 = scmp.lt.s32.totalorder %s9, 3
    %p138 = pnand %p136, %p137
    %p139 = pneg %p138
    // Predicated region
    $region29: #{forward.9} parent=5 // pred_check
      _
    $region30: #{forward.9} parent=5 // pred_check_branch
      %141 = sbr.rel (%p138) target = $region32
    $region31: #{forward.9} parent=5 // pred_region
      %s142 = ssub.s32 %s9, 1
      %p143 = scmp.lt.s32.totalorder %s14, 1
      %s144 = scalar_select %p143, %s14, 1
      %s145 = smul.addr %s144, 20
      %s146 = smul.addr %s145, 4
      %s147 = scalar_lea.vmem %s0, %s146
      %p148 = pneg %p35
      %p149 = pneg %p32
      %p150 = pneg %p56
      %p151 = pneg %p53
      %p152 = pneg %p77
      %p153 = pneg %p74
      %p154 = pneg %p103
      %p155 = pneg %p100
      %p156 = scmp.lt.s32.totalorder %s14, 1
      %s157 = scalar_select %p156, %s14, 1
      %s158 = smul.addr %s157, 4
      %s159 = smul.addr %s158, 2
      %s160 = scalar_lea.vmem %s3, %s159
      %p161 = scmp.lt.s32.totalorder %s14, 1
      %s162 = scalar_select %p161, %s14, 1
      %s163 = smul.addr %s162, 20
      %s164 = smul.addr %s163, 4
      %s165 = scalar_lea.vmem %s0, %s164
      %p166 = scmp.lt.s32.totalorder %s14, 1
      %s167 = scalar_select %p166, %s14, 1
      %s168 = smul.addr %s167, 4
      %s169 = smul.addr %s168, 2
      %s170 = scalar_lea.vmem %s3, %s169
      %v172 = vld [vmem:[%s165] sm:$0xff]
      %v173 = vld [vmem:[%s165 + $0x8] sm:$0xff]
      %v174 = vld [vmem:[%s165 + $0x10] sm:$0xff]
      %v175 = vld [vmem:[%s165 + $0x18] sm:$0xff]
      %v176 = vld [vmem:[%s165 + $0x20] sm:$0xff]
      %v177 = vld [vmem:[%s165 + $0x28] sm:$0xff]
      %v178 = vld [vmem:[%s165 + $0x30] sm:$0xff]
      %v179 = vld [vmem:[%s165 + $0x38] sm:$0xff]
      %v180 = vld [vmem:[%s165 + $0x40] sm:$0xff]
      %v181 = vld [vmem:[%s165 + $0x48] sm:$0xff]
      %v182 = vld [vmem:[%s1] sm:$0xf]
      %v183 = vld [vmem:[%s1 + $0x4] sm:$0xf]
      %v184 = vld [vmem:[%s1 + $0x8] sm:$0xf]
      %v185 = vld [vmem:[%s1 + $0xc] sm:$0xf]
      %v186 = vld [vmem:[%s1 + $0x10] sm:$0xf]
      %v187 = vld [vmem:[%s1 + $0x14] sm:$0xf]
      %v188 = vld [vmem:[%s1 + $0x18] sm:$0xf]
      %v189 = vld [vmem:[%s1 + $0x1c] sm:$0xf]
      %v190 = vld [vmem:[%s1 + $0x20] sm:$0xf]
      %v191 = vld [vmem:[%s1 + $0x24] sm:$0xf]
      %v192 = vld [vmem:[%s1 + $0x28] sm:$0xf]
      %v193 = vld [vmem:[%s1 + $0x2c] sm:$0xf]
      %v194 = vld [vmem:[%s1 + $0x30] sm:$0xf]
      %v195 = vld [vmem:[%s1 + $0x34] sm:$0xf]
      %v196 = vld [vmem:[%s1 + $0x38] sm:$0xf]
      %v197 = vld [vmem:[%s1 + $0x3c] sm:$0xf]
      %v198 = vld [vmem:[%s1 + $0x40] sm:$0xf]
      %v199 = vld [vmem:[%s1 + $0x44] sm:$0xf]
      %v200 = vld [vmem:[%s1 + $0x48] sm:$0xf]
      %v201 = vld [vmem:[%s1 + $0x4c] sm:$0xf]
      %v202 = vld [vmem:[%s1 + $0x50] sm:$0xf]
      %v203 = vld [vmem:[%s1 + $0x54] sm:$0xf]
      %v204 = vld [vmem:[%s1 + $0x58] sm:$0xf]
      %v205 = vld [vmem:[%s1 + $0x5c] sm:$0xf]
      %s206 = scalar_lea.vmem %s1, 96
      %v207 = vld [vmem:[%s206] sm:$0xf]
      %v208 = vld [vmem:[%s206 + $0x4] sm:$0xf]
      %v209 = vld [vmem:[%s206 + $0x8] sm:$0xf]
      %v210 = vld [vmem:[%s206 + $0xc] sm:$0xf]
      %v211 = vld [vmem:[%s206 + $0x10] sm:$0xf]
      %v212 = vld [vmem:[%s206 + $0x14] sm:$0xf]
      %v213 = vld [vmem:[%s206 + $0x18] sm:$0xf]
      %v214 = vld [vmem:[%s206 + $0x1c] sm:$0xf]
      %v215 = vld [vmem:[%s206 + $0x20] sm:$0xf]
      %v216 = vld [vmem:[%s206 + $0x24] sm:$0xf]
      %v217 = vld [vmem:[%s206 + $0x28] sm:$0xf]
      %v218 = vld [vmem:[%s206 + $0x2c] sm:$0xf]
      %v219 = vld [vmem:[%s206 + $0x30] sm:$0xf]
      %v220 = vld [vmem:[%s206 + $0x34] sm:$0xf]
      %v221 = vld [vmem:[%s206 + $0x38] sm:$0xf]
      %v222 = vld [vmem:[%s206 + $0x3c] sm:$0xf]
      %v223 = vld [vmem:[%s206 + $0x40] sm:$0xf]
      %v224 = vld [vmem:[%s206 + $0x44] sm:$0xf]
      %v225 = vld [vmem:[%s206 + $0x48] sm:$0xf]
      %v226 = vld [vmem:[%s206 + $0x4c] sm:$0xf]
      %v227 = vld [vmem:[%s206 + $0x50] sm:$0xf]
      %v228 = vld [vmem:[%s206 + $0x54] sm:$0xf]
      %v229 = vld [vmem:[%s206 + $0x58] sm:$0xf]
      %v230 = vld [vmem:[%s206 + $0x5c] sm:$0xf]
      %v239 = vunpack.c.l.b16 %v173
      %v240 = vunpack.c.h.b16 %v173
      %v241 = vunpack.c.l.b16 %v174
      %v242 = vunpack.c.h.b16 %v174
      %v243 = vunpack.c.l.b16 %v175
      %v244 = vunpack.c.h.b16 %v175
      %v245 = vunpack.c.l.b16 %v176
      %v246 = vunpack.c.h.b16 %v176
      %v247 = vunpack.c.l.b16 %v177
      %v248 = vunpack.c.h.b16 %v177
      %v249 = vunpack.c.l.b16 %v178
      %v250 = vunpack.c.h.b16 %v178
      %v251 = vunpack.c.l.b16 %v179
      %v252 = vunpack.c.h.b16 %v179
      %v253 = vunpack.c.l.b16 %v180
      %v254 = vunpack.c.h.b16 %v180
      %v255 = vpack.c.b16 %v241, %v239
      %v256 = vpack.c.b16 %v242, %v240
      %v257 = vpack.c.b16 %v245, %v243
      %v258 = vpack.c.b16 %v246, %v244
      %v259 = vpack.c.b16 %v249, %v247
      %v260 = vpack.c.b16 %v250, %v248
      %v261 = vpack.c.b16 %v253, %v251
      %v262 = vpack.c.b16 %v254, %v252
      %v291 = vunpack.c.l.b16 %v207
      %v292 = vunpack.c.l.b16 %v208
      %v293 = vunpack.c.l.b16 %v209
      %v294 = vunpack.c.l.b16 %v210
      %v295 = vunpack.c.l.b16 %v211
      %v296 = vunpack.c.l.b16 %v212
      %v297 = vunpack.c.l.b16 %v213
      %v298 = vunpack.c.l.b16 %v214
      %v299 = vunpack.c.l.b16 %v215
      %v300 = vunpack.c.l.b16 %v216
      %v301 = vunpack.c.l.b16 %v217
      %v302 = vunpack.c.l.b16 %v218
      %v303 = vunpack.c.l.b16 %v219
      %v304 = vunpack.c.l.b16 %v220
      %v305 = vunpack.c.l.b16 %v221
      %v306 = vunpack.c.l.b16 %v222
      %v307 = vunpack.c.l.b16 %v223
      %v308 = vunpack.c.l.b16 %v224
      %v309 = vunpack.c.l.b16 %v225
      %v310 = vunpack.c.l.b16 %v226
      %v311 = vunpack.c.l.b16 %v227
      %v312 = vunpack.c.l.b16 %v228
      %v313 = vunpack.c.l.b16 %v229
      %v314 = vunpack.c.l.b16 %v230
      %v315 = vpack.c.b16 %v292, %v291
      %v316 = vpack.c.b16 %v294, %v293
      %v317 = vpack.c.b16 %v296, %v295
      %v318 = vpack.c.b16 %v298, %v297
      %v319 = vpack.c.b16 %v300, %v299
      %v320 = vpack.c.b16 %v302, %v301
      %v321 = vpack.c.b16 %v304, %v303
      %v322 = vpack.c.b16 %v306, %v305
      %v323 = vpack.c.b16 %v308, %v307
      %v324 = vpack.c.b16 %v310, %v309
      %v325 = vpack.c.b16 %v312, %v311
      %v326 = vpack.c.b16 %v314, %v313
      %vm339 = vcmask 523264
      %v341 = vsel %vm339, %v256, 0
      %v344 = vsel %vm339, %v258, 0
      %v347 = vsel %vm339, %v260, 0
      %v350 = vsel %vm339, %v262, 0
      %352 = vmatprep.subr.bf16.mxu0 0
      %353 = vmatpush1.bf16.msra.mxu0 %v315
      %354 = vmatprep.subr.bf16.mxu0 0
      %355 = vmatpush1.bf16.msra.mxu0 %v316
      %356 = vmatprep.subr.bf16.mxu0 0
      %357 = vmatpush1.bf16.msra.mxu0 %v317
      %358 = vmatprep.subr.bf16.mxu0 0
      %359 = vmatpush1.bf16.msra.mxu0 %v318
      %360 = vmatprep.subr.bf16.mxu0 0
      %361 = vmatpush1.bf16.msra.mxu0 %v319
      %362 = vmatprep.subr.bf16.mxu0 0
      %363 = vmatpush1.bf16.msra.mxu0 %v320
      %364 = vmatprep.subr.bf16.mxu0 0
      %365 = vmatpush1.bf16.msra.mxu0 %v321
      %366 = vmatprep.subr.bf16.mxu0 0
      %367 = vmatpush1.bf16.msra.mxu0 %v322
      %368 = vmatprep.subr.bf16.mxu0 0
      %369 = vmatpush1.bf16.msra.mxu0 %v323
      %370 = vmatprep.subr.bf16.mxu0 0
      %371 = vmatpush1.bf16.msra.mxu0 %v324
      %372 = vmatprep.subr.bf16.mxu0 0
      %373 = vmatpush1.bf16.msra.mxu0 %v325
      %374 = vmatprep.subr.bf16.mxu0 0
      %375 = vmatpush1.bf16.msra.mxu0 %v326
      %376 = vmatprep.subr.bf16.mxu0 0
      %377 = vmatpush1.bf16.msra.mxu0 0
      %378 = vmatprep.subr.bf16.mxu0 0
      %379 = vmatpush1.bf16.msra.mxu0 0
      %380 = vmatprep.subr.bf16.mxu0 0
      %381 = vmatpush1.bf16.msra.mxu0 0
      %382 = vmatprep.subr.bf16.mxu0 0
      %383 = vmatpush1.bf16.msra.mxu0 0
      %384 = vmatprep.mubr.bf16.mxu0 %v341
      %385 = vmatmul.mubr.bf16.gmra.mrb[0].mxu0 %v255
      %v386 = vpop.f32.mrb[0].mxu0
      %v387 = vadd.f32 0.0, %v386
      %v388 = vpop.f32.mrb[0].mxu0
      %v389 = vpop.f32.mrb[0].mxu0
      %v390 = vadd.f32 0.0, %v389
      %v391 = vpop.f32.mrb[0].mxu0
      %392 = vmatprep.mubr.bf16.mxu0 %v344
      %393 = vmatmul.mubr.bf16.gmra.mrb[0].mxu0 %v257
      %v394 = vpop.f32.mrb[0].mxu0
      %v395 = vadd.f32 0.0, %v394
      %v396 = vpop.f32.mrb[0].mxu0
      %v397 = vpop.f32.mrb[0].mxu0
      %v398 = vadd.f32 0.0, %v397
      %v399 = vpop.f32.mrb[0].mxu0
      %400 = vmatprep.mubr.bf16.mxu0 %v347
      %401 = vmatmul.mubr.bf16.gmra.mrb[0].mxu0 %v259
      %v402 = vpop.f32.mrb[0].mxu0
      %v403 = vadd.f32 0.0, %v402
      %v404 = vpop.f32.mrb[0].mxu0
      %v405 = vpop.f32.mrb[0].mxu0
      %v406 = vadd.f32 0.0, %v405
      %v407 = vpop.f32.mrb[0].mxu0
      %408 = vmatprep.mubr.bf16.mxu0 %v350
      %409 = vmatmul.mubr.bf16.gmra.mrb[0].mxu0 %v261
      %v410 = vpop.f32.mrb[0].mxu0
      %v411 = vadd.f32 0.0, %v410
      %v412 = vpop.f32.mrb[0].mxu0
      %v413 = vpop.f32.mrb[0].mxu0
      %v414 = vadd.f32 0.0, %v413
      %v415 = vpop.f32.mrb[0].mxu0
      %416 = vdwg.mxu0
      %v418 = vunpack.c.l.b16 %v172
      %v419 = vunpack.c.h.b16 %v172
      %v420 = vpack.c.b16 %v239, %v418
      %v421 = vpack.c.b16 %v240, %v419
      %v422 = vpack.c.b16 %v243, %v241
      %v423 = vpack.c.b16 %v244, %v242
      %v424 = vpack.c.b16 %v247, %v245
      %v425 = vpack.c.b16 %v248, %v246
      %v426 = vpack.c.b16 %v251, %v249
      %v427 = vpack.c.b16 %v252, %v250
      %v456 = vunpack.c.l.b16 %v182
      %v457 = vunpack.c.l.b16 %v183
      %v458 = vunpack.c.l.b16 %v184
      %v459 = vunpack.c.l.b16 %v185
      %v460 = vunpack.c.l.b16 %v186
      %v461 = vunpack.c.l.b16 %v187
      %v462 = vunpack.c.l.b16 %v188
      %v463 = vunpack.c.l.b16 %v189
      %v464 = vunpack.c.l.b16 %v190
      %v465 = vunpack.c.l.b16 %v191
      %v466 = vunpack.c.l.b16 %v192
      %v467 = vunpack.c.l.b16 %v193
      %v468 = vunpack.c.l.b16 %v194
      %v469 = vunpack.c.l.b16 %v195
      %v470 = vunpack.c.l.b16 %v196
      %v471 = vunpack.c.l.b16 %v197
      %v472 = vunpack.c.l.b16 %v198
      %v473 = vunpack.c.l.b16 %v199
      %v474 = vunpack.c.l.b16 %v200
      %v475 = vunpack.c.l.b16 %v201
      %v476 = vunpack.c.l.b16 %v202
      %v477 = vunpack.c.l.b16 %v203
      %v478 = vunpack.c.l.b16 %v204
      %v479 = vunpack.c.l.b16 %v205
      %v480 = vpack.c.b16 %v457, %v456
      %v481 = vpack.c.b16 %v459, %v458
      %v482 = vpack.c.b16 %v461, %v460
      %v483 = vpack.c.b16 %v463, %v462
      %v484 = vpack.c.b16 %v465, %v464
      %v485 = vpack.c.b16 %v467, %v466
      %v486 = vpack.c.b16 %v469, %v468
      %v487 = vpack.c.b16 %v471, %v470
      %v488 = vpack.c.b16 %v473, %v472
      %v489 = vpack.c.b16 %v475, %v474
      %v490 = vpack.c.b16 %v477, %v476
      %v491 = vpack.c.b16 %v479, %v478
      %v505 = vsel %vm339, %v421, 0
      %v508 = vsel %vm339, %v423, 0
      %v511 = vsel %vm339, %v425, 0
      %v514 = vsel %vm339, %v427, 0
      %516 = vmatprep.subr.bf16.mxu0 0
      %517 = vmatpush1.bf16.msra.mxu0 %v480
      %518 = vmatprep.subr.bf16.mxu0 0
      %519 = vmatpush1.bf16.msra.mxu0 %v481
      %520 = vmatprep.subr.bf16.mxu0 0
      %521 = vmatpush1.bf16.msra.mxu0 %v482
      %522 = vmatprep.subr.bf16.mxu0 0
      %523 = vmatpush1.bf16.msra.mxu0 %v483
      %524 = vmatprep.subr.bf16.mxu0 0
      %525 = vmatpush1.bf16.msra.mxu0 %v484
      %526 = vmatprep.subr.bf16.mxu0 0
      %527 = vmatpush1.bf16.msra.mxu0 %v485
      %528 = vmatprep.subr.bf16.mxu0 0
      %529 = vmatpush1.bf16.msra.mxu0 %v486
      %530 = vmatprep.subr.bf16.mxu0 0
      %531 = vmatpush1.bf16.msra.mxu0 %v487
      %532 = vmatprep.subr.bf16.mxu0 0
      %533 = vmatpush1.bf16.msra.mxu0 %v488
      %534 = vmatprep.subr.bf16.mxu0 0
      %535 = vmatpush1.bf16.msra.mxu0 %v489
      %536 = vmatprep.subr.bf16.mxu0 0
      %537 = vmatpush1.bf16.msra.mxu0 %v490
      %538 = vmatprep.subr.bf16.mxu0 0
      %539 = vmatpush1.bf16.msra.mxu0 %v491
      %540 = vmatprep.subr.bf16.mxu0 0
      %541 = vmatpush1.bf16.msra.mxu0 0
      %542 = vmatprep.subr.bf16.mxu0 0
      %543 = vmatpush1.bf16.msra.mxu0 0
      %544 = vmatprep.subr.bf16.mxu0 0
      %545 = vmatpush1.bf16.msra.mxu0 0
      %546 = vmatprep.subr.bf16.mxu0 0
      %547 = vmatpush1.bf16.msra.mxu0 0
      %548 = vmatprep.mubr.bf16.mxu0 %v505
      %549 = vmatmul.mubr.bf16.gmra.mrb[0].mxu0 %v420
      %v550 = vpop.f32.mrb[0].mxu0
      %v551 = vadd.f32 %v387, %v550
      %v552 = vpop.f32.mrb[0].mxu0
      %v553 = vpop.f32.mrb[0].mxu0
      %v554 = vadd.f32 %v390, %v553
      %v555 = vpop.f32.mrb[0].mxu0
      %556 = vmatprep.mubr.bf16.mxu0 %v508
      %557 = vmatmul.mubr.bf16.gmra.mrb[0].mxu0 %v422
      %v558 = vpop.f32.mrb[0].mxu0
      %v559 = vadd.f32 %v395, %v558
      %v560 = vpop.f32.mrb[0].mxu0
      %v561 = vpop.f32.mrb[0].mxu0
      %v562 = vadd.f32 %v398, %v561
      %v563 = vpop.f32.mrb[0].mxu0
      %564 = vmatprep.mubr.bf16.mxu0 %v511
      %565 = vmatmul.mubr.bf16.gmra.mrb[0].mxu0 %v424
      %v566 = vpop.f32.mrb[0].mxu0
      %v567 = vadd.f32 %v403, %v566
      %v568 = vpop.f32.mrb[0].mxu0
      %v569 = vpop.f32.mrb[0].mxu0
      %v570 = vadd.f32 %v406, %v569
      %v571 = vpop.f32.mrb[0].mxu0
      %572 = vmatprep.mubr.bf16.mxu0 %v514
      %573 = vmatmul.mubr.bf16.gmra.mrb[0].mxu0 %v426
      %v574 = vpop.f32.mrb[0].mxu0
      %v575 = vadd.f32 %v411, %v574
      %v576 = vpop.f32.mrb[0].mxu0
      %v577 = vpop.f32.mrb[0].mxu0
      %v578 = vadd.f32 %v414, %v577
      %v579 = vpop.f32.mrb[0].mxu0
      %580 = vdwg.mxu0
      %s581 = scalar_lea.vmem %s1, 192
      %v582 = vld [vmem:[%s581] sm:$0xf]
      %v583 = vld [vmem:[%s581 + $0x4] sm:$0xf]
      %v584 = vld [vmem:[%s581 + $0x8] sm:$0xf]
      %v585 = vld [vmem:[%s581 + $0xc] sm:$0xf]
      %v586 = vld [vmem:[%s581 + $0x10] sm:$0xf]
      %v587 = vld [vmem:[%s581 + $0x14] sm:$0xf]
      %v588 = vld [vmem:[%s581 + $0x18] sm:$0xf]
      %v589 = vld [vmem:[%s581 + $0x1c] sm:$0xf]
      %v590 = vld [vmem:[%s581 + $0x20] sm:$0xf]
      %v591 = vld [vmem:[%s581 + $0x24] sm:$0xf]
      %v592 = vld [vmem:[%s581 + $0x28] sm:$0xf]
      %v593 = vld [vmem:[%s581 + $0x2c] sm:$0xf]
      %v594 = vld [vmem:[%s581 + $0x30] sm:$0xf]
      %v595 = vld [vmem:[%s581 + $0x34] sm:$0xf]
      %v596 = vld [vmem:[%s581 + $0x38] sm:$0xf]
      %v597 = vld [vmem:[%s581 + $0x3c] sm:$0xf]
      %v598 = vld [vmem:[%s581 + $0x40] sm:$0xf]
      %v599 = vld [vmem:[%s581 + $0x44] sm:$0xf]
      %v600 = vld [vmem:[%s581 + $0x48] sm:$0xf]
      %v601 = vld [vmem:[%s581 + $0x4c] sm:$0xf]
      %v602 = vld [vmem:[%s581 + $0x50] sm:$0xf]
      %v603 = vld [vmem:[%s581 + $0x54] sm:$0xf]
      %v604 = vld [vmem:[%s581 + $0x58] sm:$0xf]
      %v605 = vld [vmem:[%s581 + $0x5c] sm:$0xf]
      %v607 = vunpack.c.l.b16 %v181
      %v608 = vunpack.c.h.b16 %v181
      %v609 = vpack.c.b16 %v607, %v253
      %v610 = vpack.c.b16 %v608, %v254
      %v636 = vunpack.c.l.b16 %v582
      %v637 = vunpack.c.l.b16 %v583
      %v638 = vunpack.c.l.b16 %v584
      %v639 = vunpack.c.l.b16 %v585
      %v640 = vunpack.c.l.b16 %v586
      %v641 = vunpack.c.l.b16 %v587
      %v642 = vunpack.c.l.b16 %v588
      %v643 = vunpack.c.l.b16 %v589
      %v644 = vunpack.c.l.b16 %v590
      %v645 = vunpack.c.l.b16 %v591
      %v646 = vunpack.c.l.b16 %v592
      %v647 = vunpack.c.l.b16 %v593
      %v648 = vunpack.c.l.b16 %v594
      %v649 = vunpack.c.l.b16 %v595
      %v650 = vunpack.c.l.b16 %v596
      %v651 = vunpack.c.l.b16 %v597
      %v652 = vunpack.c.l.b16 %v598
      %v653 = vunpack.c.l.b16 %v599
      %v654 = vunpack.c.l.b16 %v600
      %v655 = vunpack.c.l.b16 %v601
      %v656 = vunpack.c.l.b16 %v602
      %v657 = vunpack.c.l.b16 %v603
      %v658 = vunpack.c.l.b16 %v604
      %v659 = vunpack.c.l.b16 %v605
      %v660 = vpack.c.b16 %v637, %v636
      %v661 = vpack.c.b16 %v639, %v638
      %v662 = vpack.c.b16 %v641, %v640
      %v663 = vpack.c.b16 %v643, %v642
      %v664 = vpack.c.b16 %v645, %v644
      %v665 = vpack.c.b16 %v647, %v646
      %v666 = vpack.c.b16 %v649, %v648
      %v667 = vpack.c.b16 %v651, %v650
      %v668 = vpack.c.b16 %v653, %v652
      %v669 = vpack.c.b16 %v655, %v654
      %v670 = vpack.c.b16 %v657, %v656
      %v671 = vpack.c.b16 %v659, %v658
      %v685 = vsel %vm339, %v610, 0
      %687 = vmatprep.subr.bf16.mxu0 0
      %688 = vmatpush1.bf16.msra.mxu0 %v660
      %689 = vmatprep.subr.bf16.mxu0 0
      %690 = vmatpush1.bf16.msra.mxu0 %v661
      %691 = vmatprep.subr.bf16.mxu0 0
      %692 = vmatpush1.bf16.msra.mxu0 %v662
      %693 = vmatprep.subr.bf16.mxu0 0
      %694 = vmatpush1.bf16.msra.mxu0 %v663
      %695 = vmatprep.subr.bf16.mxu0 0
      %696 = vmatpush1.bf16.msra.mxu0 %v664
      %697 = vmatprep.subr.bf16.mxu0 0
      %698 = vmatpush1.bf16.msra.mxu0 %v665
      %699 = vmatprep.subr.bf16.mxu0 0
      %700 = vmatpush1.bf16.msra.mxu0 %v666
      %701 = vmatprep.subr.bf16.mxu0 0
      %702 = vmatpush1.bf16.msra.mxu0 %v667
      %703 = vmatprep.subr.bf16.mxu0 0
      %704 = vmatpush1.bf16.msra.mxu0 %v668
      %705 = vmatprep.subr.bf16.mxu0 0
      %706 = vmatpush1.bf16.msra.mxu0 %v669
      %707 = vmatprep.subr.bf16.mxu0 0
      %708 = vmatpush1.bf16.msra.mxu0 %v670
      %709 = vmatprep.subr.bf16.mxu0 0
      %710 = vmatpush1.bf16.msra.mxu0 %v671
      %711 = vmatprep.subr.bf16.mxu0 0
      %712 = vmatpush1.bf16.msra.mxu0 0
      %713 = vmatprep.subr.bf16.mxu0 0
      %714 = vmatpush1.bf16.msra.mxu0 0
      %715 = vmatprep.subr.bf16.mxu0 0
      %716 = vmatpush1.bf16.msra.mxu0 0
      %717 = vmatprep.subr.bf16.mxu0 0
      %718 = vmatpush1.bf16.msra.mxu0 0
      %719 = vmatprep.mubr.bf16.mxu0 %v508
      %720 = vmatmul.mubr.bf16.gmra.mrb[0].mxu0 %v422
      %v721 = vpop.f32.mrb[0].mxu0
      %v722 = vadd.f32 0.0, %v721
      %v723 = vpop.f32.mrb[0].mxu0
      %v724 = vpop.f32.mrb[0].mxu0
      %v725 = vadd.f32 0.0, %v724
      %v726 = vpop.f32.mrb[0].mxu0
      %727 = vmatprep.mubr.bf16.mxu0 %v511
      %728 = vmatmul.mubr.bf16.gmra.mrb[0].mxu0 %v424
      %v729 = vpop.f32.mrb[0].mxu0
      %v730 = vadd.f32 0.0, %v729
      %v731 = vpop.f32.mrb[0].mxu0
      %v732 = vpop.f32.mrb[0].mxu0
      %v733 = vadd.f32 0.0, %v732
      %v734 = vpop.f32.mrb[0].mxu0
      %735 = vmatprep.mubr.bf16.mxu0 %v514
      %736 = vmatmul.mubr.bf16.gmra.mrb[0].mxu0 %v426
      %v737 = vpop.f32.mrb[0].mxu0
      %v738 = vadd.f32 0.0, %v737
      %v739 = vpop.f32.mrb[0].mxu0
      %v740 = vpop.f32.mrb[0].mxu0
      %v741 = vadd.f32 0.0, %v740
      %v742 = vpop.f32.mrb[0].mxu0
      %743 = vmatprep.mubr.bf16.mxu0 %v685
      %744 = vmatmul.mubr.bf16.gmra.mrb[0].mxu0 %v609
      %v745 = vpop.f32.mrb[0].mxu0
      %v746 = vadd.f32 0.0, %v745
      %v747 = vpop.f32.mrb[0].mxu0
      %v748 = vpop.f32.mrb[0].mxu0
      %v749 = vadd.f32 0.0, %v748
      %v750 = vpop.f32.mrb[0].mxu0
      %751 = vdwg.mxu0
      %v752 = vadd.f32 %v551, %v722
      %v753 = vadd.f32 %v554, %v725
      %v754 = vadd.f32 %v559, %v730
      %v755 = vadd.f32 %v562, %v733
      %v756 = vadd.f32 %v567, %v738
      %v757 = vadd.f32 %v570, %v741
      %v758 = vadd.f32 %v575, %v746
      %v759 = vadd.f32 %v578, %v749
      %v760 = vld [vmem:[%s2] sm:$0x1]
      %v762 = vlaneseq
      %v763 = vshrl.u32 %v762, 7
      %v764 = vsub.s32 0, %v763
      %v765 = vrot.slane %v760, %v764
      %v767 = vadd.f32 %v752, %v765
      %v768 = vadd.f32 %v753, %v765
      %v769 = vadd.f32 %v754, %v765
      %v770 = vadd.f32 %v755, %v765
      %v771 = vadd.f32 %v756, %v765
      %v772 = vadd.f32 %v757, %v765
      %v773 = vadd.f32 %v758, %v765
      %v774 = vadd.f32 %v759, %v765
      %v775 = vmax.f32 %v767, 0.0
      %v776 = vmax.f32 %v768, 0.0
      %v777 = vmax.f32 %v769, 0.0
      %v778 = vmax.f32 %v770, 0.0
      %v779 = vmax.f32 %v771, 0.0
      %v780 = vmax.f32 %v772, 0.0
      %v781 = vmax.f32 %v773, 0.0
      %v782 = vmax.f32 %v774, 0.0
      %v783 = vmax.f32 %v775, %v776
      %v784 = vmax.f32 %v777, %v778
      %v785 = vmax.f32 %v779, %v780
      %v786 = vmax.f32 %v781, %v782
      %v787 = vrot.slane %v783, 4
      %v788 = vrot.slane %v784, 4
      %v789 = vrot.slane %v785, 4
      %v790 = vrot.slane %v786, 4
      %v791 = vmax.f32 %v783, %v787
      %v792 = vmax.f32 %v784, %v788
      %v793 = vmax.f32 %v785, %v789
      %v794 = vmax.f32 %v786, %v790
      %v795 = vpack.c.bf16 %v791, %v791
      %v796 = vpack.c.bf16 %v792, %v792
      %v797 = vpack.c.bf16 %v793, %v793
      %v798 = vpack.c.bf16 %v794, %v794
      %799 = vst [vmem:[%s170] sm:$0x3] %v795
      %800 = vst [vmem:[%s170 + $0x2] sm:$0x3] %v796
      %801 = vst [vmem:[%s170 + $0x4] sm:$0x3] %v797
      %802 = vst [vmem:[%s170 + $0x6] sm:$0x3] %v798
      %p803 = scmp.lt.s32.totalorder %s14, 1
      %s804 = scalar_select %p803, %s14, 1
      %s805 = smul.addr %s804, 4
      %s806 = smul.addr %s805, 2
      %s807 = scalar_lea.vmem %s3, %s806
      // Predicated region
      $region33: #{forward.9} parent=31 // pred_check
        %p808 = pneg %p100
      $region34: #{forward.9} parent=31 // pred_check_branch
        %810 = sbr.rel (%p808) target = $region36
      $region35: #{forward.9} parent=31 // pred_region
        _
      $region36: #{forward.9} parent=31 // pred_fallthru
        _
    $region32: #{forward.9} parent=5 // pred_fallthru
      _
    %p811 = scmp.le.s32.totalorder 2, %s9
    // Predicated region
    $region37: #{forward.9} parent=5 // pred_check
      %p812 = pneg %p811
    $region38: #{forward.9} parent=5 // pred_check_branch
      %814 = sbr.rel (%p812) target = $region40
    $region39: #{forward.9} parent=5 // pred_region
      %s815 = ssub.s32 %s9, 2
      // Predicated region
      $region41: #{forward.9} parent=39 // pred_check
        %p816 = pneg %p106
      $region42: #{forward.9} parent=39 // pred_check_branch
        %818 = sbr.rel (%p816) target = $region44
      $region43: #{forward.9} parent=39 // pred_region
        %p819 = scmp.lt.s32.totalorder %s15, 1
        %s820 = scalar_select %p819, %s15, 1
        %s821 = smul.addr %s820, 4
        %s822 = smul.addr %s821, 2
        %s823 = scalar_lea.vmem %s3, %s822
      $region44: #{forward.9} parent=39 // pred_fallthru
        _
    $region40: #{forward.9} parent=5 // pred_fallthru
      _
  $region6: #{forward.9} parent=0 // loop_footer
    %s13 = sadd.s32 1, %s9
  $region7: #{forward.9} parent=0 // loop_footer_branch
    %8 = sbr.rel target = $region3
  $region8: #{forward.9} parent=0 // loop_exit
    _

// kernel: forward.10
$region0: #{forward.10}
  #allocation0 [shape = 'u32[]', space=smem, size = 0x4, offset = 0x4, fixed_abs, tag = 'smem constant byte address 0x4 - core index']
  #allocation1 [shape = 'u32[144,128]{1,0:T(1,128)}', space=vmem, size = 0x12000, scoped, tag = 'internal scratch']
  #allocation2 [shape = 'f32[1,1]{1,0:T(1,128)S(1)}', space=vmem, size = 0x200, scoped, tag = 'scoped memory for forward.10']
  %s0 = inlined_call_operand.vmem [shape: bf16[2,16,128], index: 0, kind: input, shape index: {}]
  %s1 = inlined_call_operand.vmem [shape: bf16[128,1536], index: 1, kind: input, shape index: {}]
  %s2 = inlined_call_operand.vmem [shape: f32[1,1536], index: 2, kind: input, shape index: {}]
  %s3 = inlined_call_operand.vmem [shape: bf16[512,128], index: 3, kind: input, shape index: {}]
  %s4 = inlined_call_operand.vmem [shape: f32[1,128], index: 4, kind: input, shape index: {}]
  %s5 = inlined_call_operand.<no memory space> [shape: f32[1,1], index: 5, kind: input, shape index: {}]
  %s6 = inlined_call_operand.vmem [shape: bf16[2,16,128], index: 6, kind: output, shape index: {}]
  %s7 = sld [smem:[#allocation0]]
  $region57: #{forward.10} parent=0
    _
  %s9 = ssub.s32 1, %s7
  %s10 = scalar_select 0, %s9, %s7
  %v11 = vstv %s5
  %12 = vst [vmem:[#allocation2] sm:$0x1] %v11
  loop: start=0, step=1, limit=4
  $region2: #{forward.10} parent=0 // loop_pre_header
    _
  $region3: #{forward.10} parent=0 // loop_header
    %s14 = sphi 0, %s18
    %p15 = scmp.ge.s32.totalorder %s14, 4
    %s24 = sphi 0, %s26
    %s27 = sphi 0, %s24
    %s28 = sphi 0, %s27
    %s44 = sphi 0, %s28
    %s48 = sphi 0, %s48
    %s50 = sphi 0, %s48
    %s51 = sphi 0, %s50
    %s65 = sphi 0, %s51
    %s69 = sphi 0, %s69
    %s71 = sphi 0, %s69
    %s72 = sphi 0, %s71
    %s86 = sphi 0, %s72
    %s90 = sphi 0, %s90
    %s92 = sphi 0, %s90
    %s93 = sphi 0, %s92
    %s107 = sphi 0, %s93
    %s111 = sphi 0, %s111
    %s113 = sphi 0, %s111
    %s114 = sphi 0, %s113
    %s128 = sphi 0, %s114
    %s132 = sphi 0, %s132
    %s134 = sphi 0, %s132
    %s135 = sphi 0, %s134
    %s149 = sphi 0, %s135
    %s155 = sphi 0, %s157
    %s158 = sphi 0, %s155
    %s159 = sphi 0, %s158
    %s175 = sphi 0, %s159
  $region4: #{forward.10} parent=0 // loop_header_branch
    %17 = sbr.rel (%p15) target = $region8
  $region5: #{forward.10} parent=0 // loop_body
    %s19 = ssub.s32 %s14, 1
    %s20 = ssub.s32 %s14, 2
    %s21 = sadd.s32 %s14, 1
    %s22 = ssub.s32 %s14, %s21
    %p23 = scmp.eq.s32.totalorder %s22, 0
    %s25 = sadd.s32 %s24, 1
    %s26 = scalar_select %p23, %s24, %s25
    %p29 = pneg %p23
    %p30 = scmp.eq.s32.totalorder %s14, 1
    %p31 = por %p29, %p30
    %p32 = scmp.ne.s32.totalorder %s24, %s27
    %p33 = scmp.eq.s32.totalorder %s14, 0
    %p34 = por %p32, %p33
    %p35 = scmp.ne.s32.totalorder %s24, %s27
    %p36 = scmp.eq.s32.totalorder %s19, 1
    %p37 = por %p35, %p36
    %p38 = scmp.ne.s32.totalorder %s27, %s28
    %p39 = scmp.eq.s32.totalorder %s19, 0
    %p40 = por %p38, %p39
    %p41 = scmp.ne.s32.totalorder %s27, %s28
    %p42 = scmp.eq.s32.totalorder %s20, 1
    %p43 = por %p41, %p42
    %p45 = scmp.ne.s32.totalorder %s28, %s44
    %p46 = scmp.eq.s32.totalorder %s20, 0
    %p47 = por %p45, %p46
    %s49 = sadd.s32 %s48, 1
    %p52 = scmp.eq.s32.totalorder %s14, 1
    %p53 = scmp.ne.s32.totalorder %s48, %s50
    %p54 = scmp.eq.s32.totalorder %s14, 0
    %p55 = por %p53, %p54
    %p56 = scmp.ne.s32.totalorder %s48, %s50
    %p57 = scmp.eq.s32.totalorder %s19, 1
    %p58 = por %p56, %p57
    %p59 = scmp.ne.s32.totalorder %s50, %s51
    %p60 = scmp.eq.s32.totalorder %s19, 0
    %p61 = por %p59, %p60
    %p62 = scmp.ne.s32.totalorder %s50, %s51
    %p63 = scmp.eq.s32.totalorder %s20, 1
    %p64 = por %p62, %p63
    %p66 = scmp.ne.s32.totalorder %s51, %s65
    %p67 = scmp.eq.s32.totalorder %s20, 0
    %p68 = por %p66, %p67
    %s70 = sadd.s32 %s69, 1
    %p73 = scmp.eq.s32.totalorder %s14, 1
    %p74 = scmp.ne.s32.totalorder %s69, %s71
    %p75 = scmp.eq.s32.totalorder %s14, 0
    %p76 = por %p74, %p75
    %p77 = scmp.ne.s32.totalorder %s69, %s71
    %p78 = scmp.eq.s32.totalorder %s19, 1
    %p79 = por %p77, %p78
    %p80 = scmp.ne.s32.totalorder %s71, %s72
    %p81 = scmp.eq.s32.totalorder %s19, 0
    %p82 = por %p80, %p81
    %p83 = scmp.ne.s32.totalorder %s71, %s72
    %p84 = scmp.eq.s32.totalorder %s20, 1
    %p85 = por %p83, %p84
    %p87 = scmp.ne.s32.totalorder %s72, %s86
    %p88 = scmp.eq.s32.totalorder %s20, 0
    %p89 = por %p87, %p88
    %s91 = sadd.s32 %s90, 1
    %p94 = scmp.eq.s32.totalorder %s14, 1
    %p95 = scmp.ne.s32.totalorder %s90, %s92
    %p96 = scmp.eq.s32.totalorder %s14, 0
    %p97 = por %p95, %p96
    %p98 = scmp.ne.s32.totalorder %s90, %s92
    %p99 = scmp.eq.s32.totalorder %s19, 1
    %p100 = por %p98, %p99
    %p101 = scmp.ne.s32.totalorder %s92, %s93
    %p102 = scmp.eq.s32.totalorder %s19, 0
    %p103 = por %p101, %p102
    %p104 = scmp.ne.s32.totalorder %s92, %s93
    %p105 = scmp.eq.s32.totalorder %s20, 1
    %p106 = por %p104, %p105
    %p108 = scmp.ne.s32.totalorder %s93, %s107
    %p109 = scmp.eq.s32.totalorder %s20, 0
    %p110 = por %p108, %p109
    %s112 = sadd.s32 %s111, 1
    %p115 = scmp.eq.s32.totalorder %s14, 1
    %p116 = scmp.ne.s32.totalorder %s111, %s113
    %p117 = scmp.eq.s32.totalorder %s14, 0
    %p118 = por %p116, %p117
    %p119 = scmp.ne.s32.totalorder %s111, %s113
    %p120 = scmp.eq.s32.totalorder %s19, 1
    %p121 = por %p119, %p120
    %p122 = scmp.ne.s32.totalorder %s113, %s114
    %p123 = scmp.eq.s32.totalorder %s19, 0
    %p124 = por %p122, %p123
    %p125 = scmp.ne.s32.totalorder %s113, %s114
    %p126 = scmp.eq.s32.totalorder %s20, 1
    %p127 = por %p125, %p126
    %p129 = scmp.ne.s32.totalorder %s114, %s128
    %p130 = scmp.eq.s32.totalorder %s20, 0
    %p131 = por %p129, %p130
    %s133 = sadd.s32 %s132, 1
    %p136 = scmp.eq.s32.totalorder %s14, 1
    %p137 = scmp.ne.s32.totalorder %s132, %s134
    %p138 = scmp.eq.s32.totalorder %s14, 0
    %p139 = por %p137, %p138
    %p140 = scmp.ne.s32.totalorder %s132, %s134
    %p141 = scmp.eq.s32.totalorder %s19, 1
    %p142 = por %p140, %p141
    %p143 = scmp.ne.s32.totalorder %s134, %s135
    %p144 = scmp.eq.s32.totalorder %s19, 0
    %p145 = por %p143, %p144
    %p146 = scmp.ne.s32.totalorder %s134, %s135
    %p147 = scmp.eq.s32.totalorder %s20, 1
    %p148 = por %p146, %p147
    %p150 = scmp.ne.s32.totalorder %s135, %s149
    %p151 = scmp.eq.s32.totalorder %s20, 0
    %p152 = por %p150, %p151
    %s153 = ssub.s32 %s14, %s21
    %p154 = scmp.eq.s32.totalorder %s153, 0
    %s156 = sadd.s32 %s155, 1
    %s157 = scalar_select %p154, %s155, %s156
    %p160 = pneg %p154
    %p161 = scmp.eq.s32.totalorder %s14, 1
    %p162 = por %p160, %p161
    %p163 = scmp.ne.s32.totalorder %s155, %s158
    %p164 = scmp.eq.s32.totalorder %s14, 0
    %p165 = por %p163, %p164
    %p166 = scmp.ne.s32.totalorder %s155, %s158
    %p167 = scmp.eq.s32.totalorder %s19, 1
    %p168 = por %p166, %p167
    %p169 = scmp.ne.s32.totalorder %s158, %s159
    %p170 = scmp.eq.s32.totalorder %s19, 0
    %p171 = por %p169, %p170
    %p172 = scmp.ne.s32.totalorder %s158, %s159
    %p173 = scmp.eq.s32.totalorder %s20, 1
    %p174 = por %p172, %p173
    %p176 = scmp.ne.s32.totalorder %s159, %s175
    %p177 = scmp.eq.s32.totalorder %s20, 0
    %p178 = por %p176, %p177
    %p179 = scmp.le.s32.totalorder 1, %s14
    %p180 = scmp.lt.s32.totalorder %s14, 3
    %p181 = pnand %p179, %p180
    %p182 = pneg %p181
    // Predicated region
    $region9: #{forward.10} parent=5 // pred_check
      _
    $region10: #{forward.10} parent=5 // pred_check_branch
      %184 = sbr.rel (%p181) target = $region12
    $region11: #{forward.10} parent=5 // pred_region
      %s185 = ssub.s32 %s14, 1
      // Predicated region
      $region13: #{forward.10} parent=11 // pred_check
        %p186 = pneg %p61
      $region14: #{forward.10} parent=11 // pred_check_branch
        %188 = sbr.rel (%p186) target = $region16
      $region15: #{forward.10} parent=11 // pred_region
        _
      $region16: #{forward.10} parent=11 // pred_fallthru
        _
      // Predicated region
      $region17: #{forward.10} parent=11 // pred_check
        %p189 = pneg %p82
      $region18: #{forward.10} parent=11 // pred_check_branch
        %191 = sbr.rel (%p189) target = $region20
      $region19: #{forward.10} parent=11 // pred_region
        _
      $region20: #{forward.10} parent=11 // pred_fallthru
        _
      // Predicated region
      $region21: #{forward.10} parent=11 // pred_check
        %p192 = pneg %p103
      $region22: #{forward.10} parent=11 // pred_check_branch
        %194 = sbr.rel (%p192) target = $region24
      $region23: #{forward.10} parent=11 // pred_region
        _
      $region24: #{forward.10} parent=11 // pred_fallthru
        _
      // Predicated region
      $region25: #{forward.10} parent=11 // pred_check
        %p195 = pneg %p124
      $region26: #{forward.10} parent=11 // pred_check_branch
        %197 = sbr.rel (%p195) target = $region28
      $region27: #{forward.10} parent=11 // pred_region
        _
      $region28: #{forward.10} parent=11 // pred_fallthru
        _
      // Predicated region
      $region29: #{forward.10} parent=11 // pred_check
        %p198 = pneg %p145
      $region30: #{forward.10} parent=11 // pred_check_branch
        %200 = sbr.rel (%p198) target = $region32
      $region31: #{forward.10} parent=11 // pred_region
        _
      $region32: #{forward.10} parent=11 // pred_fallthru
        _
    $region12: #{forward.10} parent=5 // pred_fallthru
      _
    %p201 = scmp.lt.s32.totalorder %s14, 2
    // Predicated region
    $region33: #{forward.10} parent=5 // pred_check
      %p202 = pneg %p201
    $region34: #{forward.10} parent=5 // pred_check_branch
      %204 = sbr.rel (%p202) target = $region36
    $region35: #{forward.10} parent=5 // pred_region
      // Predicated region
      $region37: #{forward.10} parent=35 // pred_check
        %p205 = pneg %p34
      $region38: #{forward.10} parent=35 // pred_check_branch
        %207 = sbr.rel (%p205) target = $region40
      $region39: #{forward.10} parent=35 // pred_region
        %p208 = scmp.lt.s32.totalorder %s14, 1
        %s209 = scalar_select %p208, %s14, 1
        %s210 = smul.addr %s209, 2
        %s211 = smul.addr %s210, 4
        %s212 = scalar_lea.vmem %s0, %s211
      $region40: #{forward.10} parent=35 // pred_fallthru
        _
    $region36: #{forward.10} parent=5 // pred_fallthru
      _
    %p213 = scmp.le.s32.totalorder 1, %s14
    %p214 = scmp.lt.s32.totalorder %s14, 3
    %p215 = pnand %p213, %p214
    %p216 = pneg %p215
    // Predicated region
    $region41: #{forward.10} parent=5 // pred_check
      _
    $region42: #{forward.10} parent=5 // pred_check_branch
      %218 = sbr.rel (%p215) target = $region44
    $region43: #{forward.10} parent=5 // pred_region
      %s219 = ssub.s32 %s14, 1
      %p220 = scmp.lt.s32.totalorder %s19, 1
      %s221 = scalar_select %p220, %s19, 1
      %s222 = smul.addr %s221, 2
      %s223 = smul.addr %s222, 4
      %s224 = scalar_lea.vmem %s0, %s223
      %p225 = pneg %p40
      %p226 = pneg %p37
      %p227 = pneg %p61
      %p228 = pneg %p58
      %p229 = pneg %p82
      %p230 = pneg %p79
      %p231 = pneg %p103
      %p232 = pneg %p100
      %p233 = pneg %p124
      %p234 = pneg %p121
      %p235 = pneg %p145
      %p236 = pneg %p142
      %p237 = pneg %p171
      %p238 = pneg %p168
      %p239 = scmp.lt.s32.totalorder %s19, 1
      %s240 = scalar_select %p239, %s19, 1
      %s241 = smul.addr %s240, 2
      %s242 = smul.addr %s241, 4
      %s243 = scalar_lea.vmem %s6, %s242
      %p244 = scmp.lt.s32.totalorder %s19, 1
      %s245 = scalar_select %p244, %s19, 1
      %s246 = smul.addr %s245, 2
      %s247 = smul.addr %s246, 4
      %s248 = scalar_lea.vmem %s0, %s247
      %p249 = scmp.lt.s32.totalorder %s19, 1
      %s250 = scalar_select %p249, %s19, 1
      %s251 = smul.addr %s250, 2
      %s252 = smul.addr %s251, 4
      %s253 = scalar_lea.vmem %s6, %s252
      %v255 = vld [vmem:[%s248] sm:$0xf]
      %v256 = vld [vmem:[%s248 + $0x4] sm:$0xf]
      %v257 = vld [vmem:[%s1] sm:$0xff]
      %v258 = vld [vmem:[%s1 + $0x8] sm:$0xff]
      %v259 = vld [vmem:[%s1 + $0x10] sm:$0xff]
      %v260 = vld [vmem:[%s1 + $0x18] sm:$0xff]
      %v261 = vld [vmem:[%s1 + $0x20] sm:$0xff]
      %v262 = vld [vmem:[%s1 + $0x28] sm:$0xff]
      %v263 = vld [vmem:[%s1 + $0x30] sm:$0xff]
      %v264 = vld [vmem:[%s1 + $0x38] sm:$0xff]
      %v265 = vld [vmem:[%s1 + $0x40] sm:$0xff]
      %v266 = vld [vmem:[%s1 + $0x48] sm:$0xff]
      %v267 = vld [vmem:[%s1 + $0x50] sm:$0xff]
      %v268 = vld [vmem:[%s1 + $0x58] sm:$0xff]
      %v269 = vld [vmem:[%s1 + $0x60] sm:$0xff]
      %v270 = vld [vmem:[%s1 + $0x68] sm:$0xff]
      %v271 = vld [vmem:[%s1 + $0x70] sm:$0xff]
      %v272 = vld [vmem:[%s1 + $0x78] sm:$0xff]
      %v273 = vld [vmem:[%s1 + $0x80] sm:$0xff]
      %v274 = vld [vmem:[%s1 + $0x88] sm:$0xff]
      %v275 = vld [vmem:[%s1 + $0x90] sm:$0xff]
      %v276 = vld [vmem:[%s1 + $0x98] sm:$0xff]
      %v277 = vld [vmem:[%s1 + $0xa0] sm:$0xff]
      %v278 = vld [vmem:[%s1 + $0xa8] sm:$0xff]
      %v279 = vld [vmem:[%s1 + $0xb0] sm:$0xff]
      %v280 = vld [vmem:[%s1 + $0xb8] sm:$0xff]
      %v281 = vld [vmem:[%s1 + $0xc0] sm:$0xff]
      %v282 = vld [vmem:[%s1 + $0xc8] sm:$0xff]
      %v283 = vld [vmem:[%s1 + $0xd0] sm:$0xff]
      %v284 = vld [vmem:[%s1 + $0xd8] sm:$0xff]
      %v285 = vld [vmem:[%s1 + $0xe0] sm:$0xff]
      %v286 = vld [vmem:[%s1 + $0xe8] sm:$0xff]
      %v287 = vld [vmem:[%s1 + $0xf0] sm:$0xff]
      %v288 = vld [vmem:[%s1 + $0xf8] sm:$0xff]
      %v289 = vld [vmem:[%s1 + $0x100] sm:$0xff]
      %v290 = vld [vmem:[%s1 + $0x108] sm:$0xff]
      %v291 = vld [vmem:[%s1 + $0x110] sm:$0xff]
      %v292 = vld [vmem:[%s1 + $0x118] sm:$0xff]
      %v293 = vld [vmem:[%s1 + $0x120] sm:$0xff]
      %v294 = vld [vmem:[%s1 + $0x128] sm:$0xff]
      %v295 = vld [vmem:[%s1 + $0x130] sm:$0xff]
      %v296 = vld [vmem:[%s1 + $0x138] sm:$0xff]
      %v297 = vld [vmem:[%s1 + $0x140] sm:$0xff]
      %v298 = vld [vmem:[%s1 + $0x148] sm:$0xff]
      %v299 = vld [vmem:[%s1 + $0x150] sm:$0xff]
      %v300 = vld [vmem:[%s1 + $0x158] sm:$0xff]
      %v301 = vld [vmem:[%s1 + $0x160] sm:$0xff]
      %v302 = vld [vmem:[%s1 + $0x168] sm:$0xff]
      %v303 = vld [vmem:[%s1 + $0x170] sm:$0xff]
      %v304 = vld [vmem:[%s1 + $0x178] sm:$0xff]
      %v305 = vld [vmem:[%s1 + $0x180] sm:$0xff]
      %v306 = vld [vmem:[%s1 + $0x188] sm:$0xff]
      %v307 = vld [vmem:[%s1 + $0x190] sm:$0xff]
      %v308 = vld [vmem:[%s1 + $0x198] sm:$0xff]
      %v309 = vld [vmem:[%s1 + $0x1a0] sm:$0xff]
      %v310 = vld [vmem:[%s1 + $0x1a8] sm:$0xff]
      %v311 = vld [vmem:[%s1 + $0x1b0] sm:$0xff]
      %v312 = vld [vmem:[%s1 + $0x1b8] sm:$0xff]
      %v313 = vld [vmem:[%s1 + $0x1c0] sm:$0xff]
      %v314 = vld [vmem:[%s1 + $0x1c8] sm:$0xff]
      %v315 = vld [vmem:[%s1 + $0x1d0] sm:$0xff]
      %v316 = vld [vmem:[%s1 + $0x1d8] sm:$0xff]
      %v317 = vld [vmem:[%s1 + $0x1e0] sm:$0xff]
      %v318 = vld [vmem:[%s1 + $0x1e8] sm:$0xff]
      %v319 = vld [vmem:[%s1 + $0x1f0] sm:$0xff]
      %v320 = vld [vmem:[%s1 + $0x1f8] sm:$0xff]
      %v321 = vld [vmem:[%s1 + $0x200] sm:$0xff]
      %v322 = vld [vmem:[%s1 + $0x208] sm:$0xff]
      %v323 = vld [vmem:[%s1 + $0x210] sm:$0xff]
      %v324 = vld [vmem:[%s1 + $0x218] sm:$0xff]
      %v325 = vld [vmem:[%s1 + $0x220] sm:$0xff]
      %v326 = vld [vmem:[%s1 + $0x228] sm:$0xff]
      %v327 = vld [vmem:[%s1 + $0x230] sm:$0xff]
      %v328 = vld [vmem:[%s1 + $0x238] sm:$0xff]
      %v329 = vld [vmem:[%s1 + $0x240] sm:$0xff]
      %v330 = vld [vmem:[%s1 + $0x248] sm:$0xff]
      %v331 = vld [vmem:[%s1 + $0x250] sm:$0xff]
      %v332 = vld [vmem:[%s1 + $0x258] sm:$0xff]
      %v333 = vld [vmem:[%s1 + $0x260] sm:$0xff]
      %v334 = vld [vmem:[%s1 + $0x268] sm:$0xff]
      %v335 = vld [vmem:[%s1 + $0x270] sm:$0xff]
      %v336 = vld [vmem:[%s1 + $0x278] sm:$0xff]
      %v337 = vld [vmem:[%s1 + $0x280] sm:$0xff]
      %v338 = vld [vmem:[%s1 + $0x288] sm:$0xff]
      %v339 = vld [vmem:[%s1 + $0x290] sm:$0xff]
      %v340 = vld [vmem:[%s1 + $0x298] sm:$0xff]
      %v341 = vld [vmem:[%s1 + $0x2a0] sm:$0xff]
      %v342 = vld [vmem:[%s1 + $0x2a8] sm:$0xff]
      %v343 = vld [vmem:[%s1 + $0x2b0] sm:$0xff]
      %v344 = vld [vmem:[%s1 + $0x2b8] sm:$0xff]
      %v345 = vld [vmem:[%s1 + $0x2c0] sm:$0xff]
      %v346 = vld [vmem:[%s1 + $0x2c8] sm:$0xff]
      %v347 = vld [vmem:[%s1 + $0x2d0] sm:$0xff]
      %v348 = vld [vmem:[%s1 + $0x2d8] sm:$0xff]
      %v349 = vld [vmem:[%s1 + $0x2e0] sm:$0xff]
      %v350 = vld [vmem:[%s1 + $0x2e8] sm:$0xff]
      %v351 = vld [vmem:[%s1 + $0x2f0] sm:$0xff]
      %v352 = vld [vmem:[%s1 + $0x2f8] sm:$0xff]
      %v353 = vld [vmem:[%s2] sm:$0xff]
      %v354 = vld [vmem:[%s2 + $0x8] sm:$0xf]
      %v357 = vlaneseq
      %v358 = vshrl.u32 %v357, 7
      %v359 = vsub.s32 0, %v358
      %v360 = vrot.slane %v353, %v359
      %v361 = vlaneseq
      %v362 = vshrl.u32 %v361, 7
      %v363 = vsub.s32 1, %v362
      %v364 = vrot.slane %v353, %v363
      %v365 = vlaneseq
      %v366 = vshrl.u32 %v365, 7
      %v367 = vsub.s32 2, %v366
      %v368 = vrot.slane %v353, %v367
      %v369 = vlaneseq
      %v370 = vshrl.u32 %v369, 7
      %v371 = vsub.s32 3, %v370
      %v372 = vrot.slane %v353, %v371
      %v373 = vlaneseq
      %v374 = vshrl.u32 %v373, 7
      %v375 = vsub.s32 4, %v374
      %v376 = vrot.slane %v353, %v375
      %v377 = vlaneseq
      %v378 = vshrl.u32 %v377, 7
      %v379 = vsub.s32 5, %v378
      %v380 = vrot.slane %v353, %v379
      %v381 = vlaneseq
      %v382 = vshrl.u32 %v381, 7
      %v383 = vsub.s32 6, %v382
      %v384 = vrot.slane %v353, %v383
      %v385 = vlaneseq
      %v386 = vshrl.u32 %v385, 7
      %v387 = vsub.s32 7, %v386
      %v388 = vrot.slane %v353, %v387
      %v389 = vlaneseq
      %v390 = vshrl.u32 %v389, 7
      %v391 = vsub.s32 0, %v390
      %v392 = vrot.slane %v354, %v391
      %v393 = vlaneseq
      %v394 = vshrl.u32 %v393, 7
      %v395 = vsub.s32 1, %v394
      %v396 = vrot.slane %v354, %v395
      %v397 = vlaneseq
      %v398 = vshrl.u32 %v397, 7
      %v399 = vsub.s32 2, %v398
      %v400 = vrot.slane %v354, %v399
      %v401 = vlaneseq
      %v402 = vshrl.u32 %v401, 7
      %v403 = vsub.s32 3, %v402
      %v404 = vrot.slane %v354, %v403
      %v419 = vunpack.c.l.b16 %v255
      %v420 = vunpack.c.l.b16 %v256
      %v421 = vpack.c.b16 %v420, %v419
      %v519 = vunpack.c.l.b16 %v257
      %v520 = vunpack.c.h.b16 %v257
      %v521 = vunpack.c.l.b16 %v258
      %v522 = vunpack.c.h.b16 %v258
      %v523 = vunpack.c.l.b16 %v259
      %v524 = vunpack.c.h.b16 %v259
      %v525 = vunpack.c.l.b16 %v260
      %v526 = vunpack.c.h.b16 %v260
      %v527 = vunpack.c.l.b16 %v261
      %v528 = vunpack.c.h.b16 %v261
      %v529 = vunpack.c.l.b16 %v262
      %v530 = vunpack.c.h.b16 %v262
      %v531 = vunpack.c.l.b16 %v263
      %v532 = vunpack.c.h.b16 %v263
      %v533 = vunpack.c.l.b16 %v264
      %v534 = vunpack.c.h.b16 %v264
      %v535 = vunpack.c.l.b16 %v265
      %v536 = vunpack.c.h.b16 %v265
      %v537 = vunpack.c.l.b16 %v266
      %v538 = vunpack.c.h.b16 %v266
      %v539 = vunpack.c.l.b16 %v267
      %v540 = vunpack.c.h.b16 %v267
      %v541 = vunpack.c.l.b16 %v268
      %v542 = vunpack.c.h.b16 %v268
      %v543 = vunpack.c.l.b16 %v269
      %v544 = vunpack.c.h.b16 %v269
      %v545 = vunpack.c.l.b16 %v270
      %v546 = vunpack.c.h.b16 %v270
      %v547 = vunpack.c.l.b16 %v271
      %v548 = vunpack.c.h.b16 %v271
      %v549 = vunpack.c.l.b16 %v272
      %v550 = vunpack.c.h.b16 %v272
      %v551 = vunpack.c.l.b16 %v273
      %v552 = vunpack.c.h.b16 %v273
      %v553 = vunpack.c.l.b16 %v274
      %v554 = vunpack.c.h.b16 %v274
      %v555 = vunpack.c.l.b16 %v275
      %v556 = vunpack.c.h.b16 %v275
      %v557 = vunpack.c.l.b16 %v276
      %v558 = vunpack.c.h.b16 %v276
      %v559 = vunpack.c.l.b16 %v277
      %v560 = vunpack.c.h.b16 %v277
      %v561 = vunpack.c.l.b16 %v278
      %v562 = vunpack.c.h.b16 %v278
      %v563 = vunpack.c.l.b16 %v279
      %v564 = vunpack.c.h.b16 %v279
      %v565 = vunpack.c.l.b16 %v280
      %v566 = vunpack.c.h.b16 %v280
      %v567 = vunpack.c.l.b16 %v281
      %v568 = vunpack.c.h.b16 %v281
      %v569 = vunpack.c.l.b16 %v282
      %v570 = vunpack.c.h.b16 %v282
      %v571 = vunpack.c.l.b16 %v283
      %v572 = vunpack.c.h.b16 %v283
      %v573 = vunpack.c.l.b16 %v284
      %v574 = vunpack.c.h.b16 %v284
      %v575 = vunpack.c.l.b16 %v285
      %v576 = vunpack.c.h.b16 %v285
      %v577 = vunpack.c.l.b16 %v286
      %v578 = vunpack.c.h.b16 %v286
      %v579 = vunpack.c.l.b16 %v287
      %v580 = vunpack.c.h.b16 %v287
      %v581 = vunpack.c.l.b16 %v288
      %v582 = vunpack.c.h.b16 %v288
      %v583 = vunpack.c.l.b16 %v289
      %v584 = vunpack.c.h.b16 %v289
      %v585 = vunpack.c.l.b16 %v290
      %v586 = vunpack.c.h.b16 %v290
      %v587 = vunpack.c.l.b16 %v291
      %v588 = vunpack.c.h.b16 %v291
      %v589 = vunpack.c.l.b16 %v292
      %v590 = vunpack.c.h.b16 %v292
      %v591 = vunpack.c.l.b16 %v293
      %v592 = vunpack.c.h.b16 %v293
      %v593 = vunpack.c.l.b16 %v294
      %v594 = vunpack.c.h.b16 %v294
      %v595 = vunpack.c.l.b16 %v295
      %v596 = vunpack.c.h.b16 %v295
      %v597 = vunpack.c.l.b16 %v296
      %v598 = vunpack.c.h.b16 %v296
      %v599 = vunpack.c.l.b16 %v297
      %v600 = vunpack.c.h.b16 %v297
      %v601 = vunpack.c.l.b16 %v298
      %v602 = vunpack.c.h.b16 %v298
      %v603 = vunpack.c.l.b16 %v299
      %v604 = vunpack.c.h.b16 %v299
      %v605 = vunpack.c.l.b16 %v300
      %v606 = vunpack.c.h.b16 %v300
      %v607 = vunpack.c.l.b16 %v301
      %v608 = vunpack.c.h.b16 %v301
      %v609 = vunpack.c.l.b16 %v302
      %v610 = vunpack.c.h.b16 %v302
      %v611 = vunpack.c.l.b16 %v303
      %v612 = vunpack.c.h.b16 %v303
      %v613 = vunpack.c.l.b16 %v304
      %v614 = vunpack.c.h.b16 %v304
      %v615 = vunpack.c.l.b16 %v305
      %v616 = vunpack.c.h.b16 %v305
      %v617 = vunpack.c.l.b16 %v306
      %v618 = vunpack.c.h.b16 %v306
      %v619 = vunpack.c.l.b16 %v307
      %v620 = vunpack.c.h.b16 %v307
      %v621 = vunpack.c.l.b16 %v308
      %v622 = vunpack.c.h.b16 %v308
      %v623 = vunpack.c.l.b16 %v309
      %v624 = vunpack.c.h.b16 %v309
      %v625 = vunpack.c.l.b16 %v310
      %v626 = vunpack.c.h.b16 %v310
      %v627 = vunpack.c.l.b16 %v311
      %v628 = vunpack.c.h.b16 %v311
      %v629 = vunpack.c.l.b16 %v312
      %v630 = vunpack.c.h.b16 %v312
      %v631 = vunpack.c.l.b16 %v313
      %v632 = vunpack.c.h.b16 %v313
      %v633 = vunpack.c.l.b16 %v314
      %v634 = vunpack.c.h.b16 %v314
      %v635 = vunpack.c.l.b16 %v315
      %v636 = vunpack.c.h.b16 %v315
      %v637 = vunpack.c.l.b16 %v316
      %v638 = vunpack.c.h.b16 %v316
      %v639 = vunpack.c.l.b16 %v317
      %v640 = vunpack.c.h.b16 %v317
      %v641 = vunpack.c.l.b16 %v318
      %v642 = vunpack.c.h.b16 %v318
      %v643 = vunpack.c.l.b16 %v319
      %v644 = vunpack.c.h.b16 %v319
      %v645 = vunpack.c.l.b16 %v320
      %v646 = vunpack.c.h.b16 %v320
      %v647 = vunpack.c.l.b16 %v321
      %v648 = vunpack.c.h.b16 %v321
      %v649 = vunpack.c.l.b16 %v322
      %v650 = vunpack.c.h.b16 %v322
      %v651 = vunpack.c.l.b16 %v323
      %v652 = vunpack.c.h.b16 %v323
      %v653 = vunpack.c.l.b16 %v324
      %v654 = vunpack.c.h.b16 %v324
      %v655 = vunpack.c.l.b16 %v325
      %v656 = vunpack.c.h.b16 %v325
      %v657 = vunpack.c.l.b16 %v326
      %v658 = vunpack.c.h.b16 %v326
      %v659 = vunpack.c.l.b16 %v327
      %v660 = vunpack.c.h.b16 %v327
      %v661 = vunpack.c.l.b16 %v328
      %v662 = vunpack.c.h.b16 %v328
      %v663 = vunpack.c.l.b16 %v329
      %v664 = vunpack.c.h.b16 %v329
      %v665 = vunpack.c.l.b16 %v330
      %v666 = vunpack.c.h.b16 %v330
      %v667 = vunpack.c.l.b16 %v331
      %v668 = vunpack.c.h.b16 %v331
      %v669 = vunpack.c.l.b16 %v332
      %v670 = vunpack.c.h.b16 %v332
      %v671 = vunpack.c.l.b16 %v333
      %v672 = vunpack.c.h.b16 %v333
      %v673 = vunpack.c.l.b16 %v334
      %v674 = vunpack.c.h.b16 %v334
      %v675 = vunpack.c.l.b16 %v335
      %v676 = vunpack.c.h.b16 %v335
      %v677 = vunpack.c.l.b16 %v336
      %v678 = vunpack.c.h.b16 %v336
      %v679 = vunpack.c.l.b16 %v337
      %v680 = vunpack.c.h.b16 %v337
      %v681 = vunpack.c.l.b16 %v338
      %v682 = vunpack.c.h.b16 %v338
      %v683 = vunpack.c.l.b16 %v339
      %v684 = vunpack.c.h.b16 %v339
      %v685 = vunpack.c.l.b16 %v340
      %v686 = vunpack.c.h.b16 %v340
      %v687 = vunpack.c.l.b16 %v341
      %v688 = vunpack.c.h.b16 %v341
      %v689 = vunpack.c.l.b16 %v342
      %v690 = vunpack.c.h.b16 %v342
      %v691 = vunpack.c.l.b16 %v343
      %v692 = vunpack.c.h.b16 %v343
      %v693 = vunpack.c.l.b16 %v344
      %v694 = vunpack.c.h.b16 %v344
      %v695 = vunpack.c.l.b16 %v345
      %v696 = vunpack.c.h.b16 %v345
      %v697 = vunpack.c.l.b16 %v346
      %v698 = vunpack.c.h.b16 %v346
      %v699 = vunpack.c.l.b16 %v347
      %v700 = vunpack.c.h.b16 %v347
      %v701 = vunpack.c.l.b16 %v348
      %v702 = vunpack.c.h.b16 %v348
      %v703 = vunpack.c.l.b16 %v349
      %v704 = vunpack.c.h.b16 %v349
      %v705 = vunpack.c.l.b16 %v350
      %v706 = vunpack.c.h.b16 %v350
      %v707 = vunpack.c.l.b16 %v351
      %v708 = vunpack.c.h.b16 %v351
      %v709 = vunpack.c.l.b16 %v352
      %v710 = vunpack.c.h.b16 %v352
      %v711 = vpack.c.b16 %v531, %v519
      %v712 = vpack.c.b16 %v532, %v520
      %v713 = vpack.c.b16 %v533, %v521
      %v714 = vpack.c.b16 %v534, %v522
      %v715 = vpack.c.b16 %v535, %v523
      %v716 = vpack.c.b16 %v536, %v524
      %v717 = vpack.c.b16 %v537, %v525
      %v718 = vpack.c.b16 %v538, %v526
      %v719 = vpack.c.b16 %v539, %v527
      %v720 = vpack.c.b16 %v540, %v528
      %v721 = vpack.c.b16 %v541, %v529
      %v722 = vpack.c.b16 %v542, %v530
      %v723 = vpack.c.b16 %v555, %v543
      %v724 = vpack.c.b16 %v556, %v544
      %v725 = vpack.c.b16 %v557, %v545
      %v726 = vpack.c.b16 %v558, %v546
      %v727 = vpack.c.b16 %v559, %v547
      %v728 = vpack.c.b16 %v560, %v548
      %v729 = vpack.c.b16 %v561, %v549
      %v730 = vpack.c.b16 %v562, %v550
      %v731 = vpack.c.b16 %v563, %v551
      %v732 = vpack.c.b16 %v564, %v552
      %v733 = vpack.c.b16 %v565, %v553
      %v734 = vpack.c.b16 %v566, %v554
      %v735 = vpack.c.b16 %v579, %v567
      %v736 = vpack.c.b16 %v580, %v568
      %v737 = vpack.c.b16 %v581, %v569
      %v738 = vpack.c.b16 %v582, %v570
      %v739 = vpack.c.b16 %v583, %v571
      %v740 = vpack.c.b16 %v584, %v572
      %v741 = vpack.c.b16 %v585, %v573
      %v742 = vpack.c.b16 %v586, %v574
      %v743 = vpack.c.b16 %v587, %v575
      %v744 = vpack.c.b16 %v588, %v576
      %v745 = vpack.c.b16 %v589, %v577
      %v746 = vpack.c.b16 %v590, %v578
      %v747 = vpack.c.b16 %v603, %v591
      %v748 = vpack.c.b16 %v604, %v592
      %v749 = vpack.c.b16 %v605, %v593
      %v750 = vpack.c.b16 %v606, %v594
      %v751 = vpack.c.b16 %v607, %v595
      %v752 = vpack.c.b16 %v608, %v596
      %v753 = vpack.c.b16 %v609, %v597
      %v754 = vpack.c.b16 %v610, %v598
      %v755 = vpack.c.b16 %v611, %v599
      %v756 = vpack.c.b16 %v612, %v600
      %v757 = vpack.c.b16 %v613, %v601
      %v758 = vpack.c.b16 %v614, %v602
      %v759 = vpack.c.b16 %v627, %v615
      %v760 = vpack.c.b16 %v628, %v616
      %v761 = vpack.c.b16 %v629, %v617
      %v762 = vpack.c.b16 %v630, %v618
      %v763 = vpack.c.b16 %v631, %v619
      %v764 = vpack.c.b16 %v632, %v620
      %v765 = vpack.c.b16 %v633, %v621
      %v766 = vpack.c.b16 %v634, %v622
      %v767 = vpack.c.b16 %v635, %v623
      %v768 = vpack.c.b16 %v636, %v624
      %v769 = vpack.c.b16 %v637, %v625
      %v770 = vpack.c.b16 %v638, %v626
      %v771 = vpack.c.b16 %v651, %v639
      %v772 = vpack.c.b16 %v652, %v640
      %v773 = vpack.c.b16 %v653, %v641
      %v774 = vpack.c.b16 %v654, %v642
      %v775 = vpack.c.b16 %v655, %v643
      %v776 = vpack.c.b16 %v656, %v644
      %v777 = vpack.c.b16 %v657, %v645
      %v778 = vpack.c.b16 %v658, %v646
      %v779 = vpack.c.b16 %v659, %v647
      %v780 = vpack.c.b16 %v660, %v648
      %v781 = vpack.c.b16 %v661, %v649
      %v782 = vpack.c.b16 %v662, %v650
      %v783 = vpack.c.b16 %v675, %v663
      %v784 = vpack.c.b16 %v676, %v664
      %v785 = vpack.c.b16 %v677, %v665
      %v786 = vpack.c.b16 %v678, %v666
      %v787 = vpack.c.b16 %v679, %v667
      %v788 = vpack.c.b16 %v680, %v668
      %v789 = vpack.c.b16 %v681, %v669
      %v790 = vpack.c.b16 %v682, %v670
      %v791 = vpack.c.b16 %v683, %v671
      %v792 = vpack.c.b16 %v684, %v672
      %v793 = vpack.c.b16 %v685, %v673
      %v794 = vpack.c.b16 %v686, %v674
      %v795 = vpack.c.b16 %v699, %v687
      %v796 = vpack.c.b16 %v700, %v688
      %v797 = vpack.c.b16 %v701, %v689
      %v798 = vpack.c.b16 %v702, %v690
      %v799 = vpack.c.b16 %v703, %v691
      %v800 = vpack.c.b16 %v704, %v692
      %v801 = vpack.c.b16 %v705, %v693
      %v802 = vpack.c.b16 %v706, %v694
      %v803 = vpack.c.b16 %v707, %v695
      %v804 = vpack.c.b16 %v708, %v696
      %v805 = vpack.c.b16 %v709, %v697
      %v806 = vpack.c.b16 %v710, %v698
      %903 = vmatprep.subr.bf16.mxu0 %v712
      %904 = vmatpush1.bf16.msra.mxu0 %v711
      %905 = vmatprep.subr.bf16.mxu0 %v724
      %906 = vmatpush1.bf16.msra.mxu0 %v723
      %907 = vmatprep.subr.bf16.mxu0 %v736
      %908 = vmatpush1.bf16.msra.mxu0 %v735
      %909 = vmatprep.subr.bf16.mxu0 %v748
      %910 = vmatpush1.bf16.msra.mxu0 %v747
      %911 = vmatprep.subr.bf16.mxu0 %v760
      %912 = vmatpush1.bf16.msra.mxu0 %v759
      %913 = vmatprep.subr.bf16.mxu0 %v772
      %914 = vmatpush1.bf16.msra.mxu0 %v771
      %915 = vmatprep.subr.bf16.mxu0 %v784
      %916 = vmatpush1.bf16.msra.mxu0 %v783
      %917 = vmatprep.subr.bf16.mxu0 %v796
      %918 = vmatpush1.bf16.msra.mxu0 %v795
      %919 = vmatprep.subr.bf16.mxu0 0
      %920 = vmatpush1.bf16.msra.mxu0 0
      %921 = vmatprep.subr.bf16.mxu0 0
      %922 = vmatpush1.bf16.msra.mxu0 0
      %923 = vmatprep.subr.bf16.mxu0 0
      %924 = vmatpush1.bf16.msra.mxu0 0
      %925 = vmatprep.subr.bf16.mxu0 0
      %926 = vmatpush1.bf16.msra.mxu0 0
      %927 = vmatprep.subr.bf16.mxu0 0
      %928 = vmatpush1.bf16.msra.mxu0 0
      %929 = vmatprep.subr.bf16.mxu0 0
      %930 = vmatpush1.bf16.msra.mxu0 0
      %931 = vmatprep.subr.bf16.mxu0 0
      %932 = vmatpush1.bf16.msra.mxu0 0
      %933 = vmatprep.subr.bf16.mxu0 0
      %934 = vmatpush1.bf16.msra.mxu0 0
      %935 = vmatprep.mubr.bf16.mxu0 0
      %936 = vmatmul.mubr.bf16.gmra.mrb[0].mxu0 %v421
      %v937 = vpop.f32.mrb[0].mxu0
      %v938 = vadd.f32 %v360, %v937
      %v939 = vpop.f32.mrb[0].mxu0
      %v940 = vadd.f32 %v364, %v939
      %v941 = vpop.f32.mrb[0].mxu0
      %v942 = vadd.f32 %v360, %v941
      %v943 = vpop.f32.mrb[0].mxu0
      %v944 = vadd.f32 %v364, %v943
      %945 = vdwg.mxu0
      %946 = vmatprep.subr.bf16.mxu0 %v714
      %947 = vmatpush1.bf16.msra.mxu0 %v713
      %948 = vmatprep.subr.bf16.mxu0 %v726
      %949 = vmatpush1.bf16.msra.mxu0 %v725
      %950 = vmatprep.subr.bf16.mxu0 %v738
      %951 = vmatpush1.bf16.msra.mxu0 %v737
      %952 = vmatprep.subr.bf16.mxu0 %v750
      %953 = vmatpush1.bf16.msra.mxu0 %v749
      %954 = vmatprep.subr.bf16.mxu0 %v762
      %955 = vmatpush1.bf16.msra.mxu0 %v761
      %956 = vmatprep.subr.bf16.mxu0 %v774
      %957 = vmatpush1.bf16.msra.mxu0 %v773
      %958 = vmatprep.subr.bf16.mxu0 %v786
      %959 = vmatpush1.bf16.msra.mxu0 %v785
      %960 = vmatprep.subr.bf16.mxu0 %v798
      %961 = vmatpush1.bf16.msra.mxu0 %v797
      %962 = vmatprep.subr.bf16.mxu0 0
      %963 = vmatpush1.bf16.msra.mxu0 0
      %964 = vmatprep.subr.bf16.mxu0 0
      %965 = vmatpush1.bf16.msra.mxu0 0
      %966 = vmatprep.subr.bf16.mxu0 0
      %967 = vmatpush1.bf16.msra.mxu0 0
      %968 = vmatprep.subr.bf16.mxu0 0
      %969 = vmatpush1.bf16.msra.mxu0 0
      %970 = vmatprep.subr.bf16.mxu0 0
      %971 = vmatpush1.bf16.msra.mxu0 0
      %972 = vmatprep.subr.bf16.mxu0 0
      %973 = vmatpush1.bf16.msra.mxu0 0
      %974 = vmatprep.subr.bf16.mxu0 0
      %975 = vmatpush1.bf16.msra.mxu0 0
      %976 = vmatprep.subr.bf16.mxu0 0
      %977 = vmatpush1.bf16.msra.mxu0 0
      %978 = vmatprep.mubr.bf16.mxu0 0
      %979 = vmatmul.mubr.bf16.gmra.mrb[0].mxu0 %v421
      %v980 = vpop.f32.mrb[0].mxu0
      %v981 = vadd.f32 %v368, %v980
      %v982 = vpop.f32.mrb[0].mxu0
      %v983 = vadd.f32 %v372, %v982
      %v984 = vpop.f32.mrb[0].mxu0
      %v985 = vadd.f32 %v368, %v984
      %v986 = vpop.f32.mrb[0].mxu0
      %v987 = vadd.f32 %v372, %v986
      %988 = vdwg.mxu0
      %989 = vmatprep.subr.bf16.mxu0 %v716
      %990 = vmatpush1.bf16.msra.mxu0 %v715
      %991 = vmatprep.subr.bf16.mxu0 %v728
      %992 = vmatpush1.bf16.msra.mxu0 %v727
      %993 = vmatprep.subr.bf16.mxu0 %v740
      %994 = vmatpush1.bf16.msra.mxu0 %v739
      %995 = vmatprep.subr.bf16.mxu0 %v752
      %996 = vmatpush1.bf16.msra.mxu0 %v751
      %997 = vmatprep.subr.bf16.mxu0 %v764
      %998 = vmatpush1.bf16.msra.mxu0 %v763
      %999 = vmatprep.subr.bf16.mxu0 %v776
      %1000 = vmatpush1.bf16.msra.mxu0 %v775
      %1001 = vmatprep.subr.bf16.mxu0 %v788
      %1002 = vmatpush1.bf16.msra.mxu0 %v787
      %1003 = vmatprep.subr.bf16.mxu0 %v800
      %1004 = vmatpush1.bf16.msra.mxu0 %v799
      %1005 = vmatprep.subr.bf16.mxu0 0
      %1006 = vmatpush1.bf16.msra.mxu0 0
      %1007 = vmatprep.subr.bf16.mxu0 0
      %1008 = vmatpush1.bf16.msra.mxu0 0
      %1009 = vmatprep.subr.bf16.mxu0 0
      %1010 = vmatpush1.bf16.msra.mxu0 0
      %1011 = vmatprep.subr.bf16.mxu0 0
      %1012 = vmatpush1.bf16.msra.mxu0 0
      %1013 = vmatprep.subr.bf16.mxu0 0
      %1014 = vmatpush1.bf16.msra.mxu0 0
      %1015 = vmatprep.subr.bf16.mxu0 0
      %1016 = vmatpush1.bf16.msra.mxu0 0
      %1017 = vmatprep.subr.bf16.mxu0 0
      %1018 = vmatpush1.bf16.msra.mxu0 0
      %1019 = vmatprep.subr.bf16.mxu0 0
      %1020 = vmatpush1.bf16.msra.mxu0 0
      %1021 = vmatprep.mubr.bf16.mxu0 0
      %1022 = vmatmul.mubr.bf16.gmra.mrb[0].mxu0 %v421
      %v1023 = vpop.f32.mrb[0].mxu0
      %v1024 = vadd.f32 %v376, %v1023
      %v1025 = vpop.f32.mrb[0].mxu0
      %v1026 = vadd.f32 %v380, %v1025
      %v1027 = vpop.f32.mrb[0].mxu0
      %v1028 = vadd.f32 %v376, %v1027
      %v1029 = vpop.f32.mrb[0].mxu0
      %v1030 = vadd.f32 %v380, %v1029
      %1031 = vdwg.mxu0
      %1032 = vmatprep.subr.bf16.mxu0 %v718
      %1033 = vmatpush1.bf16.msra.mxu0 %v717
      %1034 = vmatprep.subr.bf16.mxu0 %v730
      %1035 = vmatpush1.bf16.msra.mxu0 %v729
      %1036 = vmatprep.subr.bf16.mxu0 %v742
      %1037 = vmatpush1.bf16.msra.mxu0 %v741
      %1038 = vmatprep.subr.bf16.mxu0 %v754
      %1039 = vmatpush1.bf16.msra.mxu0 %v753
      %1040 = vmatprep.subr.bf16.mxu0 %v766
      %1041 = vmatpush1.bf16.msra.mxu0 %v765
      %1042 = vmatprep.subr.bf16.mxu0 %v778
      %1043 = vmatpush1.bf16.msra.mxu0 %v777
      %1044 = vmatprep.subr.bf16.mxu0 %v790
      %1045 = vmatpush1.bf16.msra.mxu0 %v789
      %1046 = vmatprep.subr.bf16.mxu0 %v802
      %1047 = vmatpush1.bf16.msra.mxu0 %v801
      %1048 = vmatprep.subr.bf16.mxu0 0
      %1049 = vmatpush1.bf16.msra.mxu0 0
      %1050 = vmatprep.subr.bf16.mxu0 0
      %1051 = vmatpush1.bf16.msra.mxu0 0
      %1052 = vmatprep.subr.bf16.mxu0 0
      %1053 = vmatpush1.bf16.msra.mxu0 0
      %1054 = vmatprep.subr.bf16.mxu0 0
      %1055 = vmatpush1.bf16.msra.mxu0 0
      %1056 = vmatprep.subr.bf16.mxu0 0
      %1057 = vmatpush1.bf16.msra.mxu0 0
      %1058 = vmatprep.subr.bf16.mxu0 0
      %1059 = vmatpush1.bf16.msra.mxu0 0
      %1060 = vmatprep.subr.bf16.mxu0 0
      %1061 = vmatpush1.bf16.msra.mxu0 0
      %1062 = vmatprep.subr.bf16.mxu0 0
      %1063 = vmatpush1.bf16.msra.mxu0 0
      %1064 = vmatprep.mubr.bf16.mxu0 0
      %1065 = vmatmul.mubr.bf16.gmra.mrb[0].mxu0 %v421
      %v1066 = vpop.f32.mrb[0].mxu0
      %v1067 = vadd.f32 %v384, %v1066
      %v1068 = vpop.f32.mrb[0].mxu0
      %v1069 = vadd.f32 %v388, %v1068
      %v1070 = vpop.f32.mrb[0].mxu0
      %v1071 = vadd.f32 %v384, %v1070
      %v1072 = vpop.f32.mrb[0].mxu0
      %v1073 = vadd.f32 %v388, %v1072
      %1074 = vdwg.mxu0
      %1075 = vmatprep.subr.bf16.mxu0 %v720
      %1076 = vmatpush1.bf16.msra.mxu0 %v719
      %1077 = vmatprep.subr.bf16.mxu0 %v732
      %1078 = vmatpush1.bf16.msra.mxu0 %v731
      %1079 = vmatprep.subr.bf16.mxu0 %v744
      %1080 = vmatpush1.bf16.msra.mxu0 %v743
      %1081 = vmatprep.subr.bf16.mxu0 %v756
      %1082 = vmatpush1.bf16.msra.mxu0 %v755
      %1083 = vmatprep.subr.bf16.mxu0 %v768
      %1084 = vmatpush1.bf16.msra.mxu0 %v767
      %1085 = vmatprep.subr.bf16.mxu0 %v780
      %1086 = vmatpush1.bf16.msra.mxu0 %v779
      %1087 = vmatprep.subr.bf16.mxu0 %v792
      %1088 = vmatpush1.bf16.msra.mxu0 %v791
      %1089 = vmatprep.subr.bf16.mxu0 %v804
      %1090 = vmatpush1.bf16.msra.mxu0 %v803
      %1091 = vmatprep.subr.bf16.mxu0 0
      %1092 = vmatpush1.bf16.msra.mxu0 0
      %1093 = vmatprep.subr.bf16.mxu0 0
      %1094 = vmatpush1.bf16.msra.mxu0 0
      %1095 = vmatprep.subr.bf16.mxu0 0
      %1096 = vmatpush1.bf16.msra.mxu0 0
      %1097 = vmatprep.subr.bf16.mxu0 0
      %1098 = vmatpush1.bf16.msra.mxu0 0
      %1099 = vmatprep.subr.bf16.mxu0 0
      %1100 = vmatpush1.bf16.msra.mxu0 0
      %1101 = vmatprep.subr.bf16.mxu0 0
      %1102 = vmatpush1.bf16.msra.mxu0 0
      %1103 = vmatprep.subr.bf16.mxu0 0
      %1104 = vmatpush1.bf16.msra.mxu0 0
      %1105 = vmatprep.subr.bf16.mxu0 0
      %1106 = vmatpush1.bf16.msra.mxu0 0
      %1107 = vmatprep.mubr.bf16.mxu0 0
      %1108 = vmatmul.mubr.bf16.gmra.mrb[0].mxu0 %v421
      %v1109 = vpop.f32.mrb[0].mxu0
      %v1110 = vadd.f32 %v392, %v1109
      %v1111 = vpop.f32.mrb[0].mxu0
      %v1112 = vadd.f32 %v396, %v1111
      %v1113 = vpop.f32.mrb[0].mxu0
      %v1114 = vadd.f32 %v392, %v1113
      %v1115 = vpop.f32.mrb[0].mxu0
      %v1116 = vadd.f32 %v396, %v1115
      %1117 = vdwg.mxu0
      %1118 = vmatprep.subr.bf16.mxu0 %v722
      %1119 = vmatpush1.bf16.msra.mxu0 %v721
      %1120 = vmatprep.subr.bf16.mxu0 %v734
      %1121 = vmatpush1.bf16.msra.mxu0 %v733
      %1122 = vmatprep.subr.bf16.mxu0 %v746
      %1123 = vmatpush1.bf16.msra.mxu0 %v745
      %1124 = vmatprep.subr.bf16.mxu0 %v758
      %1125 = vmatpush1.bf16.msra.mxu0 %v757
      %1126 = vmatprep.subr.bf16.mxu0 %v770
      %1127 = vmatpush1.bf16.msra.mxu0 %v769
      %1128 = vmatprep.subr.bf16.mxu0 %v782
      %1129 = vmatpush1.bf16.msra.mxu0 %v781
      %1130 = vmatprep.subr.bf16.mxu0 %v794
      %1131 = vmatpush1.bf16.msra.mxu0 %v793
      %1132 = vmatprep.subr.bf16.mxu0 %v806
      %1133 = vmatpush1.bf16.msra.mxu0 %v805
      %1134 = vmatprep.subr.bf16.mxu0 0
      %1135 = vmatpush1.bf16.msra.mxu0 0
      %1136 = vmatprep.subr.bf16.mxu0 0
      %1137 = vmatpush1.bf16.msra.mxu0 0
      %1138 = vmatprep.subr.bf16.mxu0 0
      %1139 = vmatpush1.bf16.msra.mxu0 0
      %1140 = vmatprep.subr.bf16.mxu0 0
      %1141 = vmatpush1.bf16.msra.mxu0 0
      %1142 = vmatprep.subr.bf16.mxu0 0
      %1143 = vmatpush1.bf16.msra.mxu0 0
      %1144 = vmatprep.subr.bf16.mxu0 0
      %1145 = vmatpush1.bf16.msra.mxu0 0
      %1146 = vmatprep.subr.bf16.mxu0 0
      %1147 = vmatpush1.bf16.msra.mxu0 0
      %1148 = vmatprep.subr.bf16.mxu0 0
      %1149 = vmatpush1.bf16.msra.mxu0 0
      %1150 = vmatprep.mubr.bf16.mxu0 0
      %1151 = vmatmul.mubr.bf16.gmra.mrb[0].mxu0 %v421
      %v1152 = vpop.f32.mrb[0].mxu0
      %v1153 = vadd.f32 %v400, %v1152
      %v1154 = vpop.f32.mrb[0].mxu0
      %v1155 = vadd.f32 %v404, %v1154
      %v1156 = vpop.f32.mrb[0].mxu0
      %v1157 = vadd.f32 %v400, %v1156
      %v1158 = vpop.f32.mrb[0].mxu0
      %v1159 = vadd.f32 %v404, %v1158
      %1160 = vdwg.mxu0
      %v1161 = vpack.c.bf16 %v942, %v938
      %v1162 = vpack.c.bf16 %v944, %v940
      %v1163 = vpack.c.bf16 %v985, %v981
      %v1164 = vpack.c.bf16 %v987, %v983
      %v1165 = vpack.c.bf16 %v1028, %v1024
      %v1166 = vpack.c.bf16 %v1030, %v1026
      %v1167 = vpack.c.bf16 %v1071, %v1067
      %v1168 = vpack.c.bf16 %v1073, %v1069
      %v1169 = vpack.c.bf16 %v1114, %v1110
      %v1170 = vpack.c.bf16 %v1116, %v1112
      %v1171 = vpack.c.bf16 %v1157, %v1153
      %v1172 = vpack.c.bf16 %v1159, %v1155
      %1173 = vmatprep.subr.bf16.mxu0 0
      %1174 = vmatpush1.bf16.xpose.msra.mxu0 %v1165
      %1175 = vmatprep.subr.bf16.mxu0 0
      %1176 = vmatpush1.bf16.xpose.msra.mxu0 0
      %1177 = vmatprep.subr.bf16.mxu0 0
      %1178 = vmatpush1.bf16.xpose.msra.mxu0 0
      %1179 = vmatprep.subr.bf16.mxu0 0
      %1180 = vmatpush1.bf16.xpose.msra.mxu0 0
      %1181 = vmatprep.subr.bf16.mxu0 0
      %1182 = vmatpush1.bf16.xpose.msra.mxu0 0
      %1183 = vmatprep.subr.bf16.mxu0 0
      %1184 = vmatpush1.bf16.xpose.msra.mxu0 0
      %1185 = vmatprep.subr.bf16.mxu0 0
      %1186 = vmatpush1.bf16.xpose.msra.mxu0 0
      %1187 = vmatprep.subr.bf16.mxu0 0
      %1188 = vmatpush1.bf16.xpose.msra.mxu0 0
      %1189 = vmatprep.subr.bf16.mxu0 0
      %1190 = vmatpush1.bf16.xpose.msra.mxu0 0
      %1191 = vmatprep.subr.bf16.mxu0 0
      %1192 = vmatpush1.bf16.xpose.msra.mxu0 0
      %1193 = vmatprep.subr.bf16.mxu0 0
      %1194 = vmatpush1.bf16.xpose.msra.mxu0 0
      %1195 = vmatprep.subr.bf16.mxu0 0
      %1196 = vmatpush1.bf16.xpose.msra.mxu0 0
      %1197 = vmatprep.subr.bf16.mxu0 0
      %1198 = vmatpush1.bf16.xpose.msra.mxu0 0
      %1199 = vmatprep.subr.bf16.mxu0 0
      %1200 = vmatpush1.bf16.xpose.msra.mxu0 0
      %1201 = vmatprep.subr.bf16.mxu0 0
      %1202 = vmatpush1.bf16.xpose.msra.mxu0 0
      %1203 = vmatprep.subr.bf16.mxu0 0
      %1204 = vmatpush1.bf16.xpose.msra.mxu0 0
      %1205 = vmatprep.mubr.bf16.mxu0 0
      %1206 = vmatmul.mubr.bf16.gmra.mrb[0].mxu0 %v1161
      %v1207 = vpop.f32.mrb[0].mxu0
      %v1208 = vadd.f32 0.0, %v1207
      %v1209 = vpop.f32.mrb[0].mxu0
      %v1210 = vpop.f32.mrb[0].mxu0
      %v1211 = vadd.f32 0.0, %v1210
      %v1212 = vpop.f32.mrb[0].mxu0
      %1213 = vdwg.mxu0
      %v1214 = vmul.f32 %v1208, 0.17677669
      %v1215 = vmul.f32 %v1211, 0.17677669
      %vm1216 = vcmask 130048
      %v1217 = vsel %vm1216, %v1214, -inf
      %1218 = vmax.xlane.f32.xlu0 %v1217
      %v1219 = vpop.xlane.xlu0 %1218
      %v1220 = vsel %vm1216, %v1215, -inf
      %1221 = vmax.xlane.f32.xlu0 %v1220
      %v1222 = vpop.xlane.xlu0 %1221
      %v1223 = vsub.f32 %v1214, %v1219
      %v1224 = vsub.f32 %v1215, %v1222
      %v1225 = vmul.f32 %v1223, 1.442695
      %v1226 = vpow.pop %v1225
      %v1227 = vmul.f32 %v1224, 1.442695
      %v1228 = vpow.pop %v1227
      %v1229 = vsel %vm1216, %v1226, 0.0
      %1230 = vadd.xlane.f32.xlu0 %v1229
      %v1231 = vpop.xlane.xlu0 %1230
      %v1232 = vsel %vm1216, %v1228, 0.0
      %1233 = vadd.xlane.f32.xlu0 %v1232
      %v1234 = vpop.xlane.xlu0 %1233
      %v1235 = vrcp.pop %v1231
      %v1236 = vmul.f32 %v1226, %v1235
      %v1237 = vrcp.pop %v1234
      %v1238 = vmul.f32 %v1228, %v1237
      %v1239 = vpack.c.bf16 %v1238, %v1236
      %v1241 = vsel %vm1216, %v1239, 0
      %1243 = vmatprep.subr.bf16.mxu0 0
      %1244 = vmatpush1.bf16.msra.mxu0 %v1169
      %1245 = vmatprep.subr.bf16.mxu0 0
      %1246 = vmatpush1.bf16.msra.mxu0 0
      %1247 = vmatprep.subr.bf16.mxu0 0
      %1248 = vmatpush1.bf16.msra.mxu0 0
      %1249 = vmatprep.subr.bf16.mxu0 0
      %1250 = vmatpush1.bf16.msra.mxu0 0
      %1251 = vmatprep.subr.bf16.mxu0 0
      %1252 = vmatpush1.bf16.msra.mxu0 0
      %1253 = vmatprep.subr.bf16.mxu0 0
      %1254 = vmatpush1.bf16.msra.mxu0 0
      %1255 = vmatprep.subr.bf16.mxu0 0
      %1256 = vmatpush1.bf16.msra.mxu0 0
      %1257 = vmatprep.subr.bf16.mxu0 0
      %1258 = vmatpush1.bf16.msra.mxu0 0
      %1259 = vmatprep.subr.bf16.mxu0 0
      %1260 = vmatpush1.bf16.msra.mxu0 0
      %1261 = vmatprep.subr.bf16.mxu0 0
      %1262 = vmatpush1.bf16.msra.mxu0 0
      %1263 = vmatprep.subr.bf16.mxu0 0
      %1264 = vmatpush1.bf16.msra.mxu0 0
      %1265 = vmatprep.subr.bf16.mxu0 0
      %1266 = vmatpush1.bf16.msra.mxu0 0
      %1267 = vmatprep.subr.bf16.mxu0 0
      %1268 = vmatpush1.bf16.msra.mxu0 0
      %1269 = vmatprep.subr.bf16.mxu0 0
      %1270 = vmatpush1.bf16.msra.mxu0 0
      %1271 = vmatprep.subr.bf16.mxu0 0
      %1272 = vmatpush1.bf16.msra.mxu0 0
      %1273 = vmatprep.subr.bf16.mxu0 0
      %1274 = vmatpush1.bf16.msra.mxu0 0
      %1275 = vmatprep.mubr.bf16.mxu0 0
      %1276 = vmatmul.mubr.bf16.gmra.mrb[0].mxu0 %v1241
      %v1277 = vpop.f32.mrb[0].mxu0
      %v1278 = vadd.f32 0.0, %v1277
      %v1279 = vpop.f32.mrb[0].mxu0
      %v1280 = vpop.f32.mrb[0].mxu0
      %v1281 = vadd.f32 0.0, %v1280
      %v1282 = vpop.f32.mrb[0].mxu0
      %1283 = vdwg.mxu0
      %v1284 = vpack.c.bf16 %v1281, %v1278
      %1285 = vmatprep.subr.bf16.mxu0 0
      %1286 = vmatpush1.bf16.xpose.msra.mxu0 %v1166
      %1287 = vmatprep.subr.bf16.mxu0 0
      %1288 = vmatpush1.bf16.xpose.msra.mxu0 0
      %1289 = vmatprep.subr.bf16.mxu0 0
      %1290 = vmatpush1.bf16.xpose.msra.mxu0 0
      %1291 = vmatprep.subr.bf16.mxu0 0
      %1292 = vmatpush1.bf16.xpose.msra.mxu0 0
      %1293 = vmatprep.subr.bf16.mxu0 0
      %1294 = vmatpush1.bf16.xpose.msra.mxu0 0
      %1295 = vmatprep.subr.bf16.mxu0 0
      %1296 = vmatpush1.bf16.xpose.msra.mxu0 0
      %1297 = vmatprep.subr.bf16.mxu0 0
      %1298 = vmatpush1.bf16.xpose.msra.mxu0 0
      %1299 = vmatprep.subr.bf16.mxu0 0
      %1300 = vmatpush1.bf16.xpose.msra.mxu0 0
      %1301 = vmatprep.subr.bf16.mxu0 0
      %1302 = vmatpush1.bf16.xpose.msra.mxu0 0
      %1303 = vmatprep.subr.bf16.mxu0 0
      %1304 = vmatpush1.bf16.xpose.msra.mxu0 0
      %1305 = vmatprep.subr.bf16.mxu0 0
      %1306 = vmatpush1.bf16.xpose.msra.mxu0 0
      %1307 = vmatprep.subr.bf16.mxu0 0
      %1308 = vmatpush1.bf16.xpose.msra.mxu0 0
      %1309 = vmatprep.subr.bf16.mxu0 0
      %1310 = vmatpush1.bf16.xpose.msra.mxu0 0
      %1311 = vmatprep.subr.bf16.mxu0 0
      %1312 = vmatpush1.bf16.xpose.msra.mxu0 0
      %1313 = vmatprep.subr.bf16.mxu0 0
      %1314 = vmatpush1.bf16.xpose.msra.mxu0 0
      %1315 = vmatprep.subr.bf16.mxu0 0
      %1316 = vmatpush1.bf16.xpose.msra.mxu0 0
      %1317 = vmatprep.mubr.bf16.mxu0 0
      %1318 = vmatmul.mubr.bf16.gmra.mrb[0].mxu0 %v1162
      %v1319 = vpop.f32.mrb[0].mxu0
      %v1320 = vadd.f32 0.0, %v1319
      %v1321 = vpop.f32.mrb[0].mxu0
      %v1322 = vpop.f32.mrb[0].mxu0
      %v1323 = vadd.f32 0.0, %v1322
      %v1324 = vpop.f32.mrb[0].mxu0
      %1325 = vdwg.mxu0
      %v1326 = vmul.f32 %v1320, 0.17677669
      %v1327 = vmul.f32 %v1323, 0.17677669
      %v1328 = vsel %vm1216, %v1326, -inf
      %1329 = vmax.xlane.f32.xlu0 %v1328
      %v1330 = vpop.xlane.xlu0 %1329
      %v1331 = vsel %vm1216, %v1327, -inf
      %1332 = vmax.xlane.f32.xlu0 %v1331
      %v1333 = vpop.xlane.xlu0 %1332
      %v1334 = vsub.f32 %v1326, %v1330
      %v1335 = vsub.f32 %v1327, %v1333
      %v1336 = vmul.f32 %v1334, 1.442695
      %v1337 = vpow.pop %v1336
      %v1338 = vmul.f32 %v1335, 1.442695
      %v1339 = vpow.pop %v1338
      %v1340 = vsel %vm1216, %v1337, 0.0
      %1341 = vadd.xlane.f32.xlu0 %v1340
      %v1342 = vpop.xlane.xlu0 %1341
      %v1343 = vsel %vm1216, %v1339, 0.0
      %1344 = vadd.xlane.f32.xlu0 %v1343
      %v1345 = vpop.xlane.xlu0 %1344
      %v1346 = vrcp.pop %v1342
      %v1347 = vmul.f32 %v1337, %v1346
      %v1348 = vrcp.pop %v1345
      %v1349 = vmul.f32 %v1339, %v1348
      %v1350 = vpack.c.bf16 %v1349, %v1347
      %v1352 = vsel %vm1216, %v1350, 0
      %1354 = vmatprep.subr.bf16.mxu0 0
      %1355 = vmatpush1.bf16.msra.mxu0 %v1170
      %1356 = vmatprep.subr.bf16.mxu0 0
      %1357 = vmatpush1.bf16.msra.mxu0 0
      %1358 = vmatprep.subr.bf16.mxu0 0
      %1359 = vmatpush1.bf16.msra.mxu0 0
      %1360 = vmatprep.subr.bf16.mxu0 0
      %1361 = vmatpush1.bf16.msra.mxu0 0
      %1362 = vmatprep.subr.bf16.mxu0 0
      %1363 = vmatpush1.bf16.msra.mxu0 0
      %1364 = vmatprep.subr.bf16.mxu0 0
      %1365 = vmatpush1.bf16.msra.mxu0 0
      %1366 = vmatprep.subr.bf16.mxu0 0
      %1367 = vmatpush1.bf16.msra.mxu0 0
      %1368 = vmatprep.subr.bf16.mxu0 0
      %1369 = vmatpush1.bf16.msra.mxu0 0
      %1370 = vmatprep.subr.bf16.mxu0 0
      %1371 = vmatpush1.bf16.msra.mxu0 0
      %1372 = vmatprep.subr.bf16.mxu0 0
      %1373 = vmatpush1.bf16.msra.mxu0 0
      %1374 = vmatprep.subr.bf16.mxu0 0
      %1375 = vmatpush1.bf16.msra.mxu0 0
      %1376 = vmatprep.subr.bf16.mxu0 0
      %1377 = vmatpush1.bf16.msra.mxu0 0
      %1378 = vmatprep.subr.bf16.mxu0 0
      %1379 = vmatpush1.bf16.msra.mxu0 0
      %1380 = vmatprep.subr.bf16.mxu0 0
      %1381 = vmatpush1.bf16.msra.mxu0 0
      %1382 = vmatprep.subr.bf16.mxu0 0
      %1383 = vmatpush1.bf16.msra.mxu0 0
      %1384 = vmatprep.subr.bf16.mxu0 0
      %1385 = vmatpush1.bf16.msra.mxu0 0
      %1386 = vmatprep.mubr.bf16.mxu0 0
      %1387 = vmatmul.mubr.bf16.gmra.mrb[0].mxu0 %v1352
      %v1388 = vpop.f32.mrb[0].mxu0
      %v1389 = vadd.f32 0.0, %v1388
      %v1390 = vpop.f32.mrb[0].mxu0
      %v1391 = vpop.f32.mrb[0].mxu0
      %v1392 = vadd.f32 0.0, %v1391
      %v1393 = vpop.f32.mrb[0].mxu0
      %1394 = vdwg.mxu0
      %v1395 = vpack.c.bf16 %v1392, %v1389
      %1396 = vmatprep.subr.bf16.mxu0 0
      %1397 = vmatpush1.bf16.xpose.msra.mxu0 %v1167
      %1398 = vmatprep.subr.bf16.mxu0 0
      %1399 = vmatpush1.bf16.xpose.msra.mxu0 0
      %1400 = vmatprep.subr.bf16.mxu0 0
      %1401 = vmatpush1.bf16.xpose.msra.mxu0 0
      %1402 = vmatprep.subr.bf16.mxu0 0
      %1403 = vmatpush1.bf16.xpose.msra.mxu0 0
      %1404 = vmatprep.subr.bf16.mxu0 0
      %1405 = vmatpush1.bf16.xpose.msra.mxu0 0
      %1406 = vmatprep.subr.bf16.mxu0 0
      %1407 = vmatpush1.bf16.xpose.msra.mxu0 0
      %1408 = vmatprep.subr.bf16.mxu0 0
      %1409 = vmatpush1.bf16.xpose.msra.mxu0 0
      %1410 = vmatprep.subr.bf16.mxu0 0
      %1411 = vmatpush1.bf16.xpose.msra.mxu0 0
      %1412 = vmatprep.subr.bf16.mxu0 0
      %1413 = vmatpush1.bf16.xpose.msra.mxu0 0
      %1414 = vmatprep.subr.bf16.mxu0 0
      %1415 = vmatpush1.bf16.xpose.msra.mxu0 0
      %1416 = vmatprep.subr.bf16.mxu0 0
      %1417 = vmatpush1.bf16.xpose.msra.mxu0 0
      %1418 = vmatprep.subr.bf16.mxu0 0
      %1419 = vmatpush1.bf16.xpose.msra.mxu0 0
      %1420 = vmatprep.subr.bf16.mxu0 0
      %1421 = vmatpush1.bf16.xpose.msra.mxu0 0
      %1422 = vmatprep.subr.bf16.mxu0 0
      %1423 = vmatpush1.bf16.xpose.msra.mxu0 0
      %1424 = vmatprep.subr.bf16.mxu0 0
      %1425 = vmatpush1.bf16.xpose.msra.mxu0 0
      %1426 = vmatprep.subr.bf16.mxu0 0
      %1427 = vmatpush1.bf16.xpose.msra.mxu0 0
      %1428 = vmatprep.mubr.bf16.mxu0 0
      %1429 = vmatmul.mubr.bf16.gmra.mrb[0].mxu0 %v1163
      %v1430 = vpop.f32.mrb[0].mxu0
      %v1431 = vadd.f32 0.0, %v1430
      %v1432 = vpop.f32.mrb[0].mxu0
      %v1433 = vpop.f32.mrb[0].mxu0
      %v1434 = vadd.f32 0.0, %v1433
      %v1435 = vpop.f32.mrb[0].mxu0
      %1436 = vdwg.mxu0
      %v1437 = vmul.f32 %v1431, 0.17677669
      %v1438 = vmul.f32 %v1434, 0.17677669
      %v1439 = vsel %vm1216, %v1437, -inf
      %1440 = vmax.xlane.f32.xlu0 %v1439
      %v1441 = vpop.xlane.xlu0 %1440
      %v1442 = vsel %vm1216, %v1438, -inf
      %1443 = vmax.xlane.f32.xlu0 %v1442
      %v1444 = vpop.xlane.xlu0 %1443
      %v1445 = vsub.f32 %v1437, %v1441
      %v1446 = vsub.f32 %v1438, %v1444
      %v1447 = vmul.f32 %v1445, 1.442695
      %v1448 = vpow.pop %v1447
      %v1449 = vmul.f32 %v1446, 1.442695
      %v1450 = vpow.pop %v1449
      %v1451 = vsel %vm1216, %v1448, 0.0
      %1452 = vadd.xlane.f32.xlu0 %v1451
      %v1453 = vpop.xlane.xlu0 %1452
      %v1454 = vsel %vm1216, %v1450, 0.0
      %1455 = vadd.xlane.f32.xlu0 %v1454
      %v1456 = vpop.xlane.xlu0 %1455
      %v1457 = vrcp.pop %v1453
      %v1458 = vmul.f32 %v1448, %v1457
      %v1459 = vrcp.pop %v1456
      %v1460 = vmul.f32 %v1450, %v1459
      %v1461 = vpack.c.bf16 %v1460, %v1458
      %v1463 = vsel %vm1216, %v1461, 0
      %1465 = vmatprep.subr.bf16.mxu0 0
      %1466 = vmatpush1.bf16.msra.mxu0 %v1171
      %1467 = vmatprep.subr.bf16.mxu0 0
      %1468 = vmatpush1.bf16.msra.mxu0 0
      %1469 = vmatprep.subr.bf16.mxu0 0
      %1470 = vmatpush1.bf16.msra.mxu0 0
      %1471 = vmatprep.subr.bf16.mxu0 0
      %1472 = vmatpush1.bf16.msra.mxu0 0
      %1473 = vmatprep.subr.bf16.mxu0 0
      %1474 = vmatpush1.bf16.msra.mxu0 0
      %1475 = vmatprep.subr.bf16.mxu0 0
      %1476 = vmatpush1.bf16.msra.mxu0 0
      %1477 = vmatprep.subr.bf16.mxu0 0
      %1478 = vmatpush1.bf16.msra.mxu0 0
      %1479 = vmatprep.subr.bf16.mxu0 0
      %1480 = vmatpush1.bf16.msra.mxu0 0
      %1481 = vmatprep.subr.bf16.mxu0 0
      %1482 = vmatpush1.bf16.msra.mxu0 0
      %1483 = vmatprep.subr.bf16.mxu0 0
      %1484 = vmatpush1.bf16.msra.mxu0 0
      %1485 = vmatprep.subr.bf16.mxu0 0
      %1486 = vmatpush1.bf16.msra.mxu0 0
      %1487 = vmatprep.subr.bf16.mxu0 0
      %1488 = vmatpush1.bf16.msra.mxu0 0
      %1489 = vmatprep.subr.bf16.mxu0 0
      %1490 = vmatpush1.bf16.msra.mxu0 0
      %1491 = vmatprep.subr.bf16.mxu0 0
      %1492 = vmatpush1.bf16.msra.mxu0 0
      %1493 = vmatprep.subr.bf16.mxu0 0
      %1494 = vmatpush1.bf16.msra.mxu0 0
      %1495 = vmatprep.subr.bf16.mxu0 0
      %1496 = vmatpush1.bf16.msra.mxu0 0
      %1497 = vmatprep.mubr.bf16.mxu0 0
      %1498 = vmatmul.mubr.bf16.gmra.mrb[0].mxu0 %v1463
      %v1499 = vpop.f32.mrb[0].mxu0
      %v1500 = vadd.f32 0.0, %v1499
      %v1501 = vpop.f32.mrb[0].mxu0
      %v1502 = vpop.f32.mrb[0].mxu0
      %v1503 = vadd.f32 0.0, %v1502
      %v1504 = vpop.f32.mrb[0].mxu0
      %1505 = vdwg.mxu0
      %v1506 = vpack.c.bf16 %v1503, %v1500
      %1507 = vmatprep.subr.bf16.mxu0 0
      %1508 = vmatpush1.bf16.xpose.msra.mxu0 %v1168
      %1509 = vmatprep.subr.bf16.mxu0 0
      %1510 = vmatpush1.bf16.xpose.msra.mxu0 0
      %1511 = vmatprep.subr.bf16.mxu0 0
      %1512 = vmatpush1.bf16.xpose.msra.mxu0 0
      %1513 = vmatprep.subr.bf16.mxu0 0
      %1514 = vmatpush1.bf16.xpose.msra.mxu0 0
      %1515 = vmatprep.subr.bf16.mxu0 0
      %1516 = vmatpush1.bf16.xpose.msra.mxu0 0
      %1517 = vmatprep.subr.bf16.mxu0 0
      %1518 = vmatpush1.bf16.xpose.msra.mxu0 0
      %1519 = vmatprep.subr.bf16.mxu0 0
      %1520 = vmatpush1.bf16.xpose.msra.mxu0 0
      %1521 = vmatprep.subr.bf16.mxu0 0
      %1522 = vmatpush1.bf16.xpose.msra.mxu0 0
      %1523 = vmatprep.subr.bf16.mxu0 0
      %1524 = vmatpush1.bf16.xpose.msra.mxu0 0
      %1525 = vmatprep.subr.bf16.mxu0 0
      %1526 = vmatpush1.bf16.xpose.msra.mxu0 0
      %1527 = vmatprep.subr.bf16.mxu0 0
      %1528 = vmatpush1.bf16.xpose.msra.mxu0 0
      %1529 = vmatprep.subr.bf16.mxu0 0
      %1530 = vmatpush1.bf16.xpose.msra.mxu0 0
      %1531 = vmatprep.subr.bf16.mxu0 0
      %1532 = vmatpush1.bf16.xpose.msra.mxu0 0
      %1533 = vmatprep.subr.bf16.mxu0 0
      %1534 = vmatpush1.bf16.xpose.msra.mxu0 0
      %1535 = vmatprep.subr.bf16.mxu0 0
      %1536 = vmatpush1.bf16.xpose.msra.mxu0 0
      %1537 = vmatprep.subr.bf16.mxu0 0
      %1538 = vmatpush1.bf16.xpose.msra.mxu0 0
      %1539 = vmatprep.mubr.bf16.mxu0 0
      %1540 = vmatmul.mubr.bf16.gmra.mrb[0].mxu0 %v1164
      %v1541 = vpop.f32.mrb[0].mxu0
      %v1542 = vadd.f32 0.0, %v1541
      %v1543 = vpop.f32.mrb[0].mxu0
      %v1544 = vpop.f32.mrb[0].mxu0
      %v1545 = vadd.f32 0.0, %v1544
      %v1546 = vpop.f32.mrb[0].mxu0
      %1547 = vdwg.mxu0
      %v1548 = vmul.f32 %v1542, 0.17677669
      %v1549 = vmul.f32 %v1545, 0.17677669
      %v1550 = vsel %vm1216, %v1548, -inf
      %1551 = vmax.xlane.f32.xlu0 %v1550
      %v1552 = vpop.xlane.xlu0 %1551
      %v1553 = vsel %vm1216, %v1549, -inf
      %1554 = vmax.xlane.f32.xlu0 %v1553
      %v1555 = vpop.xlane.xlu0 %1554
      %v1556 = vsub.f32 %v1548, %v1552
      %v1557 = vsub.f32 %v1549, %v1555
      %v1558 = vmul.f32 %v1556, 1.442695
      %v1559 = vpow.pop %v1558
      %v1560 = vmul.f32 %v1557, 1.442695
      %v1561 = vpow.pop %v1560
      %v1562 = vsel %vm1216, %v1559, 0.0
      %1563 = vadd.xlane.f32.xlu0 %v1562
      %v1564 = vpop.xlane.xlu0 %1563
      %v1565 = vsel %vm1216, %v1561, 0.0
      %1566 = vadd.xlane.f32.xlu0 %v1565
      %v1567 = vpop.xlane.xlu0 %1566
      %v1568 = vrcp.pop %v1564
      %v1569 = vmul.f32 %v1559, %v1568
      %v1570 = vrcp.pop %v1567
      %v1571 = vmul.f32 %v1561, %v1570
      %v1572 = vpack.c.bf16 %v1571, %v1569
      %v1574 = vsel %vm1216, %v1572, 0
      %1576 = vmatprep.subr.bf16.mxu0 0
      %1577 = vmatpush1.bf16.msra.mxu0 %v1172
      %1578 = vmatprep.subr.bf16.mxu0 0
      %1579 = vmatpush1.bf16.msra.mxu0 0
      %1580 = vmatprep.subr.bf16.mxu0 0
      %1581 = vmatpush1.bf16.msra.mxu0 0
      %1582 = vmatprep.subr.bf16.mxu0 0
      %1583 = vmatpush1.bf16.msra.mxu0 0
      %1584 = vmatprep.subr.bf16.mxu0 0
      %1585 = vmatpush1.bf16.msra.mxu0 0
      %1586 = vmatprep.subr.bf16.mxu0 0
      %1587 = vmatpush1.bf16.msra.mxu0 0
      %1588 = vmatprep.subr.bf16.mxu0 0
      %1589 = vmatpush1.bf16.msra.mxu0 0
      %1590 = vmatprep.subr.bf16.mxu0 0
      %1591 = vmatpush1.bf16.msra.mxu0 0
      %1592 = vmatprep.subr.bf16.mxu0 0
      %1593 = vmatpush1.bf16.msra.mxu0 0
      %1594 = vmatprep.subr.bf16.mxu0 0
      %1595 = vmatpush1.bf16.msra.mxu0 0
      %1596 = vmatprep.subr.bf16.mxu0 0
      %1597 = vmatpush1.bf16.msra.mxu0 0
      %1598 = vmatprep.subr.bf16.mxu0 0
      %1599 = vmatpush1.bf16.msra.mxu0 0
      %1600 = vmatprep.subr.bf16.mxu0 0
      %1601 = vmatpush1.bf16.msra.mxu0 0
      %1602 = vmatprep.subr.bf16.mxu0 0
      %1603 = vmatpush1.bf16.msra.mxu0 0
      %1604 = vmatprep.subr.bf16.mxu0 0
      %1605 = vmatpush1.bf16.msra.mxu0 0
      %1606 = vmatprep.subr.bf16.mxu0 0
      %1607 = vmatpush1.bf16.msra.mxu0 0
      %1608 = vmatprep.mubr.bf16.mxu0 0
      %1609 = vmatmul.mubr.bf16.gmra.mrb[0].mxu0 %v1574
      %v1610 = vpop.f32.mrb[0].mxu0
      %v1611 = vadd.f32 0.0, %v1610
      %v1612 = vpop.f32.mrb[0].mxu0
      %v1613 = vpop.f32.mrb[0].mxu0
      %v1614 = vadd.f32 0.0, %v1613
      %v1615 = vpop.f32.mrb[0].mxu0
      %1616 = vdwg.mxu0
      %v1617 = vpack.c.bf16 %v1614, %v1611
      %v1618 = vld [vmem:[%s3] sm:$0xf]
      %v1619 = vld [vmem:[%s3 + $0x4] sm:$0xf]
      %v1620 = vld [vmem:[%s3 + $0x8] sm:$0xf]
      %v1621 = vld [vmem:[%s3 + $0xc] sm:$0xf]
      %v1622 = vld [vmem:[%s3 + $0x10] sm:$0xf]
      %v1623 = vld [vmem:[%s3 + $0x14] sm:$0xf]
      %v1624 = vld [vmem:[%s3 + $0x18] sm:$0xf]
      %v1625 = vld [vmem:[%s3 + $0x1c] sm:$0xf]
      %v1626 = vld [vmem:[%s3 + $0x20] sm:$0xf]
      %v1627 = vld [vmem:[%s3 + $0x24] sm:$0xf]
      %v1628 = vld [vmem:[%s3 + $0x28] sm:$0xf]
      %v1629 = vld [vmem:[%s3 + $0x2c] sm:$0xf]
      %v1630 = vld [vmem:[%s3 + $0x30] sm:$0xf]
      %v1631 = vld [vmem:[%s3 + $0x34] sm:$0xf]
      %v1632 = vld [vmem:[%s3 + $0x38] sm:$0xf]
      %v1633 = vld [vmem:[%s3 + $0x3c] sm:$0xf]
      %v1634 = vld [vmem:[%s3 + $0x40] sm:$0xf]
      %v1635 = vld [vmem:[%s3 + $0x44] sm:$0xf]
      %v1636 = vld [vmem:[%s3 + $0x48] sm:$0xf]
      %v1637 = vld [vmem:[%s3 + $0x4c] sm:$0xf]
      %v1638 = vld [vmem:[%s3 + $0x50] sm:$0xf]
      %v1639 = vld [vmem:[%s3 + $0x54] sm:$0xf]
      %v1640 = vld [vmem:[%s3 + $0x58] sm:$0xf]
      %v1641 = vld [vmem:[%s3 + $0x5c] sm:$0xf]
      %v1642 = vld [vmem:[%s3 + $0x60] sm:$0xf]
      %v1643 = vld [vmem:[%s3 + $0x64] sm:$0xf]
      %v1644 = vld [vmem:[%s3 + $0x68] sm:$0xf]
      %v1645 = vld [vmem:[%s3 + $0x6c] sm:$0xf]
      %v1646 = vld [vmem:[%s3 + $0x70] sm:$0xf]
      %v1647 = vld [vmem:[%s3 + $0x74] sm:$0xf]
      %v1648 = vld [vmem:[%s3 + $0x78] sm:$0xf]
      %v1649 = vld [vmem:[%s3 + $0x7c] sm:$0xf]
      %v1650 = vld [vmem:[%s3 + $0x80] sm:$0xf]
      %v1651 = vld [vmem:[%s3 + $0x84] sm:$0xf]
      %v1652 = vld [vmem:[%s3 + $0x88] sm:$0xf]
      %v1653 = vld [vmem:[%s3 + $0x8c] sm:$0xf]
      %v1654 = vld [vmem:[%s3 + $0x90] sm:$0xf]
      %v1655 = vld [vmem:[%s3 + $0x94] sm:$0xf]
      %v1656 = vld [vmem:[%s3 + $0x98] sm:$0xf]
      %v1657 = vld [vmem:[%s3 + $0x9c] sm:$0xf]
      %v1658 = vld [vmem:[%s3 + $0xa0] sm:$0xf]
      %v1659 = vld [vmem:[%s3 + $0xa4] sm:$0xf]
      %v1660 = vld [vmem:[%s3 + $0xa8] sm:$0xf]
      %v1661 = vld [vmem:[%s3 + $0xac] sm:$0xf]
      %v1662 = vld [vmem:[%s3 + $0xb0] sm:$0xf]
      %v1663 = vld [vmem:[%s3 + $0xb4] sm:$0xf]
      %v1664 = vld [vmem:[%s3 + $0xb8] sm:$0xf]
      %v1665 = vld [vmem:[%s3 + $0xbc] sm:$0xf]
      %v1666 = vld [vmem:[%s3 + $0xc0] sm:$0xf]
      %v1667 = vld [vmem:[%s3 + $0xc4] sm:$0xf]
      %v1668 = vld [vmem:[%s3 + $0xc8] sm:$0xf]
      %v1669 = vld [vmem:[%s3 + $0xcc] sm:$0xf]
      %v1670 = vld [vmem:[%s3 + $0xd0] sm:$0xf]
      %v1671 = vld [vmem:[%s3 + $0xd4] sm:$0xf]
      %v1672 = vld [vmem:[%s3 + $0xd8] sm:$0xf]
      %v1673 = vld [vmem:[%s3 + $0xdc] sm:$0xf]
      %v1674 = vld [vmem:[%s3 + $0xe0] sm:$0xf]
      %v1675 = vld [vmem:[%s3 + $0xe4] sm:$0xf]
      %v1676 = vld [vmem:[%s3 + $0xe8] sm:$0xf]
      %v1677 = vld [vmem:[%s3 + $0xec] sm:$0xf]
      %v1678 = vld [vmem:[%s3 + $0xf0] sm:$0xf]
      %v1679 = vld [vmem:[%s3 + $0xf4] sm:$0xf]
      %v1680 = vld [vmem:[%s3 + $0xf8] sm:$0xf]
      %v1681 = vld [vmem:[%s3 + $0xfc] sm:$0xf]
      %v1682 = vld [vmem:[%s4] sm:$0x1]
      %v1684 = vlaneseq
      %v1685 = vshrl.u32 %v1684, 7
      %v1686 = vsub.s32 0, %v1685
      %v1687 = vrot.slane %v1682, %v1686
      %v1753 = vunpack.c.l.b16 %v1618
      %v1754 = vunpack.c.l.b16 %v1619
      %v1755 = vunpack.c.l.b16 %v1620
      %v1756 = vunpack.c.l.b16 %v1621
      %v1757 = vunpack.c.l.b16 %v1622
      %v1758 = vunpack.c.l.b16 %v1623
      %v1759 = vunpack.c.l.b16 %v1624
      %v1760 = vunpack.c.l.b16 %v1625
      %v1761 = vunpack.c.l.b16 %v1626
      %v1762 = vunpack.c.l.b16 %v1627
      %v1763 = vunpack.c.l.b16 %v1628
      %v1764 = vunpack.c.l.b16 %v1629
      %v1765 = vunpack.c.l.b16 %v1630
      %v1766 = vunpack.c.l.b16 %v1631
      %v1767 = vunpack.c.l.b16 %v1632
      %v1768 = vunpack.c.l.b16 %v1633
      %v1769 = vunpack.c.l.b16 %v1634
      %v1770 = vunpack.c.l.b16 %v1635
      %v1771 = vunpack.c.l.b16 %v1636
      %v1772 = vunpack.c.l.b16 %v1637
      %v1773 = vunpack.c.l.b16 %v1638
      %v1774 = vunpack.c.l.b16 %v1639
      %v1775 = vunpack.c.l.b16 %v1640
      %v1776 = vunpack.c.l.b16 %v1641
      %v1777 = vunpack.c.l.b16 %v1642
      %v1778 = vunpack.c.l.b16 %v1643
      %v1779 = vunpack.c.l.b16 %v1644
      %v1780 = vunpack.c.l.b16 %v1645
      %v1781 = vunpack.c.l.b16 %v1646
      %v1782 = vunpack.c.l.b16 %v1647
      %v1783 = vunpack.c.l.b16 %v1648
      %v1784 = vunpack.c.l.b16 %v1649
      %v1785 = vunpack.c.l.b16 %v1650
      %v1786 = vunpack.c.l.b16 %v1651
      %v1787 = vunpack.c.l.b16 %v1652
      %v1788 = vunpack.c.l.b16 %v1653
      %v1789 = vunpack.c.l.b16 %v1654
      %v1790 = vunpack.c.l.b16 %v1655
      %v1791 = vunpack.c.l.b16 %v1656
      %v1792 = vunpack.c.l.b16 %v1657
      %v1793 = vunpack.c.l.b16 %v1658
      %v1794 = vunpack.c.l.b16 %v1659
      %v1795 = vunpack.c.l.b16 %v1660
      %v1796 = vunpack.c.l.b16 %v1661
      %v1797 = vunpack.c.l.b16 %v1662
      %v1798 = vunpack.c.l.b16 %v1663
      %v1799 = vunpack.c.l.b16 %v1664
      %v1800 = vunpack.c.l.b16 %v1665
      %v1801 = vunpack.c.l.b16 %v1666
      %v1802 = vunpack.c.l.b16 %v1667
      %v1803 = vunpack.c.l.b16 %v1668
      %v1804 = vunpack.c.l.b16 %v1669
      %v1805 = vunpack.c.l.b16 %v1670
      %v1806 = vunpack.c.l.b16 %v1671
      %v1807 = vunpack.c.l.b16 %v1672
      %v1808 = vunpack.c.l.b16 %v1673
      %v1809 = vunpack.c.l.b16 %v1674
      %v1810 = vunpack.c.l.b16 %v1675
      %v1811 = vunpack.c.l.b16 %v1676
      %v1812 = vunpack.c.l.b16 %v1677
      %v1813 = vunpack.c.l.b16 %v1678
      %v1814 = vunpack.c.l.b16 %v1679
      %v1815 = vunpack.c.l.b16 %v1680
      %v1816 = vunpack.c.l.b16 %v1681
      %v1817 = vpack.c.b16 %v1754, %v1753
      %v1818 = vpack.c.b16 %v1756, %v1755
      %v1819 = vpack.c.b16 %v1758, %v1757
      %v1820 = vpack.c.b16 %v1760, %v1759
      %v1821 = vpack.c.b16 %v1762, %v1761
      %v1822 = vpack.c.b16 %v1764, %v1763
      %v1823 = vpack.c.b16 %v1766, %v1765
      %v1824 = vpack.c.b16 %v1768, %v1767
      %v1825 = vpack.c.b16 %v1770, %v1769
      %v1826 = vpack.c.b16 %v1772, %v1771
      %v1827 = vpack.c.b16 %v1774, %v1773
      %v1828 = vpack.c.b16 %v1776, %v1775
      %v1829 = vpack.c.b16 %v1778, %v1777
      %v1830 = vpack.c.b16 %v1780, %v1779
      %v1831 = vpack.c.b16 %v1782, %v1781
      %v1832 = vpack.c.b16 %v1784, %v1783
      %v1833 = vpack.c.b16 %v1786, %v1785
      %v1834 = vpack.c.b16 %v1788, %v1787
      %v1835 = vpack.c.b16 %v1790, %v1789
      %v1836 = vpack.c.b16 %v1792, %v1791
      %v1837 = vpack.c.b16 %v1794, %v1793
      %v1838 = vpack.c.b16 %v1796, %v1795
      %v1839 = vpack.c.b16 %v1798, %v1797
      %v1840 = vpack.c.b16 %v1800, %v1799
      %v1841 = vpack.c.b16 %v1802, %v1801
      %v1842 = vpack.c.b16 %v1804, %v1803
      %v1843 = vpack.c.b16 %v1806, %v1805
      %v1844 = vpack.c.b16 %v1808, %v1807
      %v1845 = vpack.c.b16 %v1810, %v1809
      %v1846 = vpack.c.b16 %v1812, %v1811
      %v1847 = vpack.c.b16 %v1814, %v1813
      %v1848 = vpack.c.b16 %v1816, %v1815
      %1881 = vmatprep.subr.bf16.mxu0 0
      %1882 = vmatpush1.bf16.msra.mxu0 %v1817
      %1883 = vmatprep.subr.bf16.mxu0 0
      %1884 = vmatpush1.bf16.msra.mxu0 %v1818
      %1885 = vmatprep.subr.bf16.mxu0 0
      %1886 = vmatpush1.bf16.msra.mxu0 %v1819
      %1887 = vmatprep.subr.bf16.mxu0 0
      %1888 = vmatpush1.bf16.msra.mxu0 %v1820
      %1889 = vmatprep.subr.bf16.mxu0 0
      %1890 = vmatpush1.bf16.msra.mxu0 %v1821
      %1891 = vmatprep.subr.bf16.mxu0 0
      %1892 = vmatpush1.bf16.msra.mxu0 %v1822
      %1893 = vmatprep.subr.bf16.mxu0 0
      %1894 = vmatpush1.bf16.msra.mxu0 %v1823
      %1895 = vmatprep.subr.bf16.mxu0 0
      %1896 = vmatpush1.bf16.msra.mxu0 %v1824
      %1897 = vmatprep.subr.bf16.mxu0 0
      %1898 = vmatpush1.bf16.msra.mxu0 %v1825
      %1899 = vmatprep.subr.bf16.mxu0 0
      %1900 = vmatpush1.bf16.msra.mxu0 %v1826
      %1901 = vmatprep.subr.bf16.mxu0 0
      %1902 = vmatpush1.bf16.msra.mxu0 %v1827
      %1903 = vmatprep.subr.bf16.mxu0 0
      %1904 = vmatpush1.bf16.msra.mxu0 %v1828
      %1905 = vmatprep.subr.bf16.mxu0 0
      %1906 = vmatpush1.bf16.msra.mxu0 %v1829
      %1907 = vmatprep.subr.bf16.mxu0 0
      %1908 = vmatpush1.bf16.msra.mxu0 %v1830
      %1909 = vmatprep.subr.bf16.mxu0 0
      %1910 = vmatpush1.bf16.msra.mxu0 %v1831
      %1911 = vmatprep.subr.bf16.mxu0 0
      %1912 = vmatpush1.bf16.msra.mxu0 %v1832
      %1913 = vmatprep.mubr.bf16.mxu0 %v1395
      %1914 = vmatmul.mubr.bf16.gmra.mrb[0].mxu0 %v1284
      %v1915 = vpop.f32.mrb[0].mxu0
      %v1916 = vadd.f32 %v1687, %v1915
      %v1917 = vpop.f32.mrb[0].mxu0
      %v1918 = vpop.f32.mrb[0].mxu0
      %v1919 = vadd.f32 %v1687, %v1918
      %v1920 = vpop.f32.mrb[0].mxu0
      %1921 = vdwg.mxu0
      %1922 = vmatprep.subr.bf16.mxu0 0
      %1923 = vmatpush1.bf16.msra.mxu0 %v1833
      %1924 = vmatprep.subr.bf16.mxu0 0
      %1925 = vmatpush1.bf16.msra.mxu0 %v1834
      %1926 = vmatprep.subr.bf16.mxu0 0
      %1927 = vmatpush1.bf16.msra.mxu0 %v1835
      %1928 = vmatprep.subr.bf16.mxu0 0
      %1929 = vmatpush1.bf16.msra.mxu0 %v1836
      %1930 = vmatprep.subr.bf16.mxu0 0
      %1931 = vmatpush1.bf16.msra.mxu0 %v1837
      %1932 = vmatprep.subr.bf16.mxu0 0
      %1933 = vmatpush1.bf16.msra.mxu0 %v1838
      %1934 = vmatprep.subr.bf16.mxu0 0
      %1935 = vmatpush1.bf16.msra.mxu0 %v1839
      %1936 = vmatprep.subr.bf16.mxu0 0
      %1937 = vmatpush1.bf16.msra.mxu0 %v1840
      %1938 = vmatprep.subr.bf16.mxu0 0
      %1939 = vmatpush1.bf16.msra.mxu0 %v1841
      %1940 = vmatprep.subr.bf16.mxu0 0
      %1941 = vmatpush1.bf16.msra.mxu0 %v1842
      %1942 = vmatprep.subr.bf16.mxu0 0
      %1943 = vmatpush1.bf16.msra.mxu0 %v1843
      %1944 = vmatprep.subr.bf16.mxu0 0
      %1945 = vmatpush1.bf16.msra.mxu0 %v1844
      %1946 = vmatprep.subr.bf16.mxu0 0
      %1947 = vmatpush1.bf16.msra.mxu0 %v1845
      %1948 = vmatprep.subr.bf16.mxu0 0
      %1949 = vmatpush1.bf16.msra.mxu0 %v1846
      %1950 = vmatprep.subr.bf16.mxu0 0
      %1951 = vmatpush1.bf16.msra.mxu0 %v1847
      %1952 = vmatprep.subr.bf16.mxu0 0
      %1953 = vmatpush1.bf16.msra.mxu0 %v1848
      %1954 = vmatprep.mubr.bf16.mxu0 %v1617
      %1955 = vmatmul.mubr.bf16.gmra.mrb[0].mxu0 %v1506
      %v1956 = vpop.f32.mrb[0].mxu0
      %v1957 = vadd.f32 %v1916, %v1956
      %v1958 = vpop.f32.mrb[0].mxu0
      %v1959 = vpop.f32.mrb[0].mxu0
      %v1960 = vadd.f32 %v1919, %v1959
      %v1961 = vpop.f32.mrb[0].mxu0
      %1962 = vdwg.mxu0
      %v1963 = vld [vmem:[#allocation2] sm:$0x1]
      %s1964 = vtos %v1963
      %v1965 = vstv %s1964
      %v1966 = vmul.f32 %v1965, %v1957
      %v1967 = vmul.f32 %v1965, %v1960
      %v1968 = vunpack.c.l.bf16 %v255
      %v1969 = vunpack.c.l.bf16 %v256
      %v1970 = vadd.f32 %v1966, %v1968
      %v1971 = vadd.f32 %v1967, %v1969
      %v1972 = vpack.c.bf16 %v1971, %v1970
      %v1974 = vunpack.c.l.b16 %v1972
      %v1975 = vunpack.c.h.b16 %v1972
      %v1976 = vpack.c.b16 %v1974, %v1974
      %v1977 = vpack.c.b16 %v1975, %v1975
      %1980 = vst [vmem:[%s253] sm:$0xf] %v1976
      %1981 = vst [vmem:[%s253 + $0x4] sm:$0xf] %v1977
      %p1982 = scmp.lt.s32.totalorder %s19, 1
      %s1983 = scalar_select %p1982, %s19, 1
      %s1984 = smul.addr %s1983, 2
      %s1985 = smul.addr %s1984, 4
      %s1986 = scalar_lea.vmem %s6, %s1985
      // Predicated region
      $region45: #{forward.10} parent=43 // pred_check
        %p1987 = pneg %p168
      $region46: #{forward.10} parent=43 // pred_check_branch
        %1989 = sbr.rel (%p1987) target = $region48
      $region47: #{forward.10} parent=43 // pred_region
        _
      $region48: #{forward.10} parent=43 // pred_fallthru
        _
    $region44: #{forward.10} parent=5 // pred_fallthru
      _
    %p1990 = scmp.le.s32.totalorder 2, %s14
    // Predicated region
    $region49: #{forward.10} parent=5 // pred_check
      %p1991 = pneg %p1990
    $region50: #{forward.10} parent=5 // pred_check_branch
      %1993 = sbr.rel (%p1991) target = $region52
    $region51: #{forward.10} parent=5 // pred_region
      %s1994 = ssub.s32 %s14, 2
      // Predicated region
      $region53: #{forward.10} parent=51 // pred_check
        %p1995 = pneg %p174
      $region54: #{forward.10} parent=51 // pred_check_branch
        %1997 = sbr.rel (%p1995) target = $region56
      $region55: #{forward.10} parent=51 // pred_region
        %p1998 = scmp.lt.s32.totalorder %s20, 1
        %s1999 = scalar_select %p1998, %s20, 1
        %s2000 = smul.addr %s1999, 2
        %s2001 = smul.addr %s2000, 4
        %s2002 = scalar_lea.vmem %s6, %s2001
      $region56: #{forward.10} parent=51 // pred_fallthru
        _
    $region52: #{forward.10} parent=5 // pred_fallthru
      _
  $region6: #{forward.10} parent=0 // loop_footer
    %s18 = sadd.s32 1, %s14
  $region7: #{forward.10} parent=0 // loop_footer_branch
    %13 = sbr.rel target = $region3
  $region8: #{forward.10} parent=0 // loop_exit
    _

// kernel: forward.11
$region0: #{forward.11}
  #allocation0 [shape = 'u32[]', space=smem, size = 0x4, offset = 0x4, fixed_abs, tag = 'smem constant byte address 0x4 - core index']
  #allocation1 [shape = 'u32[144,128]{1,0:T(1,128)}', space=vmem, size = 0x12000, scoped, tag = 'internal scratch']
  %s0 = inlined_call_operand.vmem [shape: bf16[2,2048], index: 0, kind: input, shape index: {}]
  %s1 = inlined_call_operand.vmem [shape: bf16[2048,128], index: 1, kind: input, shape index: {}]
  %s2 = inlined_call_operand.vmem [shape: f32[1,128], index: 2, kind: input, shape index: {}]
  %s3 = inlined_call_operand.vmem [shape: bf16[128,10], index: 3, kind: input, shape index: {}]
  %s4 = inlined_call_operand.vmem [shape: f32[1,10], index: 4, kind: input, shape index: {}]
  %s5 = inlined_call_operand.hbm [shape: f32[2,10], index: 5, kind: output, shape index: {}]
  %s6 = sld [smem:[#allocation0]]
  $region30: #{forward.11} parent=0
    _
  %s8 = ssub.s32 1, %s6
  %s9 = scalar_select 0, %s8, %s6
  $region1: #{forward.11} parent=0
    #allocation2 [shape = 'u8[1024]{0}', space=vmem, size = 0x400, scoped, tag = 'output window, operand 0, single buffered']
    #allocation3 [shape = 's32[1]{0}', space=sflag, size = 0x4, scoped, tag = 'scoped memory for forward.11']
    %10 = vsyncpa [#allocation3], 0
    // Predicated region
    $region2: #{forward.11} parent=1 // pred_check
      _
    $region3: #{forward.11} parent=1 // pred_check_branch
      %12 = sbr.rel (0) target = $region5
    $region4: #{forward.11} parent=1 // pred_region
      _
    $region5: #{forward.11} parent=1 // pred_fallthru
      _
    // Predicated region
    $region6: #{forward.11} parent=1 // pred_check
      _
    $region7: #{forward.11} parent=1 // pred_check_branch
      %14 = sbr.rel (0) target = $region9
    $region8: #{forward.11} parent=1 // pred_region
      _
    $region9: #{forward.11} parent=1 // pred_fallthru
      _
    // Predicated region
    $region10: #{forward.11} parent=1 // pred_check
      _
    $region11: #{forward.11} parent=1 // pred_check_branch
      %16 = sbr.rel (0) target = $region13
    $region12: #{forward.11} parent=1 // pred_region
      _
    $region13: #{forward.11} parent=1 // pred_fallthru
      _
    // Predicated region
    $region14: #{forward.11} parent=1 // pred_check
      _
    $region15: #{forward.11} parent=1 // pred_check_branch
      %18 = sbr.rel (0) target = $region17
    $region16: #{forward.11} parent=1 // pred_region
      _
    $region17: #{forward.11} parent=1 // pred_fallthru
      _
    // Predicated region
    $region18: #{forward.11} parent=1 // pred_check
      _
    $region19: #{forward.11} parent=1 // pred_check_branch
      %20 = sbr.rel (0) target = $region21
    $region20: #{forward.11} parent=1 // pred_region
      _
    $region21: #{forward.11} parent=1 // pred_fallthru
      _
    %v22 = vld [vmem:[%s0] sm:$0xff]
    %v23 = vld [vmem:[%s0 + $0x8] sm:$0xff]
    %v24 = vld [vmem:[%s1] sm:$0xf]
    %v25 = vld [vmem:[%s1 + $0x4] sm:$0xf]
    %v26 = vld [vmem:[%s1 + $0x8] sm:$0xf]
    %v27 = vld [vmem:[%s1 + $0xc] sm:$0xf]
    %v28 = vld [vmem:[%s1 + $0x10] sm:$0xf]
    %v29 = vld [vmem:[%s1 + $0x14] sm:$0xf]
    %v30 = vld [vmem:[%s1 + $0x18] sm:$0xf]
    %v31 = vld [vmem:[%s1 + $0x1c] sm:$0xf]
    %v32 = vld [vmem:[%s1 + $0x20] sm:$0xf]
    %v33 = vld [vmem:[%s1 + $0x24] sm:$0xf]
    %v34 = vld [vmem:[%s1 + $0x28] sm:$0xf]
    %v35 = vld [vmem:[%s1 + $0x2c] sm:$0xf]
    %v36 = vld [vmem:[%s1 + $0x30] sm:$0xf]
    %v37 = vld [vmem:[%s1 + $0x34] sm:$0xf]
    %v38 = vld [vmem:[%s1 + $0x38] sm:$0xf]
    %v39 = vld [vmem:[%s1 + $0x3c] sm:$0xf]
    %v40 = vld [vmem:[%s1 + $0x40] sm:$0xf]
    %v41 = vld [vmem:[%s1 + $0x44] sm:$0xf]
    %v42 = vld [vmem:[%s1 + $0x48] sm:$0xf]
    %v43 = vld [vmem:[%s1 + $0x4c] sm:$0xf]
    %v44 = vld [vmem:[%s1 + $0x50] sm:$0xf]
    %v45 = vld [vmem:[%s1 + $0x54] sm:$0xf]
    %v46 = vld [vmem:[%s1 + $0x58] sm:$0xf]
    %v47 = vld [vmem:[%s1 + $0x5c] sm:$0xf]
    %v48 = vld [vmem:[%s1 + $0x60] sm:$0xf]
    %v49 = vld [vmem:[%s1 + $0x64] sm:$0xf]
    %v50 = vld [vmem:[%s1 + $0x68] sm:$0xf]
    %v51 = vld [vmem:[%s1 + $0x6c] sm:$0xf]
    %v52 = vld [vmem:[%s1 + $0x70] sm:$0xf]
    %v53 = vld [vmem:[%s1 + $0x74] sm:$0xf]
    %v54 = vld [vmem:[%s1 + $0x78] sm:$0xf]
    %v55 = vld [vmem:[%s1 + $0x7c] sm:$0xf]
    %v56 = vld [vmem:[%s1 + $0x80] sm:$0xf]
    %v57 = vld [vmem:[%s1 + $0x84] sm:$0xf]
    %v58 = vld [vmem:[%s1 + $0x88] sm:$0xf]
    %v59 = vld [vmem:[%s1 + $0x8c] sm:$0xf]
    %v60 = vld [vmem:[%s1 + $0x90] sm:$0xf]
    %v61 = vld [vmem:[%s1 + $0x94] sm:$0xf]
    %v62 = vld [vmem:[%s1 + $0x98] sm:$0xf]
    %v63 = vld [vmem:[%s1 + $0x9c] sm:$0xf]
    %v64 = vld [vmem:[%s1 + $0xa0] sm:$0xf]
    %v65 = vld [vmem:[%s1 + $0xa4] sm:$0xf]
    %v66 = vld [vmem:[%s1 + $0xa8] sm:$0xf]
    %v67 = vld [vmem:[%s1 + $0xac] sm:$0xf]
    %v68 = vld [vmem:[%s1 + $0xb0] sm:$0xf]
    %v69 = vld [vmem:[%s1 + $0xb4] sm:$0xf]
    %v70 = vld [vmem:[%s1 + $0xb8] sm:$0xf]
    %v71 = vld [vmem:[%s1 + $0xbc] sm:$0xf]
    %v72 = vld [vmem:[%s1 + $0xc0] sm:$0xf]
    %v73 = vld [vmem:[%s1 + $0xc4] sm:$0xf]
    %v74 = vld [vmem:[%s1 + $0xc8] sm:$0xf]
    %v75 = vld [vmem:[%s1 + $0xcc] sm:$0xf]
    %v76 = vld [vmem:[%s1 + $0xd0] sm:$0xf]
    %v77 = vld [vmem:[%s1 + $0xd4] sm:$0xf]
    %v78 = vld [vmem:[%s1 + $0xd8] sm:$0xf]
    %v79 = vld [vmem:[%s1 + $0xdc] sm:$0xf]
    %v80 = vld [vmem:[%s1 + $0xe0] sm:$0xf]
    %v81 = vld [vmem:[%s1 + $0xe4] sm:$0xf]
    %v82 = vld [vmem:[%s1 + $0xe8] sm:$0xf]
    %v83 = vld [vmem:[%s1 + $0xec] sm:$0xf]
    %v84 = vld [vmem:[%s1 + $0xf0] sm:$0xf]
    %v85 = vld [vmem:[%s1 + $0xf4] sm:$0xf]
    %v86 = vld [vmem:[%s1 + $0xf8] sm:$0xf]
    %v87 = vld [vmem:[%s1 + $0xfc] sm:$0xf]
    %v88 = vld [vmem:[%s1 + $0x100] sm:$0xf]
    %v89 = vld [vmem:[%s1 + $0x104] sm:$0xf]
    %v90 = vld [vmem:[%s1 + $0x108] sm:$0xf]
    %v91 = vld [vmem:[%s1 + $0x10c] sm:$0xf]
    %v92 = vld [vmem:[%s1 + $0x110] sm:$0xf]
    %v93 = vld [vmem:[%s1 + $0x114] sm:$0xf]
    %v94 = vld [vmem:[%s1 + $0x118] sm:$0xf]
    %v95 = vld [vmem:[%s1 + $0x11c] sm:$0xf]
    %v96 = vld [vmem:[%s1 + $0x120] sm:$0xf]
    %v97 = vld [vmem:[%s1 + $0x124] sm:$0xf]
    %v98 = vld [vmem:[%s1 + $0x128] sm:$0xf]
    %v99 = vld [vmem:[%s1 + $0x12c] sm:$0xf]
    %v100 = vld [vmem:[%s1 + $0x130] sm:$0xf]
    %v101 = vld [vmem:[%s1 + $0x134] sm:$0xf]
    %v102 = vld [vmem:[%s1 + $0x138] sm:$0xf]
    %v103 = vld [vmem:[%s1 + $0x13c] sm:$0xf]
    %v104 = vld [vmem:[%s1 + $0x140] sm:$0xf]
    %v105 = vld [vmem:[%s1 + $0x144] sm:$0xf]
    %v106 = vld [vmem:[%s1 + $0x148] sm:$0xf]
    %v107 = vld [vmem:[%s1 + $0x14c] sm:$0xf]
    %v108 = vld [vmem:[%s1 + $0x150] sm:$0xf]
    %v109 = vld [vmem:[%s1 + $0x154] sm:$0xf]
    %v110 = vld [vmem:[%s1 + $0x158] sm:$0xf]
    %v111 = vld [vmem:[%s1 + $0x15c] sm:$0xf]
    %v112 = vld [vmem:[%s1 + $0x160] sm:$0xf]
    %v113 = vld [vmem:[%s1 + $0x164] sm:$0xf]
    %v114 = vld [vmem:[%s1 + $0x168] sm:$0xf]
    %v115 = vld [vmem:[%s1 + $0x16c] sm:$0xf]
    %v116 = vld [vmem:[%s1 + $0x170] sm:$0xf]
    %v117 = vld [vmem:[%s1 + $0x174] sm:$0xf]
    %v118 = vld [vmem:[%s1 + $0x178] sm:$0xf]
    %v119 = vld [vmem:[%s1 + $0x17c] sm:$0xf]
    %v120 = vld [vmem:[%s1 + $0x180] sm:$0xf]
    %v121 = vld [vmem:[%s1 + $0x184] sm:$0xf]
    %v122 = vld [vmem:[%s1 + $0x188] sm:$0xf]
    %v123 = vld [vmem:[%s1 + $0x18c] sm:$0xf]
    %v124 = vld [vmem:[%s1 + $0x190] sm:$0xf]
    %v125 = vld [vmem:[%s1 + $0x194] sm:$0xf]
    %v126 = vld [vmem:[%s1 + $0x198] sm:$0xf]
    %v127 = vld [vmem:[%s1 + $0x19c] sm:$0xf]
    %v128 = vld [vmem:[%s1 + $0x1a0] sm:$0xf]
    %v129 = vld [vmem:[%s1 + $0x1a4] sm:$0xf]
    %v130 = vld [vmem:[%s1 + $0x1a8] sm:$0xf]
    %v131 = vld [vmem:[%s1 + $0x1ac] sm:$0xf]
    %v132 = vld [vmem:[%s1 + $0x1b0] sm:$0xf]
    %v133 = vld [vmem:[%s1 + $0x1b4] sm:$0xf]
    %v134 = vld [vmem:[%s1 + $0x1b8] sm:$0xf]
    %v135 = vld [vmem:[%s1 + $0x1bc] sm:$0xf]
    %v136 = vld [vmem:[%s1 + $0x1c0] sm:$0xf]
    %v137 = vld [vmem:[%s1 + $0x1c4] sm:$0xf]
    %v138 = vld [vmem:[%s1 + $0x1c8] sm:$0xf]
    %v139 = vld [vmem:[%s1 + $0x1cc] sm:$0xf]
    %v140 = vld [vmem:[%s1 + $0x1d0] sm:$0xf]
    %v141 = vld [vmem:[%s1 + $0x1d4] sm:$0xf]
    %v142 = vld [vmem:[%s1 + $0x1d8] sm:$0xf]
    %v143 = vld [vmem:[%s1 + $0x1dc] sm:$0xf]
    %v144 = vld [vmem:[%s1 + $0x1e0] sm:$0xf]
    %v145 = vld [vmem:[%s1 + $0x1e4] sm:$0xf]
    %v146 = vld [vmem:[%s1 + $0x1e8] sm:$0xf]
    %v147 = vld [vmem:[%s1 + $0x1ec] sm:$0xf]
    %v148 = vld [vmem:[%s1 + $0x1f0] sm:$0xf]
    %v149 = vld [vmem:[%s1 + $0x1f4] sm:$0xf]
    %v150 = vld [vmem:[%s1 + $0x1f8] sm:$0xf]
    %v151 = vld [vmem:[%s1 + $0x1fc] sm:$0xf]
    %v152 = vld [vmem:[%s1 + $0x200] sm:$0xf]
    %v153 = vld [vmem:[%s1 + $0x204] sm:$0xf]
    %v154 = vld [vmem:[%s1 + $0x208] sm:$0xf]
    %v155 = vld [vmem:[%s1 + $0x20c] sm:$0xf]
    %v156 = vld [vmem:[%s1 + $0x210] sm:$0xf]
    %v157 = vld [vmem:[%s1 + $0x214] sm:$0xf]
    %v158 = vld [vmem:[%s1 + $0x218] sm:$0xf]
    %v159 = vld [vmem:[%s1 + $0x21c] sm:$0xf]
    %v160 = vld [vmem:[%s1 + $0x220] sm:$0xf]
    %v161 = vld [vmem:[%s1 + $0x224] sm:$0xf]
    %v162 = vld [vmem:[%s1 + $0x228] sm:$0xf]
    %v163 = vld [vmem:[%s1 + $0x22c] sm:$0xf]
    %v164 = vld [vmem:[%s1 + $0x230] sm:$0xf]
    %v165 = vld [vmem:[%s1 + $0x234] sm:$0xf]
    %v166 = vld [vmem:[%s1 + $0x238] sm:$0xf]
    %v167 = vld [vmem:[%s1 + $0x23c] sm:$0xf]
    %v168 = vld [vmem:[%s1 + $0x240] sm:$0xf]
    %v169 = vld [vmem:[%s1 + $0x244] sm:$0xf]
    %v170 = vld [vmem:[%s1 + $0x248] sm:$0xf]
    %v171 = vld [vmem:[%s1 + $0x24c] sm:$0xf]
    %v172 = vld [vmem:[%s1 + $0x250] sm:$0xf]
    %v173 = vld [vmem:[%s1 + $0x254] sm:$0xf]
    %v174 = vld [vmem:[%s1 + $0x258] sm:$0xf]
    %v175 = vld [vmem:[%s1 + $0x25c] sm:$0xf]
    %v176 = vld [vmem:[%s1 + $0x260] sm:$0xf]
    %v177 = vld [vmem:[%s1 + $0x264] sm:$0xf]
    %v178 = vld [vmem:[%s1 + $0x268] sm:$0xf]
    %v179 = vld [vmem:[%s1 + $0x26c] sm:$0xf]
    %v180 = vld [vmem:[%s1 + $0x270] sm:$0xf]
    %v181 = vld [vmem:[%s1 + $0x274] sm:$0xf]
    %v182 = vld [vmem:[%s1 + $0x278] sm:$0xf]
    %v183 = vld [vmem:[%s1 + $0x27c] sm:$0xf]
    %v184 = vld [vmem:[%s1 + $0x280] sm:$0xf]
    %v185 = vld [vmem:[%s1 + $0x284] sm:$0xf]
    %v186 = vld [vmem:[%s1 + $0x288] sm:$0xf]
    %v187 = vld [vmem:[%s1 + $0x28c] sm:$0xf]
    %v188 = vld [vmem:[%s1 + $0x290] sm:$0xf]
    %v189 = vld [vmem:[%s1 + $0x294] sm:$0xf]
    %v190 = vld [vmem:[%s1 + $0x298] sm:$0xf]
    %v191 = vld [vmem:[%s1 + $0x29c] sm:$0xf]
    %v192 = vld [vmem:[%s1 + $0x2a0] sm:$0xf]
    %v193 = vld [vmem:[%s1 + $0x2a4] sm:$0xf]
    %v194 = vld [vmem:[%s1 + $0x2a8] sm:$0xf]
    %v195 = vld [vmem:[%s1 + $0x2ac] sm:$0xf]
    %v196 = vld [vmem:[%s1 + $0x2b0] sm:$0xf]
    %v197 = vld [vmem:[%s1 + $0x2b4] sm:$0xf]
    %v198 = vld [vmem:[%s1 + $0x2b8] sm:$0xf]
    %v199 = vld [vmem:[%s1 + $0x2bc] sm:$0xf]
    %v200 = vld [vmem:[%s1 + $0x2c0] sm:$0xf]
    %v201 = vld [vmem:[%s1 + $0x2c4] sm:$0xf]
    %v202 = vld [vmem:[%s1 + $0x2c8] sm:$0xf]
    %v203 = vld [vmem:[%s1 + $0x2cc] sm:$0xf]
    %v204 = vld [vmem:[%s1 + $0x2d0] sm:$0xf]
    %v205 = vld [vmem:[%s1 + $0x2d4] sm:$0xf]
    %v206 = vld [vmem:[%s1 + $0x2d8] sm:$0xf]
    %v207 = vld [vmem:[%s1 + $0x2dc] sm:$0xf]
    %v208 = vld [vmem:[%s1 + $0x2e0] sm:$0xf]
    %v209 = vld [vmem:[%s1 + $0x2e4] sm:$0xf]
    %v210 = vld [vmem:[%s1 + $0x2e8] sm:$0xf]
    %v211 = vld [vmem:[%s1 + $0x2ec] sm:$0xf]
    %v212 = vld [vmem:[%s1 + $0x2f0] sm:$0xf]
    %v213 = vld [vmem:[%s1 + $0x2f4] sm:$0xf]
    %v214 = vld [vmem:[%s1 + $0x2f8] sm:$0xf]
    %v215 = vld [vmem:[%s1 + $0x2fc] sm:$0xf]
    %v216 = vld [vmem:[%s1 + $0x300] sm:$0xf]
    %v217 = vld [vmem:[%s1 + $0x304] sm:$0xf]
    %v218 = vld [vmem:[%s1 + $0x308] sm:$0xf]
    %v219 = vld [vmem:[%s1 + $0x30c] sm:$0xf]
    %v220 = vld [vmem:[%s1 + $0x310] sm:$0xf]
    %v221 = vld [vmem:[%s1 + $0x314] sm:$0xf]
    %v222 = vld [vmem:[%s1 + $0x318] sm:$0xf]
    %v223 = vld [vmem:[%s1 + $0x31c] sm:$0xf]
    %v224 = vld [vmem:[%s1 + $0x320] sm:$0xf]
    %v225 = vld [vmem:[%s1 + $0x324] sm:$0xf]
    %v226 = vld [vmem:[%s1 + $0x328] sm:$0xf]
    %v227 = vld [vmem:[%s1 + $0x32c] sm:$0xf]
    %v228 = vld [vmem:[%s1 + $0x330] sm:$0xf]
    %v229 = vld [vmem:[%s1 + $0x334] sm:$0xf]
    %v230 = vld [vmem:[%s1 + $0x338] sm:$0xf]
    %v231 = vld [vmem:[%s1 + $0x33c] sm:$0xf]
    %v232 = vld [vmem:[%s1 + $0x340] sm:$0xf]
    %v233 = vld [vmem:[%s1 + $0x344] sm:$0xf]
    %v234 = vld [vmem:[%s1 + $0x348] sm:$0xf]
    %v235 = vld [vmem:[%s1 + $0x34c] sm:$0xf]
    %v236 = vld [vmem:[%s1 + $0x350] sm:$0xf]
    %v237 = vld [vmem:[%s1 + $0x354] sm:$0xf]
    %v238 = vld [vmem:[%s1 + $0x358] sm:$0xf]
    %v239 = vld [vmem:[%s1 + $0x35c] sm:$0xf]
    %v240 = vld [vmem:[%s1 + $0x360] sm:$0xf]
    %v241 = vld [vmem:[%s1 + $0x364] sm:$0xf]
    %v242 = vld [vmem:[%s1 + $0x368] sm:$0xf]
    %v243 = vld [vmem:[%s1 + $0x36c] sm:$0xf]
    %v244 = vld [vmem:[%s1 + $0x370] sm:$0xf]
    %v245 = vld [vmem:[%s1 + $0x374] sm:$0xf]
    %v246 = vld [vmem:[%s1 + $0x378] sm:$0xf]
    %v247 = vld [vmem:[%s1 + $0x37c] sm:$0xf]
    %v248 = vld [vmem:[%s1 + $0x380] sm:$0xf]
    %v249 = vld [vmem:[%s1 + $0x384] sm:$0xf]
    %v250 = vld [vmem:[%s1 + $0x388] sm:$0xf]
    %v251 = vld [vmem:[%s1 + $0x38c] sm:$0xf]
    %v252 = vld [vmem:[%s1 + $0x390] sm:$0xf]
    %v253 = vld [vmem:[%s1 + $0x394] sm:$0xf]
    %v254 = vld [vmem:[%s1 + $0x398] sm:$0xf]
    %v255 = vld [vmem:[%s1 + $0x39c] sm:$0xf]
    %v256 = vld [vmem:[%s1 + $0x3a0] sm:$0xf]
    %v257 = vld [vmem:[%s1 + $0x3a4] sm:$0xf]
    %v258 = vld [vmem:[%s1 + $0x3a8] sm:$0xf]
    %v259 = vld [vmem:[%s1 + $0x3ac] sm:$0xf]
    %v260 = vld [vmem:[%s1 + $0x3b0] sm:$0xf]
    %v261 = vld [vmem:[%s1 + $0x3b4] sm:$0xf]
    %v262 = vld [vmem:[%s1 + $0x3b8] sm:$0xf]
    %v263 = vld [vmem:[%s1 + $0x3bc] sm:$0xf]
    %v264 = vld [vmem:[%s1 + $0x3c0] sm:$0xf]
    %v265 = vld [vmem:[%s1 + $0x3c4] sm:$0xf]
    %v266 = vld [vmem:[%s1 + $0x3c8] sm:$0xf]
    %v267 = vld [vmem:[%s1 + $0x3cc] sm:$0xf]
    %v268 = vld [vmem:[%s1 + $0x3d0] sm:$0xf]
    %v269 = vld [vmem:[%s1 + $0x3d4] sm:$0xf]
    %v270 = vld [vmem:[%s1 + $0x3d8] sm:$0xf]
    %v271 = vld [vmem:[%s1 + $0x3dc] sm:$0xf]
    %v272 = vld [vmem:[%s1 + $0x3e0] sm:$0xf]
    %v273 = vld [vmem:[%s1 + $0x3e4] sm:$0xf]
    %v274 = vld [vmem:[%s1 + $0x3e8] sm:$0xf]
    %v275 = vld [vmem:[%s1 + $0x3ec] sm:$0xf]
    %v276 = vld [vmem:[%s1 + $0x3f0] sm:$0xf]
    %v277 = vld [vmem:[%s1 + $0x3f4] sm:$0xf]
    %v278 = vld [vmem:[%s1 + $0x3f8] sm:$0xf]
    %v279 = vld [vmem:[%s1 + $0x3fc] sm:$0xf]
    %v280 = vld [vmem:[%s2] sm:$0x1]
    %v282 = vlaneseq
    %v283 = vshrl.u32 %v282, 7
    %v284 = vsub.s32 0, %v283
    %v285 = vrot.slane %v280, %v284
    %v289 = vcombine.high %v22, %v22
    %v291 = vunpack.c.l.s4 1966171168
    %v292 = vunpack.c.0.s8 %v291
    %v293 = vlaneseq
    %v294 = vshrl.u32 %v293, 7
    %v295 = vsub.s32 %v292, %v294
    %v296 = vrot.slane %v22, %v295
    %v298 = vunpack.c.l.s4 1966171168
    %v299 = vunpack.c.0.s8 %v298
    %v300 = vlaneseq
    %v301 = vshrl.u32 %v300, 7
    %v302 = vsub.s32 %v299, %v301
    %v303 = vrot.slane %v289, %v302
    %v304 = vcombine.high %v296, %v296
    %v305 = vcombine.high %v303, %v303
    %v307 = vunpack.c.l.s4 1966171168
    %v308 = vunpack.c.0.s8 %v307
    %v309 = vlaneseq
    %v310 = vshrl.u32 %v309, 7
    %v311 = vsub.s32 %v308, %v310
    %v312 = vrot.slane %v296, %v311
    %v314 = vunpack.c.l.s4 1966171168
    %v315 = vunpack.c.0.s8 %v314
    %v316 = vlaneseq
    %v317 = vshrl.u32 %v316, 7
    %v318 = vsub.s32 %v315, %v317
    %v319 = vrot.slane %v303, %v318
    %v321 = vunpack.c.l.s4 1966171168
    %v322 = vunpack.c.0.s8 %v321
    %v323 = vlaneseq
    %v324 = vshrl.u32 %v323, 7
    %v325 = vsub.s32 %v322, %v324
    %v326 = vrot.slane %v304, %v325
    %v328 = vunpack.c.l.s4 1966171168
    %v329 = vunpack.c.0.s8 %v328
    %v330 = vlaneseq
    %v331 = vshrl.u32 %v330, 7
    %v332 = vsub.s32 %v329, %v331
    %v333 = vrot.slane %v305, %v332
    %v334 = vcombine.high %v312, %v312
    %v335 = vcombine.high %v319, %v319
    %v336 = vcombine.high %v326, %v326
    %v337 = vcombine.high %v333, %v333
    %v338 = vcombine.high %v23, %v23
    %v340 = vunpack.c.l.s4 1966171168
    %v341 = vunpack.c.0.s8 %v340
    %v342 = vlaneseq
    %v343 = vshrl.u32 %v342, 7
    %v344 = vsub.s32 %v341, %v343
    %v345 = vrot.slane %v23, %v344
    %v347 = vunpack.c.l.s4 1966171168
    %v348 = vunpack.c.0.s8 %v347
    %v349 = vlaneseq
    %v350 = vshrl.u32 %v349, 7
    %v351 = vsub.s32 %v348, %v350
    %v352 = vrot.slane %v338, %v351
    %v353 = vcombine.high %v345, %v345
    %v354 = vcombine.high %v352, %v352
    %v356 = vunpack.c.l.s4 1966171168
    %v357 = vunpack.c.0.s8 %v356
    %v358 = vlaneseq
    %v359 = vshrl.u32 %v358, 7
    %v360 = vsub.s32 %v357, %v359
    %v361 = vrot.slane %v345, %v360
    %v363 = vunpack.c.l.s4 1966171168
    %v364 = vunpack.c.0.s8 %v363
    %v365 = vlaneseq
    %v366 = vshrl.u32 %v365, 7
    %v367 = vsub.s32 %v364, %v366
    %v368 = vrot.slane %v352, %v367
    %v370 = vunpack.c.l.s4 1966171168
    %v371 = vunpack.c.0.s8 %v370
    %v372 = vlaneseq
    %v373 = vshrl.u32 %v372, 7
    %v374 = vsub.s32 %v371, %v373
    %v375 = vrot.slane %v353, %v374
    %v377 = vunpack.c.l.s4 1966171168
    %v378 = vunpack.c.0.s8 %v377
    %v379 = vlaneseq
    %v380 = vshrl.u32 %v379, 7
    %v381 = vsub.s32 %v378, %v380
    %v382 = vrot.slane %v354, %v381
    %v383 = vcombine.high %v361, %v361
    %v384 = vcombine.high %v368, %v368
    %v385 = vcombine.high %v375, %v375
    %v386 = vcombine.high %v382, %v382
    %v659 = vunpack.c.l.b16 %v24
    %v660 = vunpack.c.l.b16 %v25
    %v661 = vunpack.c.l.b16 %v26
    %v662 = vunpack.c.l.b16 %v27
    %v663 = vunpack.c.l.b16 %v28
    %v664 = vunpack.c.l.b16 %v29
    %v665 = vunpack.c.l.b16 %v30
    %v666 = vunpack.c.l.b16 %v31
    %v667 = vunpack.c.l.b16 %v32
    %v668 = vunpack.c.l.b16 %v33
    %v669 = vunpack.c.l.b16 %v34
    %v670 = vunpack.c.l.b16 %v35
    %v671 = vunpack.c.l.b16 %v36
    %v672 = vunpack.c.l.b16 %v37
    %v673 = vunpack.c.l.b16 %v38
    %v674 = vunpack.c.l.b16 %v39
    %v675 = vunpack.c.l.b16 %v40
    %v676 = vunpack.c.l.b16 %v41
    %v677 = vunpack.c.l.b16 %v42
    %v678 = vunpack.c.l.b16 %v43
    %v679 = vunpack.c.l.b16 %v44
    %v680 = vunpack.c.l.b16 %v45
    %v681 = vunpack.c.l.b16 %v46
    %v682 = vunpack.c.l.b16 %v47
    %v683 = vunpack.c.l.b16 %v48
    %v684 = vunpack.c.l.b16 %v49
    %v685 = vunpack.c.l.b16 %v50
    %v686 = vunpack.c.l.b16 %v51
    %v687 = vunpack.c.l.b16 %v52
    %v688 = vunpack.c.l.b16 %v53
    %v689 = vunpack.c.l.b16 %v54
    %v690 = vunpack.c.l.b16 %v55
    %v691 = vunpack.c.l.b16 %v56
    %v692 = vunpack.c.l.b16 %v57
    %v693 = vunpack.c.l.b16 %v58
    %v694 = vunpack.c.l.b16 %v59
    %v695 = vunpack.c.l.b16 %v60
    %v696 = vunpack.c.l.b16 %v61
    %v697 = vunpack.c.l.b16 %v62
    %v698 = vunpack.c.l.b16 %v63
    %v699 = vunpack.c.l.b16 %v64
    %v700 = vunpack.c.l.b16 %v65
    %v701 = vunpack.c.l.b16 %v66
    %v702 = vunpack.c.l.b16 %v67
    %v703 = vunpack.c.l.b16 %v68
    %v704 = vunpack.c.l.b16 %v69
    %v705 = vunpack.c.l.b16 %v70
    %v706 = vunpack.c.l.b16 %v71
    %v707 = vunpack.c.l.b16 %v72
    %v708 = vunpack.c.l.b16 %v73
    %v709 = vunpack.c.l.b16 %v74
    %v710 = vunpack.c.l.b16 %v75
    %v711 = vunpack.c.l.b16 %v76
    %v712 = vunpack.c.l.b16 %v77
    %v713 = vunpack.c.l.b16 %v78
    %v714 = vunpack.c.l.b16 %v79
    %v715 = vunpack.c.l.b16 %v80
    %v716 = vunpack.c.l.b16 %v81
    %v717 = vunpack.c.l.b16 %v82
    %v718 = vunpack.c.l.b16 %v83
    %v719 = vunpack.c.l.b16 %v84
    %v720 = vunpack.c.l.b16 %v85
    %v721 = vunpack.c.l.b16 %v86
    %v722 = vunpack.c.l.b16 %v87
    %v723 = vunpack.c.l.b16 %v88
    %v724 = vunpack.c.l.b16 %v89
    %v725 = vunpack.c.l.b16 %v90
    %v726 = vunpack.c.l.b16 %v91
    %v727 = vunpack.c.l.b16 %v92
    %v728 = vunpack.c.l.b16 %v93
    %v729 = vunpack.c.l.b16 %v94
    %v730 = vunpack.c.l.b16 %v95
    %v731 = vunpack.c.l.b16 %v96
    %v732 = vunpack.c.l.b16 %v97
    %v733 = vunpack.c.l.b16 %v98
    %v734 = vunpack.c.l.b16 %v99
    %v735 = vunpack.c.l.b16 %v100
    %v736 = vunpack.c.l.b16 %v101
    %v737 = vunpack.c.l.b16 %v102
    %v738 = vunpack.c.l.b16 %v103
    %v739 = vunpack.c.l.b16 %v104
    %v740 = vunpack.c.l.b16 %v105
    %v741 = vunpack.c.l.b16 %v106
    %v742 = vunpack.c.l.b16 %v107
    %v743 = vunpack.c.l.b16 %v108
    %v744 = vunpack.c.l.b16 %v109
    %v745 = vunpack.c.l.b16 %v110
    %v746 = vunpack.c.l.b16 %v111
    %v747 = vunpack.c.l.b16 %v112
    %v748 = vunpack.c.l.b16 %v113
    %v749 = vunpack.c.l.b16 %v114
    %v750 = vunpack.c.l.b16 %v115
    %v751 = vunpack.c.l.b16 %v116
    %v752 = vunpack.c.l.b16 %v117
    %v753 = vunpack.c.l.b16 %v118
    %v754 = vunpack.c.l.b16 %v119
    %v755 = vunpack.c.l.b16 %v120
    %v756 = vunpack.c.l.b16 %v121
    %v757 = vunpack.c.l.b16 %v122
    %v758 = vunpack.c.l.b16 %v123
    %v759 = vunpack.c.l.b16 %v124
    %v760 = vunpack.c.l.b16 %v125
    %v761 = vunpack.c.l.b16 %v126
    %v762 = vunpack.c.l.b16 %v127
    %v763 = vunpack.c.l.b16 %v128
    %v764 = vunpack.c.l.b16 %v129
    %v765 = vunpack.c.l.b16 %v130
    %v766 = vunpack.c.l.b16 %v131
    %v767 = vunpack.c.l.b16 %v132
    %v768 = vunpack.c.l.b16 %v133
    %v769 = vunpack.c.l.b16 %v134
    %v770 = vunpack.c.l.b16 %v135
    %v771 = vunpack.c.l.b16 %v136
    %v772 = vunpack.c.l.b16 %v137
    %v773 = vunpack.c.l.b16 %v138
    %v774 = vunpack.c.l.b16 %v139
    %v775 = vunpack.c.l.b16 %v140
    %v776 = vunpack.c.l.b16 %v141
    %v777 = vunpack.c.l.b16 %v142
    %v778 = vunpack.c.l.b16 %v143
    %v779 = vunpack.c.l.b16 %v144
    %v780 = vunpack.c.l.b16 %v145
    %v781 = vunpack.c.l.b16 %v146
    %v782 = vunpack.c.l.b16 %v147
    %v783 = vunpack.c.l.b16 %v148
    %v784 = vunpack.c.l.b16 %v149
    %v785 = vunpack.c.l.b16 %v150
    %v786 = vunpack.c.l.b16 %v151
    %v787 = vunpack.c.l.b16 %v152
    %v788 = vunpack.c.l.b16 %v153
    %v789 = vunpack.c.l.b16 %v154
    %v790 = vunpack.c.l.b16 %v155
    %v791 = vunpack.c.l.b16 %v156
    %v792 = vunpack.c.l.b16 %v157
    %v793 = vunpack.c.l.b16 %v158
    %v794 = vunpack.c.l.b16 %v159
    %v795 = vunpack.c.l.b16 %v160
    %v796 = vunpack.c.l.b16 %v161
    %v797 = vunpack.c.l.b16 %v162
    %v798 = vunpack.c.l.b16 %v163
    %v799 = vunpack.c.l.b16 %v164
    %v800 = vunpack.c.l.b16 %v165
    %v801 = vunpack.c.l.b16 %v166
    %v802 = vunpack.c.l.b16 %v167
    %v803 = vunpack.c.l.b16 %v168
    %v804 = vunpack.c.l.b16 %v169
    %v805 = vunpack.c.l.b16 %v170
    %v806 = vunpack.c.l.b16 %v171
    %v807 = vunpack.c.l.b16 %v172
    %v808 = vunpack.c.l.b16 %v173
    %v809 = vunpack.c.l.b16 %v174
    %v810 = vunpack.c.l.b16 %v175
    %v811 = vunpack.c.l.b16 %v176
    %v812 = vunpack.c.l.b16 %v177
    %v813 = vunpack.c.l.b16 %v178
    %v814 = vunpack.c.l.b16 %v179
    %v815 = vunpack.c.l.b16 %v180
    %v816 = vunpack.c.l.b16 %v181
    %v817 = vunpack.c.l.b16 %v182
    %v818 = vunpack.c.l.b16 %v183
    %v819 = vunpack.c.l.b16 %v184
    %v820 = vunpack.c.l.b16 %v185
    %v821 = vunpack.c.l.b16 %v186
    %v822 = vunpack.c.l.b16 %v187
    %v823 = vunpack.c.l.b16 %v188
    %v824 = vunpack.c.l.b16 %v189
    %v825 = vunpack.c.l.b16 %v190
    %v826 = vunpack.c.l.b16 %v191
    %v827 = vunpack.c.l.b16 %v192
    %v828 = vunpack.c.l.b16 %v193
    %v829 = vunpack.c.l.b16 %v194
    %v830 = vunpack.c.l.b16 %v195
    %v831 = vunpack.c.l.b16 %v196
    %v832 = vunpack.c.l.b16 %v197
    %v833 = vunpack.c.l.b16 %v198
    %v834 = vunpack.c.l.b16 %v199
    %v835 = vunpack.c.l.b16 %v200
    %v836 = vunpack.c.l.b16 %v201
    %v837 = vunpack.c.l.b16 %v202
    %v838 = vunpack.c.l.b16 %v203
    %v839 = vunpack.c.l.b16 %v204
    %v840 = vunpack.c.l.b16 %v205
    %v841 = vunpack.c.l.b16 %v206
    %v842 = vunpack.c.l.b16 %v207
    %v843 = vunpack.c.l.b16 %v208
    %v844 = vunpack.c.l.b16 %v209
    %v845 = vunpack.c.l.b16 %v210
    %v846 = vunpack.c.l.b16 %v211
    %v847 = vunpack.c.l.b16 %v212
    %v848 = vunpack.c.l.b16 %v213
    %v849 = vunpack.c.l.b16 %v214
    %v850 = vunpack.c.l.b16 %v215
    %v851 = vunpack.c.l.b16 %v216
    %v852 = vunpack.c.l.b16 %v217
    %v853 = vunpack.c.l.b16 %v218
    %v854 = vunpack.c.l.b16 %v219
    %v855 = vunpack.c.l.b16 %v220
    %v856 = vunpack.c.l.b16 %v221
    %v857 = vunpack.c.l.b16 %v222
    %v858 = vunpack.c.l.b16 %v223
    %v859 = vunpack.c.l.b16 %v224
    %v860 = vunpack.c.l.b16 %v225
    %v861 = vunpack.c.l.b16 %v226
    %v862 = vunpack.c.l.b16 %v227
    %v863 = vunpack.c.l.b16 %v228
    %v864 = vunpack.c.l.b16 %v229
    %v865 = vunpack.c.l.b16 %v230
    %v866 = vunpack.c.l.b16 %v231
    %v867 = vunpack.c.l.b16 %v232
    %v868 = vunpack.c.l.b16 %v233
    %v869 = vunpack.c.l.b16 %v234
    %v870 = vunpack.c.l.b16 %v235
    %v871 = vunpack.c.l.b16 %v236
    %v872 = vunpack.c.l.b16 %v237
    %v873 = vunpack.c.l.b16 %v238
    %v874 = vunpack.c.l.b16 %v239
    %v875 = vunpack.c.l.b16 %v240
    %v876 = vunpack.c.l.b16 %v241
    %v877 = vunpack.c.l.b16 %v242
    %v878 = vunpack.c.l.b16 %v243
    %v879 = vunpack.c.l.b16 %v244
    %v880 = vunpack.c.l.b16 %v245
    %v881 = vunpack.c.l.b16 %v246
    %v882 = vunpack.c.l.b16 %v247
    %v883 = vunpack.c.l.b16 %v248
    %v884 = vunpack.c.l.b16 %v249
    %v885 = vunpack.c.l.b16 %v250
    %v886 = vunpack.c.l.b16 %v251
    %v887 = vunpack.c.l.b16 %v252
    %v888 = vunpack.c.l.b16 %v253
    %v889 = vunpack.c.l.b16 %v254
    %v890 = vunpack.c.l.b16 %v255
    %v891 = vunpack.c.l.b16 %v256
    %v892 = vunpack.c.l.b16 %v257
    %v893 = vunpack.c.l.b16 %v258
    %v894 = vunpack.c.l.b16 %v259
    %v895 = vunpack.c.l.b16 %v260
    %v896 = vunpack.c.l.b16 %v261
    %v897 = vunpack.c.l.b16 %v262
    %v898 = vunpack.c.l.b16 %v263
    %v899 = vunpack.c.l.b16 %v264
    %v900 = vunpack.c.l.b16 %v265
    %v901 = vunpack.c.l.b16 %v266
    %v902 = vunpack.c.l.b16 %v267
    %v903 = vunpack.c.l.b16 %v268
    %v904 = vunpack.c.l.b16 %v269
    %v905 = vunpack.c.l.b16 %v270
    %v906 = vunpack.c.l.b16 %v271
    %v907 = vunpack.c.l.b16 %v272
    %v908 = vunpack.c.l.b16 %v273
    %v909 = vunpack.c.l.b16 %v274
    %v910 = vunpack.c.l.b16 %v275
    %v911 = vunpack.c.l.b16 %v276
    %v912 = vunpack.c.l.b16 %v277
    %v913 = vunpack.c.l.b16 %v278
    %v914 = vunpack.c.l.b16 %v279
    %v915 = vpack.c.b16 %v660, %v659
    %v916 = vpack.c.b16 %v662, %v661
    %v917 = vpack.c.b16 %v664, %v663
    %v918 = vpack.c.b16 %v666, %v665
    %v919 = vpack.c.b16 %v668, %v667
    %v920 = vpack.c.b16 %v670, %v669
    %v921 = vpack.c.b16 %v672, %v671
    %v922 = vpack.c.b16 %v674, %v673
    %v923 = vpack.c.b16 %v676, %v675
    %v924 = vpack.c.b16 %v678, %v677
    %v925 = vpack.c.b16 %v680, %v679
    %v926 = vpack.c.b16 %v682, %v681
    %v927 = vpack.c.b16 %v684, %v683
    %v928 = vpack.c.b16 %v686, %v685
    %v929 = vpack.c.b16 %v688, %v687
    %v930 = vpack.c.b16 %v690, %v689
    %v931 = vpack.c.b16 %v692, %v691
    %v932 = vpack.c.b16 %v694, %v693
    %v933 = vpack.c.b16 %v696, %v695
    %v934 = vpack.c.b16 %v698, %v697
    %v935 = vpack.c.b16 %v700, %v699
    %v936 = vpack.c.b16 %v702, %v701
    %v937 = vpack.c.b16 %v704, %v703
    %v938 = vpack.c.b16 %v706, %v705
    %v939 = vpack.c.b16 %v708, %v707
    %v940 = vpack.c.b16 %v710, %v709
    %v941 = vpack.c.b16 %v712, %v711
    %v942 = vpack.c.b16 %v714, %v713
    %v943 = vpack.c.b16 %v716, %v715
    %v944 = vpack.c.b16 %v718, %v717
    %v945 = vpack.c.b16 %v720, %v719
    %v946 = vpack.c.b16 %v722, %v721
    %v947 = vpack.c.b16 %v724, %v723
    %v948 = vpack.c.b16 %v726, %v725
    %v949 = vpack.c.b16 %v728, %v727
    %v950 = vpack.c.b16 %v730, %v729
    %v951 = vpack.c.b16 %v732, %v731
    %v952 = vpack.c.b16 %v734, %v733
    %v953 = vpack.c.b16 %v736, %v735
    %v954 = vpack.c.b16 %v738, %v737
    %v955 = vpack.c.b16 %v740, %v739
    %v956 = vpack.c.b16 %v742, %v741
    %v957 = vpack.c.b16 %v744, %v743
    %v958 = vpack.c.b16 %v746, %v745
    %v959 = vpack.c.b16 %v748, %v747
    %v960 = vpack.c.b16 %v750, %v749
    %v961 = vpack.c.b16 %v752, %v751
    %v962 = vpack.c.b16 %v754, %v753
    %v963 = vpack.c.b16 %v756, %v755
    %v964 = vpack.c.b16 %v758, %v757
    %v965 = vpack.c.b16 %v760, %v759
    %v966 = vpack.c.b16 %v762, %v761
    %v967 = vpack.c.b16 %v764, %v763
    %v968 = vpack.c.b16 %v766, %v765
    %v969 = vpack.c.b16 %v768, %v767
    %v970 = vpack.c.b16 %v770, %v769
    %v971 = vpack.c.b16 %v772, %v771
    %v972 = vpack.c.b16 %v774, %v773
    %v973 = vpack.c.b16 %v776, %v775
    %v974 = vpack.c.b16 %v778, %v777
    %v975 = vpack.c.b16 %v780, %v779
    %v976 = vpack.c.b16 %v782, %v781
    %v977 = vpack.c.b16 %v784, %v783
    %v978 = vpack.c.b16 %v786, %v785
    %v979 = vpack.c.b16 %v788, %v787
    %v980 = vpack.c.b16 %v790, %v789
    %v981 = vpack.c.b16 %v792, %v791
    %v982 = vpack.c.b16 %v794, %v793
    %v983 = vpack.c.b16 %v796, %v795
    %v984 = vpack.c.b16 %v798, %v797
    %v985 = vpack.c.b16 %v800, %v799
    %v986 = vpack.c.b16 %v802, %v801
    %v987 = vpack.c.b16 %v804, %v803
    %v988 = vpack.c.b16 %v806, %v805
    %v989 = vpack.c.b16 %v808, %v807
    %v990 = vpack.c.b16 %v810, %v809
    %v991 = vpack.c.b16 %v812, %v811
    %v992 = vpack.c.b16 %v814, %v813
    %v993 = vpack.c.b16 %v816, %v815
    %v994 = vpack.c.b16 %v818, %v817
    %v995 = vpack.c.b16 %v820, %v819
    %v996 = vpack.c.b16 %v822, %v821
    %v997 = vpack.c.b16 %v824, %v823
    %v998 = vpack.c.b16 %v826, %v825
    %v999 = vpack.c.b16 %v828, %v827
    %v1000 = vpack.c.b16 %v830, %v829
    %v1001 = vpack.c.b16 %v832, %v831
    %v1002 = vpack.c.b16 %v834, %v833
    %v1003 = vpack.c.b16 %v836, %v835
    %v1004 = vpack.c.b16 %v838, %v837
    %v1005 = vpack.c.b16 %v840, %v839
    %v1006 = vpack.c.b16 %v842, %v841
    %v1007 = vpack.c.b16 %v844, %v843
    %v1008 = vpack.c.b16 %v846, %v845
    %v1009 = vpack.c.b16 %v848, %v847
    %v1010 = vpack.c.b16 %v850, %v849
    %v1011 = vpack.c.b16 %v852, %v851
    %v1012 = vpack.c.b16 %v854, %v853
    %v1013 = vpack.c.b16 %v856, %v855
    %v1014 = vpack.c.b16 %v858, %v857
    %v1015 = vpack.c.b16 %v860, %v859
    %v1016 = vpack.c.b16 %v862, %v861
    %v1017 = vpack.c.b16 %v864, %v863
    %v1018 = vpack.c.b16 %v866, %v865
    %v1019 = vpack.c.b16 %v868, %v867
    %v1020 = vpack.c.b16 %v870, %v869
    %v1021 = vpack.c.b16 %v872, %v871
    %v1022 = vpack.c.b16 %v874, %v873
    %v1023 = vpack.c.b16 %v876, %v875
    %v1024 = vpack.c.b16 %v878, %v877
    %v1025 = vpack.c.b16 %v880, %v879
    %v1026 = vpack.c.b16 %v882, %v881
    %v1027 = vpack.c.b16 %v884, %v883
    %v1028 = vpack.c.b16 %v886, %v885
    %v1029 = vpack.c.b16 %v888, %v887
    %v1030 = vpack.c.b16 %v890, %v889
    %v1031 = vpack.c.b16 %v892, %v891
    %v1032 = vpack.c.b16 %v894, %v893
    %v1033 = vpack.c.b16 %v896, %v895
    %v1034 = vpack.c.b16 %v898, %v897
    %v1035 = vpack.c.b16 %v900, %v899
    %v1036 = vpack.c.b16 %v902, %v901
    %v1037 = vpack.c.b16 %v904, %v903
    %v1038 = vpack.c.b16 %v906, %v905
    %v1039 = vpack.c.b16 %v908, %v907
    %v1040 = vpack.c.b16 %v910, %v909
    %v1041 = vpack.c.b16 %v912, %v911
    %v1042 = vpack.c.b16 %v914, %v913
    %1171 = vmatprep.subr.bf16.mxu0 0
    %1172 = vmatpush1.bf16.msra.mxu0 %v915
    %1173 = vmatprep.subr.bf16.mxu0 0
    %1174 = vmatpush1.bf16.msra.mxu0 %v916
    %1175 = vmatprep.subr.bf16.mxu0 0
    %1176 = vmatpush1.bf16.msra.mxu0 %v917
    %1177 = vmatprep.subr.bf16.mxu0 0
    %1178 = vmatpush1.bf16.msra.mxu0 %v918
    %1179 = vmatprep.subr.bf16.mxu0 0
    %1180 = vmatpush1.bf16.msra.mxu0 %v919
    %1181 = vmatprep.subr.bf16.mxu0 0
    %1182 = vmatpush1.bf16.msra.mxu0 %v920
    %1183 = vmatprep.subr.bf16.mxu0 0
    %1184 = vmatpush1.bf16.msra.mxu0 %v921
    %1185 = vmatprep.subr.bf16.mxu0 0
    %1186 = vmatpush1.bf16.msra.mxu0 %v922
    %1187 = vmatprep.subr.bf16.mxu0 0
    %1188 = vmatpush1.bf16.msra.mxu0 %v923
    %1189 = vmatprep.subr.bf16.mxu0 0
    %1190 = vmatpush1.bf16.msra.mxu0 %v924
    %1191 = vmatprep.subr.bf16.mxu0 0
    %1192 = vmatpush1.bf16.msra.mxu0 %v925
    %1193 = vmatprep.subr.bf16.mxu0 0
    %1194 = vmatpush1.bf16.msra.mxu0 %v926
    %1195 = vmatprep.subr.bf16.mxu0 0
    %1196 = vmatpush1.bf16.msra.mxu0 %v927
    %1197 = vmatprep.subr.bf16.mxu0 0
    %1198 = vmatpush1.bf16.msra.mxu0 %v928
    %1199 = vmatprep.subr.bf16.mxu0 0
    %1200 = vmatpush1.bf16.msra.mxu0 %v929
    %1201 = vmatprep.subr.bf16.mxu0 0
    %1202 = vmatpush1.bf16.msra.mxu0 %v930
    %1203 = vmatprep.mubr.bf16.mxu0 %v326
    %1204 = vmatmul.mubr.bf16.gmra.mrb[0].mxu0 %v312
    %v1205 = vpop.f32.mrb[0].mxu0
    %v1206 = vadd.f32 %v285, %v1205
    %v1207 = vpop.f32.mrb[0].mxu0
    %v1208 = vpop.f32.mrb[0].mxu0
    %v1209 = vpop.f32.mrb[0].mxu0
    %1210 = vdwg.mxu0
    %1211 = vmatprep.subr.bf16.mxu0 0
    %1212 = vmatpush1.bf16.msra.mxu0 %v931
    %1213 = vmatprep.subr.bf16.mxu0 0
    %1214 = vmatpush1.bf16.msra.mxu0 %v932
    %1215 = vmatprep.subr.bf16.mxu0 0
    %1216 = vmatpush1.bf16.msra.mxu0 %v933
    %1217 = vmatprep.subr.bf16.mxu0 0
    %1218 = vmatpush1.bf16.msra.mxu0 %v934
    %1219 = vmatprep.subr.bf16.mxu0 0
    %1220 = vmatpush1.bf16.msra.mxu0 %v935
    %1221 = vmatprep.subr.bf16.mxu0 0
    %1222 = vmatpush1.bf16.msra.mxu0 %v936
    %1223 = vmatprep.subr.bf16.mxu0 0
    %1224 = vmatpush1.bf16.msra.mxu0 %v937
    %1225 = vmatprep.subr.bf16.mxu0 0
    %1226 = vmatpush1.bf16.msra.mxu0 %v938
    %1227 = vmatprep.subr.bf16.mxu0 0
    %1228 = vmatpush1.bf16.msra.mxu0 %v939
    %1229 = vmatprep.subr.bf16.mxu0 0
    %1230 = vmatpush1.bf16.msra.mxu0 %v940
    %1231 = vmatprep.subr.bf16.mxu0 0
    %1232 = vmatpush1.bf16.msra.mxu0 %v941
    %1233 = vmatprep.subr.bf16.mxu0 0
    %1234 = vmatpush1.bf16.msra.mxu0 %v942
    %1235 = vmatprep.subr.bf16.mxu0 0
    %1236 = vmatpush1.bf16.msra.mxu0 %v943
    %1237 = vmatprep.subr.bf16.mxu0 0
    %1238 = vmatpush1.bf16.msra.mxu0 %v944
    %1239 = vmatprep.subr.bf16.mxu0 0
    %1240 = vmatpush1.bf16.msra.mxu0 %v945
    %1241 = vmatprep.subr.bf16.mxu0 0
    %1242 = vmatpush1.bf16.msra.mxu0 %v946
    %1243 = vmatprep.mubr.bf16.mxu0 %v336
    %1244 = vmatmul.mubr.bf16.gmra.mrb[0].mxu0 %v334
    %v1245 = vpop.f32.mrb[0].mxu0
    %v1246 = vadd.f32 %v1206, %v1245
    %v1247 = vpop.f32.mrb[0].mxu0
    %v1248 = vpop.f32.mrb[0].mxu0
    %v1249 = vpop.f32.mrb[0].mxu0
    %1250 = vdwg.mxu0
    %1251 = vmatprep.subr.bf16.mxu0 0
    %1252 = vmatpush1.bf16.msra.mxu0 %v947
    %1253 = vmatprep.subr.bf16.mxu0 0
    %1254 = vmatpush1.bf16.msra.mxu0 %v948
    %1255 = vmatprep.subr.bf16.mxu0 0
    %1256 = vmatpush1.bf16.msra.mxu0 %v949
    %1257 = vmatprep.subr.bf16.mxu0 0
    %1258 = vmatpush1.bf16.msra.mxu0 %v950
    %1259 = vmatprep.subr.bf16.mxu0 0
    %1260 = vmatpush1.bf16.msra.mxu0 %v951
    %1261 = vmatprep.subr.bf16.mxu0 0
    %1262 = vmatpush1.bf16.msra.mxu0 %v952
    %1263 = vmatprep.subr.bf16.mxu0 0
    %1264 = vmatpush1.bf16.msra.mxu0 %v953
    %1265 = vmatprep.subr.bf16.mxu0 0
    %1266 = vmatpush1.bf16.msra.mxu0 %v954
    %1267 = vmatprep.subr.bf16.mxu0 0
    %1268 = vmatpush1.bf16.msra.mxu0 %v955
    %1269 = vmatprep.subr.bf16.mxu0 0
    %1270 = vmatpush1.bf16.msra.mxu0 %v956
    %1271 = vmatprep.subr.bf16.mxu0 0
    %1272 = vmatpush1.bf16.msra.mxu0 %v957
    %1273 = vmatprep.subr.bf16.mxu0 0
    %1274 = vmatpush1.bf16.msra.mxu0 %v958
    %1275 = vmatprep.subr.bf16.mxu0 0
    %1276 = vmatpush1.bf16.msra.mxu0 %v959
    %1277 = vmatprep.subr.bf16.mxu0 0
    %1278 = vmatpush1.bf16.msra.mxu0 %v960
    %1279 = vmatprep.subr.bf16.mxu0 0
    %1280 = vmatpush1.bf16.msra.mxu0 %v961
    %1281 = vmatprep.subr.bf16.mxu0 0
    %1282 = vmatpush1.bf16.msra.mxu0 %v962
    %1283 = vmatprep.mubr.bf16.mxu0 %v333
    %1284 = vmatmul.mubr.bf16.gmra.mrb[0].mxu0 %v319
    %v1285 = vpop.f32.mrb[0].mxu0
    %v1286 = vadd.f32 %v1246, %v1285
    %v1287 = vpop.f32.mrb[0].mxu0
    %v1288 = vpop.f32.mrb[0].mxu0
    %v1289 = vpop.f32.mrb[0].mxu0
    %1290 = vdwg.mxu0
    %1291 = vmatprep.subr.bf16.mxu0 0
    %1292 = vmatpush1.bf16.msra.mxu0 %v963
    %1293 = vmatprep.subr.bf16.mxu0 0
    %1294 = vmatpush1.bf16.msra.mxu0 %v964
    %1295 = vmatprep.subr.bf16.mxu0 0
    %1296 = vmatpush1.bf16.msra.mxu0 %v965
    %1297 = vmatprep.subr.bf16.mxu0 0
    %1298 = vmatpush1.bf16.msra.mxu0 %v966
    %1299 = vmatprep.subr.bf16.mxu0 0
    %1300 = vmatpush1.bf16.msra.mxu0 %v967
    %1301 = vmatprep.subr.bf16.mxu0 0
    %1302 = vmatpush1.bf16.msra.mxu0 %v968
    %1303 = vmatprep.subr.bf16.mxu0 0
    %1304 = vmatpush1.bf16.msra.mxu0 %v969
    %1305 = vmatprep.subr.bf16.mxu0 0
    %1306 = vmatpush1.bf16.msra.mxu0 %v970
    %1307 = vmatprep.subr.bf16.mxu0 0
    %1308 = vmatpush1.bf16.msra.mxu0 %v971
    %1309 = vmatprep.subr.bf16.mxu0 0
    %1310 = vmatpush1.bf16.msra.mxu0 %v972
    %1311 = vmatprep.subr.bf16.mxu0 0
    %1312 = vmatpush1.bf16.msra.mxu0 %v973
    %1313 = vmatprep.subr.bf16.mxu0 0
    %1314 = vmatpush1.bf16.msra.mxu0 %v974
    %1315 = vmatprep.subr.bf16.mxu0 0
    %1316 = vmatpush1.bf16.msra.mxu0 %v975
    %1317 = vmatprep.subr.bf16.mxu0 0
    %1318 = vmatpush1.bf16.msra.mxu0 %v976
    %1319 = vmatprep.subr.bf16.mxu0 0
    %1320 = vmatpush1.bf16.msra.mxu0 %v977
    %1321 = vmatprep.subr.bf16.mxu0 0
    %1322 = vmatpush1.bf16.msra.mxu0 %v978
    %1323 = vmatprep.mubr.bf16.mxu0 %v337
    %1324 = vmatmul.mubr.bf16.gmra.mrb[0].mxu0 %v335
    %v1325 = vpop.f32.mrb[0].mxu0
    %v1326 = vadd.f32 %v1286, %v1325
    %v1327 = vpop.f32.mrb[0].mxu0
    %v1328 = vpop.f32.mrb[0].mxu0
    %v1329 = vpop.f32.mrb[0].mxu0
    %1330 = vdwg.mxu0
    %1331 = vmatprep.subr.bf16.mxu0 0
    %1332 = vmatpush1.bf16.msra.mxu0 %v979
    %1333 = vmatprep.subr.bf16.mxu0 0
    %1334 = vmatpush1.bf16.msra.mxu0 %v980
    %1335 = vmatprep.subr.bf16.mxu0 0
    %1336 = vmatpush1.bf16.msra.mxu0 %v981
    %1337 = vmatprep.subr.bf16.mxu0 0
    %1338 = vmatpush1.bf16.msra.mxu0 %v982
    %1339 = vmatprep.subr.bf16.mxu0 0
    %1340 = vmatpush1.bf16.msra.mxu0 %v983
    %1341 = vmatprep.subr.bf16.mxu0 0
    %1342 = vmatpush1.bf16.msra.mxu0 %v984
    %1343 = vmatprep.subr.bf16.mxu0 0
    %1344 = vmatpush1.bf16.msra.mxu0 %v985
    %1345 = vmatprep.subr.bf16.mxu0 0
    %1346 = vmatpush1.bf16.msra.mxu0 %v986
    %1347 = vmatprep.subr.bf16.mxu0 0
    %1348 = vmatpush1.bf16.msra.mxu0 %v987
    %1349 = vmatprep.subr.bf16.mxu0 0
    %1350 = vmatpush1.bf16.msra.mxu0 %v988
    %1351 = vmatprep.subr.bf16.mxu0 0
    %1352 = vmatpush1.bf16.msra.mxu0 %v989
    %1353 = vmatprep.subr.bf16.mxu0 0
    %1354 = vmatpush1.bf16.msra.mxu0 %v990
    %1355 = vmatprep.subr.bf16.mxu0 0
    %1356 = vmatpush1.bf16.msra.mxu0 %v991
    %1357 = vmatprep.subr.bf16.mxu0 0
    %1358 = vmatpush1.bf16.msra.mxu0 %v992
    %1359 = vmatprep.subr.bf16.mxu0 0
    %1360 = vmatpush1.bf16.msra.mxu0 %v993
    %1361 = vmatprep.subr.bf16.mxu0 0
    %1362 = vmatpush1.bf16.msra.mxu0 %v994
    %1363 = vmatprep.mubr.bf16.mxu0 %v375
    %1364 = vmatmul.mubr.bf16.gmra.mrb[0].mxu0 %v361
    %v1365 = vpop.f32.mrb[0].mxu0
    %v1366 = vadd.f32 %v1326, %v1365
    %v1367 = vpop.f32.mrb[0].mxu0
    %v1368 = vpop.f32.mrb[0].mxu0
    %v1369 = vpop.f32.mrb[0].mxu0
    %1370 = vdwg.mxu0
    %1371 = vmatprep.subr.bf16.mxu0 0
    %1372 = vmatpush1.bf16.msra.mxu0 %v995
    %1373 = vmatprep.subr.bf16.mxu0 0
    %1374 = vmatpush1.bf16.msra.mxu0 %v996
    %1375 = vmatprep.subr.bf16.mxu0 0
    %1376 = vmatpush1.bf16.msra.mxu0 %v997
    %1377 = vmatprep.subr.bf16.mxu0 0
    %1378 = vmatpush1.bf16.msra.mxu0 %v998
    %1379 = vmatprep.subr.bf16.mxu0 0
    %1380 = vmatpush1.bf16.msra.mxu0 %v999
    %1381 = vmatprep.subr.bf16.mxu0 0
    %1382 = vmatpush1.bf16.msra.mxu0 %v1000
    %1383 = vmatprep.subr.bf16.mxu0 0
    %1384 = vmatpush1.bf16.msra.mxu0 %v1001
    %1385 = vmatprep.subr.bf16.mxu0 0
    %1386 = vmatpush1.bf16.msra.mxu0 %v1002
    %1387 = vmatprep.subr.bf16.mxu0 0
    %1388 = vmatpush1.bf16.msra.mxu0 %v1003
    %1389 = vmatprep.subr.bf16.mxu0 0
    %1390 = vmatpush1.bf16.msra.mxu0 %v1004
    %1391 = vmatprep.subr.bf16.mxu0 0
    %1392 = vmatpush1.bf16.msra.mxu0 %v1005
    %1393 = vmatprep.subr.bf16.mxu0 0
    %1394 = vmatpush1.bf16.msra.mxu0 %v1006
    %1395 = vmatprep.subr.bf16.mxu0 0
    %1396 = vmatpush1.bf16.msra.mxu0 %v1007
    %1397 = vmatprep.subr.bf16.mxu0 0
    %1398 = vmatpush1.bf16.msra.mxu0 %v1008
    %1399 = vmatprep.subr.bf16.mxu0 0
    %1400 = vmatpush1.bf16.msra.mxu0 %v1009
    %1401 = vmatprep.subr.bf16.mxu0 0
    %1402 = vmatpush1.bf16.msra.mxu0 %v1010
    %1403 = vmatprep.mubr.bf16.mxu0 %v385
    %1404 = vmatmul.mubr.bf16.gmra.mrb[0].mxu0 %v383
    %v1405 = vpop.f32.mrb[0].mxu0
    %v1406 = vadd.f32 %v1366, %v1405
    %v1407 = vpop.f32.mrb[0].mxu0
    %v1408 = vpop.f32.mrb[0].mxu0
    %v1409 = vpop.f32.mrb[0].mxu0
    %1410 = vdwg.mxu0
    %1411 = vmatprep.subr.bf16.mxu0 0
    %1412 = vmatpush1.bf16.msra.mxu0 %v1011
    %1413 = vmatprep.subr.bf16.mxu0 0
    %1414 = vmatpush1.bf16.msra.mxu0 %v1012
    %1415 = vmatprep.subr.bf16.mxu0 0
    %1416 = vmatpush1.bf16.msra.mxu0 %v1013
    %1417 = vmatprep.subr.bf16.mxu0 0
    %1418 = vmatpush1.bf16.msra.mxu0 %v1014
    %1419 = vmatprep.subr.bf16.mxu0 0
    %1420 = vmatpush1.bf16.msra.mxu0 %v1015
    %1421 = vmatprep.subr.bf16.mxu0 0
    %1422 = vmatpush1.bf16.msra.mxu0 %v1016
    %1423 = vmatprep.subr.bf16.mxu0 0
    %1424 = vmatpush1.bf16.msra.mxu0 %v1017
    %1425 = vmatprep.subr.bf16.mxu0 0
    %1426 = vmatpush1.bf16.msra.mxu0 %v1018
    %1427 = vmatprep.subr.bf16.mxu0 0
    %1428 = vmatpush1.bf16.msra.mxu0 %v1019
    %1429 = vmatprep.subr.bf16.mxu0 0
    %1430 = vmatpush1.bf16.msra.mxu0 %v1020
    %1431 = vmatprep.subr.bf16.mxu0 0
    %1432 = vmatpush1.bf16.msra.mxu0 %v1021
    %1433 = vmatprep.subr.bf16.mxu0 0
    %1434 = vmatpush1.bf16.msra.mxu0 %v1022
    %1435 = vmatprep.subr.bf16.mxu0 0
    %1436 = vmatpush1.bf16.msra.mxu0 %v1023
    %1437 = vmatprep.subr.bf16.mxu0 0
    %1438 = vmatpush1.bf16.msra.mxu0 %v1024
    %1439 = vmatprep.subr.bf16.mxu0 0
    %1440 = vmatpush1.bf16.msra.mxu0 %v1025
    %1441 = vmatprep.subr.bf16.mxu0 0
    %1442 = vmatpush1.bf16.msra.mxu0 %v1026
    %1443 = vmatprep.mubr.bf16.mxu0 %v382
    %1444 = vmatmul.mubr.bf16.gmra.mrb[0].mxu0 %v368
    %v1445 = vpop.f32.mrb[0].mxu0
    %v1446 = vadd.f32 %v1406, %v1445
    %v1447 = vpop.f32.mrb[0].mxu0
    %v1448 = vpop.f32.mrb[0].mxu0
    %v1449 = vpop.f32.mrb[0].mxu0
    %1450 = vdwg.mxu0
    %1451 = vmatprep.subr.bf16.mxu0 0
    %1452 = vmatpush1.bf16.msra.mxu0 %v1027
    %1453 = vmatprep.subr.bf16.mxu0 0
    %1454 = vmatpush1.bf16.msra.mxu0 %v1028
    %1455 = vmatprep.subr.bf16.mxu0 0
    %1456 = vmatpush1.bf16.msra.mxu0 %v1029
    %1457 = vmatprep.subr.bf16.mxu0 0
    %1458 = vmatpush1.bf16.msra.mxu0 %v1030
    %1459 = vmatprep.subr.bf16.mxu0 0
    %1460 = vmatpush1.bf16.msra.mxu0 %v1031
    %1461 = vmatprep.subr.bf16.mxu0 0
    %1462 = vmatpush1.bf16.msra.mxu0 %v1032
    %1463 = vmatprep.subr.bf16.mxu0 0
    %1464 = vmatpush1.bf16.msra.mxu0 %v1033
    %1465 = vmatprep.subr.bf16.mxu0 0
    %1466 = vmatpush1.bf16.msra.mxu0 %v1034
    %1467 = vmatprep.subr.bf16.mxu0 0
    %1468 = vmatpush1.bf16.msra.mxu0 %v1035
    %1469 = vmatprep.subr.bf16.mxu0 0
    %1470 = vmatpush1.bf16.msra.mxu0 %v1036
    %1471 = vmatprep.subr.bf16.mxu0 0
    %1472 = vmatpush1.bf16.msra.mxu0 %v1037
    %1473 = vmatprep.subr.bf16.mxu0 0
    %1474 = vmatpush1.bf16.msra.mxu0 %v1038
    %1475 = vmatprep.subr.bf16.mxu0 0
    %1476 = vmatpush1.bf16.msra.mxu0 %v1039
    %1477 = vmatprep.subr.bf16.mxu0 0
    %1478 = vmatpush1.bf16.msra.mxu0 %v1040
    %1479 = vmatprep.subr.bf16.mxu0 0
    %1480 = vmatpush1.bf16.msra.mxu0 %v1041
    %1481 = vmatprep.subr.bf16.mxu0 0
    %1482 = vmatpush1.bf16.msra.mxu0 %v1042
    %1483 = vmatprep.mubr.bf16.mxu0 %v386
    %1484 = vmatmul.mubr.bf16.gmra.mrb[0].mxu0 %v384
    %v1485 = vpop.f32.mrb[0].mxu0
    %v1486 = vadd.f32 %v1446, %v1485
    %v1487 = vpop.f32.mrb[0].mxu0
    %v1488 = vpop.f32.mrb[0].mxu0
    %v1489 = vpop.f32.mrb[0].mxu0
    %1490 = vdwg.mxu0
    %v1491 = vmax.f32 %v1486, 0.0
    %v1492 = vpack.c.bf16 %v1491, %v1491
    %v1493 = vld [vmem:[%s3] sm:$0xf]
    %v1494 = vld [vmem:[%s3 + $0x4] sm:$0xf]
    %v1495 = vld [vmem:[%s3 + $0x8] sm:$0xf]
    %v1496 = vld [vmem:[%s3 + $0xc] sm:$0xf]
    %v1497 = vld [vmem:[%s3 + $0x10] sm:$0xf]
    %v1498 = vld [vmem:[%s3 + $0x14] sm:$0xf]
    %v1499 = vld [vmem:[%s3 + $0x18] sm:$0xf]
    %v1500 = vld [vmem:[%s3 + $0x1c] sm:$0xf]
    %v1501 = vld [vmem:[%s3 + $0x20] sm:$0xf]
    %v1502 = vld [vmem:[%s3 + $0x24] sm:$0xf]
    %v1503 = vld [vmem:[%s3 + $0x28] sm:$0xf]
    %v1504 = vld [vmem:[%s3 + $0x2c] sm:$0xf]
    %v1505 = vld [vmem:[%s3 + $0x30] sm:$0xf]
    %v1506 = vld [vmem:[%s3 + $0x34] sm:$0xf]
    %v1507 = vld [vmem:[%s3 + $0x38] sm:$0xf]
    %v1508 = vld [vmem:[%s3 + $0x3c] sm:$0xf]
    %v1509 = vld [vmem:[%s4] sm:$0x1]
    %v1511 = vlaneseq
    %v1512 = vshrl.u32 %v1511, 7
    %v1513 = vsub.s32 0, %v1512
    %v1514 = vrot.slane %v1509, %v1513
    %v1532 = vunpack.c.l.b16 %v1493
    %v1533 = vunpack.c.l.b16 %v1494
    %v1534 = vunpack.c.l.b16 %v1495
    %v1535 = vunpack.c.l.b16 %v1496
    %v1536 = vunpack.c.l.b16 %v1497
    %v1537 = vunpack.c.l.b16 %v1498
    %v1538 = vunpack.c.l.b16 %v1499
    %v1539 = vunpack.c.l.b16 %v1500
    %v1540 = vunpack.c.l.b16 %v1501
    %v1541 = vunpack.c.l.b16 %v1502
    %v1542 = vunpack.c.l.b16 %v1503
    %v1543 = vunpack.c.l.b16 %v1504
    %v1544 = vunpack.c.l.b16 %v1505
    %v1545 = vunpack.c.l.b16 %v1506
    %v1546 = vunpack.c.l.b16 %v1507
    %v1547 = vunpack.c.l.b16 %v1508
    %v1548 = vpack.c.b16 %v1533, %v1532
    %v1549 = vpack.c.b16 %v1535, %v1534
    %v1550 = vpack.c.b16 %v1537, %v1536
    %v1551 = vpack.c.b16 %v1539, %v1538
    %v1552 = vpack.c.b16 %v1541, %v1540
    %v1553 = vpack.c.b16 %v1543, %v1542
    %v1554 = vpack.c.b16 %v1545, %v1544
    %v1555 = vpack.c.b16 %v1547, %v1546
    %1564 = vmatprep.subr.bf16.mxu0 0
    %1565 = vmatpush1.bf16.msra.mxu0 %v1548
    %1566 = vmatprep.subr.bf16.mxu0 0
    %1567 = vmatpush1.bf16.msra.mxu0 %v1549
    %1568 = vmatprep.subr.bf16.mxu0 0
    %1569 = vmatpush1.bf16.msra.mxu0 %v1550
    %1570 = vmatprep.subr.bf16.mxu0 0
    %1571 = vmatpush1.bf16.msra.mxu0 %v1551
    %1572 = vmatprep.subr.bf16.mxu0 0
    %1573 = vmatpush1.bf16.msra.mxu0 %v1552
    %1574 = vmatprep.subr.bf16.mxu0 0
    %1575 = vmatpush1.bf16.msra.mxu0 %v1553
    %1576 = vmatprep.subr.bf16.mxu0 0
    %1577 = vmatpush1.bf16.msra.mxu0 %v1554
    %1578 = vmatprep.subr.bf16.mxu0 0
    %1579 = vmatpush1.bf16.msra.mxu0 %v1555
    %1580 = vmatprep.subr.bf16.mxu0 0
    %1581 = vmatpush1.bf16.msra.mxu0 0
    %1582 = vmatprep.subr.bf16.mxu0 0
    %1583 = vmatpush1.bf16.msra.mxu0 0
    %1584 = vmatprep.subr.bf16.mxu0 0
    %1585 = vmatpush1.bf16.msra.mxu0 0
    %1586 = vmatprep.subr.bf16.mxu0 0
    %1587 = vmatpush1.bf16.msra.mxu0 0
    %1588 = vmatprep.subr.bf16.mxu0 0
    %1589 = vmatpush1.bf16.msra.mxu0 0
    %1590 = vmatprep.subr.bf16.mxu0 0
    %1591 = vmatpush1.bf16.msra.mxu0 0
    %1592 = vmatprep.subr.bf16.mxu0 0
    %1593 = vmatpush1.bf16.msra.mxu0 0
    %1594 = vmatprep.subr.bf16.mxu0 0
    %1595 = vmatpush1.bf16.msra.mxu0 0
    %1596 = vmatprep.mubr.bf16.mxu0 0
    %1597 = vmatmul.mubr.bf16.gmra.mrb[0].mxu0 %v1492
    %v1598 = vpop.f32.mrb[0].mxu0
    %v1599 = vadd.f32 %v1514, %v1598
    %v1600 = vpop.f32.mrb[0].mxu0
    %v1601 = vpop.f32.mrb[0].mxu0
    %v1602 = vpop.f32.mrb[0].mxu0
    %1603 = vdwg.mxu0
    %vm1604 = vcmask 74752
    %1605 = vst.msk [vmem:[#allocation2] sm:$0x3] %vm1604, %v1599
    // Predicated region
    $region22: #{forward.11} parent=1 // pred_check
      _
    $region23: #{forward.11} parent=1 // pred_check_branch
      %1607 = sbr.rel (0) target = $region25
    $region24: #{forward.11} parent=1 // pred_region
      %s1609 = ssub.s32 32, 32
      %1610 = vsyncadd [#allocation3], %s1609
      %s1612 = sshll.u32 [#allocation2], 4
      %s1613 = int_to_ptr.vmem [resolvable:$true] %s1612
      %1615 = dma.vmem_to_hbm [thread:$0]  %s1613, 32, %s5, [#allocation3]
    $region25: #{forward.11} parent=1 // pred_fallthru
      _
    // Predicated region
    $region26: #{forward.11} parent=1 // pred_check
      _
    $region27: #{forward.11} parent=1 // pred_check_branch
      %1617 = sbr.rel (0) target = $region29
    $region28: #{forward.11} parent=1 // pred_region
      %1618 = dma.done [#allocation3], 32
    $region29: #{forward.11} parent=1 // pred_fallthru
      _
    %1619 = vsyncpa [#allocation3], 1

</llo_original>
